<compile_context>
chip_gen: v6e
topology: v6e:2x2x1
jax: 0.10.0
libtpu: 0.0.40
codegen_flags: <defaults>
</compile_context>

<pallas_src>
import functools

import jax
import jax.numpy as jnp
from jax.experimental import pallas as pl
from jax.experimental.pallas import tpu as pltpu

_K = 3  # every Conv3d / ConvTranspose3d in VNet uses kernel_size=3


def _round_up(x, m):
    return (x + m - 1) // m * m


# ---------------------------------------------------------------------------
# Pallas GEMM kernels:  o = (relu)(W @ colsT + bias)
#   Regular path :  w (Coutp, Kp) bf16 resident, cols (Kp, tM) bf16 streamed.
#   Phase path   :  leading grid dim selects one of the 8 sub-pixel phases.
# Accumulation / bias / ReLU are f32; the store casts to o_ref.dtype (bf16 for
# intermediate layers, f32 for the network output).
# ---------------------------------------------------------------------------

def _gemm_bias_kernel(w_ref, cols_ref, bias_ref, o_ref, *, apply_relu):
    acc = jnp.dot(w_ref[...], cols_ref[...], preferred_element_type=jnp.float32)
    out = acc + bias_ref[...]                 # (Coutp, 1) broadcasts along lanes
    if apply_relu:
        out = jnp.maximum(out, 0.0)
    o_ref[...] = out.astype(o_ref.dtype)


def _phase_gemm_kernel(w_ref, cols_ref, bias_ref, o_ref, *, apply_relu):
    acc = jnp.dot(w_ref[0], cols_ref[0], preferred_element_type=jnp.float32)
    out = acc + bias_ref[...]
    if apply_relu:
        out = jnp.maximum(out, 0.0)
    o_ref[0] = out.astype(o_ref.dtype)


def _pick_tile_m(M, Kp):
    """M tile: >= 2 blocks when M >= 256 (v7x megacore), capped so the
    double-buffered bf16 cols block stays well under v5e's 16 MiB scoped VMEM."""
    Mp128 = _round_up(M, 128)
    if Mp128 <= 128:
        return 128
    tM = min(2048, _round_up(Mp128 // 2, 128))
    while tM > 128 and 4 * Kp * tM > 8 * 1024 * 1024:   # 2 bufs x bf16 cols
        tM = max(128, (tM // 2) // 128 * 128)
    return tM


def gemm_bias_relu(wm, colsT, bias, *, relu, out_dtype):
    """(relu)(wm @ colsT + bias); wm:(Coutp,Kp) bf16, colsT:(K,M) bf16."""
    Coutp, Kp = wm.shape
    K, M = colsT.shape
    tM = _pick_tile_m(M, Kp)
    Mp = _round_up(M, tM)
    if Kp != K or Mp != M:          # skip the pad copy whenever already aligned
        colsT = jnp.pad(colsT, ((0, Kp - K), (0, Mp - M)))
    return pl.pallas_call(
        functools.partial(_gemm_bias_kernel, apply_relu=relu),
        out_shape=jax.ShapeDtypeStruct((Coutp, Mp), out_dtype),
        grid_spec=pltpu.PrefetchScalarGridSpec(
            num_scalar_prefetch=0,
            grid=(Mp // tM,),                                  # 1-D grid over M
            in_specs=[
                pl.BlockSpec((Coutp, Kp), lambda i: (0, 0)),   # resident weights
                pl.BlockSpec((Kp, tM), lambda i: (0, i)),      # streamed cols
                pl.BlockSpec((Coutp, 1), lambda i: (0, 0)),    # resident bias
            ],
            out_specs=pl.BlockSpec((Coutp, tM), lambda i: (0, i)),
        ),
        compiler_params=pltpu.CompilerParams(
            dimension_semantics=("parallel",)),
    )(wm, colsT, bias)


# ---------------------------------------------------------------------------
# BatchNorm3d (training-mode batch statistics, biased variance, eps=1e-5)
# Channel-major input (C, N, D, H, W); emits bf16 for the downstream bf16 GEMM.
# ---------------------------------------------------------------------------

def _batchnorm_kernel(x_ref, g_ref, b_ref, o_ref, *, eps):
    x = x_ref[...]                                             # (C, S, L/S) f32
    mean = jnp.mean(x, axis=(1, 2), keepdims=True)
    var = jnp.mean((x - mean) ** 2, axis=(1, 2), keepdims=True)
    inv = jax.lax.rsqrt(var + eps)
    o_ref[...] = ((x - mean) * inv * g_ref[...] + b_ref[...]).astype(o_ref.dtype)


def batch_norm3d_cm(x, gamma, beta, eps=1e-5):
    C, N, D, H, W = x.shape
    L = N * D * H * W
    S = 8 if L % 8 == 0 else 1     # spread each channel row across sublanes
    xr = x.reshape(C, S, L // S).astype(jnp.float32)
    g = gamma.reshape(C, 1, 1).astype(jnp.float32)
    b = beta.reshape(C, 1, 1).astype(jnp.float32)
    out = pl.pallas_call(
        functools.partial(_batchnorm_kernel, eps=eps),
        out_shape=jax.ShapeDtypeStruct(xr.shape, jnp.bfloat16),
    )(xr, g, b)
    return out.reshape(C, N, D, H, W)


# ---------------------------------------------------------------------------
# Conv3d (stride 1/2) and ConvTranspose3d (stride 1) via im2col + Pallas GEMM.
# All activations are channel-major (C, N, D, H, W).
# ---------------------------------------------------------------------------

def _im2col3d_T(x, s):
    """Transposed im2col of channel-major x: (Cin*27, N*Do*Ho*Wo) bf16."""
    C, N, D, H, W = x.shape
    k = _K
    Do = (D - k) // s + 1
    Ho = (H - k) // s + 1
    Wo = (W - k) // s + 1
    x = x.astype(jnp.bfloat16)
    pats = []
    for dz in range(k):
        for dy in range(k):
            for dx in range(k):
                pats.append(
                    x[:, :, dz:dz + s * Do:s, dy:dy + s * Ho:s, dx:dx + s * Wo:s])
    p = jnp.stack(pats, axis=1)                # (C, 27, N, Do, Ho, Wo)
    return p.reshape(C * k ** 3, N * Do * Ho * Wo), (N, Do, Ho, Wo)


def conv3d_gemm(x, wm, bias, cout, *, stride, relu, out_dtype):
    colsT, (N, Do, Ho, Wo) = _im2col3d_T(x, stride)
    out = gemm_bias_relu(wm, colsT, bias, relu=relu, out_dtype=out_dtype)
    M = N * Do * Ho * Wo
    return out[:cout, :M].reshape(cout, N, Do, Ho, Wo)       # channel-major


def conv_transpose3d_s1(x, wm, bias, cout, *, relu, out_dtype):
    # stride-1 ConvTranspose3d == pad (k-1) + stride-1 conv with the
    # pre-flipped / channel-swapped weight matrix (built in prepare_vnet_params).
    x = x.astype(jnp.bfloat16)
    xp = jnp.pad(x, ((0, 0), (0, 0), (2, 2), (2, 2), (2, 2)))
    return conv3d_gemm(xp, wm, bias, cout, stride=1, relu=relu, out_dtype=out_dtype)


# ---------------------------------------------------------------------------
# Stride-2 ConvTranspose3d via 8-phase sub-pixel decomposition (k=3, s=2).
#
# 1-D derivation (per dim): out[2j]   = x[j]*w[0] + x[j-1]*w[2]   (even phase)
#                           out[2j+1] = x[j]*w[1]                 (odd phase)
# so each phase is a tiny stride-1 correlation over the un-dilated input:
#   even dim: offsets {0,1} into pad(x,(1,1)), kernel indices [2, 0]
#   odd  dim: offset  {1}   into pad(x,(1,1)), kernel index   [1]
# Works for output_padding in {0,1}; padded/garbage tail positions are sliced
# away after the interleave.  All 8 phase GEMMs run in one pallas_call.
# ---------------------------------------------------------------------------

def conv_transpose3d_s2_subpixel(x, w_phase, bias, cout, *, output_padding,
                                 relu, out_dtype):
    Cin, N, D, H, W = x.shape
    Do = 2 * D + 1 + output_padding
    Ho = 2 * H + 1 + output_padding
    Wo = 2 * W + 1 + output_padding
    Pd, Ph, Pw = (Do + 1) // 2, (Ho + 1) // 2, (Wo + 1) // 2
    Kmax = w_phase.shape[2]                    # Cin * 8
    Coutp = w_phase.shape[1]
    M = N * Pd * Ph * Pw
    Mp = _round_up(M, 128)

    x = x.astype(jnp.bfloat16)
    xp = jnp.pad(x, ((0, 0), (0, 0), (1, 1), (1, 1), (1, 1)))

    def offs(parity):                          # slice offsets into the padded x
        return (0, 1) if parity == 0 else (1,)

    cols_all = []
    for r in (0, 1):
        for s in (0, 1):
            for t in (0, 1):
                taps = []
                for oz in offs(r):
                    for oy in offs(s):
                        for ox in offs(t):
                            taps.append(xp[:, :, oz:oz + Pd, oy:oy + Ph, ox:ox + Pw])
                pc = jnp.stack(taps, axis=1)   # (Cin, ntaps, N, Pd, Ph, Pw)
                pc = pc.reshape(Cin * len(taps), M)
                pc = jnp.pad(pc, ((0, Kmax - pc.shape[0]), (0, Mp - M)))
                cols_all.append(pc)
    cols_all = jnp.stack(cols_all, axis=0)     # (8, Kmax, Mp) bf16

    out = pl.pallas_call(
        functools.partial(_phase_gemm_kernel, apply_relu=relu),
        out_shape=jax.ShapeDtypeStruct((8, Coutp, Mp), out_dtype),
        grid_spec=pltpu.PrefetchScalarGridSpec(
            num_scalar_prefetch=0,
            grid=(8,),                                          # one step / phase
            in_specs=[
                pl.BlockSpec((1, Coutp, Kmax), lambda p: (p, 0, 0)),
                pl.BlockSpec((1, Kmax, Mp), lambda p: (p, 0, 0)),
                pl.BlockSpec((Coutp, 1), lambda p: (0, 0)),
            ],
            out_specs=pl.BlockSpec((1, Coutp, Mp), lambda p: (p, 0, 0)),
        ),
        compiler_params=pltpu.CompilerParams(
            dimension_semantics=("parallel",)),                 # v7x splits phases
    )(w_phase, cols_all, bias)

    # Interleave the 8 phases back into the full-resolution output.
    out = out[:, :cout, :M].reshape(2, 2, 2, cout, N, Pd, Ph, Pw)
    out = out.transpose(3, 4, 5, 0, 6, 1, 7, 2)          # (cout,N,Pd,2,Ph,2,Pw,2)
    out = out.reshape(cout, N, 2 * Pd, 2 * Ph, 2 * Pw)
    return out[:, :, :Do, :Ho, :Wo]


# ---------------------------------------------------------------------------
# VNet parameters + forward
# ---------------------------------------------------------------------------

_LAYER_SPECS = (
    # name,     kind,        Cin, Cout, stride, output_padding, relu
    ("conv1",   "conv",        1,   32, 2, 0, True),
    ("conv2",   "conv",       32,   64, 2, 0, True),
    ("conv3",   "conv",       64,  128, 1, 0, True),
    ("deconv4", "deconv_s1", 128,   64, 1, 0, True),
    ("deconv5", "deconv_s2",  64,   32, 2, 0, True),
    ("deconv6", "deconv_s2",  32,    1, 2, 1, False),
)


def _uniform(key, shape, bound):
    return jax.random.uniform(key, shape, jnp.float32, -bound, bound)


def init_vnet_params(key):
    """PyTorch-layout parameters with PyTorch default init."""
    keys = jax.random.split(key, 2 * len(_LAYER_SPECS))
    p = {}
    for i, (name, kind, cin, cout, _, _, _) in enumerate(_LAYER_SPECS):
        shape = ((cout, cin, _K, _K, _K) if kind == "conv"
                 else (cin, cout, _K, _K, _K))
        fan_in = shape[1] * _K ** 3
        bound = 1.0 / (fan_in ** 0.5)
        p[name + "_w"] = _uniform(keys[2 * i], shape, bound)
        p[name + "_b"] = _uniform(keys[2 * i + 1], (cout,), bound)
    p["bn0_gamma"] = jnp.ones((1,), jnp.float32)     # BatchNorm3d(1) affine init
    p["bn0_beta"] = jnp.zeros((1,), jnp.float32)
    return p


def _prepare_s2_deconv_weights(w_raw, cout):
    """Per-phase weight matrices for the 8-phase sub-pixel stride-2 deconv.
    w_raw: (Cin, Cout, 3,3,3) PyTorch ConvTranspose layout.
    Returns (8, Coutp, Cin*8) bf16 (per-phase K zero-padded to Cin*8)."""
    cin = w_raw.shape[0]
    w_t = jnp.transpose(w_raw, (1, 0, 2, 3, 4))     # (Cout, Cin, 3, 3, 3)
    coutp = _round_up(cout, 16)
    kmax = cin * 8

    def kidx(parity):                               # matches the slice offsets
        return (2, 0) if parity == 0 else (1,)

    phases = []
    for r in (0, 1):
        for s in (0, 1):
            for t in (0, 1):
                kz, ky, kx = kidx(r), kidx(s), kidx(t)
                wp = jnp.take(w_t, jnp.array(kz), axis=2)
                wp = jnp.take(wp, jnp.array(ky), axis=3)
                wp = jnp.take(wp, jnp.array(kx), axis=4)
                wp = wp.reshape(cout, cin * len(kz) * len(ky) * len(kx))
                wp = jnp.pad(wp, ((0, coutp - cout), (0, kmax - wp.shape[1])))
                phases.append(wp)
    return jnp.stack(phases, axis=0).astype(jnp.bfloat16)


def prepare_vnet_params(raw):
    """One-time preprocessing (hoisted out of the forward path)."""
    prep = {"bn0_gamma": raw["bn0_gamma"], "bn0_beta": raw["bn0_beta"]}
    for name, kind, cin, cout, _, _, _ in _LAYER_SPECS:
        w = raw[name + "_w"]
        coutp = _round_up(cout, 16)
        if kind == "deconv_s2":
            prep[name + "_wp"] = _prepare_s2_deconv_weights(w, cout)
        else:
            if kind == "deconv_s1":
                # flip + channel swap -> equivalent stride-1 conv weight
                w = jnp.flip(w, axis=(2, 3, 4)).transpose(1, 0, 2, 3, 4)
            k3 = cin * _K ** 3
            kp = _round_up(k3, 16)
            wm = jnp.pad(w.reshape(cout, k3), ((0, coutp - cout), (0, kp - k3)))
            prep[name + "_wm"] = wm.astype(jnp.bfloat16)
        b = jnp.pad(raw[name + "_b"], (0, coutp - cout))
        prep[name + "_b"] = b.reshape(coutp, 1).astype(jnp.float32)
    return prep


def vnet_forward(params, x):
    x = jnp.transpose(x, (1, 0, 2, 3, 4))            # channel-major, done once
    x = batch_norm3d_cm(x, params["bn0_gamma"], params["bn0_beta"])
    n_layers = len(_LAYER_SPECS)
    for idx, (name, kind, _, cout, stride, op, relu) in enumerate(_LAYER_SPECS):
        out_dtype = jnp.float32 if idx == n_layers - 1 else jnp.bfloat16
        b = params[name + "_b"]
        if kind == "conv":
            x = conv3d_gemm(x, params[name + "_wm"], b, cout,
                            stride=stride, relu=relu, out_dtype=out_dtype)
        elif kind == "deconv_s1":
            x = conv_transpose3d_s1(x, params[name + "_wm"], b, cout,
                                    relu=relu, out_dtype=out_dtype)
        else:  # deconv_s2 — 8-phase sub-pixel path
            x = conv_transpose3d_s2_subpixel(x, params[name + "_wp"], b, cout,
                                             output_padding=op, relu=relu,
                                             out_dtype=out_dtype)
    return jnp.transpose(x, (1, 0, 2, 3, 4))         # back to (N, C, D, H, W)


if __name__ == "__main__":
    key = jax.random.PRNGKey(0)
    pkey, xkey = jax.random.split(key)
    raw_params = init_vnet_params(pkey)
    params = prepare_vnet_params(raw_params)   # one-time, outside the forward
    # input: (N=2, C=1, D=16, H=16, W=16) — VNet autoencoder round-trips shape
    x = jax.random.normal(xkey, (2, 1, 16, 16, 16), jnp.float32)

    fwd = jax.jit(vnet_forward)
    out = fwd(params, x)
    jax.block_until_ready(out)
    assert out.shape == (2, 1, 16, 16, 16), out.shape
    assert jnp.isfinite(out).all()
    print("KERNEL_OK")
</pallas_src>

<mosaic_0001>
module attributes {stable_mosaic.version = 11 : i64} {
  func.func @_batchnorm_kernel(%arg0: memref<1x8x1024xf32, #tpu.memory_space<vmem>>, %arg1: memref<1x1x1xf32, #tpu.memory_space<vmem>>, %arg2: memref<1x1x1xf32, #tpu.memory_space<vmem>>, %arg3: memref<1x8x1024xbf16, #tpu.memory_space<vmem>>) attributes {dimension_semantics = [], scalar_prefetch = 0 : i64, scratch_operands = 0 : i64, tpu.core_type = #tpu.core_type<tc>} {
    %c0 = arith.constant 0 : index
    %c0_0 = arith.constant 0 : index
    %c0_1 = arith.constant 0 : index
    %0 = vector.load %arg0[%c0, %c0_0, %c0_1] : memref<1x8x1024xf32, #tpu.memory_space<vmem>>, vector<1x8x1024xf32>
    %cst = arith.constant dense<0.000000e+00> : vector<1xf32>
    %1 = vector.multi_reduction <add>, %0, %cst [1, 2] : vector<1x8x1024xf32> to vector<1xf32>
    %2 = vector.shape_cast %1 : vector<1xf32> to vector<1x1x1xf32>
    %cst_2 = arith.constant 8.192000e+03 : f32
    %3 = vector.broadcast %cst_2 : f32 to vector<1x1x1xf32>
    %4 = arith.divf %2, %3 : vector<1x1x1xf32>
    %5 = vector.broadcast %4 : vector<1x1x1xf32> to vector<1x8x1024xf32>
    %6 = arith.subf %0, %5 : vector<1x8x1024xf32>
    %7 = arith.mulf %6, %6 : vector<1x8x1024xf32>
    %cst_3 = arith.constant dense<0.000000e+00> : vector<1xf32>
    %8 = vector.multi_reduction <add>, %7, %cst_3 [1, 2] : vector<1x8x1024xf32> to vector<1xf32>
    %9 = vector.shape_cast %8 : vector<1xf32> to vector<1x1x1xf32>
    %cst_4 = arith.constant 8.192000e+03 : f32
    %10 = vector.broadcast %cst_4 : f32 to vector<1x1x1xf32>
    %11 = arith.divf %9, %10 : vector<1x1x1xf32>
    %cst_5 = arith.constant 9.99999974E-6 : f32
    %12 = vector.broadcast %cst_5 : f32 to vector<1x1x1xf32>
    %13 = arith.addf %11, %12 : vector<1x1x1xf32>
    %14 = math.rsqrt %13 : vector<1x1x1xf32>
    %15 = vector.broadcast %4 : vector<1x1x1xf32> to vector<1x8x1024xf32>
    %16 = arith.subf %0, %15 : vector<1x8x1024xf32>
    %17 = vector.broadcast %14 : vector<1x1x1xf32> to vector<1x8x1024xf32>
    %18 = arith.mulf %16, %17 : vector<1x8x1024xf32>
    %c0_6 = arith.constant 0 : index
    %c0_7 = arith.constant 0 : index
    %c0_8 = arith.constant 0 : index
    %19 = vector.load %arg1[%c0_6, %c0_7, %c0_8] : memref<1x1x1xf32, #tpu.memory_space<vmem>>, vector<1x1x1xf32>
    %20 = vector.broadcast %19 : vector<1x1x1xf32> to vector<1x8x1024xf32>
    %21 = arith.mulf %18, %20 : vector<1x8x1024xf32>
    %c0_9 = arith.constant 0 : index
    %c0_10 = arith.constant 0 : index
    %c0_11 = arith.constant 0 : index
    %22 = vector.load %arg2[%c0_9, %c0_10, %c0_11] : memref<1x1x1xf32, #tpu.memory_space<vmem>>, vector<1x1x1xf32>
    %23 = vector.broadcast %22 : vector<1x1x1xf32> to vector<1x8x1024xf32>
    %24 = arith.addf %21, %23 : vector<1x8x1024xf32>
    %25 = arith.truncf %24 : vector<1x8x1024xf32> to vector<1x8x1024xbf16>
    %c0_12 = arith.constant 0 : index
    %c0_13 = arith.constant 0 : index
    %c0_14 = arith.constant 0 : index
    %26 = vector.load %arg3[%c0_12, %c0_13, %c0_14] : memref<1x8x1024xbf16, #tpu.memory_space<vmem>>, vector<1x8x1024xbf16>
    tpu.vector_store %arg3[%c0_12, %c0_13, %c0_14], %25 {strides = array<i32>} : memref<1x8x1024xbf16, #tpu.memory_space<vmem>>, vector<1x8x1024xbf16>,
    return
  }
}

module attributes {stable_mosaic.version = 11 : i64} {
  func.func @_gemm_bias_kernel(%arg0: i32, %arg1: memref<32x32xbf16, #tpu.memory_space<vmem>>, %arg2: memref<32x384xbf16, #tpu.memory_space<vmem>>, %arg3: memref<32x1xf32, #tpu.memory_space<vmem>>, %arg4: memref<32x384xbf16, #tpu.memory_space<vmem>>) attributes {dimension_semantics = [#tpu.dimension_semantics<parallel>], iteration_bounds = array<i64: 2>, scalar_prefetch = 0 : i64, scratch_operands = 0 : i64, tpu.core_type = #tpu.core_type<tc>, window_params = [{pipeline_mode = #tpu.pipeline_mode<synchronous>, transform_indices = @transform_0, window_bounds = array<i64: 32, 32>}, {transform_indices = @transform_1, window_bounds = array<i64: 32, 384>}, {pipeline_mode = #tpu.pipeline_mode<synchronous>, transform_indices = @transform_2, window_bounds = array<i64: 32, 1>}, {transform_indices = @transform_3, window_bounds = array<i64: 32, 384>}]} {
    %c0 = arith.constant 0 : index
    %c0_0 = arith.constant 0 : index
    %0 = vector.load %arg1[%c0, %c0_0] : memref<32x32xbf16, #tpu.memory_space<vmem>>, vector<32x32xbf16>
    %c0_1 = arith.constant 0 : index
    %c0_2 = arith.constant 0 : index
    %1 = vector.load %arg2[%c0_1, %c0_2] : memref<32x384xbf16, #tpu.memory_space<vmem>>, vector<32x384xbf16>
    %cst = arith.constant dense<0.000000e+00> : vector<32x384xf32>
    %2 = tpu.matmul %0, %1, %cst {dimension_numbers = #tpu.dot_dimension_numbers<[1], [0], [0], [1], [0, 0, 1, 1], [], []>} : vector<32x32xbf16>, vector<32x384xbf16>, vector<32x384xf32> -> vector<32x384xf32>
    %c0_3 = arith.constant 0 : index
    %c0_4 = arith.constant 0 : index
    %3 = vector.load %arg3[%c0_3, %c0_4] : memref<32x1xf32, #tpu.memory_space<vmem>>, vector<32x1xf32>
    %4 = vector.broadcast %3 : vector<32x1xf32> to vector<32x384xf32>
    %5 = arith.addf %2, %4 : vector<32x384xf32>
    %cst_5 = arith.constant 0.000000e+00 : f32
    %6 = vector.broadcast %cst_5 : f32 to vector<32x384xf32>
    %7 = arith.maximumf %5, %6 : vector<32x384xf32>
    %8 = arith.truncf %7 : vector<32x384xf32> to vector<32x384xbf16>
    %c0_6 = arith.constant 0 : index
    %c0_7 = arith.constant 0 : index
    %9 = vector.load %arg4[%c0_6, %c0_7] : memref<32x384xbf16, #tpu.memory_space<vmem>>, vector<32x384xbf16>
    tpu.vector_store %arg4[%c0_6, %c0_7], %8 {strides = array<i32>} : memref<32x384xbf16, #tpu.memory_space<vmem>>, vector<32x384xbf16>,
    return
  }
  func.func @transform_0(%arg0: i32) -> (i32, i32) {
    %c0_i32 = arith.constant 0 : i32
    %c0_i32_0 = arith.constant 0 : i32
    %c0_i32_1 = arith.constant 0 : i32
    return %c0_i32, %c0_i32_0 : i32, i32
  }
  func.func @transform_1(%arg0: i32) -> (i32, i32) {
    %c0_i32 = arith.constant 0 : i32
    %c0_i32_0 = arith.constant 0 : i32
    return %c0_i32, %arg0 : i32, i32
  }
  func.func @transform_2(%arg0: i32) -> (i32, i32) {
    %c0_i32 = arith.constant 0 : i32
    %c0_i32_0 = arith.constant 0 : i32
    %c0_i32_1 = arith.constant 0 : i32
    return %c0_i32, %c0_i32_0 : i32, i32
  }
  func.func @transform_3(%arg0: i32) -> (i32, i32) {
    %c0_i32 = arith.constant 0 : i32
    %c0_i32_0 = arith.constant 0 : i32
    return %c0_i32, %arg0 : i32, i32
  }
}

module attributes {stable_mosaic.version = 11 : i64} {
  func.func @_gemm_bias_kernel(%arg0: i32, %arg1: memref<64x864xbf16, #tpu.memory_space<vmem>>, %arg2: memref<864x128xbf16, #tpu.memory_space<vmem>>, %arg3: memref<64x1xf32, #tpu.memory_space<vmem>>, %arg4: memref<64x128xbf16, #tpu.memory_space<vmem>>) attributes {dimension_semantics = [#tpu.dimension_semantics<parallel>], iteration_bounds = array<i64: 1>, scalar_prefetch = 0 : i64, scratch_operands = 0 : i64, tpu.core_type = #tpu.core_type<tc>, window_params = [{pipeline_mode = #tpu.pipeline_mode<synchronous>, transform_indices = @transform_0, window_bounds = array<i64: 64, 864>}, {transform_indices = @transform_1, window_bounds = array<i64: 864, 128>}, {pipeline_mode = #tpu.pipeline_mode<synchronous>, transform_indices = @transform_2, window_bounds = array<i64: 64, 1>}, {transform_indices = @transform_3, window_bounds = array<i64: 64, 128>}]} {
    %c0 = arith.constant 0 : index
    %c0_0 = arith.constant 0 : index
    %0 = vector.load %arg1[%c0, %c0_0] : memref<64x864xbf16, #tpu.memory_space<vmem>>, vector<64x864xbf16>
    %c0_1 = arith.constant 0 : index
    %c0_2 = arith.constant 0 : index
    %1 = vector.load %arg2[%c0_1, %c0_2] : memref<864x128xbf16, #tpu.memory_space<vmem>>, vector<864x128xbf16>
    %cst = arith.constant dense<0.000000e+00> : vector<64x128xf32>
    %2 = tpu.matmul %0, %1, %cst {dimension_numbers = #tpu.dot_dimension_numbers<[1], [0], [0], [1], [0, 0, 1, 1], [], []>} : vector<64x864xbf16>, vector<864x128xbf16>, vector<64x128xf32> -> vector<64x128xf32>
    %c0_3 = arith.constant 0 : index
    %c0_4 = arith.constant 0 : index
    %3 = vector.load %arg3[%c0_3, %c0_4] : memref<64x1xf32, #tpu.memory_space<vmem>>, vector<64x1xf32>
    %4 = vector.broadcast %3 : vector<64x1xf32> to vector<64x128xf32>
    %5 = arith.addf %2, %4 : vector<64x128xf32>
    %cst_5 = arith.constant 0.000000e+00 : f32
    %6 = vector.broadcast %cst_5 : f32 to vector<64x128xf32>
    %7 = arith.maximumf %5, %6 : vector<64x128xf32>
    %8 = arith.truncf %7 : vector<64x128xf32> to vector<64x128xbf16>
    %c0_6 = arith.constant 0 : index
    %c0_7 = arith.constant 0 : index
    %9 = vector.load %arg4[%c0_6, %c0_7] : memref<64x128xbf16, #tpu.memory_space<vmem>>, vector<64x128xbf16>
    tpu.vector_store %arg4[%c0_6, %c0_7], %8 {strides = array<i32>} : memref<64x128xbf16, #tpu.memory_space<vmem>>, vector<64x128xbf16>,
    return
  }
  func.func @transform_0(%arg0: i32) -> (i32, i32) {
    %c0_i32 = arith.constant 0 : i32
    %c0_i32_0 = arith.constant 0 : i32
    %c0_i32_1 = arith.constant 0 : i32
    return %c0_i32, %c0_i32_0 : i32, i32
  }
  func.func @transform_1(%arg0: i32) -> (i32, i32) {
    %c0_i32 = arith.constant 0 : i32
    %c0_i32_0 = arith.constant 0 : i32
    return %c0_i32, %arg0 : i32, i32
  }
  func.func @transform_2(%arg0: i32) -> (i32, i32) {
    %c0_i32 = arith.constant 0 : i32
    %c0_i32_0 = arith.constant 0 : i32
    %c0_i32_1 = arith.constant 0 : i32
    return %c0_i32, %c0_i32_0 : i32, i32
  }
  func.func @transform_3(%arg0: i32) -> (i32, i32) {
    %c0_i32 = arith.constant 0 : i32
    %c0_i32_0 = arith.constant 0 : i32
    return %c0_i32, %arg0 : i32, i32
  }
}

module attributes {stable_mosaic.version = 11 : i64} {
  func.func @_gemm_bias_kernel(%arg0: i32, %arg1: memref<128x1728xbf16, #tpu.memory_space<vmem>>, %arg2: memref<1728x128xbf16, #tpu.memory_space<vmem>>, %arg3: memref<128x1xf32, #tpu.memory_space<vmem>>, %arg4: memref<128x128xbf16, #tpu.memory_space<vmem>>) attributes {dimension_semantics = [#tpu.dimension_semantics<parallel>], iteration_bounds = array<i64: 1>, scalar_prefetch = 0 : i64, scratch_operands = 0 : i64, tpu.core_type = #tpu.core_type<tc>, window_params = [{pipeline_mode = #tpu.pipeline_mode<synchronous>, transform_indices = @transform_0, window_bounds = array<i64: 128, 1728>}, {transform_indices = @transform_1, window_bounds = array<i64: 1728, 128>}, {pipeline_mode = #tpu.pipeline_mode<synchronous>, transform_indices = @transform_2, window_bounds = array<i64: 128, 1>}, {transform_indices = @transform_3, window_bounds = array<i64: 128, 128>}]} {
    %c0 = arith.constant 0 : index
    %c0_0 = arith.constant 0 : index
    %0 = vector.load %arg1[%c0, %c0_0] : memref<128x1728xbf16, #tpu.memory_space<vmem>>, vector<128x1728xbf16>
    %c0_1 = arith.constant 0 : index
    %c0_2 = arith.constant 0 : index
    %1 = vector.load %arg2[%c0_1, %c0_2] : memref<1728x128xbf16, #tpu.memory_space<vmem>>, vector<1728x128xbf16>
    %cst = arith.constant dense<0.000000e+00> : vector<128x128xf32>
    %2 = tpu.matmul %0, %1, %cst {dimension_numbers = #tpu.dot_dimension_numbers<[1], [0], [0], [1], [0, 0, 1, 1], [], []>} : vector<128x1728xbf16>, vector<1728x128xbf16>, vector<128x128xf32> -> vector<128x128xf32>
    %c0_3 = arith.constant 0 : index
    %c0_4 = arith.constant 0 : index
    %3 = vector.load %arg3[%c0_3, %c0_4] : memref<128x1xf32, #tpu.memory_space<vmem>>, vector<128x1xf32>
    %4 = vector.broadcast %3 : vector<128x1xf32> to vector<128x128xf32>
    %5 = arith.addf %2, %4 : vector<128x128xf32>
    %cst_5 = arith.constant 0.000000e+00 : f32
    %6 = vector.broadcast %cst_5 : f32 to vector<128x128xf32>
    %7 = arith.maximumf %5, %6 : vector<128x128xf32>
    %8 = arith.truncf %7 : vector<128x128xf32> to vector<128x128xbf16>
    %c0_6 = arith.constant 0 : index
    %c0_7 = arith.constant 0 : index
    %9 = vector.load %arg4[%c0_6, %c0_7] : memref<128x128xbf16, #tpu.memory_space<vmem>>, vector<128x128xbf16>
    tpu.vector_store %arg4[%c0_6, %c0_7], %8 {strides = array<i32>} : memref<128x128xbf16, #tpu.memory_space<vmem>>, vector<128x128xbf16>,
    return
  }
  func.func @transform_0(%arg0: i32) -> (i32, i32) {
    %c0_i32 = arith.constant 0 : i32
    %c0_i32_0 = arith.constant 0 : i32
    %c0_i32_1 = arith.constant 0 : i32
    return %c0_i32, %c0_i32_0 : i32, i32
  }
  func.func @transform_1(%arg0: i32) -> (i32, i32) {
    %c0_i32 = arith.constant 0 : i32
    %c0_i32_0 = arith.constant 0 : i32
    return %c0_i32, %arg0 : i32, i32
  }
  func.func @transform_2(%arg0: i32) -> (i32, i32) {
    %c0_i32 = arith.constant 0 : i32
    %c0_i32_0 = arith.constant 0 : i32
    %c0_i32_1 = arith.constant 0 : i32
    return %c0_i32, %c0_i32_0 : i32, i32
  }
  func.func @transform_3(%arg0: i32) -> (i32, i32) {
    %c0_i32 = arith.constant 0 : i32
    %c0_i32_0 = arith.constant 0 : i32
    return %c0_i32, %arg0 : i32, i32
  }
}

module attributes {stable_mosaic.version = 11 : i64} {
  func.func @_gemm_bias_kernel(%arg0: i32, %arg1: memref<64x3456xbf16, #tpu.memory_space<vmem>>, %arg2: memref<3456x128xbf16, #tpu.memory_space<vmem>>, %arg3: memref<64x1xf32, #tpu.memory_space<vmem>>, %arg4: memref<64x128xbf16, #tpu.memory_space<vmem>>) attributes {dimension_semantics = [#tpu.dimension_semantics<parallel>], iteration_bounds = array<i64: 1>, scalar_prefetch = 0 : i64, scratch_operands = 0 : i64, tpu.core_type = #tpu.core_type<tc>, window_params = [{pipeline_mode = #tpu.pipeline_mode<synchronous>, transform_indices = @transform_0, window_bounds = array<i64: 64, 3456>}, {transform_indices = @transform_1, window_bounds = array<i64: 3456, 128>}, {pipeline_mode = #tpu.pipeline_mode<synchronous>, transform_indices = @transform_2, window_bounds = array<i64: 64, 1>}, {transform_indices = @transform_3, window_bounds = array<i64: 64, 128>}]} {
    %c0 = arith.constant 0 : index
    %c0_0 = arith.constant 0 : index
    %0 = vector.load %arg1[%c0, %c0_0] : memref<64x3456xbf16, #tpu.memory_space<vmem>>, vector<64x3456xbf16>
    %c0_1 = arith.constant 0 : index
    %c0_2 = arith.constant 0 : index
    %1 = vector.load %arg2[%c0_1, %c0_2] : memref<3456x128xbf16, #tpu.memory_space<vmem>>, vector<3456x128xbf16>
    %cst = arith.constant dense<0.000000e+00> : vector<64x128xf32>
    %2 = tpu.matmul %0, %1, %cst {dimension_numbers = #tpu.dot_dimension_numbers<[1], [0], [0], [1], [0, 0, 1, 1], [], []>} : vector<64x3456xbf16>, vector<3456x128xbf16>, vector<64x128xf32> -> vector<64x128xf32>
    %c0_3 = arith.constant 0 : index
    %c0_4 = arith.constant 0 : index
    %3 = vector.load %arg3[%c0_3, %c0_4] : memref<64x1xf32, #tpu.memory_space<vmem>>, vector<64x1xf32>
    %4 = vector.broadcast %3 : vector<64x1xf32> to vector<64x128xf32>
    %5 = arith.addf %2, %4 : vector<64x128xf32>
    %cst_5 = arith.constant 0.000000e+00 : f32
    %6 = vector.broadcast %cst_5 : f32 to vector<64x128xf32>
    %7 = arith.maximumf %5, %6 : vector<64x128xf32>
    %8 = arith.truncf %7 : vector<64x128xf32> to vector<64x128xbf16>
    %c0_6 = arith.constant 0 : index
    %c0_7 = arith.constant 0 : index
    %9 = vector.load %arg4[%c0_6, %c0_7] : memref<64x128xbf16, #tpu.memory_space<vmem>>, vector<64x128xbf16>
    tpu.vector_store %arg4[%c0_6, %c0_7], %8 {strides = array<i32>} : memref<64x128xbf16, #tpu.memory_space<vmem>>, vector<64x128xbf16>,
    return
  }
  func.func @transform_0(%arg0: i32) -> (i32, i32) {
    %c0_i32 = arith.constant 0 : i32
    %c0_i32_0 = arith.constant 0 : i32
    %c0_i32_1 = arith.constant 0 : i32
    return %c0_i32, %c0_i32_0 : i32, i32
  }
  func.func @transform_1(%arg0: i32) -> (i32, i32) {
    %c0_i32 = arith.constant 0 : i32
    %c0_i32_0 = arith.constant 0 : i32
    return %c0_i32, %arg0 : i32, i32
  }
  func.func @transform_2(%arg0: i32) -> (i32, i32) {
    %c0_i32 = arith.constant 0 : i32
    %c0_i32_0 = arith.constant 0 : i32
    %c0_i32_1 = arith.constant 0 : i32
    return %c0_i32, %c0_i32_0 : i32, i32
  }
  func.func @transform_3(%arg0: i32) -> (i32, i32) {
    %c0_i32 = arith.constant 0 : i32
    %c0_i32_0 = arith.constant 0 : i32
    return %c0_i32, %arg0 : i32, i32
  }
}

module attributes {stable_mosaic.version = 11 : i64} {
  func.func @_phase_gemm_kernel(%arg0: i32, %arg1: memref<1x32x512xbf16, #tpu.memory_space<vmem>>, %arg2: memref<1x512x128xbf16, #tpu.memory_space<vmem>>, %arg3: memref<32x1xf32, #tpu.memory_space<vmem>>, %arg4: memref<1x32x128xbf16, #tpu.memory_space<vmem>>) attributes {dimension_semantics = [#tpu.dimension_semantics<parallel>], iteration_bounds = array<i64: 8>, scalar_prefetch = 0 : i64, scratch_operands = 0 : i64, tpu.core_type = #tpu.core_type<tc>, window_params = [{transform_indices = @transform_0, window_bounds = array<i64: 1, 32, 512>}, {transform_indices = @transform_1, window_bounds = array<i64: 1, 512, 128>}, {pipeline_mode = #tpu.pipeline_mode<synchronous>, transform_indices = @transform_2, window_bounds = array<i64: 32, 1>}, {transform_indices = @transform_3, window_bounds = array<i64: 1, 32, 128>}]} {
    %c0 = arith.constant 0 : index
    %c0_0 = arith.constant 0 : index
    %c0_1 = arith.constant 0 : index
    %0 = vector.load %arg1[%c0, %c0_0, %c0_1] : memref<1x32x512xbf16, #tpu.memory_space<vmem>>, vector<1x32x512xbf16>
    %1 = vector.shape_cast %0 : vector<1x32x512xbf16> to vector<32x512xbf16>
    %c0_2 = arith.constant 0 : index
    %c0_3 = arith.constant 0 : index
    %c0_4 = arith.constant 0 : index
    %2 = vector.load %arg2[%c0_2, %c0_3, %c0_4] : memref<1x512x128xbf16, #tpu.memory_space<vmem>>, vector<1x512x128xbf16>
    %3 = vector.shape_cast %2 : vector<1x512x128xbf16> to vector<512x128xbf16>
    %cst = arith.constant dense<0.000000e+00> : vector<32x128xf32>
    %4 = tpu.matmul %1, %3, %cst {dimension_numbers = #tpu.dot_dimension_numbers<[1], [0], [0], [1], [0, 0, 1, 1], [], []>} : vector<32x512xbf16>, vector<512x128xbf16>, vector<32x128xf32> -> vector<32x128xf32>
    %c0_5 = arith.constant 0 : index
    %c0_6 = arith.constant 0 : index
    %5 = vector.load %arg3[%c0_5, %c0_6] : memref<32x1xf32, #tpu.memory_space<vmem>>, vector<32x1xf32>
    %6 = vector.broadcast %5 : vector<32x1xf32> to vector<32x128xf32>
    %7 = arith.addf %4, %6 : vector<32x128xf32>
    %cst_7 = arith.constant 0.000000e+00 : f32
    %8 = vector.broadcast %cst_7 : f32 to vector<32x128xf32>
    %9 = arith.maximumf %7, %8 : vector<32x128xf32>
    %10 = arith.truncf %9 : vector<32x128xf32> to vector<32x128xbf16>
    %c0_8 = arith.constant 0 : index
    %c0_9 = arith.constant 0 : index
    %c0_10 = arith.constant 0 : index
    %11 = vector.load %arg4[%c0_8, %c0_9, %c0_10] : memref<1x32x128xbf16, #tpu.memory_space<vmem>>, vector<1x32x128xbf16>
    %12 = vector.shape_cast %11 : vector<1x32x128xbf16> to vector<32x128xbf16>
    %13 = vector.shape_cast %10 : vector<32x128xbf16> to vector<1x32x128xbf16>
    tpu.vector_store %arg4[%c0_8, %c0_9, %c0_10], %13 {strides = array<i32>} : memref<1x32x128xbf16, #tpu.memory_space<vmem>>, vector<1x32x128xbf16>,
    return
  }
  func.func @transform_0(%arg0: i32) -> (i32, i32, i32) {
    %c0_i32 = arith.constant 0 : i32
    %c0_i32_0 = arith.constant 0 : i32
    %c0_i32_1 = arith.constant 0 : i32
    return %arg0, %c0_i32, %c0_i32_0 : i32, i32, i32
  }
  func.func @transform_1(%arg0: i32) -> (i32, i32, i32) {
    %c0_i32 = arith.constant 0 : i32
    %c0_i32_0 = arith.constant 0 : i32
    %c0_i32_1 = arith.constant 0 : i32
    return %arg0, %c0_i32, %c0_i32_0 : i32, i32, i32
  }
  func.func @transform_2(%arg0: i32) -> (i32, i32) {
    %c0_i32 = arith.constant 0 : i32
    %c0_i32_0 = arith.constant 0 : i32
    %c0_i32_1 = arith.constant 0 : i32
    return %c0_i32, %c0_i32_0 : i32, i32
  }
  func.func @transform_3(%arg0: i32) -> (i32, i32, i32) {
    %c0_i32 = arith.constant 0 : i32
    %c0_i32_0 = arith.constant 0 : i32
    %c0_i32_1 = arith.constant 0 : i32
    return %arg0, %c0_i32, %c0_i32_0 : i32, i32, i32
  }
}

module attributes {stable_mosaic.version = 11 : i64} {
  func.func @_phase_gemm_kernel(%arg0: i32, %arg1: memref<1x16x256xbf16, #tpu.memory_space<vmem>>, %arg2: memref<1x256x1024xbf16, #tpu.memory_space<vmem>>, %arg3: memref<16x1xf32, #tpu.memory_space<vmem>>, %arg4: memref<1x16x1024xf32, #tpu.memory_space<vmem>>) attributes {dimension_semantics = [#tpu.dimension_semantics<parallel>], iteration_bounds = array<i64: 8>, scalar_prefetch = 0 : i64, scratch_operands = 0 : i64, tpu.core_type = #tpu.core_type<tc>, window_params = [{transform_indices = @transform_0, window_bounds = array<i64: 1, 16, 256>}, {transform_indices = @transform_1, window_bounds = array<i64: 1, 256, 1024>}, {pipeline_mode = #tpu.pipeline_mode<synchronous>, transform_indices = @transform_2, window_bounds = array<i64: 16, 1>}, {transform_indices = @transform_3, window_bounds = array<i64: 1, 16, 1024>}]} {
    %c0 = arith.constant 0 : index
    %c0_0 = arith.constant 0 : index
    %c0_1 = arith.constant 0 : index
    %0 = vector.load %arg1[%c0, %c0_0, %c0_1] : memref<1x16x256xbf16, #tpu.memory_space<vmem>>, vector<1x16x256xbf16>
    %1 = vector.shape_cast %0 : vector<1x16x256xbf16> to vector<16x256xbf16>
    %c0_2 = arith.constant 0 : index
    %c0_3 = arith.constant 0 : index
    %c0_4 = arith.constant 0 : index
    %2 = vector.load %arg2[%c0_2, %c0_3, %c0_4] : memref<1x256x1024xbf16, #tpu.memory_space<vmem>>, vector<1x256x1024xbf16>
    %3 = vector.shape_cast %2 : vector<1x256x1024xbf16> to vector<256x1024xbf16>
    %cst = arith.constant dense<0.000000e+00> : vector<16x1024xf32>
    %4 = tpu.matmul %1, %3, %cst {dimension_numbers = #tpu.dot_dimension_numbers<[1], [0], [0], [1], [0, 0, 1, 1], [], []>} : vector<16x256xbf16>, vector<256x1024xbf16>, vector<16x1024xf32> -> vector<16x1024xf32>
    %c0_5 = arith.constant 0 : index
    %c0_6 = arith.constant 0 : index
    %5 = vector.load %arg3[%c0_5, %c0_6] : memref<16x1xf32, #tpu.memory_space<vmem>>, vector<16x1xf32>
    %6 = vector.broadcast %5 : vector<16x1xf32> to vector<16x1024xf32>
    %7 = arith.addf %4, %6 : vector<16x1024xf32>
    %c0_7 = arith.constant 0 : index
    %c0_8 = arith.constant 0 : index
    %c0_9 = arith.constant 0 : index
    %8 = vector.load %arg4[%c0_7, %c0_8, %c0_9] : memref<1x16x1024xf32, #tpu.memory_space<vmem>>, vector<1x16x1024xf32>
    %9 = vector.shape_cast %8 : vector<1x16x1024xf32> to vector<16x1024xf32>
    %10 = vector.shape_cast %7 : vector<16x1024xf32> to vector<1x16x1024xf32>
    tpu.vector_store %arg4[%c0_7, %c0_8, %c0_9], %10 {strides = array<i32>} : memref<1x16x1024xf32, #tpu.memory_space<vmem>>, vector<1x16x1024xf32>,
    return
  }
  func.func @transform_0(%arg0: i32) -> (i32, i32, i32) {
    %c0_i32 = arith.constant 0 : i32
    %c0_i32_0 = arith.constant 0 : i32
    %c0_i32_1 = arith.constant 0 : i32
    return %arg0, %c0_i32, %c0_i32_0 : i32, i32, i32
  }
  func.func @transform_1(%arg0: i32) -> (i32, i32, i32) {
    %c0_i32 = arith.constant 0 : i32
    %c0_i32_0 = arith.constant 0 : i32
    %c0_i32_1 = arith.constant 0 : i32
    return %arg0, %c0_i32, %c0_i32_0 : i32, i32, i32
  }
  func.func @transform_2(%arg0: i32) -> (i32, i32) {
    %c0_i32 = arith.constant 0 : i32
    %c0_i32_0 = arith.constant 0 : i32
    %c0_i32_1 = arith.constant 0 : i32
    return %c0_i32, %c0_i32_0 : i32, i32
  }
  func.func @transform_3(%arg0: i32) -> (i32, i32, i32) {
    %c0_i32 = arith.constant 0 : i32
    %c0_i32_0 = arith.constant 0 : i32
    %c0_i32_1 = arith.constant 0 : i32
    return %arg0, %c0_i32, %c0_i32_0 : i32, i32, i32
  }
}

</mosaic_0001>

<llo_original>
// kernel: vnet_forward.7
$region0: #{vnet_forward.7}
  #allocation0 [shape = 'u32[]', space=smem, size = 0x4, offset = 0x4, fixed_abs, tag = 'smem constant byte address 0x4 - core index']
  #allocation1 [shape = 'u32[144,128]{1,0:T(1,128)}', space=vmem, size = 0x12000, scoped, tag = 'internal scratch']
  #allocation2 [shape = 'f32[1,1,1]{2,1,0:T(1,128)S(1)}', space=vmem, size = 0x200, scoped, tag = 'scoped memory for vnet_forward.7']
  #allocation3 [shape = 'f32[1,1,1]{2,1,0:T(1,128)S(1)}', space=vmem, size = 0x200, scoped, tag = 'scoped memory for vnet_forward.7']
  %s0 = inlined_call_operand.vmem [shape: f32[1,8,1024], index: 0, kind: input, shape index: {}]
  %s1 = inlined_call_operand.<no memory space> [shape: f32[1,1,1], index: 1, kind: input, shape index: {}]
  %s2 = inlined_call_operand.<no memory space> [shape: f32[1,1,1], index: 2, kind: input, shape index: {}]
  %s3 = inlined_call_operand.vmem [shape: bf16[1,8,1024], index: 3, kind: output, shape index: {}]
  %s4 = sld [smem:[#allocation0]]
  $region22: #{vnet_forward.7} parent=0
    _
  %s6 = ssub.s32 1, %s4
  %s7 = scalar_select 0, %s6, %s4
  %v8 = vstv %s1
  %9 = vst [vmem:[#allocation2] sm:$0x1] %v8
  %v10 = vstv %s2
  %11 = vst [vmem:[#allocation3] sm:$0x1] %v10
  // Predicated region
  $region2: #{vnet_forward.7} parent=0 // pred_check
    _
  $region3: #{vnet_forward.7} parent=0 // pred_check_branch
    %13 = sbr.rel (0) target = $region5
  $region4: #{vnet_forward.7} parent=0 // pred_region
    _
  $region5: #{vnet_forward.7} parent=0 // pred_fallthru
    _
  // Predicated region
  $region6: #{vnet_forward.7} parent=0 // pred_check
    _
  $region7: #{vnet_forward.7} parent=0 // pred_check_branch
    %15 = sbr.rel (0) target = $region9
  $region8: #{vnet_forward.7} parent=0 // pred_region
    _
  $region9: #{vnet_forward.7} parent=0 // pred_fallthru
    _
  // Predicated region
  $region10: #{vnet_forward.7} parent=0 // pred_check
    _
  $region11: #{vnet_forward.7} parent=0 // pred_check_branch
    %17 = sbr.rel (0) target = $region13
  $region12: #{vnet_forward.7} parent=0 // pred_region
    _
  $region13: #{vnet_forward.7} parent=0 // pred_fallthru
    _
  %v18 = vld [vmem:[%s0] sm:$0xff]
  %v19 = vld [vmem:[%s0 + $0x8] sm:$0xff]
  %v20 = vld [vmem:[%s0 + $0x10] sm:$0xff]
  %v21 = vld [vmem:[%s0 + $0x18] sm:$0xff]
  %v22 = vld [vmem:[%s0 + $0x20] sm:$0xff]
  %v23 = vld [vmem:[%s0 + $0x28] sm:$0xff]
  %v24 = vld [vmem:[%s0 + $0x30] sm:$0xff]
  %v25 = vld [vmem:[%s0 + $0x38] sm:$0xff]
  %v26 = vadd.f32 %v18, %v19
  %v27 = vadd.f32 %v26, %v20
  %v28 = vadd.f32 %v27, %v21
  %v29 = vadd.f32 %v28, %v22
  %v30 = vadd.f32 %v29, %v23
  %v31 = vadd.f32 %v30, %v24
  %v32 = vadd.f32 %v31, %v25
  %33 = vadd.xlane.f32.xlu0 %v32
  %v34 = vpop.xlane.xlu0 %33
  %v35 = vrot.slane %v34, 4
  %v36 = vadd.f32 %v34, %v35
  %v37 = vrot.slane %v36, 2
  %v38 = vadd.f32 %v36, %v37
  %v39 = vrot.slane %v38, 1
  %v40 = vadd.f32 %v38, %v39
  %v41 = vrcp.pop 8192.0
  %v42 = vmul.f32 %v40, %v41
  %v43 = vsub.f32 %v18, %v42
  %v44 = vsub.f32 %v19, %v42
  %v45 = vsub.f32 %v20, %v42
  %v46 = vsub.f32 %v21, %v42
  %v47 = vsub.f32 %v22, %v42
  %v48 = vsub.f32 %v23, %v42
  %v49 = vsub.f32 %v24, %v42
  %v50 = vsub.f32 %v25, %v42
  %v51 = vmul.f32 %v43, %v43
  %v52 = vmul.f32 %v44, %v44
  %v53 = vmul.f32 %v45, %v45
  %v54 = vmul.f32 %v46, %v46
  %v55 = vmul.f32 %v47, %v47
  %v56 = vmul.f32 %v48, %v48
  %v57 = vmul.f32 %v49, %v49
  %v58 = vmul.f32 %v50, %v50
  %v59 = vadd.f32 %v51, %v52
  %v60 = vadd.f32 %v59, %v53
  %v61 = vadd.f32 %v60, %v54
  %v62 = vadd.f32 %v61, %v55
  %v63 = vadd.f32 %v62, %v56
  %v64 = vadd.f32 %v63, %v57
  %v65 = vadd.f32 %v64, %v58
  %66 = vadd.xlane.f32.xlu0 %v65
  %v67 = vpop.xlane.xlu0 %66
  %v68 = vrot.slane %v67, 4
  %v69 = vadd.f32 %v67, %v68
  %v70 = vrot.slane %v69, 2
  %v71 = vadd.f32 %v69, %v70
  %v72 = vrot.slane %v71, 1
  %v73 = vadd.f32 %v71, %v72
  %v74 = vmul.f32 %v73, %v41
  %v75 = vadd.f32 %v74, 1e-05
  %v76 = vrsqrt.pop %v75
  %v77 = vmul.f32 %v43, %v76
  %v78 = vmul.f32 %v44, %v76
  %v79 = vmul.f32 %v45, %v76
  %v80 = vmul.f32 %v46, %v76
  %v81 = vmul.f32 %v47, %v76
  %v82 = vmul.f32 %v48, %v76
  %v83 = vmul.f32 %v49, %v76
  %v84 = vmul.f32 %v50, %v76
  %v85 = vld [vmem:[#allocation2] sm:$0x1]
  %v87 = vlaneseq
  %v88 = vshrl.u32 %v87, 7
  %v89 = vsub.s32 0, %v88
  %v90 = vrot.slane %v85, %v89
  %91 = vset.pattern.permute.xlu0 0
  %92 = vperm.xlu0 %91, %v90
  %v93 = vpop.permute.xlu0 %92
  %v95 = vmul.f32 %v77, %v93
  %v96 = vmul.f32 %v78, %v93
  %v97 = vmul.f32 %v79, %v93
  %v98 = vmul.f32 %v80, %v93
  %v99 = vmul.f32 %v81, %v93
  %v100 = vmul.f32 %v82, %v93
  %v101 = vmul.f32 %v83, %v93
  %v102 = vmul.f32 %v84, %v93
  %v103 = vld [vmem:[#allocation3] sm:$0x1]
  %v105 = vlaneseq
  %v106 = vshrl.u32 %v105, 7
  %v107 = vsub.s32 0, %v106
  %v108 = vrot.slane %v103, %v107
  %109 = vset.pattern.permute.xlu0 0
  %110 = vperm.xlu0 %109, %v108
  %v111 = vpop.permute.xlu0 %110
  %v113 = vadd.f32 %v95, %v111
  %v114 = vadd.f32 %v96, %v111
  %v115 = vadd.f32 %v97, %v111
  %v116 = vadd.f32 %v98, %v111
  %v117 = vadd.f32 %v99, %v111
  %v118 = vadd.f32 %v100, %v111
  %v119 = vadd.f32 %v101, %v111
  %v120 = vadd.f32 %v102, %v111
  %v121 = vpack.c.bf16 %v113, %v113
  %v122 = vpack.c.bf16 %v114, %v114
  %v123 = vpack.c.bf16 %v115, %v115
  %v124 = vpack.c.bf16 %v116, %v116
  %v125 = vpack.c.bf16 %v117, %v117
  %v126 = vpack.c.bf16 %v118, %v118
  %v127 = vpack.c.bf16 %v119, %v119
  %v128 = vpack.c.bf16 %v120, %v120
  %v137 = vunpack.c.l.b16 %v121
  %v138 = vunpack.c.l.b16 %v122
  %v139 = vunpack.c.l.b16 %v123
  %v140 = vunpack.c.l.b16 %v124
  %v141 = vunpack.c.l.b16 %v125
  %v142 = vunpack.c.l.b16 %v126
  %v143 = vunpack.c.l.b16 %v127
  %v144 = vunpack.c.l.b16 %v128
  %v145 = vpack.c.b16 %v138, %v137
  %v146 = vpack.c.b16 %v140, %v139
  %v147 = vpack.c.b16 %v142, %v141
  %v148 = vpack.c.b16 %v144, %v143
  %153 = vst [vmem:[%s3] sm:$0xff] %v145
  %154 = vst [vmem:[%s3 + $0x8] sm:$0xff] %v146
  %155 = vst [vmem:[%s3 + $0x10] sm:$0xff] %v147
  %156 = vst [vmem:[%s3 + $0x18] sm:$0xff] %v148
  // Predicated region
  $region14: #{vnet_forward.7} parent=0 // pred_check
    _
  $region15: #{vnet_forward.7} parent=0 // pred_check_branch
    %158 = sbr.rel (0) target = $region17
  $region16: #{vnet_forward.7} parent=0 // pred_region
    _
  $region17: #{vnet_forward.7} parent=0 // pred_fallthru
    _
  // Predicated region
  $region18: #{vnet_forward.7} parent=0 // pred_check
    _
  $region19: #{vnet_forward.7} parent=0 // pred_check_branch
    %160 = sbr.rel (0) target = $region21
  $region20: #{vnet_forward.7} parent=0 // pred_region
    _
  $region21: #{vnet_forward.7} parent=0 // pred_fallthru
    _

// kernel: vnet_forward.8
$region0: #{vnet_forward.8}
  #allocation0 [shape = 'u32[]', space=smem, size = 0x4, offset = 0x4, fixed_abs, tag = 'smem constant byte address 0x4 - core index']
  #allocation1 [shape = 'u32[144,128]{1,0:T(1,128)}', space=vmem, size = 0x12000, scoped, tag = 'internal scratch']
  %s0 = inlined_call_operand.hbm [shape: bf16[32,32], index: 0, kind: input, shape index: {}]
  %s1 = inlined_call_operand.vmem [shape: bf16[32,768], index: 1, kind: input, shape index: {}]
  %s2 = inlined_call_operand.vmem [shape: f32[32,1], index: 2, kind: input, shape index: {}]
  %s3 = inlined_call_operand.vmem [shape: bf16[32,768], index: 3, kind: output, shape index: {}]
  %s4 = sld [smem:[#allocation0]]
  $region97: #{vnet_forward.8} parent=0
    _
  %s6 = ssub.s32 1, %s4
  %s7 = scalar_select 0, %s6, %s4
  $region1: #{vnet_forward.8} parent=0
    #allocation2 [shape = 'u8[8192]{0}', space=vmem, size = 0x2000, scoped, tag = 'input window, operand 0, single buffered']
    #allocation3 [shape = 's32[2]{0}', space=sflag, size = 0x8, scoped, tag = 'scoped memory for vnet_forward.8']
    #allocation4 [shape = 'u8[49152]{0}', space=vmem, size = 0xc000, scoped, tag = 'input window, operand 1']
    #allocation5 [shape = 'u8[49152]{0}', space=vmem, size = 0xc000, scoped, tag = 'output window, operand 0']
    %8 = vsyncpa [#allocation3], 0
    loop: start=0, step=1, limit=4
    $region2: #{vnet_forward.8} parent=1 // loop_pre_header
      _
    $region3: #{vnet_forward.8} parent=1 // loop_header
      %s10 = sphi 0, %s14
      %p11 = scmp.ge.s32.totalorder %s10, 4
      %s18 = sphi 0, %s18
      %s20 = sphi 0, %s18
      %s21 = sphi 0, %s20
      %s35 = sphi 0, %s21
      %s41 = sphi 0, %s43
      %s44 = sphi 0, %s41
      %s45 = sphi 0, %s44
      %s61 = sphi 0, %s45
      %s65 = sphi 0, %s65
      %s67 = sphi 0, %s65
      %s68 = sphi 0, %s67
      %s82 = sphi 0, %s68
      %s88 = sphi 0, %s90
      %s91 = sphi 0, %s88
      %s92 = sphi 0, %s91
      %s108 = sphi 0, %s92
    $region4: #{vnet_forward.8} parent=1 // loop_header_branch
      %13 = sbr.rel (%p11) target = $region8
    $region5: #{vnet_forward.8} parent=1 // loop_body
      %s15 = ssub.s32 %s10, 1
      %s16 = ssub.s32 %s10, 2
      %s17 = sadd.s32 %s10, 1
      %s19 = sadd.s32 %s18, 1
      %p22 = scmp.eq.s32.totalorder %s10, 1
      %p23 = scmp.ne.s32.totalorder %s18, %s20
      %p24 = scmp.eq.s32.totalorder %s10, 0
      %p25 = por %p23, %p24
      %p26 = scmp.ne.s32.totalorder %s18, %s20
      %p27 = scmp.eq.s32.totalorder %s15, 1
      %p28 = por %p26, %p27
      %p29 = scmp.ne.s32.totalorder %s20, %s21
      %p30 = scmp.eq.s32.totalorder %s15, 0
      %p31 = por %p29, %p30
      %p32 = scmp.ne.s32.totalorder %s20, %s21
      %p33 = scmp.eq.s32.totalorder %s16, 1
      %p34 = por %p32, %p33
      %p36 = scmp.ne.s32.totalorder %s21, %s35
      %p37 = scmp.eq.s32.totalorder %s16, 0
      %p38 = por %p36, %p37
      %s39 = ssub.s32 %s10, %s17
      %p40 = scmp.eq.s32.totalorder %s39, 0
      %s42 = sadd.s32 %s41, 1
      %s43 = scalar_select %p40, %s41, %s42
      %p46 = pneg %p40
      %p47 = scmp.eq.s32.totalorder %s10, 1
      %p48 = por %p46, %p47
      %p49 = scmp.ne.s32.totalorder %s41, %s44
      %p50 = scmp.eq.s32.totalorder %s10, 0
      %p51 = por %p49, %p50
      %p52 = scmp.ne.s32.totalorder %s41, %s44
      %p53 = scmp.eq.s32.totalorder %s15, 1
      %p54 = por %p52, %p53
      %p55 = scmp.ne.s32.totalorder %s44, %s45
      %p56 = scmp.eq.s32.totalorder %s15, 0
      %p57 = por %p55, %p56
      %p58 = scmp.ne.s32.totalorder %s44, %s45
      %p59 = scmp.eq.s32.totalorder %s16, 1
      %p60 = por %p58, %p59
      %p62 = scmp.ne.s32.totalorder %s45, %s61
      %p63 = scmp.eq.s32.totalorder %s16, 0
      %p64 = por %p62, %p63
      %s66 = sadd.s32 %s65, 1
      %p69 = scmp.eq.s32.totalorder %s10, 1
      %p70 = scmp.ne.s32.totalorder %s65, %s67
      %p71 = scmp.eq.s32.totalorder %s10, 0
      %p72 = por %p70, %p71
      %p73 = scmp.ne.s32.totalorder %s65, %s67
      %p74 = scmp.eq.s32.totalorder %s15, 1
      %p75 = por %p73, %p74
      %p76 = scmp.ne.s32.totalorder %s67, %s68
      %p77 = scmp.eq.s32.totalorder %s15, 0
      %p78 = por %p76, %p77
      %p79 = scmp.ne.s32.totalorder %s67, %s68
      %p80 = scmp.eq.s32.totalorder %s16, 1
      %p81 = por %p79, %p80
      %p83 = scmp.ne.s32.totalorder %s68, %s82
      %p84 = scmp.eq.s32.totalorder %s16, 0
      %p85 = por %p83, %p84
      %s86 = ssub.s32 %s10, %s17
      %p87 = scmp.eq.s32.totalorder %s86, 0
      %s89 = sadd.s32 %s88, 1
      %s90 = scalar_select %p87, %s88, %s89
      %p93 = pneg %p87
      %p94 = scmp.eq.s32.totalorder %s10, 1
      %p95 = por %p93, %p94
      %p96 = scmp.ne.s32.totalorder %s88, %s91
      %p97 = scmp.eq.s32.totalorder %s10, 0
      %p98 = por %p96, %p97
      %p99 = scmp.ne.s32.totalorder %s88, %s91
      %p100 = scmp.eq.s32.totalorder %s15, 1
      %p101 = por %p99, %p100
      %p102 = scmp.ne.s32.totalorder %s91, %s92
      %p103 = scmp.eq.s32.totalorder %s15, 0
      %p104 = por %p102, %p103
      %p105 = scmp.ne.s32.totalorder %s91, %s92
      %p106 = scmp.eq.s32.totalorder %s16, 1
      %p107 = por %p105, %p106
      %p109 = scmp.ne.s32.totalorder %s92, %s108
      %p110 = scmp.eq.s32.totalorder %s16, 0
      %p111 = por %p109, %p110
      %p112 = scmp.le.s32.totalorder 1, %s10
      %p113 = scmp.lt.s32.totalorder %s10, 3
      %p114 = pnand %p112, %p113
      %p115 = pneg %p114
      // Predicated region
      $region9: #{vnet_forward.8} parent=5 // pred_check
        _
      $region10: #{vnet_forward.8} parent=5 // pred_check_branch
        %117 = sbr.rel (%p114) target = $region12
      $region11: #{vnet_forward.8} parent=5 // pred_region
        %s118 = ssub.s32 %s10, 1
        // Predicated region
        $region13: #{vnet_forward.8} parent=11 // pred_check
          %p119 = pneg %p31
        $region14: #{vnet_forward.8} parent=11 // pred_check_branch
          %121 = sbr.rel (%p119) target = $region16
        $region15: #{vnet_forward.8} parent=11 // pred_region
          %s123 = ssub.s32 256, 256
          %124 = vsyncadd [#allocation3], %s123
          %s125 = sshll.u32 [#allocation2], 4
          %s126 = int_to_ptr.vmem [resolvable:$true] %s125
          %131 = dma.hbm_to_vmem [thread:$0]  %s0, 256, %s126, [#allocation3], 64, 64, 4
        $region16: #{vnet_forward.8} parent=11 // pred_fallthru
          _
        // Predicated region
        $region17: #{vnet_forward.8} parent=11 // pred_check
          %p132 = pneg %p78
        $region18: #{vnet_forward.8} parent=11 // pred_check_branch
          %134 = sbr.rel (%p132) target = $region20
        $region19: #{vnet_forward.8} parent=11 // pred_region
          _
        $region20: #{vnet_forward.8} parent=11 // pred_fallthru
          _
      $region12: #{vnet_forward.8} parent=5 // pred_fallthru
        _
      %p135 = scmp.lt.s32.totalorder %s10, 2
      // Predicated region
      $region21: #{vnet_forward.8} parent=5 // pred_check
        %p136 = pneg %p135
      $region22: #{vnet_forward.8} parent=5 // pred_check_branch
        %138 = sbr.rel (%p136) target = $region24
      $region23: #{vnet_forward.8} parent=5 // pred_region
        // Predicated region
        $region25: #{vnet_forward.8} parent=23 // pred_check
          %p139 = pneg %p51
        $region26: #{vnet_forward.8} parent=23 // pred_check_branch
          %141 = sbr.rel (%p139) target = $region28
        $region27: #{vnet_forward.8} parent=23 // pred_region
          %s142 = sand.u32 %s41, 1
          %s143 = sand.u32 %s41, 1
          %s144 = smul.addr %s143, 48
          %s145 = scalar_lea.vmem [#allocation4], %s144
          %s146 = smul.u32 3, %s10
          %s147 = smul.addr %s146, 4
          %s148 = scalar_lea.vmem %s1, %s147
          // Predicated region
          $region29: #{vnet_forward.8} parent=27 // pred_check
            _
          $region30: #{vnet_forward.8} parent=27 // pred_check_branch
            %150 = sbr.rel (0) target = $region32
          $region31: #{vnet_forward.8} parent=27 // pred_region
            // Predicated region
            $region33: #{vnet_forward.8} parent=31 // pred_check
              _
            $region34: #{vnet_forward.8} parent=31 // pred_check_branch
              %152 = sbr.rel (0) target = $region36
            $region35: #{vnet_forward.8} parent=31 // pred_region
              %s153 = scalar_lea.vmem %s148, 8
              %s154 = scalar_lea.vmem %s145, 8 [#allocation4]
              loop: start=0, step=1, limit=1
              $region37: #{vnet_forward.8} parent=35 // loop_pre_header
                _
              $region38: #{vnet_forward.8} parent=35 // loop_header
                %s156 = sphi 0, %s160
                %p157 = scmp.ge.s32.totalorder %s156, 1
                %s161 = sphi %s148, %s148
                %s162 = sphi %s145, %s145
              $region39: #{vnet_forward.8} parent=35 // loop_header_branch
                %159 = sbr.rel (%p157) target = $region43
              $region40: #{vnet_forward.8} parent=35 // loop_body
                %v163 = vld [vmem:[%s161] sm:$0xff]
                %164 = vst [vmem:[%s162] sm:$0xff] %v163
                %v165 = vld [vmem:[%s161 + $0x18] sm:$0xff]
                %166 = vst [vmem:[%s162 + $0xc] sm:$0xff] %v165
                %v167 = vld [vmem:[%s161 + $0x30] sm:$0xff]
                %168 = vst [vmem:[%s162 + $0x18] sm:$0xff] %v167
                %v169 = vld [vmem:[%s161 + $0x48] sm:$0xff]
                %170 = vst [vmem:[%s162 + $0x24] sm:$0xff] %v169
              $region41: #{vnet_forward.8} parent=35 // loop_footer
                %s160 = sadd.s32 1, %s156
              $region42: #{vnet_forward.8} parent=35 // loop_footer_branch
                %155 = sbr.rel target = $region38
              $region43: #{vnet_forward.8} parent=35 // loop_exit
                _
              %s172 = ssub.s32 16, 1
              loop: start=0, step=1, limit=1
              $region44: #{vnet_forward.8} parent=35 // loop_pre_header
                _
              $region45: #{vnet_forward.8} parent=35 // loop_header
                %s174 = sphi 0, %s178
                %p175 = scmp.ge.s32.totalorder %s174, 1
                %s179 = sphi %s153, %s153
                %s180 = sphi %s154, %s154
              $region46: #{vnet_forward.8} parent=35 // loop_header_branch
                %177 = sbr.rel (%p175) target = $region50
              $region47: #{vnet_forward.8} parent=35 // loop_body
                %v181 = vld [vmem:[%s179] sm:%s172]
                %182 = vst [vmem:[%s180] sm:%s172] %v181
                %v183 = vld [vmem:[%s179 + $0x18] sm:%s172]
                %184 = vst [vmem:[%s180 + $0xc] sm:%s172] %v183
                %v185 = vld [vmem:[%s179 + $0x30] sm:%s172]
                %186 = vst [vmem:[%s180 + $0x18] sm:%s172] %v185
                %v187 = vld [vmem:[%s179 + $0x48] sm:%s172]
                %188 = vst [vmem:[%s180 + $0x24] sm:%s172] %v187
              $region48: #{vnet_forward.8} parent=35 // loop_footer
                %s178 = sadd.s32 1, %s174
              $region49: #{vnet_forward.8} parent=35 // loop_footer_branch
                %173 = sbr.rel target = $region45
              $region50: #{vnet_forward.8} parent=35 // loop_exit
                _
            $region36: #{vnet_forward.8} parent=31 // pred_fallthru
              _
          $region32: #{vnet_forward.8} parent=27 // pred_fallthru
            _
          %189 = vnop
        $region28: #{vnet_forward.8} parent=23 // pred_fallthru
          _
      $region24: #{vnet_forward.8} parent=5 // pred_fallthru
        _
      %p190 = scmp.le.s32.totalorder 1, %s10
      %p191 = scmp.lt.s32.totalorder %s10, 3
      %p192 = pnand %p190, %p191
      %p193 = pneg %p192
      // Predicated region
      $region51: #{vnet_forward.8} parent=5 // pred_check
        _
      $region52: #{vnet_forward.8} parent=5 // pred_check_branch
        %195 = sbr.rel (%p192) target = $region54
      $region53: #{vnet_forward.8} parent=5 // pred_region
        %s196 = ssub.s32 %s10, 1
        // Predicated region
        $region55: #{vnet_forward.8} parent=53 // pred_check
          %p197 = pneg %p31
        $region56: #{vnet_forward.8} parent=53 // pred_check_branch
          %199 = sbr.rel (%p197) target = $region58
        $region57: #{vnet_forward.8} parent=53 // pred_region
          %200 = dma.done [#allocation3], 256
        $region58: #{vnet_forward.8} parent=53 // pred_fallthru
          _
        %s201 = sand.u32 %s44, 1
        %s202 = sand.u32 %s44, 1
        %s203 = smul.addr %s202, 48
        %s204 = scalar_lea.vmem [#allocation4], %s203
        // Predicated region
        $region59: #{vnet_forward.8} parent=53 // pred_check
          %p205 = pneg %p57
        $region60: #{vnet_forward.8} parent=53 // pred_check_branch
          %207 = sbr.rel (%p205) target = $region62
        $region61: #{vnet_forward.8} parent=53 // pred_region
          _
        $region62: #{vnet_forward.8} parent=53 // pred_fallthru
          _
        %p208 = pneg %p31
        %p209 = pneg %p28
        %s210 = sand.u32 %s44, 1
        %s211 = sand.u32 %s44, 1
        %s212 = smul.addr %s211, 48
        %s213 = scalar_lea.vmem [#allocation4], %s212
        %p214 = pneg %p57
        %p215 = pneg %p54
        %p216 = pneg %p78
        %p217 = pneg %p75
        %p218 = pneg %p104
        %p219 = pneg %p101
        %s220 = sand.u32 %s91, 1
        %s221 = sand.u32 %s91, 1
        %s222 = smul.addr %s221, 48
        %s223 = scalar_lea.vmem [#allocation5], %s222
        %s224 = smul.u32 3, %s15
        %s225 = smul.u32 3, %s15
        %v227 = vld [vmem:[#allocation2] sm:$0xf]
        %v228 = vld [vmem:[#allocation2 + $0x4] sm:$0xf]
        %v229 = vld [vmem:[#allocation2 + $0x8] sm:$0xf]
        %v230 = vld [vmem:[#allocation2 + $0xc] sm:$0xf]
        %v231 = vld [vmem:[%s204] sm:$0xff]
        %v232 = vld [vmem:[%s204 + $0x8] sm:$0xf]
        %v233 = vld [vmem:[%s204 + $0xc] sm:$0xff]
        %v234 = vld [vmem:[%s204 + $0x14] sm:$0xf]
        %v235 = vld [vmem:[%s204 + $0x18] sm:$0xff]
        %v236 = vld [vmem:[%s204 + $0x20] sm:$0xf]
        %v237 = vld [vmem:[%s204 + $0x24] sm:$0xff]
        %v238 = vld [vmem:[%s204 + $0x2c] sm:$0xf]
        %v239 = vld [vmem:[%s2] sm:$0xff]
        %v240 = vld [vmem:[%s2 + $0x8] sm:$0xff]
        %v241 = vld [vmem:[%s2 + $0x10] sm:$0xff]
        %v242 = vld [vmem:[%s2 + $0x18] sm:$0xff]
        %244 = vset.pattern.permute.xlu0 0
        %245 = vperm.xlu0 %244, %v239
        %v246 = vpop.permute.xlu0 %245
        %249 = vset.pattern.permute.xlu0 0
        %250 = vperm.xlu0 %249, %v240
        %v251 = vpop.permute.xlu0 %250
        %254 = vset.pattern.permute.xlu0 0
        %255 = vperm.xlu0 %254, %v241
        %v256 = vpop.permute.xlu0 %255
        %259 = vset.pattern.permute.xlu0 0
        %260 = vperm.xlu0 %259, %v242
        %v261 = vpop.permute.xlu0 %260
        %v267 = vunpack.c.l.b16 %v227
        %v268 = vunpack.c.l.b16 %v228
        %v269 = vunpack.c.l.b16 %v229
        %v270 = vunpack.c.l.b16 %v230
        %v271 = vpack.c.b16 %v268, %v267
        %v272 = vpack.c.b16 %v270, %v269
        %v281 = vunpack.c.l.b16 %v231
        %v282 = vunpack.c.h.b16 %v231
        %v283 = vunpack.c.l.b16 %v232
        %v284 = vunpack.c.l.b16 %v233
        %v285 = vunpack.c.h.b16 %v233
        %v286 = vunpack.c.l.b16 %v234
        %v287 = vunpack.c.l.b16 %v235
        %v288 = vunpack.c.h.b16 %v235
        %v289 = vunpack.c.l.b16 %v236
        %v290 = vunpack.c.l.b16 %v237
        %v291 = vunpack.c.h.b16 %v237
        %v292 = vunpack.c.l.b16 %v238
        %v293 = vpack.c.b16 %v284, %v281
        %v294 = vpack.c.b16 %v285, %v282
        %v295 = vpack.c.b16 %v286, %v283
        %v296 = vpack.c.b16 %v290, %v287
        %v297 = vpack.c.b16 %v291, %v288
        %v298 = vpack.c.b16 %v292, %v289
        %vm305 = vcmask 261120
        %v307 = vsel %vm305, %v271, 0
        %v310 = vsel %vm305, %v272, 0
        %312 = vmatprep.subr.bf16.mxu0 0
        %313 = vmatpush1.bf16.msra.mxu0 0
        %314 = vmatprep.subr.bf16.mxu0 0
        %315 = vmatpush1.bf16.msra.mxu0 0
        %316 = vmatprep.subr.bf16.mxu0 0
        %317 = vmatpush1.bf16.msra.mxu0 0
        %318 = vmatprep.subr.bf16.mxu0 0
        %319 = vmatpush1.bf16.msra.mxu0 0
        %320 = vmatprep.subr.bf16.mxu0 0
        %321 = vmatpush1.bf16.msra.mxu0 0
        %322 = vmatprep.subr.bf16.mxu0 0
        %323 = vmatpush1.bf16.msra.mxu0 0
        %324 = vmatprep.subr.bf16.mxu0 %v297
        %325 = vmatpush1.bf16.msra.mxu0 %v296
        %326 = vmatprep.subr.bf16.mxu0 %v294
        %327 = vmatpush1.bf16.msra.mxu0 %v293
        %328 = vmatprep.subr.bf16.mxu0 0
        %329 = vmatpush2.bf16.msra.mxu0 0
        %330 = vmatprep.subr.bf16.mxu0 0
        %331 = vmatpush2.bf16.msra.mxu0 0
        %332 = vmatprep.subr.bf16.mxu0 0
        %333 = vmatpush2.bf16.msra.mxu0 0
        %334 = vmatprep.subr.bf16.mxu0 0
        %335 = vmatpush2.bf16.msra.mxu0 0
        %336 = vmatprep.subr.bf16.mxu0 0
        %337 = vmatpush2.bf16.msra.mxu0 0
        %338 = vmatprep.subr.bf16.mxu0 0
        %339 = vmatpush2.bf16.msra.mxu0 0
        %340 = vmatprep.subr.bf16.mxu0 0
        %341 = vmatpush2.bf16.msra.mxu0 0
        %342 = vmatprep.subr.bf16.mxu0 0
        %343 = vmatpush2.bf16.msra.mxu0 0
        %344 = vmatprep.mubr.bf16.mxu0 0
        %345 = vmatmul.mubr.bf16.gmra.mxu0 %v307
        %v346 = vpop.f32.mrf.mxu0
        %v347 = vadd.f32 %v246, %v346
        %v348 = vpop.f32.mrf.mxu0
        %v349 = vadd.f32 %v246, %v348
        %v350 = vpop.f32.mrf.mxu0
        %v351 = vadd.f32 %v251, %v350
        %v352 = vpop.f32.mrf.mxu0
        %v353 = vadd.f32 %v251, %v352
        %354 = vmatprep.mubr.bf16.mxu0 0
        %355 = vmatmul.mubr.bf16.gmra.mxu0 %v310
        %v356 = vpop.f32.mrf.mxu0
        %v357 = vadd.f32 %v256, %v356
        %v358 = vpop.f32.mrf.mxu0
        %v359 = vadd.f32 %v256, %v358
        %v360 = vpop.f32.mrf.mxu0
        %v361 = vadd.f32 %v261, %v360
        %v362 = vpop.f32.mrf.mxu0
        %v363 = vadd.f32 %v261, %v362
        %364 = vdwg.mxu0
        %365 = vmatprep.subr.bf16.mxu0 0
        %366 = vmatpush1.bf16.msra.mxu0 0
        %367 = vmatprep.subr.bf16.mxu0 0
        %368 = vmatpush1.bf16.msra.mxu0 0
        %369 = vmatprep.subr.bf16.mxu0 0
        %370 = vmatpush1.bf16.msra.mxu0 0
        %371 = vmatprep.subr.bf16.mxu0 0
        %372 = vmatpush1.bf16.msra.mxu0 0
        %373 = vmatprep.subr.bf16.mxu0 0
        %374 = vmatpush1.bf16.msra.mxu0 0
        %375 = vmatprep.subr.bf16.mxu0 0
        %376 = vmatpush1.bf16.msra.mxu0 0
        %377 = vmatprep.subr.bf16.mxu0 0
        %378 = vmatpush1.bf16.msra.mxu0 %v298
        %379 = vmatprep.subr.bf16.mxu0 0
        %380 = vmatpush1.bf16.msra.mxu0 %v295
        %381 = vmatprep.subr.bf16.mxu0 0
        %382 = vmatpush2.bf16.msra.mxu0 0
        %383 = vmatprep.subr.bf16.mxu0 0
        %384 = vmatpush2.bf16.msra.mxu0 0
        %385 = vmatprep.subr.bf16.mxu0 0
        %386 = vmatpush2.bf16.msra.mxu0 0
        %387 = vmatprep.subr.bf16.mxu0 0
        %388 = vmatpush2.bf16.msra.mxu0 0
        %389 = vmatprep.subr.bf16.mxu0 0
        %390 = vmatpush2.bf16.msra.mxu0 0
        %391 = vmatprep.subr.bf16.mxu0 0
        %392 = vmatpush2.bf16.msra.mxu0 0
        %393 = vmatprep.subr.bf16.mxu0 0
        %394 = vmatpush2.bf16.msra.mxu0 0
        %395 = vmatprep.subr.bf16.mxu0 0
        %396 = vmatpush2.bf16.msra.mxu0 0
        %397 = vmatprep.mubr.bf16.mxu0 0
        %398 = vmatmul.mubr.bf16.gmra.mxu0 %v307
        %v399 = vpop.f32.mrf.mxu0
        %v400 = vadd.f32 %v246, %v399
        %v401 = vpop.f32.mrf.mxu0
        %v402 = vpop.f32.mrf.mxu0
        %v403 = vadd.f32 %v251, %v402
        %v404 = vpop.f32.mrf.mxu0
        %405 = vmatprep.mubr.bf16.mxu0 0
        %406 = vmatmul.mubr.bf16.gmra.mxu0 %v310
        %v407 = vpop.f32.mrf.mxu0
        %v408 = vadd.f32 %v256, %v407
        %v409 = vpop.f32.mrf.mxu0
        %v410 = vpop.f32.mrf.mxu0
        %v411 = vadd.f32 %v261, %v410
        %v412 = vpop.f32.mrf.mxu0
        %413 = vdwg.mxu0
        %v414 = vmax.f32 %v347, 0.0
        %v415 = vmax.f32 %v349, 0.0
        %v416 = vmax.f32 %v400, 0.0
        %v417 = vmax.f32 %v351, 0.0
        %v418 = vmax.f32 %v353, 0.0
        %v419 = vmax.f32 %v403, 0.0
        %v420 = vmax.f32 %v357, 0.0
        %v421 = vmax.f32 %v359, 0.0
        %v422 = vmax.f32 %v408, 0.0
        %v423 = vmax.f32 %v361, 0.0
        %v424 = vmax.f32 %v363, 0.0
        %v425 = vmax.f32 %v411, 0.0
        %v426 = vpack.c.bf16 %v417, %v414
        %v427 = vpack.c.bf16 %v418, %v415
        %v428 = vpack.c.bf16 %v419, %v416
        %v429 = vpack.c.bf16 %v423, %v420
        %v430 = vpack.c.bf16 %v424, %v421
        %v431 = vpack.c.bf16 %v425, %v422
        %v438 = vunpack.c.l.b16 %v426
        %v439 = vunpack.c.l.b16 %v427
        %v440 = vunpack.c.l.b16 %v428
        %v441 = vunpack.c.h.b16 %v426
        %v442 = vunpack.c.h.b16 %v427
        %v443 = vunpack.c.h.b16 %v428
        %v444 = vunpack.c.l.b16 %v429
        %v445 = vunpack.c.l.b16 %v430
        %v446 = vunpack.c.l.b16 %v431
        %v447 = vunpack.c.h.b16 %v429
        %v448 = vunpack.c.h.b16 %v430
        %v449 = vunpack.c.h.b16 %v431
        %v450 = vpack.c.b16 %v439, %v438
        %v451 = vpack.c.b16 %v440, %v440
        %v452 = vpack.c.b16 %v442, %v441
        %v453 = vpack.c.b16 %v443, %v443
        %v454 = vpack.c.b16 %v445, %v444
        %v455 = vpack.c.b16 %v446, %v446
        %v456 = vpack.c.b16 %v448, %v447
        %v457 = vpack.c.b16 %v449, %v449
        %466 = vst [vmem:[%s223] sm:$0xff] %v450
        %467 = vst [vmem:[%s223 + $0x8] sm:$0xf] %v451
        %468 = vst [vmem:[%s223 + $0xc] sm:$0xff] %v452
        %469 = vst [vmem:[%s223 + $0x14] sm:$0xf] %v453
        %470 = vst [vmem:[%s223 + $0x18] sm:$0xff] %v454
        %471 = vst [vmem:[%s223 + $0x20] sm:$0xf] %v455
        %472 = vst [vmem:[%s223 + $0x24] sm:$0xff] %v456
        %473 = vst [vmem:[%s223 + $0x2c] sm:$0xf] %v457
        %s474 = sand.u32 %s91, 1
        %s475 = sand.u32 %s91, 1
        %s476 = smul.addr %s475, 48
        %s477 = scalar_lea.vmem [#allocation5], %s476
        // Predicated region
        $region63: #{vnet_forward.8} parent=53 // pred_check
          %p478 = pneg %p101
        $region64: #{vnet_forward.8} parent=53 // pred_check_branch
          %480 = sbr.rel (%p478) target = $region66
        $region65: #{vnet_forward.8} parent=53 // pred_region
          %s481 = smul.u32 3, %s15
          %s482 = smul.addr %s481, 4
          %s483 = scalar_lea.vmem %s3, %s482
          // Predicated region
          $region67: #{vnet_forward.8} parent=65 // pred_check
            _
          $region68: #{vnet_forward.8} parent=65 // pred_check_branch
            %485 = sbr.rel (0) target = $region70
          $region69: #{vnet_forward.8} parent=65 // pred_region
            // Predicated region
            $region71: #{vnet_forward.8} parent=69 // pred_check
              _
            $region72: #{vnet_forward.8} parent=69 // pred_check_branch
              %487 = sbr.rel (0) target = $region74
            $region73: #{vnet_forward.8} parent=69 // pred_region
              %s488 = scalar_lea.vmem %s477, 8 [#allocation5]
              %s489 = scalar_lea.vmem %s483, 8
              loop: start=0, step=1, limit=1
              $region75: #{vnet_forward.8} parent=73 // loop_pre_header
                _
              $region76: #{vnet_forward.8} parent=73 // loop_header
                %s491 = sphi 0, %s495
                %p492 = scmp.ge.s32.totalorder %s491, 1
                %s496 = sphi %s477, %s477
                %s497 = sphi %s483, %s483
              $region77: #{vnet_forward.8} parent=73 // loop_header_branch
                %494 = sbr.rel (%p492) target = $region81
              $region78: #{vnet_forward.8} parent=73 // loop_body
                %v498 = vld [vmem:[%s496] sm:$0xff]
                %499 = vst [vmem:[%s497] sm:$0xff] %v498
                %v500 = vld [vmem:[%s496 + $0xc] sm:$0xff]
                %501 = vst [vmem:[%s497 + $0x18] sm:$0xff] %v500
                %v502 = vld [vmem:[%s496 + $0x18] sm:$0xff]
                %503 = vst [vmem:[%s497 + $0x30] sm:$0xff] %v502
                %v504 = vld [vmem:[%s496 + $0x24] sm:$0xff]
                %505 = vst [vmem:[%s497 + $0x48] sm:$0xff] %v504
              $region79: #{vnet_forward.8} parent=73 // loop_footer
                %s495 = sadd.s32 1, %s491
              $region80: #{vnet_forward.8} parent=73 // loop_footer_branch
                %490 = sbr.rel target = $region76
              $region81: #{vnet_forward.8} parent=73 // loop_exit
                _
              %s507 = ssub.s32 16, 1
              loop: start=0, step=1, limit=1
              $region82: #{vnet_forward.8} parent=73 // loop_pre_header
                _
              $region83: #{vnet_forward.8} parent=73 // loop_header
                %s509 = sphi 0, %s513
                %p510 = scmp.ge.s32.totalorder %s509, 1
                %s514 = sphi %s488, %s488
                %s515 = sphi %s489, %s489
              $region84: #{vnet_forward.8} parent=73 // loop_header_branch
                %512 = sbr.rel (%p510) target = $region88
              $region85: #{vnet_forward.8} parent=73 // loop_body
                %v516 = vld [vmem:[%s514] sm:%s507]
                %517 = vst [vmem:[%s515] sm:%s507] %v516
                %v518 = vld [vmem:[%s514 + $0xc] sm:%s507]
                %519 = vst [vmem:[%s515 + $0x18] sm:%s507] %v518
                %v520 = vld [vmem:[%s514 + $0x18] sm:%s507]
                %521 = vst [vmem:[%s515 + $0x30] sm:%s507] %v520
                %v522 = vld [vmem:[%s514 + $0x24] sm:%s507]
                %523 = vst [vmem:[%s515 + $0x48] sm:%s507] %v522
              $region86: #{vnet_forward.8} parent=73 // loop_footer
                %s513 = sadd.s32 1, %s509
              $region87: #{vnet_forward.8} parent=73 // loop_footer_branch
                %508 = sbr.rel target = $region83
              $region88: #{vnet_forward.8} parent=73 // loop_exit
                _
            $region74: #{vnet_forward.8} parent=69 // pred_fallthru
              _
          $region70: #{vnet_forward.8} parent=65 // pred_fallthru
            _
          %524 = vnop
        $region66: #{vnet_forward.8} parent=53 // pred_fallthru
          _
      $region54: #{vnet_forward.8} parent=5 // pred_fallthru
        _
      %p525 = scmp.le.s32.totalorder 2, %s10
      // Predicated region
      $region89: #{vnet_forward.8} parent=5 // pred_check
        %p526 = pneg %p525
      $region90: #{vnet_forward.8} parent=5 // pred_check_branch
        %528 = sbr.rel (%p526) target = $region92
      $region91: #{vnet_forward.8} parent=5 // pred_region
        %s529 = ssub.s32 %s10, 2
        // Predicated region
        $region93: #{vnet_forward.8} parent=91 // pred_check
          %p530 = pneg %p107
        $region94: #{vnet_forward.8} parent=91 // pred_check_branch
          %532 = sbr.rel (%p530) target = $region96
        $region95: #{vnet_forward.8} parent=91 // pred_region
          %s533 = sand.u32 %s92, 1
          %s534 = sand.u32 %s92, 1
          %s535 = smul.addr %s534, 48
          %s536 = scalar_lea.vmem [#allocation5], %s535
        $region96: #{vnet_forward.8} parent=91 // pred_fallthru
          _
      $region92: #{vnet_forward.8} parent=5 // pred_fallthru
        _
    $region6: #{vnet_forward.8} parent=1 // loop_footer
      %s14 = sadd.s32 1, %s10
    $region7: #{vnet_forward.8} parent=1 // loop_footer_branch
      %9 = sbr.rel target = $region3
    $region8: #{vnet_forward.8} parent=1 // loop_exit
      _
    %537 = vsyncpa [#allocation3], 1
    %s538 = scalar_lea.sflag [#allocation3], 1
    %539 = vsyncpa %s538, 1

// kernel: vnet_forward.9
$region0: #{vnet_forward.9}
  #allocation0 [shape = 'u32[]', space=smem, size = 0x4, offset = 0x4, fixed_abs, tag = 'smem constant byte address 0x4 - core index']
  #allocation1 [shape = 'u32[144,128]{1,0:T(1,128)}', space=vmem, size = 0x12000, scoped, tag = 'internal scratch']
  %s0 = inlined_call_operand.vmem [shape: bf16[64,864], index: 0, kind: input, shape index: {}]
  %s1 = inlined_call_operand.vmem [shape: bf16[864,128], index: 1, kind: input, shape index: {}]
  %s2 = inlined_call_operand.vmem [shape: f32[64,1], index: 2, kind: input, shape index: {}]
  %s3 = inlined_call_operand.vmem [shape: bf16[64,128], index: 3, kind: output, shape index: {}]
  %s4 = sld [smem:[#allocation0]]
  $region22: #{vnet_forward.9} parent=0
    _
  %s6 = ssub.s32 1, %s4
  %s7 = scalar_select 0, %s6, %s4
  // Predicated region
  $region2: #{vnet_forward.9} parent=0 // pred_check
    _
  $region3: #{vnet_forward.9} parent=0 // pred_check_branch
    %9 = sbr.rel (0) target = $region5
  $region4: #{vnet_forward.9} parent=0 // pred_region
    _
  $region5: #{vnet_forward.9} parent=0 // pred_fallthru
    _
  // Predicated region
  $region6: #{vnet_forward.9} parent=0 // pred_check
    _
  $region7: #{vnet_forward.9} parent=0 // pred_check_branch
    %11 = sbr.rel (0) target = $region9
  $region8: #{vnet_forward.9} parent=0 // pred_region
    _
  $region9: #{vnet_forward.9} parent=0 // pred_fallthru
    _
  // Predicated region
  $region10: #{vnet_forward.9} parent=0 // pred_check
    _
  $region11: #{vnet_forward.9} parent=0 // pred_check_branch
    %13 = sbr.rel (0) target = $region13
  $region12: #{vnet_forward.9} parent=0 // pred_region
    _
  $region13: #{vnet_forward.9} parent=0 // pred_fallthru
    _
  %v15 = vld [vmem:[%s0] sm:$0xff]
  %v16 = vld [vmem:[%s0 + $0x8] sm:$0xff]
  %v17 = vld [vmem:[%s0 + $0x10] sm:$0xff]
  %v18 = vld [vmem:[%s0 + $0x18] sm:$0xf]
  %v19 = vld [vmem:[%s0 + $0x1c] sm:$0xff]
  %v20 = vld [vmem:[%s0 + $0x24] sm:$0xff]
  %v21 = vld [vmem:[%s0 + $0x2c] sm:$0xff]
  %v22 = vld [vmem:[%s0 + $0x34] sm:$0xf]
  %v23 = vld [vmem:[%s0 + $0x38] sm:$0xff]
  %v24 = vld [vmem:[%s0 + $0x40] sm:$0xff]
  %v25 = vld [vmem:[%s0 + $0x48] sm:$0xff]
  %v26 = vld [vmem:[%s0 + $0x50] sm:$0xf]
  %v27 = vld [vmem:[%s0 + $0x54] sm:$0xff]
  %v28 = vld [vmem:[%s0 + $0x5c] sm:$0xff]
  %v29 = vld [vmem:[%s0 + $0x64] sm:$0xff]
  %v30 = vld [vmem:[%s0 + $0x6c] sm:$0xf]
  %v31 = vld [vmem:[%s0 + $0x70] sm:$0xff]
  %v32 = vld [vmem:[%s0 + $0x78] sm:$0xff]
  %v33 = vld [vmem:[%s0 + $0x80] sm:$0xff]
  %v34 = vld [vmem:[%s0 + $0x88] sm:$0xf]
  %v35 = vld [vmem:[%s0 + $0x8c] sm:$0xff]
  %v36 = vld [vmem:[%s0 + $0x94] sm:$0xff]
  %v37 = vld [vmem:[%s0 + $0x9c] sm:$0xff]
  %v38 = vld [vmem:[%s0 + $0xa4] sm:$0xf]
  %v39 = vld [vmem:[%s0 + $0xa8] sm:$0xff]
  %v40 = vld [vmem:[%s0 + $0xb0] sm:$0xff]
  %v41 = vld [vmem:[%s0 + $0xb8] sm:$0xff]
  %v42 = vld [vmem:[%s0 + $0xc0] sm:$0xf]
  %v43 = vld [vmem:[%s0 + $0xc4] sm:$0xff]
  %v44 = vld [vmem:[%s0 + $0xcc] sm:$0xff]
  %v45 = vld [vmem:[%s0 + $0xd4] sm:$0xff]
  %v46 = vld [vmem:[%s0 + $0xdc] sm:$0xf]
  %v47 = vld [vmem:[%s1] sm:$0xf]
  %v48 = vld [vmem:[%s1 + $0x4] sm:$0xf]
  %v49 = vld [vmem:[%s1 + $0x8] sm:$0xf]
  %v50 = vld [vmem:[%s1 + $0xc] sm:$0xf]
  %v51 = vld [vmem:[%s1 + $0x10] sm:$0xf]
  %v52 = vld [vmem:[%s1 + $0x14] sm:$0xf]
  %v53 = vld [vmem:[%s1 + $0x18] sm:$0xf]
  %v54 = vld [vmem:[%s1 + $0x1c] sm:$0xf]
  %v55 = vld [vmem:[%s1 + $0x20] sm:$0xf]
  %v56 = vld [vmem:[%s1 + $0x24] sm:$0xf]
  %v57 = vld [vmem:[%s1 + $0x28] sm:$0xf]
  %v58 = vld [vmem:[%s1 + $0x2c] sm:$0xf]
  %v59 = vld [vmem:[%s1 + $0x30] sm:$0xf]
  %v60 = vld [vmem:[%s1 + $0x34] sm:$0xf]
  %v61 = vld [vmem:[%s1 + $0x38] sm:$0xf]
  %v62 = vld [vmem:[%s1 + $0x3c] sm:$0xf]
  %v63 = vld [vmem:[%s1 + $0x40] sm:$0xf]
  %v64 = vld [vmem:[%s1 + $0x44] sm:$0xf]
  %v65 = vld [vmem:[%s1 + $0x48] sm:$0xf]
  %v66 = vld [vmem:[%s1 + $0x4c] sm:$0xf]
  %v67 = vld [vmem:[%s1 + $0x50] sm:$0xf]
  %v68 = vld [vmem:[%s1 + $0x54] sm:$0xf]
  %v69 = vld [vmem:[%s1 + $0x58] sm:$0xf]
  %v70 = vld [vmem:[%s1 + $0x5c] sm:$0xf]
  %v71 = vld [vmem:[%s1 + $0x60] sm:$0xf]
  %v72 = vld [vmem:[%s1 + $0x64] sm:$0xf]
  %v73 = vld [vmem:[%s1 + $0x68] sm:$0xf]
  %v74 = vld [vmem:[%s1 + $0x6c] sm:$0xf]
  %v75 = vld [vmem:[%s1 + $0x70] sm:$0xf]
  %v76 = vld [vmem:[%s1 + $0x74] sm:$0xf]
  %v77 = vld [vmem:[%s1 + $0x78] sm:$0xf]
  %v78 = vld [vmem:[%s1 + $0x7c] sm:$0xf]
  %v79 = vld [vmem:[%s1 + $0x80] sm:$0xf]
  %v80 = vld [vmem:[%s1 + $0x84] sm:$0xf]
  %v81 = vld [vmem:[%s1 + $0x88] sm:$0xf]
  %v82 = vld [vmem:[%s1 + $0x8c] sm:$0xf]
  %v83 = vld [vmem:[%s1 + $0x90] sm:$0xf]
  %v84 = vld [vmem:[%s1 + $0x94] sm:$0xf]
  %v85 = vld [vmem:[%s1 + $0x98] sm:$0xf]
  %v86 = vld [vmem:[%s1 + $0x9c] sm:$0xf]
  %v87 = vld [vmem:[%s1 + $0xa0] sm:$0xf]
  %v88 = vld [vmem:[%s1 + $0xa4] sm:$0xf]
  %v89 = vld [vmem:[%s1 + $0xa8] sm:$0xf]
  %v90 = vld [vmem:[%s1 + $0xac] sm:$0xf]
  %v91 = vld [vmem:[%s1 + $0xb0] sm:$0xf]
  %v92 = vld [vmem:[%s1 + $0xb4] sm:$0xf]
  %v93 = vld [vmem:[%s1 + $0xb8] sm:$0xf]
  %v94 = vld [vmem:[%s1 + $0xbc] sm:$0xf]
  %v95 = vld [vmem:[%s1 + $0xc0] sm:$0xf]
  %v96 = vld [vmem:[%s1 + $0xc4] sm:$0xf]
  %v97 = vld [vmem:[%s1 + $0xc8] sm:$0xf]
  %v98 = vld [vmem:[%s1 + $0xcc] sm:$0xf]
  %v99 = vld [vmem:[%s1 + $0xd0] sm:$0xf]
  %v100 = vld [vmem:[%s1 + $0xd4] sm:$0xf]
  %v101 = vld [vmem:[%s1 + $0xd8] sm:$0xf]
  %v102 = vld [vmem:[%s1 + $0xdc] sm:$0xf]
  %v103 = vld [vmem:[%s1 + $0xe0] sm:$0xf]
  %v104 = vld [vmem:[%s1 + $0xe4] sm:$0xf]
  %v105 = vld [vmem:[%s1 + $0xe8] sm:$0xf]
  %v106 = vld [vmem:[%s1 + $0xec] sm:$0xf]
  %v107 = vld [vmem:[%s1 + $0xf0] sm:$0xf]
  %v108 = vld [vmem:[%s1 + $0xf4] sm:$0xf]
  %v109 = vld [vmem:[%s1 + $0xf8] sm:$0xf]
  %v110 = vld [vmem:[%s1 + $0xfc] sm:$0xf]
  %v111 = vld [vmem:[%s1 + $0x100] sm:$0xf]
  %v112 = vld [vmem:[%s1 + $0x104] sm:$0xf]
  %v113 = vld [vmem:[%s1 + $0x108] sm:$0xf]
  %v114 = vld [vmem:[%s1 + $0x10c] sm:$0xf]
  %v115 = vld [vmem:[%s1 + $0x110] sm:$0xf]
  %v116 = vld [vmem:[%s1 + $0x114] sm:$0xf]
  %v117 = vld [vmem:[%s1 + $0x118] sm:$0xf]
  %v118 = vld [vmem:[%s1 + $0x11c] sm:$0xf]
  %v119 = vld [vmem:[%s1 + $0x120] sm:$0xf]
  %v120 = vld [vmem:[%s1 + $0x124] sm:$0xf]
  %v121 = vld [vmem:[%s1 + $0x128] sm:$0xf]
  %v122 = vld [vmem:[%s1 + $0x12c] sm:$0xf]
  %v123 = vld [vmem:[%s1 + $0x130] sm:$0xf]
  %v124 = vld [vmem:[%s1 + $0x134] sm:$0xf]
  %v125 = vld [vmem:[%s1 + $0x138] sm:$0xf]
  %v126 = vld [vmem:[%s1 + $0x13c] sm:$0xf]
  %v127 = vld [vmem:[%s1 + $0x140] sm:$0xf]
  %v128 = vld [vmem:[%s1 + $0x144] sm:$0xf]
  %v129 = vld [vmem:[%s1 + $0x148] sm:$0xf]
  %v130 = vld [vmem:[%s1 + $0x14c] sm:$0xf]
  %v131 = vld [vmem:[%s1 + $0x150] sm:$0xf]
  %v132 = vld [vmem:[%s1 + $0x154] sm:$0xf]
  %v133 = vld [vmem:[%s1 + $0x158] sm:$0xf]
  %v134 = vld [vmem:[%s1 + $0x15c] sm:$0xf]
  %v135 = vld [vmem:[%s1 + $0x160] sm:$0xf]
  %v136 = vld [vmem:[%s1 + $0x164] sm:$0xf]
  %v137 = vld [vmem:[%s1 + $0x168] sm:$0xf]
  %v138 = vld [vmem:[%s1 + $0x16c] sm:$0xf]
  %v139 = vld [vmem:[%s1 + $0x170] sm:$0xf]
  %v140 = vld [vmem:[%s1 + $0x174] sm:$0xf]
  %v141 = vld [vmem:[%s1 + $0x178] sm:$0xf]
  %v142 = vld [vmem:[%s1 + $0x17c] sm:$0xf]
  %v143 = vld [vmem:[%s1 + $0x180] sm:$0xf]
  %v144 = vld [vmem:[%s1 + $0x184] sm:$0xf]
  %v145 = vld [vmem:[%s1 + $0x188] sm:$0xf]
  %v146 = vld [vmem:[%s1 + $0x18c] sm:$0xf]
  %v147 = vld [vmem:[%s1 + $0x190] sm:$0xf]
  %v148 = vld [vmem:[%s1 + $0x194] sm:$0xf]
  %v149 = vld [vmem:[%s1 + $0x198] sm:$0xf]
  %v150 = vld [vmem:[%s1 + $0x19c] sm:$0xf]
  %v151 = vld [vmem:[%s1 + $0x1a0] sm:$0xf]
  %v152 = vld [vmem:[%s1 + $0x1a4] sm:$0xf]
  %v153 = vld [vmem:[%s1 + $0x1a8] sm:$0xf]
  %v154 = vld [vmem:[%s1 + $0x1ac] sm:$0xf]
  %v155 = vld [vmem:[%s2] sm:$0xff]
  %v156 = vld [vmem:[%s2 + $0x8] sm:$0xff]
  %v157 = vld [vmem:[%s2 + $0x10] sm:$0xff]
  %v158 = vld [vmem:[%s2 + $0x18] sm:$0xff]
  %v159 = vld [vmem:[%s2 + $0x20] sm:$0xff]
  %v160 = vld [vmem:[%s2 + $0x28] sm:$0xff]
  %v161 = vld [vmem:[%s2 + $0x30] sm:$0xff]
  %v162 = vld [vmem:[%s2 + $0x38] sm:$0xff]
  %164 = vset.pattern.permute.xlu0 0
  %165 = vperm.xlu0 %164, %v155
  %v166 = vpop.permute.xlu0 %165
  %169 = vset.pattern.permute.xlu0 0
  %170 = vperm.xlu0 %169, %v156
  %v171 = vpop.permute.xlu0 %170
  %174 = vset.pattern.permute.xlu0 0
  %175 = vperm.xlu0 %174, %v157
  %v176 = vpop.permute.xlu0 %175
  %179 = vset.pattern.permute.xlu0 0
  %180 = vperm.xlu0 %179, %v158
  %v181 = vpop.permute.xlu0 %180
  %184 = vset.pattern.permute.xlu0 0
  %185 = vperm.xlu0 %184, %v159
  %v186 = vpop.permute.xlu0 %185
  %189 = vset.pattern.permute.xlu0 0
  %190 = vperm.xlu0 %189, %v160
  %v191 = vpop.permute.xlu0 %190
  %194 = vset.pattern.permute.xlu0 0
  %195 = vperm.xlu0 %194, %v161
  %v196 = vpop.permute.xlu0 %195
  %199 = vset.pattern.permute.xlu0 0
  %200 = vperm.xlu0 %199, %v162
  %v201 = vpop.permute.xlu0 %200
  %v235 = vunpack.c.l.b16 %v15
  %v236 = vunpack.c.h.b16 %v15
  %v237 = vunpack.c.l.b16 %v16
  %v238 = vunpack.c.h.b16 %v16
  %v239 = vunpack.c.l.b16 %v17
  %v240 = vunpack.c.h.b16 %v17
  %v241 = vunpack.c.l.b16 %v18
  %v242 = vunpack.c.l.b16 %v19
  %v243 = vunpack.c.h.b16 %v19
  %v244 = vunpack.c.l.b16 %v20
  %v245 = vunpack.c.h.b16 %v20
  %v246 = vunpack.c.l.b16 %v21
  %v247 = vunpack.c.h.b16 %v21
  %v248 = vunpack.c.l.b16 %v22
  %v249 = vunpack.c.l.b16 %v23
  %v250 = vunpack.c.h.b16 %v23
  %v251 = vunpack.c.l.b16 %v24
  %v252 = vunpack.c.h.b16 %v24
  %v253 = vunpack.c.l.b16 %v25
  %v254 = vunpack.c.h.b16 %v25
  %v255 = vunpack.c.l.b16 %v26
  %v256 = vunpack.c.l.b16 %v27
  %v257 = vunpack.c.h.b16 %v27
  %v258 = vunpack.c.l.b16 %v28
  %v259 = vunpack.c.h.b16 %v28
  %v260 = vunpack.c.l.b16 %v29
  %v261 = vunpack.c.h.b16 %v29
  %v262 = vunpack.c.l.b16 %v30
  %v263 = vunpack.c.l.b16 %v31
  %v264 = vunpack.c.h.b16 %v31
  %v265 = vunpack.c.l.b16 %v32
  %v266 = vunpack.c.h.b16 %v32
  %v267 = vunpack.c.l.b16 %v33
  %v268 = vunpack.c.h.b16 %v33
  %v269 = vunpack.c.l.b16 %v34
  %v270 = vunpack.c.l.b16 %v35
  %v271 = vunpack.c.h.b16 %v35
  %v272 = vunpack.c.l.b16 %v36
  %v273 = vunpack.c.h.b16 %v36
  %v274 = vunpack.c.l.b16 %v37
  %v275 = vunpack.c.h.b16 %v37
  %v276 = vunpack.c.l.b16 %v38
  %v277 = vunpack.c.l.b16 %v39
  %v278 = vunpack.c.h.b16 %v39
  %v279 = vunpack.c.l.b16 %v40
  %v280 = vunpack.c.h.b16 %v40
  %v281 = vunpack.c.l.b16 %v41
  %v282 = vunpack.c.h.b16 %v41
  %v283 = vunpack.c.l.b16 %v42
  %v284 = vunpack.c.l.b16 %v43
  %v285 = vunpack.c.h.b16 %v43
  %v286 = vunpack.c.l.b16 %v44
  %v287 = vunpack.c.h.b16 %v44
  %v288 = vunpack.c.l.b16 %v45
  %v289 = vunpack.c.h.b16 %v45
  %v290 = vunpack.c.l.b16 %v46
  %v291 = vpack.c.b16 %v242, %v235
  %v292 = vpack.c.b16 %v243, %v236
  %v293 = vpack.c.b16 %v244, %v237
  %v294 = vpack.c.b16 %v245, %v238
  %v295 = vpack.c.b16 %v246, %v239
  %v296 = vpack.c.b16 %v247, %v240
  %v297 = vpack.c.b16 %v248, %v241
  %v298 = vpack.c.b16 %v256, %v249
  %v299 = vpack.c.b16 %v257, %v250
  %v300 = vpack.c.b16 %v258, %v251
  %v301 = vpack.c.b16 %v259, %v252
  %v302 = vpack.c.b16 %v260, %v253
  %v303 = vpack.c.b16 %v261, %v254
  %v304 = vpack.c.b16 %v262, %v255
  %v305 = vpack.c.b16 %v270, %v263
  %v306 = vpack.c.b16 %v271, %v264
  %v307 = vpack.c.b16 %v272, %v265
  %v308 = vpack.c.b16 %v273, %v266
  %v309 = vpack.c.b16 %v274, %v267
  %v310 = vpack.c.b16 %v275, %v268
  %v311 = vpack.c.b16 %v276, %v269
  %v312 = vpack.c.b16 %v284, %v277
  %v313 = vpack.c.b16 %v285, %v278
  %v314 = vpack.c.b16 %v286, %v279
  %v315 = vpack.c.b16 %v287, %v280
  %v316 = vpack.c.b16 %v288, %v281
  %v317 = vpack.c.b16 %v289, %v282
  %v318 = vpack.c.b16 %v290, %v283
  %v451 = vunpack.c.l.b16 %v47
  %v452 = vunpack.c.l.b16 %v48
  %v453 = vunpack.c.l.b16 %v49
  %v454 = vunpack.c.l.b16 %v50
  %v455 = vunpack.c.l.b16 %v51
  %v456 = vunpack.c.l.b16 %v52
  %v457 = vunpack.c.l.b16 %v53
  %v458 = vunpack.c.l.b16 %v54
  %v459 = vunpack.c.l.b16 %v55
  %v460 = vunpack.c.l.b16 %v56
  %v461 = vunpack.c.l.b16 %v57
  %v462 = vunpack.c.l.b16 %v58
  %v463 = vunpack.c.l.b16 %v59
  %v464 = vunpack.c.l.b16 %v60
  %v465 = vunpack.c.l.b16 %v61
  %v466 = vunpack.c.l.b16 %v62
  %v467 = vunpack.c.l.b16 %v63
  %v468 = vunpack.c.l.b16 %v64
  %v469 = vunpack.c.l.b16 %v65
  %v470 = vunpack.c.l.b16 %v66
  %v471 = vunpack.c.l.b16 %v67
  %v472 = vunpack.c.l.b16 %v68
  %v473 = vunpack.c.l.b16 %v69
  %v474 = vunpack.c.l.b16 %v70
  %v475 = vunpack.c.l.b16 %v71
  %v476 = vunpack.c.l.b16 %v72
  %v477 = vunpack.c.l.b16 %v73
  %v478 = vunpack.c.l.b16 %v74
  %v479 = vunpack.c.l.b16 %v75
  %v480 = vunpack.c.l.b16 %v76
  %v481 = vunpack.c.l.b16 %v77
  %v482 = vunpack.c.l.b16 %v78
  %v483 = vunpack.c.l.b16 %v79
  %v484 = vunpack.c.l.b16 %v80
  %v485 = vunpack.c.l.b16 %v81
  %v486 = vunpack.c.l.b16 %v82
  %v487 = vunpack.c.l.b16 %v83
  %v488 = vunpack.c.l.b16 %v84
  %v489 = vunpack.c.l.b16 %v85
  %v490 = vunpack.c.l.b16 %v86
  %v491 = vunpack.c.l.b16 %v87
  %v492 = vunpack.c.l.b16 %v88
  %v493 = vunpack.c.l.b16 %v89
  %v494 = vunpack.c.l.b16 %v90
  %v495 = vunpack.c.l.b16 %v91
  %v496 = vunpack.c.l.b16 %v92
  %v497 = vunpack.c.l.b16 %v93
  %v498 = vunpack.c.l.b16 %v94
  %v499 = vunpack.c.l.b16 %v95
  %v500 = vunpack.c.l.b16 %v96
  %v501 = vunpack.c.l.b16 %v97
  %v502 = vunpack.c.l.b16 %v98
  %v503 = vunpack.c.l.b16 %v99
  %v504 = vunpack.c.l.b16 %v100
  %v505 = vunpack.c.l.b16 %v101
  %v506 = vunpack.c.l.b16 %v102
  %v507 = vunpack.c.l.b16 %v103
  %v508 = vunpack.c.l.b16 %v104
  %v509 = vunpack.c.l.b16 %v105
  %v510 = vunpack.c.l.b16 %v106
  %v511 = vunpack.c.l.b16 %v107
  %v512 = vunpack.c.l.b16 %v108
  %v513 = vunpack.c.l.b16 %v109
  %v514 = vunpack.c.l.b16 %v110
  %v515 = vunpack.c.l.b16 %v111
  %v516 = vunpack.c.l.b16 %v112
  %v517 = vunpack.c.l.b16 %v113
  %v518 = vunpack.c.l.b16 %v114
  %v519 = vunpack.c.l.b16 %v115
  %v520 = vunpack.c.l.b16 %v116
  %v521 = vunpack.c.l.b16 %v117
  %v522 = vunpack.c.l.b16 %v118
  %v523 = vunpack.c.l.b16 %v119
  %v524 = vunpack.c.l.b16 %v120
  %v525 = vunpack.c.l.b16 %v121
  %v526 = vunpack.c.l.b16 %v122
  %v527 = vunpack.c.l.b16 %v123
  %v528 = vunpack.c.l.b16 %v124
  %v529 = vunpack.c.l.b16 %v125
  %v530 = vunpack.c.l.b16 %v126
  %v531 = vunpack.c.l.b16 %v127
  %v532 = vunpack.c.l.b16 %v128
  %v533 = vunpack.c.l.b16 %v129
  %v534 = vunpack.c.l.b16 %v130
  %v535 = vunpack.c.l.b16 %v131
  %v536 = vunpack.c.l.b16 %v132
  %v537 = vunpack.c.l.b16 %v133
  %v538 = vunpack.c.l.b16 %v134
  %v539 = vunpack.c.l.b16 %v135
  %v540 = vunpack.c.l.b16 %v136
  %v541 = vunpack.c.l.b16 %v137
  %v542 = vunpack.c.l.b16 %v138
  %v543 = vunpack.c.l.b16 %v139
  %v544 = vunpack.c.l.b16 %v140
  %v545 = vunpack.c.l.b16 %v141
  %v546 = vunpack.c.l.b16 %v142
  %v547 = vunpack.c.l.b16 %v143
  %v548 = vunpack.c.l.b16 %v144
  %v549 = vunpack.c.l.b16 %v145
  %v550 = vunpack.c.l.b16 %v146
  %v551 = vunpack.c.l.b16 %v147
  %v552 = vunpack.c.l.b16 %v148
  %v553 = vunpack.c.l.b16 %v149
  %v554 = vunpack.c.l.b16 %v150
  %v555 = vunpack.c.l.b16 %v151
  %v556 = vunpack.c.l.b16 %v152
  %v557 = vunpack.c.l.b16 %v153
  %v558 = vunpack.c.l.b16 %v154
  %v559 = vpack.c.b16 %v452, %v451
  %v560 = vpack.c.b16 %v454, %v453
  %v561 = vpack.c.b16 %v456, %v455
  %v562 = vpack.c.b16 %v458, %v457
  %v563 = vpack.c.b16 %v460, %v459
  %v564 = vpack.c.b16 %v462, %v461
  %v565 = vpack.c.b16 %v464, %v463
  %v566 = vpack.c.b16 %v466, %v465
  %v567 = vpack.c.b16 %v468, %v467
  %v568 = vpack.c.b16 %v470, %v469
  %v569 = vpack.c.b16 %v472, %v471
  %v570 = vpack.c.b16 %v474, %v473
  %v571 = vpack.c.b16 %v476, %v475
  %v572 = vpack.c.b16 %v478, %v477
  %v573 = vpack.c.b16 %v480, %v479
  %v574 = vpack.c.b16 %v482, %v481
  %v575 = vpack.c.b16 %v484, %v483
  %v576 = vpack.c.b16 %v486, %v485
  %v577 = vpack.c.b16 %v488, %v487
  %v578 = vpack.c.b16 %v490, %v489
  %v579 = vpack.c.b16 %v492, %v491
  %v580 = vpack.c.b16 %v494, %v493
  %v581 = vpack.c.b16 %v496, %v495
  %v582 = vpack.c.b16 %v498, %v497
  %v583 = vpack.c.b16 %v500, %v499
  %v584 = vpack.c.b16 %v502, %v501
  %v585 = vpack.c.b16 %v504, %v503
  %v586 = vpack.c.b16 %v506, %v505
  %v587 = vpack.c.b16 %v508, %v507
  %v588 = vpack.c.b16 %v510, %v509
  %v589 = vpack.c.b16 %v512, %v511
  %v590 = vpack.c.b16 %v514, %v513
  %v591 = vpack.c.b16 %v516, %v515
  %v592 = vpack.c.b16 %v518, %v517
  %v593 = vpack.c.b16 %v520, %v519
  %v594 = vpack.c.b16 %v522, %v521
  %v595 = vpack.c.b16 %v524, %v523
  %v596 = vpack.c.b16 %v526, %v525
  %v597 = vpack.c.b16 %v528, %v527
  %v598 = vpack.c.b16 %v530, %v529
  %v599 = vpack.c.b16 %v532, %v531
  %v600 = vpack.c.b16 %v534, %v533
  %v601 = vpack.c.b16 %v536, %v535
  %v602 = vpack.c.b16 %v538, %v537
  %v603 = vpack.c.b16 %v540, %v539
  %v604 = vpack.c.b16 %v542, %v541
  %v605 = vpack.c.b16 %v544, %v543
  %v606 = vpack.c.b16 %v546, %v545
  %v607 = vpack.c.b16 %v548, %v547
  %v608 = vpack.c.b16 %v550, %v549
  %v609 = vpack.c.b16 %v552, %v551
  %v610 = vpack.c.b16 %v554, %v553
  %v611 = vpack.c.b16 %v556, %v555
  %v612 = vpack.c.b16 %v558, %v557
  %vm667 = vcmask 785408
  %v669 = vsel %vm667, %v297, 0
  %v672 = vsel %vm667, %v304, 0
  %v675 = vsel %vm667, %v311, 0
  %v678 = vsel %vm667, %v318, 0
  %680 = vmatprep.subr.bf16.mxu0 0
  %681 = vmatpush1.bf16.msra.mxu0 %v566
  %682 = vmatprep.subr.bf16.mxu0 0
  %683 = vmatpush1.bf16.msra.mxu0 %v565
  %684 = vmatprep.subr.bf16.mxu0 0
  %685 = vmatpush1.bf16.msra.mxu0 %v564
  %686 = vmatprep.subr.bf16.mxu0 0
  %687 = vmatpush1.bf16.msra.mxu0 %v563
  %688 = vmatprep.subr.bf16.mxu0 0
  %689 = vmatpush1.bf16.msra.mxu0 %v562
  %690 = vmatprep.subr.bf16.mxu0 0
  %691 = vmatpush1.bf16.msra.mxu0 %v561
  %692 = vmatprep.subr.bf16.mxu0 0
  %693 = vmatpush1.bf16.msra.mxu0 %v560
  %694 = vmatprep.subr.bf16.mxu0 0
  %695 = vmatpush1.bf16.msra.mxu0 %v559
  %696 = vmatprep.subr.bf16.mxu0 0
  %697 = vmatpush2.bf16.msra.mxu0 %v574
  %698 = vmatprep.subr.bf16.mxu0 0
  %699 = vmatpush2.bf16.msra.mxu0 %v573
  %700 = vmatprep.subr.bf16.mxu0 0
  %701 = vmatpush2.bf16.msra.mxu0 %v572
  %702 = vmatprep.subr.bf16.mxu0 0
  %703 = vmatpush2.bf16.msra.mxu0 %v571
  %704 = vmatprep.subr.bf16.mxu0 0
  %705 = vmatpush2.bf16.msra.mxu0 %v570
  %706 = vmatprep.subr.bf16.mxu0 0
  %707 = vmatpush2.bf16.msra.mxu0 %v569
  %708 = vmatprep.subr.bf16.mxu0 0
  %709 = vmatpush2.bf16.msra.mxu0 %v568
  %710 = vmatprep.subr.bf16.mxu0 0
  %711 = vmatpush2.bf16.msra.mxu0 %v567
  %712 = vmatprep.mubr.bf16.mxu0 %v292
  %713 = vmatmul.mubr.bf16.gmra.mxu0 %v291
  %v714 = vpop.f32.mrf.mxu0
  %v715 = vadd.f32 %v166, %v714
  %v716 = vpop.f32.mrf.mxu0
  %v717 = vpop.f32.mrf.mxu0
  %v718 = vadd.f32 %v171, %v717
  %v719 = vpop.f32.mrf.mxu0
  %720 = vmatprep.mubr.bf16.mxu0 %v299
  %721 = vmatmul.mubr.bf16.gmra.mxu0 %v298
  %v722 = vpop.f32.mrf.mxu0
  %v723 = vadd.f32 %v176, %v722
  %v724 = vpop.f32.mrf.mxu0
  %v725 = vpop.f32.mrf.mxu0
  %v726 = vadd.f32 %v181, %v725
  %v727 = vpop.f32.mrf.mxu0
  %728 = vmatprep.mubr.bf16.mxu0 %v306
  %729 = vmatmul.mubr.bf16.gmra.mxu0 %v305
  %v730 = vpop.f32.mrf.mxu0
  %v731 = vadd.f32 %v186, %v730
  %v732 = vpop.f32.mrf.mxu0
  %v733 = vpop.f32.mrf.mxu0
  %v734 = vadd.f32 %v191, %v733
  %v735 = vpop.f32.mrf.mxu0
  %736 = vmatprep.mubr.bf16.mxu0 %v313
  %737 = vmatmul.mubr.bf16.gmra.mxu0 %v312
  %v738 = vpop.f32.mrf.mxu0
  %v739 = vadd.f32 %v196, %v738
  %v740 = vpop.f32.mrf.mxu0
  %v741 = vpop.f32.mrf.mxu0
  %v742 = vadd.f32 %v201, %v741
  %v743 = vpop.f32.mrf.mxu0
  %744 = vdwg.mxu0
  %745 = vmatprep.subr.bf16.mxu0 0
  %746 = vmatpush1.bf16.msra.mxu0 %v582
  %747 = vmatprep.subr.bf16.mxu0 0
  %748 = vmatpush1.bf16.msra.mxu0 %v581
  %749 = vmatprep.subr.bf16.mxu0 0
  %750 = vmatpush1.bf16.msra.mxu0 %v580
  %751 = vmatprep.subr.bf16.mxu0 0
  %752 = vmatpush1.bf16.msra.mxu0 %v579
  %753 = vmatprep.subr.bf16.mxu0 0
  %754 = vmatpush1.bf16.msra.mxu0 %v578
  %755 = vmatprep.subr.bf16.mxu0 0
  %756 = vmatpush1.bf16.msra.mxu0 %v577
  %757 = vmatprep.subr.bf16.mxu0 0
  %758 = vmatpush1.bf16.msra.mxu0 %v576
  %759 = vmatprep.subr.bf16.mxu0 0
  %760 = vmatpush1.bf16.msra.mxu0 %v575
  %761 = vmatprep.subr.bf16.mxu0 0
  %762 = vmatpush2.bf16.msra.mxu0 %v590
  %763 = vmatprep.subr.bf16.mxu0 0
  %764 = vmatpush2.bf16.msra.mxu0 %v589
  %765 = vmatprep.subr.bf16.mxu0 0
  %766 = vmatpush2.bf16.msra.mxu0 %v588
  %767 = vmatprep.subr.bf16.mxu0 0
  %768 = vmatpush2.bf16.msra.mxu0 %v587
  %769 = vmatprep.subr.bf16.mxu0 0
  %770 = vmatpush2.bf16.msra.mxu0 %v586
  %771 = vmatprep.subr.bf16.mxu0 0
  %772 = vmatpush2.bf16.msra.mxu0 %v585
  %773 = vmatprep.subr.bf16.mxu0 0
  %774 = vmatpush2.bf16.msra.mxu0 %v584
  %775 = vmatprep.subr.bf16.mxu0 0
  %776 = vmatpush2.bf16.msra.mxu0 %v583
  %777 = vmatprep.mubr.bf16.mxu0 %v294
  %778 = vmatmul.mubr.bf16.gmra.mxu0 %v293
  %v779 = vpop.f32.mrf.mxu0
  %v780 = vadd.f32 %v715, %v779
  %v781 = vpop.f32.mrf.mxu0
  %v782 = vpop.f32.mrf.mxu0
  %v783 = vadd.f32 %v718, %v782
  %v784 = vpop.f32.mrf.mxu0
  %785 = vmatprep.mubr.bf16.mxu0 %v301
  %786 = vmatmul.mubr.bf16.gmra.mxu0 %v300
  %v787 = vpop.f32.mrf.mxu0
  %v788 = vadd.f32 %v723, %v787
  %v789 = vpop.f32.mrf.mxu0
  %v790 = vpop.f32.mrf.mxu0
  %v791 = vadd.f32 %v726, %v790
  %v792 = vpop.f32.mrf.mxu0
  %793 = vmatprep.mubr.bf16.mxu0 %v308
  %794 = vmatmul.mubr.bf16.gmra.mxu0 %v307
  %v795 = vpop.f32.mrf.mxu0
  %v796 = vadd.f32 %v731, %v795
  %v797 = vpop.f32.mrf.mxu0
  %v798 = vpop.f32.mrf.mxu0
  %v799 = vadd.f32 %v734, %v798
  %v800 = vpop.f32.mrf.mxu0
  %801 = vmatprep.mubr.bf16.mxu0 %v315
  %802 = vmatmul.mubr.bf16.gmra.mxu0 %v314
  %v803 = vpop.f32.mrf.mxu0
  %v804 = vadd.f32 %v739, %v803
  %v805 = vpop.f32.mrf.mxu0
  %v806 = vpop.f32.mrf.mxu0
  %v807 = vadd.f32 %v742, %v806
  %v808 = vpop.f32.mrf.mxu0
  %809 = vdwg.mxu0
  %810 = vmatprep.subr.bf16.mxu0 0
  %811 = vmatpush1.bf16.msra.mxu0 %v598
  %812 = vmatprep.subr.bf16.mxu0 0
  %813 = vmatpush1.bf16.msra.mxu0 %v597
  %814 = vmatprep.subr.bf16.mxu0 0
  %815 = vmatpush1.bf16.msra.mxu0 %v596
  %816 = vmatprep.subr.bf16.mxu0 0
  %817 = vmatpush1.bf16.msra.mxu0 %v595
  %818 = vmatprep.subr.bf16.mxu0 0
  %819 = vmatpush1.bf16.msra.mxu0 %v594
  %820 = vmatprep.subr.bf16.mxu0 0
  %821 = vmatpush1.bf16.msra.mxu0 %v593
  %822 = vmatprep.subr.bf16.mxu0 0
  %823 = vmatpush1.bf16.msra.mxu0 %v592
  %824 = vmatprep.subr.bf16.mxu0 0
  %825 = vmatpush1.bf16.msra.mxu0 %v591
  %826 = vmatprep.subr.bf16.mxu0 0
  %827 = vmatpush2.bf16.msra.mxu0 %v606
  %828 = vmatprep.subr.bf16.mxu0 0
  %829 = vmatpush2.bf16.msra.mxu0 %v605
  %830 = vmatprep.subr.bf16.mxu0 0
  %831 = vmatpush2.bf16.msra.mxu0 %v604
  %832 = vmatprep.subr.bf16.mxu0 0
  %833 = vmatpush2.bf16.msra.mxu0 %v603
  %834 = vmatprep.subr.bf16.mxu0 0
  %835 = vmatpush2.bf16.msra.mxu0 %v602
  %836 = vmatprep.subr.bf16.mxu0 0
  %837 = vmatpush2.bf16.msra.mxu0 %v601
  %838 = vmatprep.subr.bf16.mxu0 0
  %839 = vmatpush2.bf16.msra.mxu0 %v600
  %840 = vmatprep.subr.bf16.mxu0 0
  %841 = vmatpush2.bf16.msra.mxu0 %v599
  %842 = vmatprep.mubr.bf16.mxu0 %v296
  %843 = vmatmul.mubr.bf16.gmra.mxu0 %v295
  %v844 = vpop.f32.mrf.mxu0
  %v845 = vadd.f32 %v780, %v844
  %v846 = vpop.f32.mrf.mxu0
  %v847 = vpop.f32.mrf.mxu0
  %v848 = vadd.f32 %v783, %v847
  %v849 = vpop.f32.mrf.mxu0
  %850 = vmatprep.mubr.bf16.mxu0 %v303
  %851 = vmatmul.mubr.bf16.gmra.mxu0 %v302
  %v852 = vpop.f32.mrf.mxu0
  %v853 = vadd.f32 %v788, %v852
  %v854 = vpop.f32.mrf.mxu0
  %v855 = vpop.f32.mrf.mxu0
  %v856 = vadd.f32 %v791, %v855
  %v857 = vpop.f32.mrf.mxu0
  %858 = vmatprep.mubr.bf16.mxu0 %v310
  %859 = vmatmul.mubr.bf16.gmra.mxu0 %v309
  %v860 = vpop.f32.mrf.mxu0
  %v861 = vadd.f32 %v796, %v860
  %v862 = vpop.f32.mrf.mxu0
  %v863 = vpop.f32.mrf.mxu0
  %v864 = vadd.f32 %v799, %v863
  %v865 = vpop.f32.mrf.mxu0
  %866 = vmatprep.mubr.bf16.mxu0 %v317
  %867 = vmatmul.mubr.bf16.gmra.mxu0 %v316
  %v868 = vpop.f32.mrf.mxu0
  %v869 = vadd.f32 %v804, %v868
  %v870 = vpop.f32.mrf.mxu0
  %v871 = vpop.f32.mrf.mxu0
  %v872 = vadd.f32 %v807, %v871
  %v873 = vpop.f32.mrf.mxu0
  %874 = vdwg.mxu0
  %875 = vmatprep.subr.bf16.mxu0 0
  %876 = vmatpush1.bf16.msra.mxu0 0
  %877 = vmatprep.subr.bf16.mxu0 0
  %878 = vmatpush1.bf16.msra.mxu0 0
  %879 = vmatprep.subr.bf16.mxu0 0
  %880 = vmatpush1.bf16.msra.mxu0 %v612
  %881 = vmatprep.subr.bf16.mxu0 0
  %882 = vmatpush1.bf16.msra.mxu0 %v611
  %883 = vmatprep.subr.bf16.mxu0 0
  %884 = vmatpush1.bf16.msra.mxu0 %v610
  %885 = vmatprep.subr.bf16.mxu0 0
  %886 = vmatpush1.bf16.msra.mxu0 %v609
  %887 = vmatprep.subr.bf16.mxu0 0
  %888 = vmatpush1.bf16.msra.mxu0 %v608
  %889 = vmatprep.subr.bf16.mxu0 0
  %890 = vmatpush1.bf16.msra.mxu0 %v607
  %891 = vmatprep.subr.bf16.mxu0 0
  %892 = vmatpush2.bf16.msra.mxu0 0
  %893 = vmatprep.subr.bf16.mxu0 0
  %894 = vmatpush2.bf16.msra.mxu0 0
  %895 = vmatprep.subr.bf16.mxu0 0
  %896 = vmatpush2.bf16.msra.mxu0 0
  %897 = vmatprep.subr.bf16.mxu0 0
  %898 = vmatpush2.bf16.msra.mxu0 0
  %899 = vmatprep.subr.bf16.mxu0 0
  %900 = vmatpush2.bf16.msra.mxu0 0
  %901 = vmatprep.subr.bf16.mxu0 0
  %902 = vmatpush2.bf16.msra.mxu0 0
  %903 = vmatprep.subr.bf16.mxu0 0
  %904 = vmatpush2.bf16.msra.mxu0 0
  %905 = vmatprep.subr.bf16.mxu0 0
  %906 = vmatpush2.bf16.msra.mxu0 0
  %907 = vmatprep.mubr.bf16.mxu0 0
  %908 = vmatmul.mubr.bf16.gmra.mxu0 %v669
  %v909 = vpop.f32.mrf.mxu0
  %v910 = vadd.f32 %v845, %v909
  %v911 = vpop.f32.mrf.mxu0
  %v912 = vpop.f32.mrf.mxu0
  %v913 = vadd.f32 %v848, %v912
  %v914 = vpop.f32.mrf.mxu0
  %915 = vmatprep.mubr.bf16.mxu0 0
  %916 = vmatmul.mubr.bf16.gmra.mxu0 %v672
  %v917 = vpop.f32.mrf.mxu0
  %v918 = vadd.f32 %v853, %v917
  %v919 = vpop.f32.mrf.mxu0
  %v920 = vpop.f32.mrf.mxu0
  %v921 = vadd.f32 %v856, %v920
  %v922 = vpop.f32.mrf.mxu0
  %923 = vmatprep.mubr.bf16.mxu0 0
  %924 = vmatmul.mubr.bf16.gmra.mxu0 %v675
  %v925 = vpop.f32.mrf.mxu0
  %v926 = vadd.f32 %v861, %v925
  %v927 = vpop.f32.mrf.mxu0
  %v928 = vpop.f32.mrf.mxu0
  %v929 = vadd.f32 %v864, %v928
  %v930 = vpop.f32.mrf.mxu0
  %931 = vmatprep.mubr.bf16.mxu0 0
  %932 = vmatmul.mubr.bf16.gmra.mxu0 %v678
  %v933 = vpop.f32.mrf.mxu0
  %v934 = vadd.f32 %v869, %v933
  %v935 = vpop.f32.mrf.mxu0
  %v936 = vpop.f32.mrf.mxu0
  %v937 = vadd.f32 %v872, %v936
  %v938 = vpop.f32.mrf.mxu0
  %939 = vdwg.mxu0
  %v940 = vmax.f32 %v910, 0.0
  %v941 = vmax.f32 %v913, 0.0
  %v942 = vmax.f32 %v918, 0.0
  %v943 = vmax.f32 %v921, 0.0
  %v944 = vmax.f32 %v926, 0.0
  %v945 = vmax.f32 %v929, 0.0
  %v946 = vmax.f32 %v934, 0.0
  %v947 = vmax.f32 %v937, 0.0
  %v948 = vpack.c.bf16 %v941, %v940
  %v949 = vpack.c.bf16 %v943, %v942
  %v950 = vpack.c.bf16 %v945, %v944
  %v951 = vpack.c.bf16 %v947, %v946
  %v956 = vunpack.c.l.b16 %v948
  %v957 = vunpack.c.h.b16 %v948
  %v958 = vunpack.c.l.b16 %v949
  %v959 = vunpack.c.h.b16 %v949
  %v960 = vunpack.c.l.b16 %v950
  %v961 = vunpack.c.h.b16 %v950
  %v962 = vunpack.c.l.b16 %v951
  %v963 = vunpack.c.h.b16 %v951
  %v964 = vpack.c.b16 %v956, %v956
  %v965 = vpack.c.b16 %v957, %v957
  %v966 = vpack.c.b16 %v958, %v958
  %v967 = vpack.c.b16 %v959, %v959
  %v968 = vpack.c.b16 %v960, %v960
  %v969 = vpack.c.b16 %v961, %v961
  %v970 = vpack.c.b16 %v962, %v962
  %v971 = vpack.c.b16 %v963, %v963
  %980 = vst [vmem:[%s3] sm:$0xf] %v964
  %981 = vst [vmem:[%s3 + $0x4] sm:$0xf] %v965
  %982 = vst [vmem:[%s3 + $0x8] sm:$0xf] %v966
  %983 = vst [vmem:[%s3 + $0xc] sm:$0xf] %v967
  %984 = vst [vmem:[%s3 + $0x10] sm:$0xf] %v968
  %985 = vst [vmem:[%s3 + $0x14] sm:$0xf] %v969
  %986 = vst [vmem:[%s3 + $0x18] sm:$0xf] %v970
  %987 = vst [vmem:[%s3 + $0x1c] sm:$0xf] %v971
  // Predicated region
  $region14: #{vnet_forward.9} parent=0 // pred_check
    _
  $region15: #{vnet_forward.9} parent=0 // pred_check_branch
    %989 = sbr.rel (0) target = $region17
  $region16: #{vnet_forward.9} parent=0 // pred_region
    _
  $region17: #{vnet_forward.9} parent=0 // pred_fallthru
    _
  // Predicated region
  $region18: #{vnet_forward.9} parent=0 // pred_check
    _
  $region19: #{vnet_forward.9} parent=0 // pred_check_branch
    %991 = sbr.rel (0) target = $region21
  $region20: #{vnet_forward.9} parent=0 // pred_region
    _
  $region21: #{vnet_forward.9} parent=0 // pred_fallthru
    _

// kernel: vnet_forward.10
$region0: #{vnet_forward.10}
  #allocation0 [shape = 'u32[]', space=smem, size = 0x4, offset = 0x4, fixed_abs, tag = 'smem constant byte address 0x4 - core index']
  #allocation1 [shape = 'u32[144,128]{1,0:T(1,128)}', space=vmem, size = 0x12000, scoped, tag = 'internal scratch']
  %s0 = inlined_call_operand.vmem [shape: bf16[128,1728], index: 0, kind: input, shape index: {}]
  %s1 = inlined_call_operand.vmem [shape: bf16[1728,128], index: 1, kind: input, shape index: {}]
  %s2 = inlined_call_operand.vmem [shape: f32[128,1], index: 2, kind: input, shape index: {}]
  %s3 = inlined_call_operand.vmem [shape: bf16[128,128], index: 3, kind: output, shape index: {}]
  %s4 = sld [smem:[#allocation0]]
  $region22: #{vnet_forward.10} parent=0
    _
  %s6 = ssub.s32 1, %s4
  %s7 = scalar_select 0, %s6, %s4
  // Predicated region
  $region2: #{vnet_forward.10} parent=0 // pred_check
    _
  $region3: #{vnet_forward.10} parent=0 // pred_check_branch
    %9 = sbr.rel (0) target = $region5
  $region4: #{vnet_forward.10} parent=0 // pred_region
    _
  $region5: #{vnet_forward.10} parent=0 // pred_fallthru
    _
  // Predicated region
  $region6: #{vnet_forward.10} parent=0 // pred_check
    _
  $region7: #{vnet_forward.10} parent=0 // pred_check_branch
    %11 = sbr.rel (0) target = $region9
  $region8: #{vnet_forward.10} parent=0 // pred_region
    _
  $region9: #{vnet_forward.10} parent=0 // pred_fallthru
    _
  // Predicated region
  $region10: #{vnet_forward.10} parent=0 // pred_check
    _
  $region11: #{vnet_forward.10} parent=0 // pred_check_branch
    %13 = sbr.rel (0) target = $region13
  $region12: #{vnet_forward.10} parent=0 // pred_region
    _
  $region13: #{vnet_forward.10} parent=0 // pred_fallthru
    _
  %v15 = vld [vmem:[%s0] sm:$0xff]
  %v16 = vld [vmem:[%s0 + $0x8] sm:$0xff]
  %v17 = vld [vmem:[%s0 + $0x10] sm:$0xff]
  %v18 = vld [vmem:[%s0 + $0x18] sm:$0xff]
  %v19 = vld [vmem:[%s0 + $0x20] sm:$0xff]
  %v20 = vld [vmem:[%s0 + $0x28] sm:$0xff]
  %v21 = vld [vmem:[%s0 + $0x30] sm:$0xff]
  %v22 = vld [vmem:[%s0 + $0x38] sm:$0xff]
  %v23 = vld [vmem:[%s0 + $0x40] sm:$0xff]
  %v24 = vld [vmem:[%s0 + $0x48] sm:$0xff]
  %v25 = vld [vmem:[%s0 + $0x50] sm:$0xff]
  %v26 = vld [vmem:[%s0 + $0x58] sm:$0xff]
  %v27 = vld [vmem:[%s0 + $0x60] sm:$0xff]
  %v28 = vld [vmem:[%s0 + $0x68] sm:$0xff]
  %v29 = vld [vmem:[%s0 + $0x70] sm:$0xff]
  %v30 = vld [vmem:[%s0 + $0x78] sm:$0xff]
  %v31 = vld [vmem:[%s0 + $0x80] sm:$0xff]
  %v32 = vld [vmem:[%s0 + $0x88] sm:$0xff]
  %v33 = vld [vmem:[%s0 + $0x90] sm:$0xff]
  %v34 = vld [vmem:[%s0 + $0x98] sm:$0xff]
  %v35 = vld [vmem:[%s0 + $0xa0] sm:$0xff]
  %v36 = vld [vmem:[%s0 + $0xa8] sm:$0xff]
  %v37 = vld [vmem:[%s0 + $0xb0] sm:$0xff]
  %v38 = vld [vmem:[%s0 + $0xb8] sm:$0xff]
  %v39 = vld [vmem:[%s0 + $0xc0] sm:$0xff]
  %v40 = vld [vmem:[%s0 + $0xc8] sm:$0xff]
  %v41 = vld [vmem:[%s0 + $0xd0] sm:$0xff]
  %v42 = vld [vmem:[%s0 + $0xd8] sm:$0xff]
  %v43 = vld [vmem:[%s0 + $0xe0] sm:$0xff]
  %v44 = vld [vmem:[%s0 + $0xe8] sm:$0xff]
  %v45 = vld [vmem:[%s0 + $0xf0] sm:$0xff]
  %v46 = vld [vmem:[%s0 + $0xf8] sm:$0xff]
  %v47 = vld [vmem:[%s0 + $0x100] sm:$0xff]
  %v48 = vld [vmem:[%s0 + $0x108] sm:$0xff]
  %v49 = vld [vmem:[%s0 + $0x110] sm:$0xff]
  %v50 = vld [vmem:[%s0 + $0x118] sm:$0xff]
  %v51 = vld [vmem:[%s0 + $0x120] sm:$0xff]
  %v52 = vld [vmem:[%s0 + $0x128] sm:$0xff]
  %v53 = vld [vmem:[%s0 + $0x130] sm:$0xff]
  %v54 = vld [vmem:[%s0 + $0x138] sm:$0xff]
  %v55 = vld [vmem:[%s0 + $0x140] sm:$0xff]
  %v56 = vld [vmem:[%s0 + $0x148] sm:$0xff]
  %v57 = vld [vmem:[%s0 + $0x150] sm:$0xff]
  %v58 = vld [vmem:[%s0 + $0x158] sm:$0xff]
  %v59 = vld [vmem:[%s0 + $0x160] sm:$0xff]
  %v60 = vld [vmem:[%s0 + $0x168] sm:$0xff]
  %v61 = vld [vmem:[%s0 + $0x170] sm:$0xff]
  %v62 = vld [vmem:[%s0 + $0x178] sm:$0xff]
  %v63 = vld [vmem:[%s0 + $0x180] sm:$0xff]
  %v64 = vld [vmem:[%s0 + $0x188] sm:$0xff]
  %v65 = vld [vmem:[%s0 + $0x190] sm:$0xff]
  %v66 = vld [vmem:[%s0 + $0x198] sm:$0xff]
  %v67 = vld [vmem:[%s0 + $0x1a0] sm:$0xff]
  %v68 = vld [vmem:[%s0 + $0x1a8] sm:$0xff]
  %v69 = vld [vmem:[%s0 + $0x1b0] sm:$0xff]
  %v70 = vld [vmem:[%s0 + $0x1b8] sm:$0xff]
  %v71 = vld [vmem:[%s0 + $0x1c0] sm:$0xff]
  %v72 = vld [vmem:[%s0 + $0x1c8] sm:$0xff]
  %v73 = vld [vmem:[%s0 + $0x1d0] sm:$0xff]
  %v74 = vld [vmem:[%s0 + $0x1d8] sm:$0xff]
  %v75 = vld [vmem:[%s0 + $0x1e0] sm:$0xff]
  %v76 = vld [vmem:[%s0 + $0x1e8] sm:$0xff]
  %v77 = vld [vmem:[%s0 + $0x1f0] sm:$0xff]
  %v78 = vld [vmem:[%s0 + $0x1f8] sm:$0xff]
  %v79 = vld [vmem:[%s0 + $0x200] sm:$0xff]
  %v80 = vld [vmem:[%s0 + $0x208] sm:$0xff]
  %v81 = vld [vmem:[%s0 + $0x210] sm:$0xff]
  %v82 = vld [vmem:[%s0 + $0x218] sm:$0xff]
  %v83 = vld [vmem:[%s0 + $0x220] sm:$0xff]
  %v84 = vld [vmem:[%s0 + $0x228] sm:$0xff]
  %v85 = vld [vmem:[%s0 + $0x230] sm:$0xff]
  %v86 = vld [vmem:[%s0 + $0x238] sm:$0xff]
  %v87 = vld [vmem:[%s0 + $0x240] sm:$0xff]
  %v88 = vld [vmem:[%s0 + $0x248] sm:$0xff]
  %v89 = vld [vmem:[%s0 + $0x250] sm:$0xff]
  %v90 = vld [vmem:[%s0 + $0x258] sm:$0xff]
  %v91 = vld [vmem:[%s0 + $0x260] sm:$0xff]
  %v92 = vld [vmem:[%s0 + $0x268] sm:$0xff]
  %v93 = vld [vmem:[%s0 + $0x270] sm:$0xff]
  %v94 = vld [vmem:[%s0 + $0x278] sm:$0xff]
  %v95 = vld [vmem:[%s0 + $0x280] sm:$0xff]
  %v96 = vld [vmem:[%s0 + $0x288] sm:$0xff]
  %v97 = vld [vmem:[%s0 + $0x290] sm:$0xff]
  %v98 = vld [vmem:[%s0 + $0x298] sm:$0xff]
  %v99 = vld [vmem:[%s0 + $0x2a0] sm:$0xff]
  %v100 = vld [vmem:[%s0 + $0x2a8] sm:$0xff]
  %v101 = vld [vmem:[%s0 + $0x2b0] sm:$0xff]
  %v102 = vld [vmem:[%s0 + $0x2b8] sm:$0xff]
  %v103 = vld [vmem:[%s0 + $0x2c0] sm:$0xff]
  %v104 = vld [vmem:[%s0 + $0x2c8] sm:$0xff]
  %v105 = vld [vmem:[%s0 + $0x2d0] sm:$0xff]
  %v106 = vld [vmem:[%s0 + $0x2d8] sm:$0xff]
  %v107 = vld [vmem:[%s0 + $0x2e0] sm:$0xff]
  %v108 = vld [vmem:[%s0 + $0x2e8] sm:$0xff]
  %v109 = vld [vmem:[%s0 + $0x2f0] sm:$0xff]
  %v110 = vld [vmem:[%s0 + $0x2f8] sm:$0xff]
  %v111 = vld [vmem:[%s0 + $0x300] sm:$0xff]
  %v112 = vld [vmem:[%s0 + $0x308] sm:$0xff]
  %v113 = vld [vmem:[%s0 + $0x310] sm:$0xff]
  %v114 = vld [vmem:[%s0 + $0x318] sm:$0xff]
  %v115 = vld [vmem:[%s0 + $0x320] sm:$0xff]
  %v116 = vld [vmem:[%s0 + $0x328] sm:$0xff]
  %v117 = vld [vmem:[%s0 + $0x330] sm:$0xff]
  %v118 = vld [vmem:[%s0 + $0x338] sm:$0xff]
  %v119 = vld [vmem:[%s0 + $0x340] sm:$0xff]
  %v120 = vld [vmem:[%s0 + $0x348] sm:$0xff]
  %v121 = vld [vmem:[%s0 + $0x350] sm:$0xff]
  %v122 = vld [vmem:[%s0 + $0x358] sm:$0xff]
  %v123 = vld [vmem:[%s0 + $0x360] sm:$0xff]
  %v124 = vld [vmem:[%s0 + $0x368] sm:$0xff]
  %v125 = vld [vmem:[%s0 + $0x370] sm:$0xff]
  %v126 = vld [vmem:[%s0 + $0x378] sm:$0xff]
  %v127 = vld [vmem:[%s1] sm:$0xf]
  %v128 = vld [vmem:[%s1 + $0x4] sm:$0xf]
  %v129 = vld [vmem:[%s1 + $0x8] sm:$0xf]
  %v130 = vld [vmem:[%s1 + $0xc] sm:$0xf]
  %v131 = vld [vmem:[%s1 + $0x10] sm:$0xf]
  %v132 = vld [vmem:[%s1 + $0x14] sm:$0xf]
  %v133 = vld [vmem:[%s1 + $0x18] sm:$0xf]
  %v134 = vld [vmem:[%s1 + $0x1c] sm:$0xf]
  %v135 = vld [vmem:[%s1 + $0x20] sm:$0xf]
  %v136 = vld [vmem:[%s1 + $0x24] sm:$0xf]
  %v137 = vld [vmem:[%s1 + $0x28] sm:$0xf]
  %v138 = vld [vmem:[%s1 + $0x2c] sm:$0xf]
  %v139 = vld [vmem:[%s1 + $0x30] sm:$0xf]
  %v140 = vld [vmem:[%s1 + $0x34] sm:$0xf]
  %v141 = vld [vmem:[%s1 + $0x38] sm:$0xf]
  %v142 = vld [vmem:[%s1 + $0x3c] sm:$0xf]
  %v143 = vld [vmem:[%s1 + $0x40] sm:$0xf]
  %v144 = vld [vmem:[%s1 + $0x44] sm:$0xf]
  %v145 = vld [vmem:[%s1 + $0x48] sm:$0xf]
  %v146 = vld [vmem:[%s1 + $0x4c] sm:$0xf]
  %v147 = vld [vmem:[%s1 + $0x50] sm:$0xf]
  %v148 = vld [vmem:[%s1 + $0x54] sm:$0xf]
  %v149 = vld [vmem:[%s1 + $0x58] sm:$0xf]
  %v150 = vld [vmem:[%s1 + $0x5c] sm:$0xf]
  %v151 = vld [vmem:[%s1 + $0x60] sm:$0xf]
  %v152 = vld [vmem:[%s1 + $0x64] sm:$0xf]
  %v153 = vld [vmem:[%s1 + $0x68] sm:$0xf]
  %v154 = vld [vmem:[%s1 + $0x6c] sm:$0xf]
  %v155 = vld [vmem:[%s1 + $0x70] sm:$0xf]
  %v156 = vld [vmem:[%s1 + $0x74] sm:$0xf]
  %v157 = vld [vmem:[%s1 + $0x78] sm:$0xf]
  %v158 = vld [vmem:[%s1 + $0x7c] sm:$0xf]
  %v159 = vld [vmem:[%s1 + $0x80] sm:$0xf]
  %v160 = vld [vmem:[%s1 + $0x84] sm:$0xf]
  %v161 = vld [vmem:[%s1 + $0x88] sm:$0xf]
  %v162 = vld [vmem:[%s1 + $0x8c] sm:$0xf]
  %v163 = vld [vmem:[%s1 + $0x90] sm:$0xf]
  %v164 = vld [vmem:[%s1 + $0x94] sm:$0xf]
  %v165 = vld [vmem:[%s1 + $0x98] sm:$0xf]
  %v166 = vld [vmem:[%s1 + $0x9c] sm:$0xf]
  %v167 = vld [vmem:[%s1 + $0xa0] sm:$0xf]
  %v168 = vld [vmem:[%s1 + $0xa4] sm:$0xf]
  %v169 = vld [vmem:[%s1 + $0xa8] sm:$0xf]
  %v170 = vld [vmem:[%s1 + $0xac] sm:$0xf]
  %v171 = vld [vmem:[%s1 + $0xb0] sm:$0xf]
  %v172 = vld [vmem:[%s1 + $0xb4] sm:$0xf]
  %v173 = vld [vmem:[%s1 + $0xb8] sm:$0xf]
  %v174 = vld [vmem:[%s1 + $0xbc] sm:$0xf]
  %v175 = vld [vmem:[%s1 + $0xc0] sm:$0xf]
  %v176 = vld [vmem:[%s1 + $0xc4] sm:$0xf]
  %v177 = vld [vmem:[%s1 + $0xc8] sm:$0xf]
  %v178 = vld [vmem:[%s1 + $0xcc] sm:$0xf]
  %v179 = vld [vmem:[%s1 + $0xd0] sm:$0xf]
  %v180 = vld [vmem:[%s1 + $0xd4] sm:$0xf]
  %v181 = vld [vmem:[%s1 + $0xd8] sm:$0xf]
  %v182 = vld [vmem:[%s1 + $0xdc] sm:$0xf]
  %v183 = vld [vmem:[%s1 + $0xe0] sm:$0xf]
  %v184 = vld [vmem:[%s1 + $0xe4] sm:$0xf]
  %v185 = vld [vmem:[%s1 + $0xe8] sm:$0xf]
  %v186 = vld [vmem:[%s1 + $0xec] sm:$0xf]
  %v187 = vld [vmem:[%s1 + $0xf0] sm:$0xf]
  %v188 = vld [vmem:[%s1 + $0xf4] sm:$0xf]
  %v189 = vld [vmem:[%s1 + $0xf8] sm:$0xf]
  %v190 = vld [vmem:[%s1 + $0xfc] sm:$0xf]
  %v191 = vld [vmem:[%s1 + $0x100] sm:$0xf]
  %v192 = vld [vmem:[%s1 + $0x104] sm:$0xf]
  %v193 = vld [vmem:[%s1 + $0x108] sm:$0xf]
  %v194 = vld [vmem:[%s1 + $0x10c] sm:$0xf]
  %v195 = vld [vmem:[%s1 + $0x110] sm:$0xf]
  %v196 = vld [vmem:[%s1 + $0x114] sm:$0xf]
  %v197 = vld [vmem:[%s1 + $0x118] sm:$0xf]
  %v198 = vld [vmem:[%s1 + $0x11c] sm:$0xf]
  %v199 = vld [vmem:[%s1 + $0x120] sm:$0xf]
  %v200 = vld [vmem:[%s1 + $0x124] sm:$0xf]
  %v201 = vld [vmem:[%s1 + $0x128] sm:$0xf]
  %v202 = vld [vmem:[%s1 + $0x12c] sm:$0xf]
  %v203 = vld [vmem:[%s1 + $0x130] sm:$0xf]
  %v204 = vld [vmem:[%s1 + $0x134] sm:$0xf]
  %v205 = vld [vmem:[%s1 + $0x138] sm:$0xf]
  %v206 = vld [vmem:[%s1 + $0x13c] sm:$0xf]
  %v207 = vld [vmem:[%s1 + $0x140] sm:$0xf]
  %v208 = vld [vmem:[%s1 + $0x144] sm:$0xf]
  %v209 = vld [vmem:[%s1 + $0x148] sm:$0xf]
  %v210 = vld [vmem:[%s1 + $0x14c] sm:$0xf]
  %v211 = vld [vmem:[%s1 + $0x150] sm:$0xf]
  %v212 = vld [vmem:[%s1 + $0x154] sm:$0xf]
  %v213 = vld [vmem:[%s1 + $0x158] sm:$0xf]
  %v214 = vld [vmem:[%s1 + $0x15c] sm:$0xf]
  %v215 = vld [vmem:[%s1 + $0x160] sm:$0xf]
  %v216 = vld [vmem:[%s1 + $0x164] sm:$0xf]
  %v217 = vld [vmem:[%s1 + $0x168] sm:$0xf]
  %v218 = vld [vmem:[%s1 + $0x16c] sm:$0xf]
  %v219 = vld [vmem:[%s1 + $0x170] sm:$0xf]
  %v220 = vld [vmem:[%s1 + $0x174] sm:$0xf]
  %v221 = vld [vmem:[%s1 + $0x178] sm:$0xf]
  %v222 = vld [vmem:[%s1 + $0x17c] sm:$0xf]
  %v223 = vld [vmem:[%s1 + $0x180] sm:$0xf]
  %v224 = vld [vmem:[%s1 + $0x184] sm:$0xf]
  %v225 = vld [vmem:[%s1 + $0x188] sm:$0xf]
  %v226 = vld [vmem:[%s1 + $0x18c] sm:$0xf]
  %v227 = vld [vmem:[%s1 + $0x190] sm:$0xf]
  %v228 = vld [vmem:[%s1 + $0x194] sm:$0xf]
  %v229 = vld [vmem:[%s1 + $0x198] sm:$0xf]
  %v230 = vld [vmem:[%s1 + $0x19c] sm:$0xf]
  %v231 = vld [vmem:[%s1 + $0x1a0] sm:$0xf]
  %v232 = vld [vmem:[%s1 + $0x1a4] sm:$0xf]
  %v233 = vld [vmem:[%s1 + $0x1a8] sm:$0xf]
  %v234 = vld [vmem:[%s1 + $0x1ac] sm:$0xf]
  %v235 = vld [vmem:[%s1 + $0x1b0] sm:$0xf]
  %v236 = vld [vmem:[%s1 + $0x1b4] sm:$0xf]
  %v237 = vld [vmem:[%s1 + $0x1b8] sm:$0xf]
  %v238 = vld [vmem:[%s1 + $0x1bc] sm:$0xf]
  %v239 = vld [vmem:[%s1 + $0x1c0] sm:$0xf]
  %v240 = vld [vmem:[%s1 + $0x1c4] sm:$0xf]
  %v241 = vld [vmem:[%s1 + $0x1c8] sm:$0xf]
  %v242 = vld [vmem:[%s1 + $0x1cc] sm:$0xf]
  %v243 = vld [vmem:[%s1 + $0x1d0] sm:$0xf]
  %v244 = vld [vmem:[%s1 + $0x1d4] sm:$0xf]
  %v245 = vld [vmem:[%s1 + $0x1d8] sm:$0xf]
  %v246 = vld [vmem:[%s1 + $0x1dc] sm:$0xf]
  %v247 = vld [vmem:[%s1 + $0x1e0] sm:$0xf]
  %v248 = vld [vmem:[%s1 + $0x1e4] sm:$0xf]
  %v249 = vld [vmem:[%s1 + $0x1e8] sm:$0xf]
  %v250 = vld [vmem:[%s1 + $0x1ec] sm:$0xf]
  %v251 = vld [vmem:[%s1 + $0x1f0] sm:$0xf]
  %v252 = vld [vmem:[%s1 + $0x1f4] sm:$0xf]
  %v253 = vld [vmem:[%s1 + $0x1f8] sm:$0xf]
  %v254 = vld [vmem:[%s1 + $0x1fc] sm:$0xf]
  %v255 = vld [vmem:[%s1 + $0x200] sm:$0xf]
  %v256 = vld [vmem:[%s1 + $0x204] sm:$0xf]
  %v257 = vld [vmem:[%s1 + $0x208] sm:$0xf]
  %v258 = vld [vmem:[%s1 + $0x20c] sm:$0xf]
  %v259 = vld [vmem:[%s1 + $0x210] sm:$0xf]
  %v260 = vld [vmem:[%s1 + $0x214] sm:$0xf]
  %v261 = vld [vmem:[%s1 + $0x218] sm:$0xf]
  %v262 = vld [vmem:[%s1 + $0x21c] sm:$0xf]
  %v263 = vld [vmem:[%s1 + $0x220] sm:$0xf]
  %v264 = vld [vmem:[%s1 + $0x224] sm:$0xf]
  %v265 = vld [vmem:[%s1 + $0x228] sm:$0xf]
  %v266 = vld [vmem:[%s1 + $0x22c] sm:$0xf]
  %v267 = vld [vmem:[%s1 + $0x230] sm:$0xf]
  %v268 = vld [vmem:[%s1 + $0x234] sm:$0xf]
  %v269 = vld [vmem:[%s1 + $0x238] sm:$0xf]
  %v270 = vld [vmem:[%s1 + $0x23c] sm:$0xf]
  %v271 = vld [vmem:[%s1 + $0x240] sm:$0xf]
  %v272 = vld [vmem:[%s1 + $0x244] sm:$0xf]
  %v273 = vld [vmem:[%s1 + $0x248] sm:$0xf]
  %v274 = vld [vmem:[%s1 + $0x24c] sm:$0xf]
  %v275 = vld [vmem:[%s1 + $0x250] sm:$0xf]
  %v276 = vld [vmem:[%s1 + $0x254] sm:$0xf]
  %v277 = vld [vmem:[%s1 + $0x258] sm:$0xf]
  %v278 = vld [vmem:[%s1 + $0x25c] sm:$0xf]
  %v279 = vld [vmem:[%s1 + $0x260] sm:$0xf]
  %v280 = vld [vmem:[%s1 + $0x264] sm:$0xf]
  %v281 = vld [vmem:[%s1 + $0x268] sm:$0xf]
  %v282 = vld [vmem:[%s1 + $0x26c] sm:$0xf]
  %v283 = vld [vmem:[%s1 + $0x270] sm:$0xf]
  %v284 = vld [vmem:[%s1 + $0x274] sm:$0xf]
  %v285 = vld [vmem:[%s1 + $0x278] sm:$0xf]
  %v286 = vld [vmem:[%s1 + $0x27c] sm:$0xf]
  %v287 = vld [vmem:[%s1 + $0x280] sm:$0xf]
  %v288 = vld [vmem:[%s1 + $0x284] sm:$0xf]
  %v289 = vld [vmem:[%s1 + $0x288] sm:$0xf]
  %v290 = vld [vmem:[%s1 + $0x28c] sm:$0xf]
  %v291 = vld [vmem:[%s1 + $0x290] sm:$0xf]
  %v292 = vld [vmem:[%s1 + $0x294] sm:$0xf]
  %v293 = vld [vmem:[%s1 + $0x298] sm:$0xf]
  %v294 = vld [vmem:[%s1 + $0x29c] sm:$0xf]
  %v295 = vld [vmem:[%s1 + $0x2a0] sm:$0xf]
  %v296 = vld [vmem:[%s1 + $0x2a4] sm:$0xf]
  %v297 = vld [vmem:[%s1 + $0x2a8] sm:$0xf]
  %v298 = vld [vmem:[%s1 + $0x2ac] sm:$0xf]
  %v299 = vld [vmem:[%s1 + $0x2b0] sm:$0xf]
  %v300 = vld [vmem:[%s1 + $0x2b4] sm:$0xf]
  %v301 = vld [vmem:[%s1 + $0x2b8] sm:$0xf]
  %v302 = vld [vmem:[%s1 + $0x2bc] sm:$0xf]
  %v303 = vld [vmem:[%s1 + $0x2c0] sm:$0xf]
  %v304 = vld [vmem:[%s1 + $0x2c4] sm:$0xf]
  %v305 = vld [vmem:[%s1 + $0x2c8] sm:$0xf]
  %v306 = vld [vmem:[%s1 + $0x2cc] sm:$0xf]
  %v307 = vld [vmem:[%s1 + $0x2d0] sm:$0xf]
  %v308 = vld [vmem:[%s1 + $0x2d4] sm:$0xf]
  %v309 = vld [vmem:[%s1 + $0x2d8] sm:$0xf]
  %v310 = vld [vmem:[%s1 + $0x2dc] sm:$0xf]
  %v311 = vld [vmem:[%s1 + $0x2e0] sm:$0xf]
  %v312 = vld [vmem:[%s1 + $0x2e4] sm:$0xf]
  %v313 = vld [vmem:[%s1 + $0x2e8] sm:$0xf]
  %v314 = vld [vmem:[%s1 + $0x2ec] sm:$0xf]
  %v315 = vld [vmem:[%s1 + $0x2f0] sm:$0xf]
  %v316 = vld [vmem:[%s1 + $0x2f4] sm:$0xf]
  %v317 = vld [vmem:[%s1 + $0x2f8] sm:$0xf]
  %v318 = vld [vmem:[%s1 + $0x2fc] sm:$0xf]
  %v319 = vld [vmem:[%s1 + $0x300] sm:$0xf]
  %v320 = vld [vmem:[%s1 + $0x304] sm:$0xf]
  %v321 = vld [vmem:[%s1 + $0x308] sm:$0xf]
  %v322 = vld [vmem:[%s1 + $0x30c] sm:$0xf]
  %v323 = vld [vmem:[%s1 + $0x310] sm:$0xf]
  %v324 = vld [vmem:[%s1 + $0x314] sm:$0xf]
  %v325 = vld [vmem:[%s1 + $0x318] sm:$0xf]
  %v326 = vld [vmem:[%s1 + $0x31c] sm:$0xf]
  %v327 = vld [vmem:[%s1 + $0x320] sm:$0xf]
  %v328 = vld [vmem:[%s1 + $0x324] sm:$0xf]
  %v329 = vld [vmem:[%s1 + $0x328] sm:$0xf]
  %v330 = vld [vmem:[%s1 + $0x32c] sm:$0xf]
  %v331 = vld [vmem:[%s1 + $0x330] sm:$0xf]
  %v332 = vld [vmem:[%s1 + $0x334] sm:$0xf]
  %v333 = vld [vmem:[%s1 + $0x338] sm:$0xf]
  %v334 = vld [vmem:[%s1 + $0x33c] sm:$0xf]
  %v335 = vld [vmem:[%s1 + $0x340] sm:$0xf]
  %v336 = vld [vmem:[%s1 + $0x344] sm:$0xf]
  %v337 = vld [vmem:[%s1 + $0x348] sm:$0xf]
  %v338 = vld [vmem:[%s1 + $0x34c] sm:$0xf]
  %v339 = vld [vmem:[%s1 + $0x350] sm:$0xf]
  %v340 = vld [vmem:[%s1 + $0x354] sm:$0xf]
  %v341 = vld [vmem:[%s1 + $0x358] sm:$0xf]
  %v342 = vld [vmem:[%s1 + $0x35c] sm:$0xf]
  %v343 = vld [vmem:[%s2] sm:$0xff]
  %v344 = vld [vmem:[%s2 + $0x8] sm:$0xff]
  %v345 = vld [vmem:[%s2 + $0x10] sm:$0xff]
  %v346 = vld [vmem:[%s2 + $0x18] sm:$0xff]
  %v347 = vld [vmem:[%s2 + $0x20] sm:$0xff]
  %v348 = vld [vmem:[%s2 + $0x28] sm:$0xff]
  %v349 = vld [vmem:[%s2 + $0x30] sm:$0xff]
  %v350 = vld [vmem:[%s2 + $0x38] sm:$0xff]
  %v351 = vld [vmem:[%s2 + $0x40] sm:$0xff]
  %v352 = vld [vmem:[%s2 + $0x48] sm:$0xff]
  %v353 = vld [vmem:[%s2 + $0x50] sm:$0xff]
  %v354 = vld [vmem:[%s2 + $0x58] sm:$0xff]
  %v355 = vld [vmem:[%s2 + $0x60] sm:$0xff]
  %v356 = vld [vmem:[%s2 + $0x68] sm:$0xff]
  %v357 = vld [vmem:[%s2 + $0x70] sm:$0xff]
  %v358 = vld [vmem:[%s2 + $0x78] sm:$0xff]
  %360 = vset.pattern.permute.xlu0 0
  %361 = vperm.xlu0 %360, %v343
  %v362 = vpop.permute.xlu0 %361
  %365 = vset.pattern.permute.xlu0 0
  %366 = vperm.xlu0 %365, %v344
  %v367 = vpop.permute.xlu0 %366
  %370 = vset.pattern.permute.xlu0 0
  %371 = vperm.xlu0 %370, %v345
  %v372 = vpop.permute.xlu0 %371
  %375 = vset.pattern.permute.xlu0 0
  %376 = vperm.xlu0 %375, %v346
  %v377 = vpop.permute.xlu0 %376
  %380 = vset.pattern.permute.xlu0 0
  %381 = vperm.xlu0 %380, %v347
  %v382 = vpop.permute.xlu0 %381
  %385 = vset.pattern.permute.xlu0 0
  %386 = vperm.xlu0 %385, %v348
  %v387 = vpop.permute.xlu0 %386
  %390 = vset.pattern.permute.xlu0 0
  %391 = vperm.xlu0 %390, %v349
  %v392 = vpop.permute.xlu0 %391
  %395 = vset.pattern.permute.xlu0 0
  %396 = vperm.xlu0 %395, %v350
  %v397 = vpop.permute.xlu0 %396
  %400 = vset.pattern.permute.xlu0 0
  %401 = vperm.xlu0 %400, %v351
  %v402 = vpop.permute.xlu0 %401
  %405 = vset.pattern.permute.xlu0 0
  %406 = vperm.xlu0 %405, %v352
  %v407 = vpop.permute.xlu0 %406
  %410 = vset.pattern.permute.xlu0 0
  %411 = vperm.xlu0 %410, %v353
  %v412 = vpop.permute.xlu0 %411
  %415 = vset.pattern.permute.xlu0 0
  %416 = vperm.xlu0 %415, %v354
  %v417 = vpop.permute.xlu0 %416
  %420 = vset.pattern.permute.xlu0 0
  %421 = vperm.xlu0 %420, %v355
  %v422 = vpop.permute.xlu0 %421
  %425 = vset.pattern.permute.xlu0 0
  %426 = vperm.xlu0 %425, %v356
  %v427 = vpop.permute.xlu0 %426
  %430 = vset.pattern.permute.xlu0 0
  %431 = vperm.xlu0 %430, %v357
  %v432 = vpop.permute.xlu0 %431
  %435 = vset.pattern.permute.xlu0 0
  %436 = vperm.xlu0 %435, %v358
  %v437 = vpop.permute.xlu0 %436
  %v551 = vunpack.c.l.b16 %v15
  %v552 = vunpack.c.h.b16 %v15
  %v553 = vunpack.c.l.b16 %v16
  %v554 = vunpack.c.h.b16 %v16
  %v555 = vunpack.c.l.b16 %v17
  %v556 = vunpack.c.h.b16 %v17
  %v557 = vunpack.c.l.b16 %v18
  %v558 = vunpack.c.h.b16 %v18
  %v559 = vunpack.c.l.b16 %v19
  %v560 = vunpack.c.h.b16 %v19
  %v561 = vunpack.c.l.b16 %v20
  %v562 = vunpack.c.h.b16 %v20
  %v563 = vunpack.c.l.b16 %v21
  %v564 = vunpack.c.h.b16 %v21
  %v565 = vunpack.c.l.b16 %v22
  %v566 = vunpack.c.h.b16 %v22
  %v567 = vunpack.c.l.b16 %v23
  %v568 = vunpack.c.h.b16 %v23
  %v569 = vunpack.c.l.b16 %v24
  %v570 = vunpack.c.h.b16 %v24
  %v571 = vunpack.c.l.b16 %v25
  %v572 = vunpack.c.h.b16 %v25
  %v573 = vunpack.c.l.b16 %v26
  %v574 = vunpack.c.h.b16 %v26
  %v575 = vunpack.c.l.b16 %v27
  %v576 = vunpack.c.h.b16 %v27
  %v577 = vunpack.c.l.b16 %v28
  %v578 = vunpack.c.h.b16 %v28
  %v579 = vunpack.c.l.b16 %v29
  %v580 = vunpack.c.h.b16 %v29
  %v581 = vunpack.c.l.b16 %v30
  %v582 = vunpack.c.h.b16 %v30
  %v583 = vunpack.c.l.b16 %v31
  %v584 = vunpack.c.h.b16 %v31
  %v585 = vunpack.c.l.b16 %v32
  %v586 = vunpack.c.h.b16 %v32
  %v587 = vunpack.c.l.b16 %v33
  %v588 = vunpack.c.h.b16 %v33
  %v589 = vunpack.c.l.b16 %v34
  %v590 = vunpack.c.h.b16 %v34
  %v591 = vunpack.c.l.b16 %v35
  %v592 = vunpack.c.h.b16 %v35
  %v593 = vunpack.c.l.b16 %v36
  %v594 = vunpack.c.h.b16 %v36
  %v595 = vunpack.c.l.b16 %v37
  %v596 = vunpack.c.h.b16 %v37
  %v597 = vunpack.c.l.b16 %v38
  %v598 = vunpack.c.h.b16 %v38
  %v599 = vunpack.c.l.b16 %v39
  %v600 = vunpack.c.h.b16 %v39
  %v601 = vunpack.c.l.b16 %v40
  %v602 = vunpack.c.h.b16 %v40
  %v603 = vunpack.c.l.b16 %v41
  %v604 = vunpack.c.h.b16 %v41
  %v605 = vunpack.c.l.b16 %v42
  %v606 = vunpack.c.h.b16 %v42
  %v607 = vunpack.c.l.b16 %v43
  %v608 = vunpack.c.h.b16 %v43
  %v609 = vunpack.c.l.b16 %v44
  %v610 = vunpack.c.h.b16 %v44
  %v611 = vunpack.c.l.b16 %v45
  %v612 = vunpack.c.h.b16 %v45
  %v613 = vunpack.c.l.b16 %v46
  %v614 = vunpack.c.h.b16 %v46
  %v615 = vunpack.c.l.b16 %v47
  %v616 = vunpack.c.h.b16 %v47
  %v617 = vunpack.c.l.b16 %v48
  %v618 = vunpack.c.h.b16 %v48
  %v619 = vunpack.c.l.b16 %v49
  %v620 = vunpack.c.h.b16 %v49
  %v621 = vunpack.c.l.b16 %v50
  %v622 = vunpack.c.h.b16 %v50
  %v623 = vunpack.c.l.b16 %v51
  %v624 = vunpack.c.h.b16 %v51
  %v625 = vunpack.c.l.b16 %v52
  %v626 = vunpack.c.h.b16 %v52
  %v627 = vunpack.c.l.b16 %v53
  %v628 = vunpack.c.h.b16 %v53
  %v629 = vunpack.c.l.b16 %v54
  %v630 = vunpack.c.h.b16 %v54
  %v631 = vunpack.c.l.b16 %v55
  %v632 = vunpack.c.h.b16 %v55
  %v633 = vunpack.c.l.b16 %v56
  %v634 = vunpack.c.h.b16 %v56
  %v635 = vunpack.c.l.b16 %v57
  %v636 = vunpack.c.h.b16 %v57
  %v637 = vunpack.c.l.b16 %v58
  %v638 = vunpack.c.h.b16 %v58
  %v639 = vunpack.c.l.b16 %v59
  %v640 = vunpack.c.h.b16 %v59
  %v641 = vunpack.c.l.b16 %v60
  %v642 = vunpack.c.h.b16 %v60
  %v643 = vunpack.c.l.b16 %v61
  %v644 = vunpack.c.h.b16 %v61
  %v645 = vunpack.c.l.b16 %v62
  %v646 = vunpack.c.h.b16 %v62
  %v647 = vunpack.c.l.b16 %v63
  %v648 = vunpack.c.h.b16 %v63
  %v649 = vunpack.c.l.b16 %v64
  %v650 = vunpack.c.h.b16 %v64
  %v651 = vunpack.c.l.b16 %v65
  %v652 = vunpack.c.h.b16 %v65
  %v653 = vunpack.c.l.b16 %v66
  %v654 = vunpack.c.h.b16 %v66
  %v655 = vunpack.c.l.b16 %v67
  %v656 = vunpack.c.h.b16 %v67
  %v657 = vunpack.c.l.b16 %v68
  %v658 = vunpack.c.h.b16 %v68
  %v659 = vunpack.c.l.b16 %v69
  %v660 = vunpack.c.h.b16 %v69
  %v661 = vunpack.c.l.b16 %v70
  %v662 = vunpack.c.h.b16 %v70
  %v663 = vunpack.c.l.b16 %v71
  %v664 = vunpack.c.h.b16 %v71
  %v665 = vunpack.c.l.b16 %v72
  %v666 = vunpack.c.h.b16 %v72
  %v667 = vunpack.c.l.b16 %v73
  %v668 = vunpack.c.h.b16 %v73
  %v669 = vunpack.c.l.b16 %v74
  %v670 = vunpack.c.h.b16 %v74
  %v671 = vunpack.c.l.b16 %v75
  %v672 = vunpack.c.h.b16 %v75
  %v673 = vunpack.c.l.b16 %v76
  %v674 = vunpack.c.h.b16 %v76
  %v675 = vunpack.c.l.b16 %v77
  %v676 = vunpack.c.h.b16 %v77
  %v677 = vunpack.c.l.b16 %v78
  %v678 = vunpack.c.h.b16 %v78
  %v679 = vunpack.c.l.b16 %v79
  %v680 = vunpack.c.h.b16 %v79
  %v681 = vunpack.c.l.b16 %v80
  %v682 = vunpack.c.h.b16 %v80
  %v683 = vunpack.c.l.b16 %v81
  %v684 = vunpack.c.h.b16 %v81
  %v685 = vunpack.c.l.b16 %v82
  %v686 = vunpack.c.h.b16 %v82
  %v687 = vunpack.c.l.b16 %v83
  %v688 = vunpack.c.h.b16 %v83
  %v689 = vunpack.c.l.b16 %v84
  %v690 = vunpack.c.h.b16 %v84
  %v691 = vunpack.c.l.b16 %v85
  %v692 = vunpack.c.h.b16 %v85
  %v693 = vunpack.c.l.b16 %v86
  %v694 = vunpack.c.h.b16 %v86
  %v695 = vunpack.c.l.b16 %v87
  %v696 = vunpack.c.h.b16 %v87
  %v697 = vunpack.c.l.b16 %v88
  %v698 = vunpack.c.h.b16 %v88
  %v699 = vunpack.c.l.b16 %v89
  %v700 = vunpack.c.h.b16 %v89
  %v701 = vunpack.c.l.b16 %v90
  %v702 = vunpack.c.h.b16 %v90
  %v703 = vunpack.c.l.b16 %v91
  %v704 = vunpack.c.h.b16 %v91
  %v705 = vunpack.c.l.b16 %v92
  %v706 = vunpack.c.h.b16 %v92
  %v707 = vunpack.c.l.b16 %v93
  %v708 = vunpack.c.h.b16 %v93
  %v709 = vunpack.c.l.b16 %v94
  %v710 = vunpack.c.h.b16 %v94
  %v711 = vunpack.c.l.b16 %v95
  %v712 = vunpack.c.h.b16 %v95
  %v713 = vunpack.c.l.b16 %v96
  %v714 = vunpack.c.h.b16 %v96
  %v715 = vunpack.c.l.b16 %v97
  %v716 = vunpack.c.h.b16 %v97
  %v717 = vunpack.c.l.b16 %v98
  %v718 = vunpack.c.h.b16 %v98
  %v719 = vunpack.c.l.b16 %v99
  %v720 = vunpack.c.h.b16 %v99
  %v721 = vunpack.c.l.b16 %v100
  %v722 = vunpack.c.h.b16 %v100
  %v723 = vunpack.c.l.b16 %v101
  %v724 = vunpack.c.h.b16 %v101
  %v725 = vunpack.c.l.b16 %v102
  %v726 = vunpack.c.h.b16 %v102
  %v727 = vunpack.c.l.b16 %v103
  %v728 = vunpack.c.h.b16 %v103
  %v729 = vunpack.c.l.b16 %v104
  %v730 = vunpack.c.h.b16 %v104
  %v731 = vunpack.c.l.b16 %v105
  %v732 = vunpack.c.h.b16 %v105
  %v733 = vunpack.c.l.b16 %v106
  %v734 = vunpack.c.h.b16 %v106
  %v735 = vunpack.c.l.b16 %v107
  %v736 = vunpack.c.h.b16 %v107
  %v737 = vunpack.c.l.b16 %v108
  %v738 = vunpack.c.h.b16 %v108
  %v739 = vunpack.c.l.b16 %v109
  %v740 = vunpack.c.h.b16 %v109
  %v741 = vunpack.c.l.b16 %v110
  %v742 = vunpack.c.h.b16 %v110
  %v743 = vunpack.c.l.b16 %v111
  %v744 = vunpack.c.h.b16 %v111
  %v745 = vunpack.c.l.b16 %v112
  %v746 = vunpack.c.h.b16 %v112
  %v747 = vunpack.c.l.b16 %v113
  %v748 = vunpack.c.h.b16 %v113
  %v749 = vunpack.c.l.b16 %v114
  %v750 = vunpack.c.h.b16 %v114
  %v751 = vunpack.c.l.b16 %v115
  %v752 = vunpack.c.h.b16 %v115
  %v753 = vunpack.c.l.b16 %v116
  %v754 = vunpack.c.h.b16 %v116
  %v755 = vunpack.c.l.b16 %v117
  %v756 = vunpack.c.h.b16 %v117
  %v757 = vunpack.c.l.b16 %v118
  %v758 = vunpack.c.h.b16 %v118
  %v759 = vunpack.c.l.b16 %v119
  %v760 = vunpack.c.h.b16 %v119
  %v761 = vunpack.c.l.b16 %v120
  %v762 = vunpack.c.h.b16 %v120
  %v763 = vunpack.c.l.b16 %v121
  %v764 = vunpack.c.h.b16 %v121
  %v765 = vunpack.c.l.b16 %v122
  %v766 = vunpack.c.h.b16 %v122
  %v767 = vunpack.c.l.b16 %v123
  %v768 = vunpack.c.h.b16 %v123
  %v769 = vunpack.c.l.b16 %v124
  %v770 = vunpack.c.h.b16 %v124
  %v771 = vunpack.c.l.b16 %v125
  %v772 = vunpack.c.h.b16 %v125
  %v773 = vunpack.c.l.b16 %v126
  %v774 = vunpack.c.h.b16 %v126
  %v775 = vpack.c.b16 %v565, %v551
  %v776 = vpack.c.b16 %v566, %v552
  %v777 = vpack.c.b16 %v567, %v553
  %v778 = vpack.c.b16 %v568, %v554
  %v779 = vpack.c.b16 %v569, %v555
  %v780 = vpack.c.b16 %v570, %v556
  %v781 = vpack.c.b16 %v571, %v557
  %v782 = vpack.c.b16 %v572, %v558
  %v783 = vpack.c.b16 %v573, %v559
  %v784 = vpack.c.b16 %v574, %v560
  %v785 = vpack.c.b16 %v575, %v561
  %v786 = vpack.c.b16 %v576, %v562
  %v787 = vpack.c.b16 %v577, %v563
  %v788 = vpack.c.b16 %v578, %v564
  %v789 = vpack.c.b16 %v593, %v579
  %v790 = vpack.c.b16 %v594, %v580
  %v791 = vpack.c.b16 %v595, %v581
  %v792 = vpack.c.b16 %v596, %v582
  %v793 = vpack.c.b16 %v597, %v583
  %v794 = vpack.c.b16 %v598, %v584
  %v795 = vpack.c.b16 %v599, %v585
  %v796 = vpack.c.b16 %v600, %v586
  %v797 = vpack.c.b16 %v601, %v587
  %v798 = vpack.c.b16 %v602, %v588
  %v799 = vpack.c.b16 %v603, %v589
  %v800 = vpack.c.b16 %v604, %v590
  %v801 = vpack.c.b16 %v605, %v591
  %v802 = vpack.c.b16 %v606, %v592
  %v803 = vpack.c.b16 %v621, %v607
  %v804 = vpack.c.b16 %v622, %v608
  %v805 = vpack.c.b16 %v623, %v609
  %v806 = vpack.c.b16 %v624, %v610
  %v807 = vpack.c.b16 %v625, %v611
  %v808 = vpack.c.b16 %v626, %v612
  %v809 = vpack.c.b16 %v627, %v613
  %v810 = vpack.c.b16 %v628, %v614
  %v811 = vpack.c.b16 %v629, %v615
  %v812 = vpack.c.b16 %v630, %v616
  %v813 = vpack.c.b16 %v631, %v617
  %v814 = vpack.c.b16 %v632, %v618
  %v815 = vpack.c.b16 %v633, %v619
  %v816 = vpack.c.b16 %v634, %v620
  %v817 = vpack.c.b16 %v649, %v635
  %v818 = vpack.c.b16 %v650, %v636
  %v819 = vpack.c.b16 %v651, %v637
  %v820 = vpack.c.b16 %v652, %v638
  %v821 = vpack.c.b16 %v653, %v639
  %v822 = vpack.c.b16 %v654, %v640
  %v823 = vpack.c.b16 %v655, %v641
  %v824 = vpack.c.b16 %v656, %v642
  %v825 = vpack.c.b16 %v657, %v643
  %v826 = vpack.c.b16 %v658, %v644
  %v827 = vpack.c.b16 %v659, %v645
  %v828 = vpack.c.b16 %v660, %v646
  %v829 = vpack.c.b16 %v661, %v647
  %v830 = vpack.c.b16 %v662, %v648
  %v831 = vpack.c.b16 %v677, %v663
  %v832 = vpack.c.b16 %v678, %v664
  %v833 = vpack.c.b16 %v679, %v665
  %v834 = vpack.c.b16 %v680, %v666
  %v835 = vpack.c.b16 %v681, %v667
  %v836 = vpack.c.b16 %v682, %v668
  %v837 = vpack.c.b16 %v683, %v669
  %v838 = vpack.c.b16 %v684, %v670
  %v839 = vpack.c.b16 %v685, %v671
  %v840 = vpack.c.b16 %v686, %v672
  %v841 = vpack.c.b16 %v687, %v673
  %v842 = vpack.c.b16 %v688, %v674
  %v843 = vpack.c.b16 %v689, %v675
  %v844 = vpack.c.b16 %v690, %v676
  %v845 = vpack.c.b16 %v705, %v691
  %v846 = vpack.c.b16 %v706, %v692
  %v847 = vpack.c.b16 %v707, %v693
  %v848 = vpack.c.b16 %v708, %v694
  %v849 = vpack.c.b16 %v709, %v695
  %v850 = vpack.c.b16 %v710, %v696
  %v851 = vpack.c.b16 %v711, %v697
  %v852 = vpack.c.b16 %v712, %v698
  %v853 = vpack.c.b16 %v713, %v699
  %v854 = vpack.c.b16 %v714, %v700
  %v855 = vpack.c.b16 %v715, %v701
  %v856 = vpack.c.b16 %v716, %v702
  %v857 = vpack.c.b16 %v717, %v703
  %v858 = vpack.c.b16 %v718, %v704
  %v859 = vpack.c.b16 %v733, %v719
  %v860 = vpack.c.b16 %v734, %v720
  %v861 = vpack.c.b16 %v735, %v721
  %v862 = vpack.c.b16 %v736, %v722
  %v863 = vpack.c.b16 %v737, %v723
  %v864 = vpack.c.b16 %v738, %v724
  %v865 = vpack.c.b16 %v739, %v725
  %v866 = vpack.c.b16 %v740, %v726
  %v867 = vpack.c.b16 %v741, %v727
  %v868 = vpack.c.b16 %v742, %v728
  %v869 = vpack.c.b16 %v743, %v729
  %v870 = vpack.c.b16 %v744, %v730
  %v871 = vpack.c.b16 %v745, %v731
  %v872 = vpack.c.b16 %v746, %v732
  %v873 = vpack.c.b16 %v761, %v747
  %v874 = vpack.c.b16 %v762, %v748
  %v875 = vpack.c.b16 %v763, %v749
  %v876 = vpack.c.b16 %v764, %v750
  %v877 = vpack.c.b16 %v765, %v751
  %v878 = vpack.c.b16 %v766, %v752
  %v879 = vpack.c.b16 %v767, %v753
  %v880 = vpack.c.b16 %v768, %v754
  %v881 = vpack.c.b16 %v769, %v755
  %v882 = vpack.c.b16 %v770, %v756
  %v883 = vpack.c.b16 %v771, %v757
  %v884 = vpack.c.b16 %v772, %v758
  %v885 = vpack.c.b16 %v773, %v759
  %v886 = vpack.c.b16 %v774, %v760
  %v1207 = vunpack.c.l.b16 %v127
  %v1208 = vunpack.c.l.b16 %v128
  %v1209 = vunpack.c.l.b16 %v129
  %v1210 = vunpack.c.l.b16 %v130
  %v1211 = vunpack.c.l.b16 %v131
  %v1212 = vunpack.c.l.b16 %v132
  %v1213 = vunpack.c.l.b16 %v133
  %v1214 = vunpack.c.l.b16 %v134
  %v1215 = vunpack.c.l.b16 %v135
  %v1216 = vunpack.c.l.b16 %v136
  %v1217 = vunpack.c.l.b16 %v137
  %v1218 = vunpack.c.l.b16 %v138
  %v1219 = vunpack.c.l.b16 %v139
  %v1220 = vunpack.c.l.b16 %v140
  %v1221 = vunpack.c.l.b16 %v141
  %v1222 = vunpack.c.l.b16 %v142
  %v1223 = vunpack.c.l.b16 %v143
  %v1224 = vunpack.c.l.b16 %v144
  %v1225 = vunpack.c.l.b16 %v145
  %v1226 = vunpack.c.l.b16 %v146
  %v1227 = vunpack.c.l.b16 %v147
  %v1228 = vunpack.c.l.b16 %v148
  %v1229 = vunpack.c.l.b16 %v149
  %v1230 = vunpack.c.l.b16 %v150
  %v1231 = vunpack.c.l.b16 %v151
  %v1232 = vunpack.c.l.b16 %v152
  %v1233 = vunpack.c.l.b16 %v153
  %v1234 = vunpack.c.l.b16 %v154
  %v1235 = vunpack.c.l.b16 %v155
  %v1236 = vunpack.c.l.b16 %v156
  %v1237 = vunpack.c.l.b16 %v157
  %v1238 = vunpack.c.l.b16 %v158
  %v1239 = vunpack.c.l.b16 %v159
  %v1240 = vunpack.c.l.b16 %v160
  %v1241 = vunpack.c.l.b16 %v161
  %v1242 = vunpack.c.l.b16 %v162
  %v1243 = vunpack.c.l.b16 %v163
  %v1244 = vunpack.c.l.b16 %v164
  %v1245 = vunpack.c.l.b16 %v165
  %v1246 = vunpack.c.l.b16 %v166
  %v1247 = vunpack.c.l.b16 %v167
  %v1248 = vunpack.c.l.b16 %v168
  %v1249 = vunpack.c.l.b16 %v169
  %v1250 = vunpack.c.l.b16 %v170
  %v1251 = vunpack.c.l.b16 %v171
  %v1252 = vunpack.c.l.b16 %v172
  %v1253 = vunpack.c.l.b16 %v173
  %v1254 = vunpack.c.l.b16 %v174
  %v1255 = vunpack.c.l.b16 %v175
  %v1256 = vunpack.c.l.b16 %v176
  %v1257 = vunpack.c.l.b16 %v177
  %v1258 = vunpack.c.l.b16 %v178
  %v1259 = vunpack.c.l.b16 %v179
  %v1260 = vunpack.c.l.b16 %v180
  %v1261 = vunpack.c.l.b16 %v181
  %v1262 = vunpack.c.l.b16 %v182
  %v1263 = vunpack.c.l.b16 %v183
  %v1264 = vunpack.c.l.b16 %v184
  %v1265 = vunpack.c.l.b16 %v185
  %v1266 = vunpack.c.l.b16 %v186
  %v1267 = vunpack.c.l.b16 %v187
  %v1268 = vunpack.c.l.b16 %v188
  %v1269 = vunpack.c.l.b16 %v189
  %v1270 = vunpack.c.l.b16 %v190
  %v1271 = vunpack.c.l.b16 %v191
  %v1272 = vunpack.c.l.b16 %v192
  %v1273 = vunpack.c.l.b16 %v193
  %v1274 = vunpack.c.l.b16 %v194
  %v1275 = vunpack.c.l.b16 %v195
  %v1276 = vunpack.c.l.b16 %v196
  %v1277 = vunpack.c.l.b16 %v197
  %v1278 = vunpack.c.l.b16 %v198
  %v1279 = vunpack.c.l.b16 %v199
  %v1280 = vunpack.c.l.b16 %v200
  %v1281 = vunpack.c.l.b16 %v201
  %v1282 = vunpack.c.l.b16 %v202
  %v1283 = vunpack.c.l.b16 %v203
  %v1284 = vunpack.c.l.b16 %v204
  %v1285 = vunpack.c.l.b16 %v205
  %v1286 = vunpack.c.l.b16 %v206
  %v1287 = vunpack.c.l.b16 %v207
  %v1288 = vunpack.c.l.b16 %v208
  %v1289 = vunpack.c.l.b16 %v209
  %v1290 = vunpack.c.l.b16 %v210
  %v1291 = vunpack.c.l.b16 %v211
  %v1292 = vunpack.c.l.b16 %v212
  %v1293 = vunpack.c.l.b16 %v213
  %v1294 = vunpack.c.l.b16 %v214
  %v1295 = vunpack.c.l.b16 %v215
  %v1296 = vunpack.c.l.b16 %v216
  %v1297 = vunpack.c.l.b16 %v217
  %v1298 = vunpack.c.l.b16 %v218
  %v1299 = vunpack.c.l.b16 %v219
  %v1300 = vunpack.c.l.b16 %v220
  %v1301 = vunpack.c.l.b16 %v221
  %v1302 = vunpack.c.l.b16 %v222
  %v1303 = vunpack.c.l.b16 %v223
  %v1304 = vunpack.c.l.b16 %v224
  %v1305 = vunpack.c.l.b16 %v225
  %v1306 = vunpack.c.l.b16 %v226
  %v1307 = vunpack.c.l.b16 %v227
  %v1308 = vunpack.c.l.b16 %v228
  %v1309 = vunpack.c.l.b16 %v229
  %v1310 = vunpack.c.l.b16 %v230
  %v1311 = vunpack.c.l.b16 %v231
  %v1312 = vunpack.c.l.b16 %v232
  %v1313 = vunpack.c.l.b16 %v233
  %v1314 = vunpack.c.l.b16 %v234
  %v1315 = vunpack.c.l.b16 %v235
  %v1316 = vunpack.c.l.b16 %v236
  %v1317 = vunpack.c.l.b16 %v237
  %v1318 = vunpack.c.l.b16 %v238
  %v1319 = vunpack.c.l.b16 %v239
  %v1320 = vunpack.c.l.b16 %v240
  %v1321 = vunpack.c.l.b16 %v241
  %v1322 = vunpack.c.l.b16 %v242
  %v1323 = vunpack.c.l.b16 %v243
  %v1324 = vunpack.c.l.b16 %v244
  %v1325 = vunpack.c.l.b16 %v245
  %v1326 = vunpack.c.l.b16 %v246
  %v1327 = vunpack.c.l.b16 %v247
  %v1328 = vunpack.c.l.b16 %v248
  %v1329 = vunpack.c.l.b16 %v249
  %v1330 = vunpack.c.l.b16 %v250
  %v1331 = vunpack.c.l.b16 %v251
  %v1332 = vunpack.c.l.b16 %v252
  %v1333 = vunpack.c.l.b16 %v253
  %v1334 = vunpack.c.l.b16 %v254
  %v1335 = vunpack.c.l.b16 %v255
  %v1336 = vunpack.c.l.b16 %v256
  %v1337 = vunpack.c.l.b16 %v257
  %v1338 = vunpack.c.l.b16 %v258
  %v1339 = vunpack.c.l.b16 %v259
  %v1340 = vunpack.c.l.b16 %v260
  %v1341 = vunpack.c.l.b16 %v261
  %v1342 = vunpack.c.l.b16 %v262
  %v1343 = vunpack.c.l.b16 %v263
  %v1344 = vunpack.c.l.b16 %v264
  %v1345 = vunpack.c.l.b16 %v265
  %v1346 = vunpack.c.l.b16 %v266
  %v1347 = vunpack.c.l.b16 %v267
  %v1348 = vunpack.c.l.b16 %v268
  %v1349 = vunpack.c.l.b16 %v269
  %v1350 = vunpack.c.l.b16 %v270
  %v1351 = vunpack.c.l.b16 %v271
  %v1352 = vunpack.c.l.b16 %v272
  %v1353 = vunpack.c.l.b16 %v273
  %v1354 = vunpack.c.l.b16 %v274
  %v1355 = vunpack.c.l.b16 %v275
  %v1356 = vunpack.c.l.b16 %v276
  %v1357 = vunpack.c.l.b16 %v277
  %v1358 = vunpack.c.l.b16 %v278
  %v1359 = vunpack.c.l.b16 %v279
  %v1360 = vunpack.c.l.b16 %v280
  %v1361 = vunpack.c.l.b16 %v281
  %v1362 = vunpack.c.l.b16 %v282
  %v1363 = vunpack.c.l.b16 %v283
  %v1364 = vunpack.c.l.b16 %v284
  %v1365 = vunpack.c.l.b16 %v285
  %v1366 = vunpack.c.l.b16 %v286
  %v1367 = vunpack.c.l.b16 %v287
  %v1368 = vunpack.c.l.b16 %v288
  %v1369 = vunpack.c.l.b16 %v289
  %v1370 = vunpack.c.l.b16 %v290
  %v1371 = vunpack.c.l.b16 %v291
  %v1372 = vunpack.c.l.b16 %v292
  %v1373 = vunpack.c.l.b16 %v293
  %v1374 = vunpack.c.l.b16 %v294
  %v1375 = vunpack.c.l.b16 %v295
  %v1376 = vunpack.c.l.b16 %v296
  %v1377 = vunpack.c.l.b16 %v297
  %v1378 = vunpack.c.l.b16 %v298
  %v1379 = vunpack.c.l.b16 %v299
  %v1380 = vunpack.c.l.b16 %v300
  %v1381 = vunpack.c.l.b16 %v301
  %v1382 = vunpack.c.l.b16 %v302
  %v1383 = vunpack.c.l.b16 %v303
  %v1384 = vunpack.c.l.b16 %v304
  %v1385 = vunpack.c.l.b16 %v305
  %v1386 = vunpack.c.l.b16 %v306
  %v1387 = vunpack.c.l.b16 %v307
  %v1388 = vunpack.c.l.b16 %v308
  %v1389 = vunpack.c.l.b16 %v309
  %v1390 = vunpack.c.l.b16 %v310
  %v1391 = vunpack.c.l.b16 %v311
  %v1392 = vunpack.c.l.b16 %v312
  %v1393 = vunpack.c.l.b16 %v313
  %v1394 = vunpack.c.l.b16 %v314
  %v1395 = vunpack.c.l.b16 %v315
  %v1396 = vunpack.c.l.b16 %v316
  %v1397 = vunpack.c.l.b16 %v317
  %v1398 = vunpack.c.l.b16 %v318
  %v1399 = vunpack.c.l.b16 %v319
  %v1400 = vunpack.c.l.b16 %v320
  %v1401 = vunpack.c.l.b16 %v321
  %v1402 = vunpack.c.l.b16 %v322
  %v1403 = vunpack.c.l.b16 %v323
  %v1404 = vunpack.c.l.b16 %v324
  %v1405 = vunpack.c.l.b16 %v325
  %v1406 = vunpack.c.l.b16 %v326
  %v1407 = vunpack.c.l.b16 %v327
  %v1408 = vunpack.c.l.b16 %v328
  %v1409 = vunpack.c.l.b16 %v329
  %v1410 = vunpack.c.l.b16 %v330
  %v1411 = vunpack.c.l.b16 %v331
  %v1412 = vunpack.c.l.b16 %v332
  %v1413 = vunpack.c.l.b16 %v333
  %v1414 = vunpack.c.l.b16 %v334
  %v1415 = vunpack.c.l.b16 %v335
  %v1416 = vunpack.c.l.b16 %v336
  %v1417 = vunpack.c.l.b16 %v337
  %v1418 = vunpack.c.l.b16 %v338
  %v1419 = vunpack.c.l.b16 %v339
  %v1420 = vunpack.c.l.b16 %v340
  %v1421 = vunpack.c.l.b16 %v341
  %v1422 = vunpack.c.l.b16 %v342
  %v1423 = vpack.c.b16 %v1208, %v1207
  %v1424 = vpack.c.b16 %v1210, %v1209
  %v1425 = vpack.c.b16 %v1212, %v1211
  %v1426 = vpack.c.b16 %v1214, %v1213
  %v1427 = vpack.c.b16 %v1216, %v1215
  %v1428 = vpack.c.b16 %v1218, %v1217
  %v1429 = vpack.c.b16 %v1220, %v1219
  %v1430 = vpack.c.b16 %v1222, %v1221
  %v1431 = vpack.c.b16 %v1224, %v1223
  %v1432 = vpack.c.b16 %v1226, %v1225
  %v1433 = vpack.c.b16 %v1228, %v1227
  %v1434 = vpack.c.b16 %v1230, %v1229
  %v1435 = vpack.c.b16 %v1232, %v1231
  %v1436 = vpack.c.b16 %v1234, %v1233
  %v1437 = vpack.c.b16 %v1236, %v1235
  %v1438 = vpack.c.b16 %v1238, %v1237
  %v1439 = vpack.c.b16 %v1240, %v1239
  %v1440 = vpack.c.b16 %v1242, %v1241
  %v1441 = vpack.c.b16 %v1244, %v1243
  %v1442 = vpack.c.b16 %v1246, %v1245
  %v1443 = vpack.c.b16 %v1248, %v1247
  %v1444 = vpack.c.b16 %v1250, %v1249
  %v1445 = vpack.c.b16 %v1252, %v1251
  %v1446 = vpack.c.b16 %v1254, %v1253
  %v1447 = vpack.c.b16 %v1256, %v1255
  %v1448 = vpack.c.b16 %v1258, %v1257
  %v1449 = vpack.c.b16 %v1260, %v1259
  %v1450 = vpack.c.b16 %v1262, %v1261
  %v1451 = vpack.c.b16 %v1264, %v1263
  %v1452 = vpack.c.b16 %v1266, %v1265
  %v1453 = vpack.c.b16 %v1268, %v1267
  %v1454 = vpack.c.b16 %v1270, %v1269
  %v1455 = vpack.c.b16 %v1272, %v1271
  %v1456 = vpack.c.b16 %v1274, %v1273
  %v1457 = vpack.c.b16 %v1276, %v1275
  %v1458 = vpack.c.b16 %v1278, %v1277
  %v1459 = vpack.c.b16 %v1280, %v1279
  %v1460 = vpack.c.b16 %v1282, %v1281
  %v1461 = vpack.c.b16 %v1284, %v1283
  %v1462 = vpack.c.b16 %v1286, %v1285
  %v1463 = vpack.c.b16 %v1288, %v1287
  %v1464 = vpack.c.b16 %v1290, %v1289
  %v1465 = vpack.c.b16 %v1292, %v1291
  %v1466 = vpack.c.b16 %v1294, %v1293
  %v1467 = vpack.c.b16 %v1296, %v1295
  %v1468 = vpack.c.b16 %v1298, %v1297
  %v1469 = vpack.c.b16 %v1300, %v1299
  %v1470 = vpack.c.b16 %v1302, %v1301
  %v1471 = vpack.c.b16 %v1304, %v1303
  %v1472 = vpack.c.b16 %v1306, %v1305
  %v1473 = vpack.c.b16 %v1308, %v1307
  %v1474 = vpack.c.b16 %v1310, %v1309
  %v1475 = vpack.c.b16 %v1312, %v1311
  %v1476 = vpack.c.b16 %v1314, %v1313
  %v1477 = vpack.c.b16 %v1316, %v1315
  %v1478 = vpack.c.b16 %v1318, %v1317
  %v1479 = vpack.c.b16 %v1320, %v1319
  %v1480 = vpack.c.b16 %v1322, %v1321
  %v1481 = vpack.c.b16 %v1324, %v1323
  %v1482 = vpack.c.b16 %v1326, %v1325
  %v1483 = vpack.c.b16 %v1328, %v1327
  %v1484 = vpack.c.b16 %v1330, %v1329
  %v1485 = vpack.c.b16 %v1332, %v1331
  %v1486 = vpack.c.b16 %v1334, %v1333
  %v1487 = vpack.c.b16 %v1336, %v1335
  %v1488 = vpack.c.b16 %v1338, %v1337
  %v1489 = vpack.c.b16 %v1340, %v1339
  %v1490 = vpack.c.b16 %v1342, %v1341
  %v1491 = vpack.c.b16 %v1344, %v1343
  %v1492 = vpack.c.b16 %v1346, %v1345
  %v1493 = vpack.c.b16 %v1348, %v1347
  %v1494 = vpack.c.b16 %v1350, %v1349
  %v1495 = vpack.c.b16 %v1352, %v1351
  %v1496 = vpack.c.b16 %v1354, %v1353
  %v1497 = vpack.c.b16 %v1356, %v1355
  %v1498 = vpack.c.b16 %v1358, %v1357
  %v1499 = vpack.c.b16 %v1360, %v1359
  %v1500 = vpack.c.b16 %v1362, %v1361
  %v1501 = vpack.c.b16 %v1364, %v1363
  %v1502 = vpack.c.b16 %v1366, %v1365
  %v1503 = vpack.c.b16 %v1368, %v1367
  %v1504 = vpack.c.b16 %v1370, %v1369
  %v1505 = vpack.c.b16 %v1372, %v1371
  %v1506 = vpack.c.b16 %v1374, %v1373
  %v1507 = vpack.c.b16 %v1376, %v1375
  %v1508 = vpack.c.b16 %v1378, %v1377
  %v1509 = vpack.c.b16 %v1380, %v1379
  %v1510 = vpack.c.b16 %v1382, %v1381
  %v1511 = vpack.c.b16 %v1384, %v1383
  %v1512 = vpack.c.b16 %v1386, %v1385
  %v1513 = vpack.c.b16 %v1388, %v1387
  %v1514 = vpack.c.b16 %v1390, %v1389
  %v1515 = vpack.c.b16 %v1392, %v1391
  %v1516 = vpack.c.b16 %v1394, %v1393
  %v1517 = vpack.c.b16 %v1396, %v1395
  %v1518 = vpack.c.b16 %v1398, %v1397
  %v1519 = vpack.c.b16 %v1400, %v1399
  %v1520 = vpack.c.b16 %v1402, %v1401
  %v1521 = vpack.c.b16 %v1404, %v1403
  %v1522 = vpack.c.b16 %v1406, %v1405
  %v1523 = vpack.c.b16 %v1408, %v1407
  %v1524 = vpack.c.b16 %v1410, %v1409
  %v1525 = vpack.c.b16 %v1412, %v1411
  %v1526 = vpack.c.b16 %v1414, %v1413
  %v1527 = vpack.c.b16 %v1416, %v1415
  %v1528 = vpack.c.b16 %v1418, %v1417
  %v1529 = vpack.c.b16 %v1420, %v1419
  %v1530 = vpack.c.b16 %v1422, %v1421
  %vm1639 = vcmask 523264
  %v1641 = vsel %vm1639, %v788, 0
  %v1644 = vsel %vm1639, %v802, 0
  %v1647 = vsel %vm1639, %v816, 0
  %v1650 = vsel %vm1639, %v830, 0
  %v1653 = vsel %vm1639, %v844, 0
  %v1656 = vsel %vm1639, %v858, 0
  %v1659 = vsel %vm1639, %v872, 0
  %v1662 = vsel %vm1639, %v886, 0
  %1664 = vmatprep.subr.bf16.mxu0 0
  %1665 = vmatpush1.bf16.msra.mxu0 %v1430
  %1666 = vmatprep.subr.bf16.mxu0 0
  %1667 = vmatpush1.bf16.msra.mxu0 %v1429
  %1668 = vmatprep.subr.bf16.mxu0 0
  %1669 = vmatpush1.bf16.msra.mxu0 %v1428
  %1670 = vmatprep.subr.bf16.mxu0 0
  %1671 = vmatpush1.bf16.msra.mxu0 %v1427
  %1672 = vmatprep.subr.bf16.mxu0 0
  %1673 = vmatpush1.bf16.msra.mxu0 %v1426
  %1674 = vmatprep.subr.bf16.mxu0 0
  %1675 = vmatpush1.bf16.msra.mxu0 %v1425
  %1676 = vmatprep.subr.bf16.mxu0 0
  %1677 = vmatpush1.bf16.msra.mxu0 %v1424
  %1678 = vmatprep.subr.bf16.mxu0 0
  %1679 = vmatpush1.bf16.msra.mxu0 %v1423
  %1680 = vmatprep.subr.bf16.mxu0 0
  %1681 = vmatpush2.bf16.msra.mxu0 %v1438
  %1682 = vmatprep.subr.bf16.mxu0 0
  %1683 = vmatpush2.bf16.msra.mxu0 %v1437
  %1684 = vmatprep.subr.bf16.mxu0 0
  %1685 = vmatpush2.bf16.msra.mxu0 %v1436
  %1686 = vmatprep.subr.bf16.mxu0 0
  %1687 = vmatpush2.bf16.msra.mxu0 %v1435
  %1688 = vmatprep.subr.bf16.mxu0 0
  %1689 = vmatpush2.bf16.msra.mxu0 %v1434
  %1690 = vmatprep.subr.bf16.mxu0 0
  %1691 = vmatpush2.bf16.msra.mxu0 %v1433
  %1692 = vmatprep.subr.bf16.mxu0 0
  %1693 = vmatpush2.bf16.msra.mxu0 %v1432
  %1694 = vmatprep.subr.bf16.mxu0 0
  %1695 = vmatpush2.bf16.msra.mxu0 %v1431
  %1696 = vmatprep.mubr.bf16.mxu0 %v776
  %1697 = vmatmul.mubr.bf16.gmra.mxu0 %v775
  %v1698 = vpop.f32.mrf.mxu0
  %v1699 = vadd.f32 %v362, %v1698
  %v1700 = vpop.f32.mrf.mxu0
  %v1701 = vpop.f32.mrf.mxu0
  %v1702 = vadd.f32 %v367, %v1701
  %v1703 = vpop.f32.mrf.mxu0
  %1704 = vmatprep.mubr.bf16.mxu0 %v790
  %1705 = vmatmul.mubr.bf16.gmra.mxu0 %v789
  %v1706 = vpop.f32.mrf.mxu0
  %v1707 = vadd.f32 %v372, %v1706
  %v1708 = vpop.f32.mrf.mxu0
  %v1709 = vpop.f32.mrf.mxu0
  %v1710 = vadd.f32 %v377, %v1709
  %v1711 = vpop.f32.mrf.mxu0
  %1712 = vmatprep.mubr.bf16.mxu0 %v804
  %1713 = vmatmul.mubr.bf16.gmra.mxu0 %v803
  %v1714 = vpop.f32.mrf.mxu0
  %v1715 = vadd.f32 %v382, %v1714
  %v1716 = vpop.f32.mrf.mxu0
  %v1717 = vpop.f32.mrf.mxu0
  %v1718 = vadd.f32 %v387, %v1717
  %v1719 = vpop.f32.mrf.mxu0
  %1720 = vmatprep.mubr.bf16.mxu0 %v818
  %1721 = vmatmul.mubr.bf16.gmra.mxu0 %v817
  %v1722 = vpop.f32.mrf.mxu0
  %v1723 = vadd.f32 %v392, %v1722
  %v1724 = vpop.f32.mrf.mxu0
  %v1725 = vpop.f32.mrf.mxu0
  %v1726 = vadd.f32 %v397, %v1725
  %v1727 = vpop.f32.mrf.mxu0
  %1728 = vmatprep.mubr.bf16.mxu0 %v832
  %1729 = vmatmul.mubr.bf16.gmra.mxu0 %v831
  %v1730 = vpop.f32.mrf.mxu0
  %v1731 = vadd.f32 %v402, %v1730
  %v1732 = vpop.f32.mrf.mxu0
  %v1733 = vpop.f32.mrf.mxu0
  %v1734 = vadd.f32 %v407, %v1733
  %v1735 = vpop.f32.mrf.mxu0
  %1736 = vmatprep.mubr.bf16.mxu0 %v846
  %1737 = vmatmul.mubr.bf16.gmra.mxu0 %v845
  %v1738 = vpop.f32.mrf.mxu0
  %v1739 = vadd.f32 %v412, %v1738
  %v1740 = vpop.f32.mrf.mxu0
  %v1741 = vpop.f32.mrf.mxu0
  %v1742 = vadd.f32 %v417, %v1741
  %v1743 = vpop.f32.mrf.mxu0
  %1744 = vmatprep.mubr.bf16.mxu0 %v860
  %1745 = vmatmul.mubr.bf16.gmra.mxu0 %v859
  %v1746 = vpop.f32.mrf.mxu0
  %v1747 = vadd.f32 %v422, %v1746
  %v1748 = vpop.f32.mrf.mxu0
  %v1749 = vpop.f32.mrf.mxu0
  %v1750 = vadd.f32 %v427, %v1749
  %v1751 = vpop.f32.mrf.mxu0
  %1752 = vmatprep.mubr.bf16.mxu0 %v874
  %1753 = vmatmul.mubr.bf16.gmra.mxu0 %v873
  %v1754 = vpop.f32.mrf.mxu0
  %v1755 = vadd.f32 %v432, %v1754
  %v1756 = vpop.f32.mrf.mxu0
  %v1757 = vpop.f32.mrf.mxu0
  %v1758 = vadd.f32 %v437, %v1757
  %v1759 = vpop.f32.mrf.mxu0
  %1760 = vdwg.mxu0
  %1761 = vmatprep.subr.bf16.mxu0 0
  %1762 = vmatpush1.bf16.msra.mxu0 %v1446
  %1763 = vmatprep.subr.bf16.mxu0 0
  %1764 = vmatpush1.bf16.msra.mxu0 %v1445
  %1765 = vmatprep.subr.bf16.mxu0 0
  %1766 = vmatpush1.bf16.msra.mxu0 %v1444
  %1767 = vmatprep.subr.bf16.mxu0 0
  %1768 = vmatpush1.bf16.msra.mxu0 %v1443
  %1769 = vmatprep.subr.bf16.mxu0 0
  %1770 = vmatpush1.bf16.msra.mxu0 %v1442
  %1771 = vmatprep.subr.bf16.mxu0 0
  %1772 = vmatpush1.bf16.msra.mxu0 %v1441
  %1773 = vmatprep.subr.bf16.mxu0 0
  %1774 = vmatpush1.bf16.msra.mxu0 %v1440
  %1775 = vmatprep.subr.bf16.mxu0 0
  %1776 = vmatpush1.bf16.msra.mxu0 %v1439
  %1777 = vmatprep.subr.bf16.mxu0 0
  %1778 = vmatpush2.bf16.msra.mxu0 %v1454
  %1779 = vmatprep.subr.bf16.mxu0 0
  %1780 = vmatpush2.bf16.msra.mxu0 %v1453
  %1781 = vmatprep.subr.bf16.mxu0 0
  %1782 = vmatpush2.bf16.msra.mxu0 %v1452
  %1783 = vmatprep.subr.bf16.mxu0 0
  %1784 = vmatpush2.bf16.msra.mxu0 %v1451
  %1785 = vmatprep.subr.bf16.mxu0 0
  %1786 = vmatpush2.bf16.msra.mxu0 %v1450
  %1787 = vmatprep.subr.bf16.mxu0 0
  %1788 = vmatpush2.bf16.msra.mxu0 %v1449
  %1789 = vmatprep.subr.bf16.mxu0 0
  %1790 = vmatpush2.bf16.msra.mxu0 %v1448
  %1791 = vmatprep.subr.bf16.mxu0 0
  %1792 = vmatpush2.bf16.msra.mxu0 %v1447
  %1793 = vmatprep.mubr.bf16.mxu0 %v778
  %1794 = vmatmul.mubr.bf16.gmra.mxu0 %v777
  %v1795 = vpop.f32.mrf.mxu0
  %v1796 = vadd.f32 %v1699, %v1795
  %v1797 = vpop.f32.mrf.mxu0
  %v1798 = vpop.f32.mrf.mxu0
  %v1799 = vadd.f32 %v1702, %v1798
  %v1800 = vpop.f32.mrf.mxu0
  %1801 = vmatprep.mubr.bf16.mxu0 %v792
  %1802 = vmatmul.mubr.bf16.gmra.mxu0 %v791
  %v1803 = vpop.f32.mrf.mxu0
  %v1804 = vadd.f32 %v1707, %v1803
  %v1805 = vpop.f32.mrf.mxu0
  %v1806 = vpop.f32.mrf.mxu0
  %v1807 = vadd.f32 %v1710, %v1806
  %v1808 = vpop.f32.mrf.mxu0
  %1809 = vmatprep.mubr.bf16.mxu0 %v806
  %1810 = vmatmul.mubr.bf16.gmra.mxu0 %v805
  %v1811 = vpop.f32.mrf.mxu0
  %v1812 = vadd.f32 %v1715, %v1811
  %v1813 = vpop.f32.mrf.mxu0
  %v1814 = vpop.f32.mrf.mxu0
  %v1815 = vadd.f32 %v1718, %v1814
  %v1816 = vpop.f32.mrf.mxu0
  %1817 = vmatprep.mubr.bf16.mxu0 %v820
  %1818 = vmatmul.mubr.bf16.gmra.mxu0 %v819
  %v1819 = vpop.f32.mrf.mxu0
  %v1820 = vadd.f32 %v1723, %v1819
  %v1821 = vpop.f32.mrf.mxu0
  %v1822 = vpop.f32.mrf.mxu0
  %v1823 = vadd.f32 %v1726, %v1822
  %v1824 = vpop.f32.mrf.mxu0
  %1825 = vmatprep.mubr.bf16.mxu0 %v834
  %1826 = vmatmul.mubr.bf16.gmra.mxu0 %v833
  %v1827 = vpop.f32.mrf.mxu0
  %v1828 = vadd.f32 %v1731, %v1827
  %v1829 = vpop.f32.mrf.mxu0
  %v1830 = vpop.f32.mrf.mxu0
  %v1831 = vadd.f32 %v1734, %v1830
  %v1832 = vpop.f32.mrf.mxu0
  %1833 = vmatprep.mubr.bf16.mxu0 %v848
  %1834 = vmatmul.mubr.bf16.gmra.mxu0 %v847
  %v1835 = vpop.f32.mrf.mxu0
  %v1836 = vadd.f32 %v1739, %v1835
  %v1837 = vpop.f32.mrf.mxu0
  %v1838 = vpop.f32.mrf.mxu0
  %v1839 = vadd.f32 %v1742, %v1838
  %v1840 = vpop.f32.mrf.mxu0
  %1841 = vmatprep.mubr.bf16.mxu0 %v862
  %1842 = vmatmul.mubr.bf16.gmra.mxu0 %v861
  %v1843 = vpop.f32.mrf.mxu0
  %v1844 = vadd.f32 %v1747, %v1843
  %v1845 = vpop.f32.mrf.mxu0
  %v1846 = vpop.f32.mrf.mxu0
  %v1847 = vadd.f32 %v1750, %v1846
  %v1848 = vpop.f32.mrf.mxu0
  %1849 = vmatprep.mubr.bf16.mxu0 %v876
  %1850 = vmatmul.mubr.bf16.gmra.mxu0 %v875
  %v1851 = vpop.f32.mrf.mxu0
  %v1852 = vadd.f32 %v1755, %v1851
  %v1853 = vpop.f32.mrf.mxu0
  %v1854 = vpop.f32.mrf.mxu0
  %v1855 = vadd.f32 %v1758, %v1854
  %v1856 = vpop.f32.mrf.mxu0
  %1857 = vdwg.mxu0
  %1858 = vmatprep.subr.bf16.mxu0 0
  %1859 = vmatpush1.bf16.msra.mxu0 %v1462
  %1860 = vmatprep.subr.bf16.mxu0 0
  %1861 = vmatpush1.bf16.msra.mxu0 %v1461
  %1862 = vmatprep.subr.bf16.mxu0 0
  %1863 = vmatpush1.bf16.msra.mxu0 %v1460
  %1864 = vmatprep.subr.bf16.mxu0 0
  %1865 = vmatpush1.bf16.msra.mxu0 %v1459
  %1866 = vmatprep.subr.bf16.mxu0 0
  %1867 = vmatpush1.bf16.msra.mxu0 %v1458
  %1868 = vmatprep.subr.bf16.mxu0 0
  %1869 = vmatpush1.bf16.msra.mxu0 %v1457
  %1870 = vmatprep.subr.bf16.mxu0 0
  %1871 = vmatpush1.bf16.msra.mxu0 %v1456
  %1872 = vmatprep.subr.bf16.mxu0 0
  %1873 = vmatpush1.bf16.msra.mxu0 %v1455
  %1874 = vmatprep.subr.bf16.mxu0 0
  %1875 = vmatpush2.bf16.msra.mxu0 %v1470
  %1876 = vmatprep.subr.bf16.mxu0 0
  %1877 = vmatpush2.bf16.msra.mxu0 %v1469
  %1878 = vmatprep.subr.bf16.mxu0 0
  %1879 = vmatpush2.bf16.msra.mxu0 %v1468
  %1880 = vmatprep.subr.bf16.mxu0 0
  %1881 = vmatpush2.bf16.msra.mxu0 %v1467
  %1882 = vmatprep.subr.bf16.mxu0 0
  %1883 = vmatpush2.bf16.msra.mxu0 %v1466
  %1884 = vmatprep.subr.bf16.mxu0 0
  %1885 = vmatpush2.bf16.msra.mxu0 %v1465
  %1886 = vmatprep.subr.bf16.mxu0 0
  %1887 = vmatpush2.bf16.msra.mxu0 %v1464
  %1888 = vmatprep.subr.bf16.mxu0 0
  %1889 = vmatpush2.bf16.msra.mxu0 %v1463
  %1890 = vmatprep.mubr.bf16.mxu0 %v780
  %1891 = vmatmul.mubr.bf16.gmra.mxu0 %v779
  %v1892 = vpop.f32.mrf.mxu0
  %v1893 = vadd.f32 %v1796, %v1892
  %v1894 = vpop.f32.mrf.mxu0
  %v1895 = vpop.f32.mrf.mxu0
  %v1896 = vadd.f32 %v1799, %v1895
  %v1897 = vpop.f32.mrf.mxu0
  %1898 = vmatprep.mubr.bf16.mxu0 %v794
  %1899 = vmatmul.mubr.bf16.gmra.mxu0 %v793
  %v1900 = vpop.f32.mrf.mxu0
  %v1901 = vadd.f32 %v1804, %v1900
  %v1902 = vpop.f32.mrf.mxu0
  %v1903 = vpop.f32.mrf.mxu0
  %v1904 = vadd.f32 %v1807, %v1903
  %v1905 = vpop.f32.mrf.mxu0
  %1906 = vmatprep.mubr.bf16.mxu0 %v808
  %1907 = vmatmul.mubr.bf16.gmra.mxu0 %v807
  %v1908 = vpop.f32.mrf.mxu0
  %v1909 = vadd.f32 %v1812, %v1908
  %v1910 = vpop.f32.mrf.mxu0
  %v1911 = vpop.f32.mrf.mxu0
  %v1912 = vadd.f32 %v1815, %v1911
  %v1913 = vpop.f32.mrf.mxu0
  %1914 = vmatprep.mubr.bf16.mxu0 %v822
  %1915 = vmatmul.mubr.bf16.gmra.mxu0 %v821
  %v1916 = vpop.f32.mrf.mxu0
  %v1917 = vadd.f32 %v1820, %v1916
  %v1918 = vpop.f32.mrf.mxu0
  %v1919 = vpop.f32.mrf.mxu0
  %v1920 = vadd.f32 %v1823, %v1919
  %v1921 = vpop.f32.mrf.mxu0
  %1922 = vmatprep.mubr.bf16.mxu0 %v836
  %1923 = vmatmul.mubr.bf16.gmra.mxu0 %v835
  %v1924 = vpop.f32.mrf.mxu0
  %v1925 = vadd.f32 %v1828, %v1924
  %v1926 = vpop.f32.mrf.mxu0
  %v1927 = vpop.f32.mrf.mxu0
  %v1928 = vadd.f32 %v1831, %v1927
  %v1929 = vpop.f32.mrf.mxu0
  %1930 = vmatprep.mubr.bf16.mxu0 %v850
  %1931 = vmatmul.mubr.bf16.gmra.mxu0 %v849
  %v1932 = vpop.f32.mrf.mxu0
  %v1933 = vadd.f32 %v1836, %v1932
  %v1934 = vpop.f32.mrf.mxu0
  %v1935 = vpop.f32.mrf.mxu0
  %v1936 = vadd.f32 %v1839, %v1935
  %v1937 = vpop.f32.mrf.mxu0
  %1938 = vmatprep.mubr.bf16.mxu0 %v864
  %1939 = vmatmul.mubr.bf16.gmra.mxu0 %v863
  %v1940 = vpop.f32.mrf.mxu0
  %v1941 = vadd.f32 %v1844, %v1940
  %v1942 = vpop.f32.mrf.mxu0
  %v1943 = vpop.f32.mrf.mxu0
  %v1944 = vadd.f32 %v1847, %v1943
  %v1945 = vpop.f32.mrf.mxu0
  %1946 = vmatprep.mubr.bf16.mxu0 %v878
  %1947 = vmatmul.mubr.bf16.gmra.mxu0 %v877
  %v1948 = vpop.f32.mrf.mxu0
  %v1949 = vadd.f32 %v1852, %v1948
  %v1950 = vpop.f32.mrf.mxu0
  %v1951 = vpop.f32.mrf.mxu0
  %v1952 = vadd.f32 %v1855, %v1951
  %v1953 = vpop.f32.mrf.mxu0
  %1954 = vdwg.mxu0
  %1955 = vmatprep.subr.bf16.mxu0 0
  %1956 = vmatpush1.bf16.msra.mxu0 %v1478
  %1957 = vmatprep.subr.bf16.mxu0 0
  %1958 = vmatpush1.bf16.msra.mxu0 %v1477
  %1959 = vmatprep.subr.bf16.mxu0 0
  %1960 = vmatpush1.bf16.msra.mxu0 %v1476
  %1961 = vmatprep.subr.bf16.mxu0 0
  %1962 = vmatpush1.bf16.msra.mxu0 %v1475
  %1963 = vmatprep.subr.bf16.mxu0 0
  %1964 = vmatpush1.bf16.msra.mxu0 %v1474
  %1965 = vmatprep.subr.bf16.mxu0 0
  %1966 = vmatpush1.bf16.msra.mxu0 %v1473
  %1967 = vmatprep.subr.bf16.mxu0 0
  %1968 = vmatpush1.bf16.msra.mxu0 %v1472
  %1969 = vmatprep.subr.bf16.mxu0 0
  %1970 = vmatpush1.bf16.msra.mxu0 %v1471
  %1971 = vmatprep.subr.bf16.mxu0 0
  %1972 = vmatpush2.bf16.msra.mxu0 %v1486
  %1973 = vmatprep.subr.bf16.mxu0 0
  %1974 = vmatpush2.bf16.msra.mxu0 %v1485
  %1975 = vmatprep.subr.bf16.mxu0 0
  %1976 = vmatpush2.bf16.msra.mxu0 %v1484
  %1977 = vmatprep.subr.bf16.mxu0 0
  %1978 = vmatpush2.bf16.msra.mxu0 %v1483
  %1979 = vmatprep.subr.bf16.mxu0 0
  %1980 = vmatpush2.bf16.msra.mxu0 %v1482
  %1981 = vmatprep.subr.bf16.mxu0 0
  %1982 = vmatpush2.bf16.msra.mxu0 %v1481
  %1983 = vmatprep.subr.bf16.mxu0 0
  %1984 = vmatpush2.bf16.msra.mxu0 %v1480
  %1985 = vmatprep.subr.bf16.mxu0 0
  %1986 = vmatpush2.bf16.msra.mxu0 %v1479
  %1987 = vmatprep.mubr.bf16.mxu0 %v782
  %1988 = vmatmul.mubr.bf16.gmra.mxu0 %v781
  %v1989 = vpop.f32.mrf.mxu0
  %v1990 = vadd.f32 %v1893, %v1989
  %v1991 = vpop.f32.mrf.mxu0
  %v1992 = vpop.f32.mrf.mxu0
  %v1993 = vadd.f32 %v1896, %v1992
  %v1994 = vpop.f32.mrf.mxu0
  %1995 = vmatprep.mubr.bf16.mxu0 %v796
  %1996 = vmatmul.mubr.bf16.gmra.mxu0 %v795
  %v1997 = vpop.f32.mrf.mxu0
  %v1998 = vadd.f32 %v1901, %v1997
  %v1999 = vpop.f32.mrf.mxu0
  %v2000 = vpop.f32.mrf.mxu0
  %v2001 = vadd.f32 %v1904, %v2000
  %v2002 = vpop.f32.mrf.mxu0
  %2003 = vmatprep.mubr.bf16.mxu0 %v810
  %2004 = vmatmul.mubr.bf16.gmra.mxu0 %v809
  %v2005 = vpop.f32.mrf.mxu0
  %v2006 = vadd.f32 %v1909, %v2005
  %v2007 = vpop.f32.mrf.mxu0
  %v2008 = vpop.f32.mrf.mxu0
  %v2009 = vadd.f32 %v1912, %v2008
  %v2010 = vpop.f32.mrf.mxu0
  %2011 = vmatprep.mubr.bf16.mxu0 %v824
  %2012 = vmatmul.mubr.bf16.gmra.mxu0 %v823
  %v2013 = vpop.f32.mrf.mxu0
  %v2014 = vadd.f32 %v1917, %v2013
  %v2015 = vpop.f32.mrf.mxu0
  %v2016 = vpop.f32.mrf.mxu0
  %v2017 = vadd.f32 %v1920, %v2016
  %v2018 = vpop.f32.mrf.mxu0
  %2019 = vmatprep.mubr.bf16.mxu0 %v838
  %2020 = vmatmul.mubr.bf16.gmra.mxu0 %v837
  %v2021 = vpop.f32.mrf.mxu0
  %v2022 = vadd.f32 %v1925, %v2021
  %v2023 = vpop.f32.mrf.mxu0
  %v2024 = vpop.f32.mrf.mxu0
  %v2025 = vadd.f32 %v1928, %v2024
  %v2026 = vpop.f32.mrf.mxu0
  %2027 = vmatprep.mubr.bf16.mxu0 %v852
  %2028 = vmatmul.mubr.bf16.gmra.mxu0 %v851
  %v2029 = vpop.f32.mrf.mxu0
  %v2030 = vadd.f32 %v1933, %v2029
  %v2031 = vpop.f32.mrf.mxu0
  %v2032 = vpop.f32.mrf.mxu0
  %v2033 = vadd.f32 %v1936, %v2032
  %v2034 = vpop.f32.mrf.mxu0
  %2035 = vmatprep.mubr.bf16.mxu0 %v866
  %2036 = vmatmul.mubr.bf16.gmra.mxu0 %v865
  %v2037 = vpop.f32.mrf.mxu0
  %v2038 = vadd.f32 %v1941, %v2037
  %v2039 = vpop.f32.mrf.mxu0
  %v2040 = vpop.f32.mrf.mxu0
  %v2041 = vadd.f32 %v1944, %v2040
  %v2042 = vpop.f32.mrf.mxu0
  %2043 = vmatprep.mubr.bf16.mxu0 %v880
  %2044 = vmatmul.mubr.bf16.gmra.mxu0 %v879
  %v2045 = vpop.f32.mrf.mxu0
  %v2046 = vadd.f32 %v1949, %v2045
  %v2047 = vpop.f32.mrf.mxu0
  %v2048 = vpop.f32.mrf.mxu0
  %v2049 = vadd.f32 %v1952, %v2048
  %v2050 = vpop.f32.mrf.mxu0
  %2051 = vdwg.mxu0
  %2052 = vmatprep.subr.bf16.mxu0 0
  %2053 = vmatpush1.bf16.msra.mxu0 %v1494
  %2054 = vmatprep.subr.bf16.mxu0 0
  %2055 = vmatpush1.bf16.msra.mxu0 %v1493
  %2056 = vmatprep.subr.bf16.mxu0 0
  %2057 = vmatpush1.bf16.msra.mxu0 %v1492
  %2058 = vmatprep.subr.bf16.mxu0 0
  %2059 = vmatpush1.bf16.msra.mxu0 %v1491
  %2060 = vmatprep.subr.bf16.mxu0 0
  %2061 = vmatpush1.bf16.msra.mxu0 %v1490
  %2062 = vmatprep.subr.bf16.mxu0 0
  %2063 = vmatpush1.bf16.msra.mxu0 %v1489
  %2064 = vmatprep.subr.bf16.mxu0 0
  %2065 = vmatpush1.bf16.msra.mxu0 %v1488
  %2066 = vmatprep.subr.bf16.mxu0 0
  %2067 = vmatpush1.bf16.msra.mxu0 %v1487
  %2068 = vmatprep.subr.bf16.mxu0 0
  %2069 = vmatpush2.bf16.msra.mxu0 %v1502
  %2070 = vmatprep.subr.bf16.mxu0 0
  %2071 = vmatpush2.bf16.msra.mxu0 %v1501
  %2072 = vmatprep.subr.bf16.mxu0 0
  %2073 = vmatpush2.bf16.msra.mxu0 %v1500
  %2074 = vmatprep.subr.bf16.mxu0 0
  %2075 = vmatpush2.bf16.msra.mxu0 %v1499
  %2076 = vmatprep.subr.bf16.mxu0 0
  %2077 = vmatpush2.bf16.msra.mxu0 %v1498
  %2078 = vmatprep.subr.bf16.mxu0 0
  %2079 = vmatpush2.bf16.msra.mxu0 %v1497
  %2080 = vmatprep.subr.bf16.mxu0 0
  %2081 = vmatpush2.bf16.msra.mxu0 %v1496
  %2082 = vmatprep.subr.bf16.mxu0 0
  %2083 = vmatpush2.bf16.msra.mxu0 %v1495
  %2084 = vmatprep.mubr.bf16.mxu0 %v784
  %2085 = vmatmul.mubr.bf16.gmra.mxu0 %v783
  %v2086 = vpop.f32.mrf.mxu0
  %v2087 = vadd.f32 %v1990, %v2086
  %v2088 = vpop.f32.mrf.mxu0
  %v2089 = vpop.f32.mrf.mxu0
  %v2090 = vadd.f32 %v1993, %v2089
  %v2091 = vpop.f32.mrf.mxu0
  %2092 = vmatprep.mubr.bf16.mxu0 %v798
  %2093 = vmatmul.mubr.bf16.gmra.mxu0 %v797
  %v2094 = vpop.f32.mrf.mxu0
  %v2095 = vadd.f32 %v1998, %v2094
  %v2096 = vpop.f32.mrf.mxu0
  %v2097 = vpop.f32.mrf.mxu0
  %v2098 = vadd.f32 %v2001, %v2097
  %v2099 = vpop.f32.mrf.mxu0
  %2100 = vmatprep.mubr.bf16.mxu0 %v812
  %2101 = vmatmul.mubr.bf16.gmra.mxu0 %v811
  %v2102 = vpop.f32.mrf.mxu0
  %v2103 = vadd.f32 %v2006, %v2102
  %v2104 = vpop.f32.mrf.mxu0
  %v2105 = vpop.f32.mrf.mxu0
  %v2106 = vadd.f32 %v2009, %v2105
  %v2107 = vpop.f32.mrf.mxu0
  %2108 = vmatprep.mubr.bf16.mxu0 %v826
  %2109 = vmatmul.mubr.bf16.gmra.mxu0 %v825
  %v2110 = vpop.f32.mrf.mxu0
  %v2111 = vadd.f32 %v2014, %v2110
  %v2112 = vpop.f32.mrf.mxu0
  %v2113 = vpop.f32.mrf.mxu0
  %v2114 = vadd.f32 %v2017, %v2113
  %v2115 = vpop.f32.mrf.mxu0
  %2116 = vmatprep.mubr.bf16.mxu0 %v840
  %2117 = vmatmul.mubr.bf16.gmra.mxu0 %v839
  %v2118 = vpop.f32.mrf.mxu0
  %v2119 = vadd.f32 %v2022, %v2118
  %v2120 = vpop.f32.mrf.mxu0
  %v2121 = vpop.f32.mrf.mxu0
  %v2122 = vadd.f32 %v2025, %v2121
  %v2123 = vpop.f32.mrf.mxu0
  %2124 = vmatprep.mubr.bf16.mxu0 %v854
  %2125 = vmatmul.mubr.bf16.gmra.mxu0 %v853
  %v2126 = vpop.f32.mrf.mxu0
  %v2127 = vadd.f32 %v2030, %v2126
  %v2128 = vpop.f32.mrf.mxu0
  %v2129 = vpop.f32.mrf.mxu0
  %v2130 = vadd.f32 %v2033, %v2129
  %v2131 = vpop.f32.mrf.mxu0
  %2132 = vmatprep.mubr.bf16.mxu0 %v868
  %2133 = vmatmul.mubr.bf16.gmra.mxu0 %v867
  %v2134 = vpop.f32.mrf.mxu0
  %v2135 = vadd.f32 %v2038, %v2134
  %v2136 = vpop.f32.mrf.mxu0
  %v2137 = vpop.f32.mrf.mxu0
  %v2138 = vadd.f32 %v2041, %v2137
  %v2139 = vpop.f32.mrf.mxu0
  %2140 = vmatprep.mubr.bf16.mxu0 %v882
  %2141 = vmatmul.mubr.bf16.gmra.mxu0 %v881
  %v2142 = vpop.f32.mrf.mxu0
  %v2143 = vadd.f32 %v2046, %v2142
  %v2144 = vpop.f32.mrf.mxu0
  %v2145 = vpop.f32.mrf.mxu0
  %v2146 = vadd.f32 %v2049, %v2145
  %v2147 = vpop.f32.mrf.mxu0
  %2148 = vdwg.mxu0
  %2149 = vmatprep.subr.bf16.mxu0 0
  %2150 = vmatpush1.bf16.msra.mxu0 %v1510
  %2151 = vmatprep.subr.bf16.mxu0 0
  %2152 = vmatpush1.bf16.msra.mxu0 %v1509
  %2153 = vmatprep.subr.bf16.mxu0 0
  %2154 = vmatpush1.bf16.msra.mxu0 %v1508
  %2155 = vmatprep.subr.bf16.mxu0 0
  %2156 = vmatpush1.bf16.msra.mxu0 %v1507
  %2157 = vmatprep.subr.bf16.mxu0 0
  %2158 = vmatpush1.bf16.msra.mxu0 %v1506
  %2159 = vmatprep.subr.bf16.mxu0 0
  %2160 = vmatpush1.bf16.msra.mxu0 %v1505
  %2161 = vmatprep.subr.bf16.mxu0 0
  %2162 = vmatpush1.bf16.msra.mxu0 %v1504
  %2163 = vmatprep.subr.bf16.mxu0 0
  %2164 = vmatpush1.bf16.msra.mxu0 %v1503
  %2165 = vmatprep.subr.bf16.mxu0 0
  %2166 = vmatpush2.bf16.msra.mxu0 %v1518
  %2167 = vmatprep.subr.bf16.mxu0 0
  %2168 = vmatpush2.bf16.msra.mxu0 %v1517
  %2169 = vmatprep.subr.bf16.mxu0 0
  %2170 = vmatpush2.bf16.msra.mxu0 %v1516
  %2171 = vmatprep.subr.bf16.mxu0 0
  %2172 = vmatpush2.bf16.msra.mxu0 %v1515
  %2173 = vmatprep.subr.bf16.mxu0 0
  %2174 = vmatpush2.bf16.msra.mxu0 %v1514
  %2175 = vmatprep.subr.bf16.mxu0 0
  %2176 = vmatpush2.bf16.msra.mxu0 %v1513
  %2177 = vmatprep.subr.bf16.mxu0 0
  %2178 = vmatpush2.bf16.msra.mxu0 %v1512
  %2179 = vmatprep.subr.bf16.mxu0 0
  %2180 = vmatpush2.bf16.msra.mxu0 %v1511
  %2181 = vmatprep.mubr.bf16.mxu0 %v786
  %2182 = vmatmul.mubr.bf16.gmra.mxu0 %v785
  %v2183 = vpop.f32.mrf.mxu0
  %v2184 = vadd.f32 %v2087, %v2183
  %v2185 = vpop.f32.mrf.mxu0
  %v2186 = vpop.f32.mrf.mxu0
  %v2187 = vadd.f32 %v2090, %v2186
  %v2188 = vpop.f32.mrf.mxu0
  %2189 = vmatprep.mubr.bf16.mxu0 %v800
  %2190 = vmatmul.mubr.bf16.gmra.mxu0 %v799
  %v2191 = vpop.f32.mrf.mxu0
  %v2192 = vadd.f32 %v2095, %v2191
  %v2193 = vpop.f32.mrf.mxu0
  %v2194 = vpop.f32.mrf.mxu0
  %v2195 = vadd.f32 %v2098, %v2194
  %v2196 = vpop.f32.mrf.mxu0
  %2197 = vmatprep.mubr.bf16.mxu0 %v814
  %2198 = vmatmul.mubr.bf16.gmra.mxu0 %v813
  %v2199 = vpop.f32.mrf.mxu0
  %v2200 = vadd.f32 %v2103, %v2199
  %v2201 = vpop.f32.mrf.mxu0
  %v2202 = vpop.f32.mrf.mxu0
  %v2203 = vadd.f32 %v2106, %v2202
  %v2204 = vpop.f32.mrf.mxu0
  %2205 = vmatprep.mubr.bf16.mxu0 %v828
  %2206 = vmatmul.mubr.bf16.gmra.mxu0 %v827
  %v2207 = vpop.f32.mrf.mxu0
  %v2208 = vadd.f32 %v2111, %v2207
  %v2209 = vpop.f32.mrf.mxu0
  %v2210 = vpop.f32.mrf.mxu0
  %v2211 = vadd.f32 %v2114, %v2210
  %v2212 = vpop.f32.mrf.mxu0
  %2213 = vmatprep.mubr.bf16.mxu0 %v842
  %2214 = vmatmul.mubr.bf16.gmra.mxu0 %v841
  %v2215 = vpop.f32.mrf.mxu0
  %v2216 = vadd.f32 %v2119, %v2215
  %v2217 = vpop.f32.mrf.mxu0
  %v2218 = vpop.f32.mrf.mxu0
  %v2219 = vadd.f32 %v2122, %v2218
  %v2220 = vpop.f32.mrf.mxu0
  %2221 = vmatprep.mubr.bf16.mxu0 %v856
  %2222 = vmatmul.mubr.bf16.gmra.mxu0 %v855
  %v2223 = vpop.f32.mrf.mxu0
  %v2224 = vadd.f32 %v2127, %v2223
  %v2225 = vpop.f32.mrf.mxu0
  %v2226 = vpop.f32.mrf.mxu0
  %v2227 = vadd.f32 %v2130, %v2226
  %v2228 = vpop.f32.mrf.mxu0
  %2229 = vmatprep.mubr.bf16.mxu0 %v870
  %2230 = vmatmul.mubr.bf16.gmra.mxu0 %v869
  %v2231 = vpop.f32.mrf.mxu0
  %v2232 = vadd.f32 %v2135, %v2231
  %v2233 = vpop.f32.mrf.mxu0
  %v2234 = vpop.f32.mrf.mxu0
  %v2235 = vadd.f32 %v2138, %v2234
  %v2236 = vpop.f32.mrf.mxu0
  %2237 = vmatprep.mubr.bf16.mxu0 %v884
  %2238 = vmatmul.mubr.bf16.gmra.mxu0 %v883
  %v2239 = vpop.f32.mrf.mxu0
  %v2240 = vadd.f32 %v2143, %v2239
  %v2241 = vpop.f32.mrf.mxu0
  %v2242 = vpop.f32.mrf.mxu0
  %v2243 = vadd.f32 %v2146, %v2242
  %v2244 = vpop.f32.mrf.mxu0
  %2245 = vdwg.mxu0
  %2246 = vmatprep.subr.bf16.mxu0 0
  %2247 = vmatpush1.bf16.msra.mxu0 %v1526
  %2248 = vmatprep.subr.bf16.mxu0 0
  %2249 = vmatpush1.bf16.msra.mxu0 %v1525
  %2250 = vmatprep.subr.bf16.mxu0 0
  %2251 = vmatpush1.bf16.msra.mxu0 %v1524
  %2252 = vmatprep.subr.bf16.mxu0 0
  %2253 = vmatpush1.bf16.msra.mxu0 %v1523
  %2254 = vmatprep.subr.bf16.mxu0 0
  %2255 = vmatpush1.bf16.msra.mxu0 %v1522
  %2256 = vmatprep.subr.bf16.mxu0 0
  %2257 = vmatpush1.bf16.msra.mxu0 %v1521
  %2258 = vmatprep.subr.bf16.mxu0 0
  %2259 = vmatpush1.bf16.msra.mxu0 %v1520
  %2260 = vmatprep.subr.bf16.mxu0 0
  %2261 = vmatpush1.bf16.msra.mxu0 %v1519
  %2262 = vmatprep.subr.bf16.mxu0 0
  %2263 = vmatpush2.bf16.msra.mxu0 0
  %2264 = vmatprep.subr.bf16.mxu0 0
  %2265 = vmatpush2.bf16.msra.mxu0 0
  %2266 = vmatprep.subr.bf16.mxu0 0
  %2267 = vmatpush2.bf16.msra.mxu0 0
  %2268 = vmatprep.subr.bf16.mxu0 0
  %2269 = vmatpush2.bf16.msra.mxu0 0
  %2270 = vmatprep.subr.bf16.mxu0 0
  %2271 = vmatpush2.bf16.msra.mxu0 %v1530
  %2272 = vmatprep.subr.bf16.mxu0 0
  %2273 = vmatpush2.bf16.msra.mxu0 %v1529
  %2274 = vmatprep.subr.bf16.mxu0 0
  %2275 = vmatpush2.bf16.msra.mxu0 %v1528
  %2276 = vmatprep.subr.bf16.mxu0 0
  %2277 = vmatpush2.bf16.msra.mxu0 %v1527
  %2278 = vmatprep.mubr.bf16.mxu0 %v1641
  %2279 = vmatmul.mubr.bf16.gmra.mxu0 %v787
  %v2280 = vpop.f32.mrf.mxu0
  %v2281 = vadd.f32 %v2184, %v2280
  %v2282 = vpop.f32.mrf.mxu0
  %v2283 = vpop.f32.mrf.mxu0
  %v2284 = vadd.f32 %v2187, %v2283
  %v2285 = vpop.f32.mrf.mxu0
  %2286 = vmatprep.mubr.bf16.mxu0 %v1644
  %2287 = vmatmul.mubr.bf16.gmra.mxu0 %v801
  %v2288 = vpop.f32.mrf.mxu0
  %v2289 = vadd.f32 %v2192, %v2288
  %v2290 = vpop.f32.mrf.mxu0
  %v2291 = vpop.f32.mrf.mxu0
  %v2292 = vadd.f32 %v2195, %v2291
  %v2293 = vpop.f32.mrf.mxu0
  %2294 = vmatprep.mubr.bf16.mxu0 %v1647
  %2295 = vmatmul.mubr.bf16.gmra.mxu0 %v815
  %v2296 = vpop.f32.mrf.mxu0
  %v2297 = vadd.f32 %v2200, %v2296
  %v2298 = vpop.f32.mrf.mxu0
  %v2299 = vpop.f32.mrf.mxu0
  %v2300 = vadd.f32 %v2203, %v2299
  %v2301 = vpop.f32.mrf.mxu0
  %2302 = vmatprep.mubr.bf16.mxu0 %v1650
  %2303 = vmatmul.mubr.bf16.gmra.mxu0 %v829
  %v2304 = vpop.f32.mrf.mxu0
  %v2305 = vadd.f32 %v2208, %v2304
  %v2306 = vpop.f32.mrf.mxu0
  %v2307 = vpop.f32.mrf.mxu0
  %v2308 = vadd.f32 %v2211, %v2307
  %v2309 = vpop.f32.mrf.mxu0
  %2310 = vmatprep.mubr.bf16.mxu0 %v1653
  %2311 = vmatmul.mubr.bf16.gmra.mxu0 %v843
  %v2312 = vpop.f32.mrf.mxu0
  %v2313 = vadd.f32 %v2216, %v2312
  %v2314 = vpop.f32.mrf.mxu0
  %v2315 = vpop.f32.mrf.mxu0
  %v2316 = vadd.f32 %v2219, %v2315
  %v2317 = vpop.f32.mrf.mxu0
  %2318 = vmatprep.mubr.bf16.mxu0 %v1656
  %2319 = vmatmul.mubr.bf16.gmra.mxu0 %v857
  %v2320 = vpop.f32.mrf.mxu0
  %v2321 = vadd.f32 %v2224, %v2320
  %v2322 = vpop.f32.mrf.mxu0
  %v2323 = vpop.f32.mrf.mxu0
  %v2324 = vadd.f32 %v2227, %v2323
  %v2325 = vpop.f32.mrf.mxu0
  %2326 = vmatprep.mubr.bf16.mxu0 %v1659
  %2327 = vmatmul.mubr.bf16.gmra.mxu0 %v871
  %v2328 = vpop.f32.mrf.mxu0
  %v2329 = vadd.f32 %v2232, %v2328
  %v2330 = vpop.f32.mrf.mxu0
  %v2331 = vpop.f32.mrf.mxu0
  %v2332 = vadd.f32 %v2235, %v2331
  %v2333 = vpop.f32.mrf.mxu0
  %2334 = vmatprep.mubr.bf16.mxu0 %v1662
  %2335 = vmatmul.mubr.bf16.gmra.mxu0 %v885
  %v2336 = vpop.f32.mrf.mxu0
  %v2337 = vadd.f32 %v2240, %v2336
  %v2338 = vpop.f32.mrf.mxu0
  %v2339 = vpop.f32.mrf.mxu0
  %v2340 = vadd.f32 %v2243, %v2339
  %v2341 = vpop.f32.mrf.mxu0
  %2342 = vdwg.mxu0
  %v2343 = vmax.f32 %v2281, 0.0
  %v2344 = vmax.f32 %v2284, 0.0
  %v2345 = vmax.f32 %v2289, 0.0
  %v2346 = vmax.f32 %v2292, 0.0
  %v2347 = vmax.f32 %v2297, 0.0
  %v2348 = vmax.f32 %v2300, 0.0
  %v2349 = vmax.f32 %v2305, 0.0
  %v2350 = vmax.f32 %v2308, 0.0
  %v2351 = vmax.f32 %v2313, 0.0
  %v2352 = vmax.f32 %v2316, 0.0
  %v2353 = vmax.f32 %v2321, 0.0
  %v2354 = vmax.f32 %v2324, 0.0
  %v2355 = vmax.f32 %v2329, 0.0
  %v2356 = vmax.f32 %v2332, 0.0
  %v2357 = vmax.f32 %v2337, 0.0
  %v2358 = vmax.f32 %v2340, 0.0
  %v2359 = vpack.c.bf16 %v2344, %v2343
  %v2360 = vpack.c.bf16 %v2346, %v2345
  %v2361 = vpack.c.bf16 %v2348, %v2347
  %v2362 = vpack.c.bf16 %v2350, %v2349
  %v2363 = vpack.c.bf16 %v2352, %v2351
  %v2364 = vpack.c.bf16 %v2354, %v2353
  %v2365 = vpack.c.bf16 %v2356, %v2355
  %v2366 = vpack.c.bf16 %v2358, %v2357
  %v2375 = vunpack.c.l.b16 %v2359
  %v2376 = vunpack.c.h.b16 %v2359
  %v2377 = vunpack.c.l.b16 %v2360
  %v2378 = vunpack.c.h.b16 %v2360
  %v2379 = vunpack.c.l.b16 %v2361
  %v2380 = vunpack.c.h.b16 %v2361
  %v2381 = vunpack.c.l.b16 %v2362
  %v2382 = vunpack.c.h.b16 %v2362
  %v2383 = vunpack.c.l.b16 %v2363
  %v2384 = vunpack.c.h.b16 %v2363
  %v2385 = vunpack.c.l.b16 %v2364
  %v2386 = vunpack.c.h.b16 %v2364
  %v2387 = vunpack.c.l.b16 %v2365
  %v2388 = vunpack.c.h.b16 %v2365
  %v2389 = vunpack.c.l.b16 %v2366
  %v2390 = vunpack.c.h.b16 %v2366
  %v2391 = vpack.c.b16 %v2375, %v2375
  %v2392 = vpack.c.b16 %v2376, %v2376
  %v2393 = vpack.c.b16 %v2377, %v2377
  %v2394 = vpack.c.b16 %v2378, %v2378
  %v2395 = vpack.c.b16 %v2379, %v2379
  %v2396 = vpack.c.b16 %v2380, %v2380
  %v2397 = vpack.c.b16 %v2381, %v2381
  %v2398 = vpack.c.b16 %v2382, %v2382
  %v2399 = vpack.c.b16 %v2383, %v2383
  %v2400 = vpack.c.b16 %v2384, %v2384
  %v2401 = vpack.c.b16 %v2385, %v2385
  %v2402 = vpack.c.b16 %v2386, %v2386
  %v2403 = vpack.c.b16 %v2387, %v2387
  %v2404 = vpack.c.b16 %v2388, %v2388
  %v2405 = vpack.c.b16 %v2389, %v2389
  %v2406 = vpack.c.b16 %v2390, %v2390
  %2423 = vst [vmem:[%s3] sm:$0xf] %v2391
  %2424 = vst [vmem:[%s3 + $0x4] sm:$0xf] %v2392
  %2425 = vst [vmem:[%s3 + $0x8] sm:$0xf] %v2393
  %2426 = vst [vmem:[%s3 + $0xc] sm:$0xf] %v2394
  %2427 = vst [vmem:[%s3 + $0x10] sm:$0xf] %v2395
  %2428 = vst [vmem:[%s3 + $0x14] sm:$0xf] %v2396
  %2429 = vst [vmem:[%s3 + $0x18] sm:$0xf] %v2397
  %2430 = vst [vmem:[%s3 + $0x1c] sm:$0xf] %v2398
  %2431 = vst [vmem:[%s3 + $0x20] sm:$0xf] %v2399
  %2432 = vst [vmem:[%s3 + $0x24] sm:$0xf] %v2400
  %2433 = vst [vmem:[%s3 + $0x28] sm:$0xf] %v2401
  %2434 = vst [vmem:[%s3 + $0x2c] sm:$0xf] %v2402
  %2435 = vst [vmem:[%s3 + $0x30] sm:$0xf] %v2403
  %2436 = vst [vmem:[%s3 + $0x34] sm:$0xf] %v2404
  %2437 = vst [vmem:[%s3 + $0x38] sm:$0xf] %v2405
  %2438 = vst [vmem:[%s3 + $0x3c] sm:$0xf] %v2406
  // Predicated region
  $region14: #{vnet_forward.10} parent=0 // pred_check
    _
  $region15: #{vnet_forward.10} parent=0 // pred_check_branch
    %2440 = sbr.rel (0) target = $region17
  $region16: #{vnet_forward.10} parent=0 // pred_region
    _
  $region17: #{vnet_forward.10} parent=0 // pred_fallthru
    _
  // Predicated region
  $region18: #{vnet_forward.10} parent=0 // pred_check
    _
  $region19: #{vnet_forward.10} parent=0 // pred_check_branch
    %2442 = sbr.rel (0) target = $region21
  $region20: #{vnet_forward.10} parent=0 // pred_region
    _
  $region21: #{vnet_forward.10} parent=0 // pred_fallthru
    _

// kernel: vnet_forward.11
$region0: #{vnet_forward.11}
  #allocation0 [shape = 'u32[]', space=smem, size = 0x4, offset = 0x4, fixed_abs, tag = 'smem constant byte address 0x4 - core index']
  #allocation1 [shape = 'u32[144,128]{1,0:T(1,128)}', space=vmem, size = 0x12000, scoped, tag = 'internal scratch']
  %s0 = inlined_call_operand.vmem [shape: bf16[64,3456], index: 0, kind: input, shape index: {}]
  %s1 = inlined_call_operand.vmem [shape: bf16[3456,128], index: 1, kind: input, shape index: {}]
  %s2 = inlined_call_operand.vmem [shape: f32[64,1], index: 2, kind: input, shape index: {}]
  %s3 = inlined_call_operand.vmem [shape: bf16[64,128], index: 3, kind: output, shape index: {}]
  %s4 = sld [smem:[#allocation0]]
  $region22: #{vnet_forward.11} parent=0
    _
  %s6 = ssub.s32 1, %s4
  %s7 = scalar_select 0, %s6, %s4
  // Predicated region
  $region2: #{vnet_forward.11} parent=0 // pred_check
    _
  $region3: #{vnet_forward.11} parent=0 // pred_check_branch
    %9 = sbr.rel (0) target = $region5
  $region4: #{vnet_forward.11} parent=0 // pred_region
    _
  $region5: #{vnet_forward.11} parent=0 // pred_fallthru
    _
  // Predicated region
  $region6: #{vnet_forward.11} parent=0 // pred_check
    _
  $region7: #{vnet_forward.11} parent=0 // pred_check_branch
    %11 = sbr.rel (0) target = $region9
  $region8: #{vnet_forward.11} parent=0 // pred_region
    _
  $region9: #{vnet_forward.11} parent=0 // pred_fallthru
    _
  // Predicated region
  $region10: #{vnet_forward.11} parent=0 // pred_check
    _
  $region11: #{vnet_forward.11} parent=0 // pred_check_branch
    %13 = sbr.rel (0) target = $region13
  $region12: #{vnet_forward.11} parent=0 // pred_region
    _
  $region13: #{vnet_forward.11} parent=0 // pred_fallthru
    _
  %v15 = vld [vmem:[%s0] sm:$0xff]
  %v16 = vld [vmem:[%s0 + $0x8] sm:$0xff]
  %v17 = vld [vmem:[%s0 + $0x10] sm:$0xff]
  %v18 = vld [vmem:[%s0 + $0x18] sm:$0xff]
  %v19 = vld [vmem:[%s0 + $0x20] sm:$0xff]
  %v20 = vld [vmem:[%s0 + $0x28] sm:$0xff]
  %v21 = vld [vmem:[%s0 + $0x30] sm:$0xff]
  %v22 = vld [vmem:[%s0 + $0x38] sm:$0xff]
  %v23 = vld [vmem:[%s0 + $0x40] sm:$0xff]
  %v24 = vld [vmem:[%s0 + $0x48] sm:$0xff]
  %v25 = vld [vmem:[%s0 + $0x50] sm:$0xff]
  %v26 = vld [vmem:[%s0 + $0x58] sm:$0xff]
  %v27 = vld [vmem:[%s0 + $0x60] sm:$0xff]
  %v28 = vld [vmem:[%s0 + $0x68] sm:$0xf]
  %v29 = vld [vmem:[%s0 + $0x6c] sm:$0xff]
  %v30 = vld [vmem:[%s0 + $0x74] sm:$0xff]
  %v31 = vld [vmem:[%s0 + $0x7c] sm:$0xff]
  %v32 = vld [vmem:[%s0 + $0x84] sm:$0xff]
  %v33 = vld [vmem:[%s0 + $0x8c] sm:$0xff]
  %v34 = vld [vmem:[%s0 + $0x94] sm:$0xff]
  %v35 = vld [vmem:[%s0 + $0x9c] sm:$0xff]
  %v36 = vld [vmem:[%s0 + $0xa4] sm:$0xff]
  %v37 = vld [vmem:[%s0 + $0xac] sm:$0xff]
  %v38 = vld [vmem:[%s0 + $0xb4] sm:$0xff]
  %v39 = vld [vmem:[%s0 + $0xbc] sm:$0xff]
  %v40 = vld [vmem:[%s0 + $0xc4] sm:$0xff]
  %v41 = vld [vmem:[%s0 + $0xcc] sm:$0xff]
  %v42 = vld [vmem:[%s0 + $0xd4] sm:$0xf]
  %v43 = vld [vmem:[%s0 + $0xd8] sm:$0xff]
  %v44 = vld [vmem:[%s0 + $0xe0] sm:$0xff]
  %v45 = vld [vmem:[%s0 + $0xe8] sm:$0xff]
  %v46 = vld [vmem:[%s0 + $0xf0] sm:$0xff]
  %v47 = vld [vmem:[%s0 + $0xf8] sm:$0xff]
  %v48 = vld [vmem:[%s0 + $0x100] sm:$0xff]
  %v49 = vld [vmem:[%s0 + $0x108] sm:$0xff]
  %v50 = vld [vmem:[%s0 + $0x110] sm:$0xff]
  %v51 = vld [vmem:[%s0 + $0x118] sm:$0xff]
  %v52 = vld [vmem:[%s0 + $0x120] sm:$0xff]
  %v53 = vld [vmem:[%s0 + $0x128] sm:$0xff]
  %v54 = vld [vmem:[%s0 + $0x130] sm:$0xff]
  %v55 = vld [vmem:[%s0 + $0x138] sm:$0xff]
  %v56 = vld [vmem:[%s0 + $0x140] sm:$0xf]
  %v57 = vld [vmem:[%s0 + $0x144] sm:$0xff]
  %v58 = vld [vmem:[%s0 + $0x14c] sm:$0xff]
  %v59 = vld [vmem:[%s0 + $0x154] sm:$0xff]
  %v60 = vld [vmem:[%s0 + $0x15c] sm:$0xff]
  %v61 = vld [vmem:[%s0 + $0x164] sm:$0xff]
  %v62 = vld [vmem:[%s0 + $0x16c] sm:$0xff]
  %v63 = vld [vmem:[%s0 + $0x174] sm:$0xff]
  %v64 = vld [vmem:[%s0 + $0x17c] sm:$0xff]
  %v65 = vld [vmem:[%s0 + $0x184] sm:$0xff]
  %v66 = vld [vmem:[%s0 + $0x18c] sm:$0xff]
  %v67 = vld [vmem:[%s0 + $0x194] sm:$0xff]
  %v68 = vld [vmem:[%s0 + $0x19c] sm:$0xff]
  %v69 = vld [vmem:[%s0 + $0x1a4] sm:$0xff]
  %v70 = vld [vmem:[%s0 + $0x1ac] sm:$0xf]
  %v71 = vld [vmem:[%s0 + $0x1b0] sm:$0xff]
  %v72 = vld [vmem:[%s0 + $0x1b8] sm:$0xff]
  %v73 = vld [vmem:[%s0 + $0x1c0] sm:$0xff]
  %v74 = vld [vmem:[%s0 + $0x1c8] sm:$0xff]
  %v75 = vld [vmem:[%s0 + $0x1d0] sm:$0xff]
  %v76 = vld [vmem:[%s0 + $0x1d8] sm:$0xff]
  %v77 = vld [vmem:[%s0 + $0x1e0] sm:$0xff]
  %v78 = vld [vmem:[%s0 + $0x1e8] sm:$0xff]
  %v79 = vld [vmem:[%s0 + $0x1f0] sm:$0xff]
  %v80 = vld [vmem:[%s0 + $0x1f8] sm:$0xff]
  %v81 = vld [vmem:[%s0 + $0x200] sm:$0xff]
  %v82 = vld [vmem:[%s0 + $0x208] sm:$0xff]
  %v83 = vld [vmem:[%s0 + $0x210] sm:$0xff]
  %v84 = vld [vmem:[%s0 + $0x218] sm:$0xf]
  %v85 = vld [vmem:[%s0 + $0x21c] sm:$0xff]
  %v86 = vld [vmem:[%s0 + $0x224] sm:$0xff]
  %v87 = vld [vmem:[%s0 + $0x22c] sm:$0xff]
  %v88 = vld [vmem:[%s0 + $0x234] sm:$0xff]
  %v89 = vld [vmem:[%s0 + $0x23c] sm:$0xff]
  %v90 = vld [vmem:[%s0 + $0x244] sm:$0xff]
  %v91 = vld [vmem:[%s0 + $0x24c] sm:$0xff]
  %v92 = vld [vmem:[%s0 + $0x254] sm:$0xff]
  %v93 = vld [vmem:[%s0 + $0x25c] sm:$0xff]
  %v94 = vld [vmem:[%s0 + $0x264] sm:$0xff]
  %v95 = vld [vmem:[%s0 + $0x26c] sm:$0xff]
  %v96 = vld [vmem:[%s0 + $0x274] sm:$0xff]
  %v97 = vld [vmem:[%s0 + $0x27c] sm:$0xff]
  %v98 = vld [vmem:[%s0 + $0x284] sm:$0xf]
  %v99 = vld [vmem:[%s0 + $0x288] sm:$0xff]
  %v100 = vld [vmem:[%s0 + $0x290] sm:$0xff]
  %v101 = vld [vmem:[%s0 + $0x298] sm:$0xff]
  %v102 = vld [vmem:[%s0 + $0x2a0] sm:$0xff]
  %v103 = vld [vmem:[%s0 + $0x2a8] sm:$0xff]
  %v104 = vld [vmem:[%s0 + $0x2b0] sm:$0xff]
  %v105 = vld [vmem:[%s0 + $0x2b8] sm:$0xff]
  %v106 = vld [vmem:[%s0 + $0x2c0] sm:$0xff]
  %v107 = vld [vmem:[%s0 + $0x2c8] sm:$0xff]
  %v108 = vld [vmem:[%s0 + $0x2d0] sm:$0xff]
  %v109 = vld [vmem:[%s0 + $0x2d8] sm:$0xff]
  %v110 = vld [vmem:[%s0 + $0x2e0] sm:$0xff]
  %v111 = vld [vmem:[%s0 + $0x2e8] sm:$0xff]
  %v112 = vld [vmem:[%s0 + $0x2f0] sm:$0xf]
  %v113 = vld [vmem:[%s0 + $0x2f4] sm:$0xff]
  %v114 = vld [vmem:[%s0 + $0x2fc] sm:$0xff]
  %v115 = vld [vmem:[%s0 + $0x304] sm:$0xff]
  %v116 = vld [vmem:[%s0 + $0x30c] sm:$0xff]
  %v117 = vld [vmem:[%s0 + $0x314] sm:$0xff]
  %v118 = vld [vmem:[%s0 + $0x31c] sm:$0xff]
  %v119 = vld [vmem:[%s0 + $0x324] sm:$0xff]
  %v120 = vld [vmem:[%s0 + $0x32c] sm:$0xff]
  %v121 = vld [vmem:[%s0 + $0x334] sm:$0xff]
  %v122 = vld [vmem:[%s0 + $0x33c] sm:$0xff]
  %v123 = vld [vmem:[%s0 + $0x344] sm:$0xff]
  %v124 = vld [vmem:[%s0 + $0x34c] sm:$0xff]
  %v125 = vld [vmem:[%s0 + $0x354] sm:$0xff]
  %v126 = vld [vmem:[%s0 + $0x35c] sm:$0xf]
  %v127 = vld [vmem:[%s1] sm:$0xf]
  %v128 = vld [vmem:[%s1 + $0x4] sm:$0xf]
  %v129 = vld [vmem:[%s1 + $0x8] sm:$0xf]
  %v130 = vld [vmem:[%s1 + $0xc] sm:$0xf]
  %v131 = vld [vmem:[%s1 + $0x10] sm:$0xf]
  %v132 = vld [vmem:[%s1 + $0x14] sm:$0xf]
  %v133 = vld [vmem:[%s1 + $0x18] sm:$0xf]
  %v134 = vld [vmem:[%s1 + $0x1c] sm:$0xf]
  %v135 = vld [vmem:[%s1 + $0x20] sm:$0xf]
  %v136 = vld [vmem:[%s1 + $0x24] sm:$0xf]
  %v137 = vld [vmem:[%s1 + $0x28] sm:$0xf]
  %v138 = vld [vmem:[%s1 + $0x2c] sm:$0xf]
  %v139 = vld [vmem:[%s1 + $0x30] sm:$0xf]
  %v140 = vld [vmem:[%s1 + $0x34] sm:$0xf]
  %v141 = vld [vmem:[%s1 + $0x38] sm:$0xf]
  %v142 = vld [vmem:[%s1 + $0x3c] sm:$0xf]
  %v143 = vld [vmem:[%s1 + $0x40] sm:$0xf]
  %v144 = vld [vmem:[%s1 + $0x44] sm:$0xf]
  %v145 = vld [vmem:[%s1 + $0x48] sm:$0xf]
  %v146 = vld [vmem:[%s1 + $0x4c] sm:$0xf]
  %v147 = vld [vmem:[%s1 + $0x50] sm:$0xf]
  %v148 = vld [vmem:[%s1 + $0x54] sm:$0xf]
  %v149 = vld [vmem:[%s1 + $0x58] sm:$0xf]
  %v150 = vld [vmem:[%s1 + $0x5c] sm:$0xf]
  %v151 = vld [vmem:[%s1 + $0x60] sm:$0xf]
  %v152 = vld [vmem:[%s1 + $0x64] sm:$0xf]
  %v153 = vld [vmem:[%s1 + $0x68] sm:$0xf]
  %v154 = vld [vmem:[%s1 + $0x6c] sm:$0xf]
  %v155 = vld [vmem:[%s1 + $0x70] sm:$0xf]
  %v156 = vld [vmem:[%s1 + $0x74] sm:$0xf]
  %v157 = vld [vmem:[%s1 + $0x78] sm:$0xf]
  %v158 = vld [vmem:[%s1 + $0x7c] sm:$0xf]
  %v159 = vld [vmem:[%s1 + $0x80] sm:$0xf]
  %v160 = vld [vmem:[%s1 + $0x84] sm:$0xf]
  %v161 = vld [vmem:[%s1 + $0x88] sm:$0xf]
  %v162 = vld [vmem:[%s1 + $0x8c] sm:$0xf]
  %v163 = vld [vmem:[%s1 + $0x90] sm:$0xf]
  %v164 = vld [vmem:[%s1 + $0x94] sm:$0xf]
  %v165 = vld [vmem:[%s1 + $0x98] sm:$0xf]
  %v166 = vld [vmem:[%s1 + $0x9c] sm:$0xf]
  %v167 = vld [vmem:[%s1 + $0xa0] sm:$0xf]
  %v168 = vld [vmem:[%s1 + $0xa4] sm:$0xf]
  %v169 = vld [vmem:[%s1 + $0xa8] sm:$0xf]
  %v170 = vld [vmem:[%s1 + $0xac] sm:$0xf]
  %v171 = vld [vmem:[%s1 + $0xb0] sm:$0xf]
  %v172 = vld [vmem:[%s1 + $0xb4] sm:$0xf]
  %v173 = vld [vmem:[%s1 + $0xb8] sm:$0xf]
  %v174 = vld [vmem:[%s1 + $0xbc] sm:$0xf]
  %v175 = vld [vmem:[%s1 + $0xc0] sm:$0xf]
  %v176 = vld [vmem:[%s1 + $0xc4] sm:$0xf]
  %v177 = vld [vmem:[%s1 + $0xc8] sm:$0xf]
  %v178 = vld [vmem:[%s1 + $0xcc] sm:$0xf]
  %v179 = vld [vmem:[%s1 + $0xd0] sm:$0xf]
  %v180 = vld [vmem:[%s1 + $0xd4] sm:$0xf]
  %v181 = vld [vmem:[%s1 + $0xd8] sm:$0xf]
  %v182 = vld [vmem:[%s1 + $0xdc] sm:$0xf]
  %v183 = vld [vmem:[%s1 + $0xe0] sm:$0xf]
  %v184 = vld [vmem:[%s1 + $0xe4] sm:$0xf]
  %v185 = vld [vmem:[%s1 + $0xe8] sm:$0xf]
  %v186 = vld [vmem:[%s1 + $0xec] sm:$0xf]
  %v187 = vld [vmem:[%s1 + $0xf0] sm:$0xf]
  %v188 = vld [vmem:[%s1 + $0xf4] sm:$0xf]
  %v189 = vld [vmem:[%s1 + $0xf8] sm:$0xf]
  %v190 = vld [vmem:[%s1 + $0xfc] sm:$0xf]
  %v191 = vld [vmem:[%s1 + $0x100] sm:$0xf]
  %v192 = vld [vmem:[%s1 + $0x104] sm:$0xf]
  %v193 = vld [vmem:[%s1 + $0x108] sm:$0xf]
  %v194 = vld [vmem:[%s1 + $0x10c] sm:$0xf]
  %v195 = vld [vmem:[%s1 + $0x110] sm:$0xf]
  %v196 = vld [vmem:[%s1 + $0x114] sm:$0xf]
  %v197 = vld [vmem:[%s1 + $0x118] sm:$0xf]
  %v198 = vld [vmem:[%s1 + $0x11c] sm:$0xf]
  %v199 = vld [vmem:[%s1 + $0x120] sm:$0xf]
  %v200 = vld [vmem:[%s1 + $0x124] sm:$0xf]
  %v201 = vld [vmem:[%s1 + $0x128] sm:$0xf]
  %v202 = vld [vmem:[%s1 + $0x12c] sm:$0xf]
  %v203 = vld [vmem:[%s1 + $0x130] sm:$0xf]
  %v204 = vld [vmem:[%s1 + $0x134] sm:$0xf]
  %v205 = vld [vmem:[%s1 + $0x138] sm:$0xf]
  %v206 = vld [vmem:[%s1 + $0x13c] sm:$0xf]
  %v207 = vld [vmem:[%s1 + $0x140] sm:$0xf]
  %v208 = vld [vmem:[%s1 + $0x144] sm:$0xf]
  %v209 = vld [vmem:[%s1 + $0x148] sm:$0xf]
  %v210 = vld [vmem:[%s1 + $0x14c] sm:$0xf]
  %v211 = vld [vmem:[%s1 + $0x150] sm:$0xf]
  %v212 = vld [vmem:[%s1 + $0x154] sm:$0xf]
  %v213 = vld [vmem:[%s1 + $0x158] sm:$0xf]
  %v214 = vld [vmem:[%s1 + $0x15c] sm:$0xf]
  %v215 = vld [vmem:[%s1 + $0x160] sm:$0xf]
  %v216 = vld [vmem:[%s1 + $0x164] sm:$0xf]
  %v217 = vld [vmem:[%s1 + $0x168] sm:$0xf]
  %v218 = vld [vmem:[%s1 + $0x16c] sm:$0xf]
  %v219 = vld [vmem:[%s1 + $0x170] sm:$0xf]
  %v220 = vld [vmem:[%s1 + $0x174] sm:$0xf]
  %v221 = vld [vmem:[%s1 + $0x178] sm:$0xf]
  %v222 = vld [vmem:[%s1 + $0x17c] sm:$0xf]
  %v223 = vld [vmem:[%s1 + $0x180] sm:$0xf]
  %v224 = vld [vmem:[%s1 + $0x184] sm:$0xf]
  %v225 = vld [vmem:[%s1 + $0x188] sm:$0xf]
  %v226 = vld [vmem:[%s1 + $0x18c] sm:$0xf]
  %v227 = vld [vmem:[%s1 + $0x190] sm:$0xf]
  %v228 = vld [vmem:[%s1 + $0x194] sm:$0xf]
  %v229 = vld [vmem:[%s1 + $0x198] sm:$0xf]
  %v230 = vld [vmem:[%s1 + $0x19c] sm:$0xf]
  %v231 = vld [vmem:[%s1 + $0x1a0] sm:$0xf]
  %v232 = vld [vmem:[%s1 + $0x1a4] sm:$0xf]
  %v233 = vld [vmem:[%s1 + $0x1a8] sm:$0xf]
  %v234 = vld [vmem:[%s1 + $0x1ac] sm:$0xf]
  %v235 = vld [vmem:[%s1 + $0x1b0] sm:$0xf]
  %v236 = vld [vmem:[%s1 + $0x1b4] sm:$0xf]
  %v237 = vld [vmem:[%s1 + $0x1b8] sm:$0xf]
  %v238 = vld [vmem:[%s1 + $0x1bc] sm:$0xf]
  %v239 = vld [vmem:[%s1 + $0x1c0] sm:$0xf]
  %v240 = vld [vmem:[%s1 + $0x1c4] sm:$0xf]
  %v241 = vld [vmem:[%s1 + $0x1c8] sm:$0xf]
  %v242 = vld [vmem:[%s1 + $0x1cc] sm:$0xf]
  %v243 = vld [vmem:[%s1 + $0x1d0] sm:$0xf]
  %v244 = vld [vmem:[%s1 + $0x1d4] sm:$0xf]
  %v245 = vld [vmem:[%s1 + $0x1d8] sm:$0xf]
  %v246 = vld [vmem:[%s1 + $0x1dc] sm:$0xf]
  %v247 = vld [vmem:[%s1 + $0x1e0] sm:$0xf]
  %v248 = vld [vmem:[%s1 + $0x1e4] sm:$0xf]
  %v249 = vld [vmem:[%s1 + $0x1e8] sm:$0xf]
  %v250 = vld [vmem:[%s1 + $0x1ec] sm:$0xf]
  %v251 = vld [vmem:[%s1 + $0x1f0] sm:$0xf]
  %v252 = vld [vmem:[%s1 + $0x1f4] sm:$0xf]
  %v253 = vld [vmem:[%s1 + $0x1f8] sm:$0xf]
  %v254 = vld [vmem:[%s1 + $0x1fc] sm:$0xf]
  %v255 = vld [vmem:[%s1 + $0x200] sm:$0xf]
  %v256 = vld [vmem:[%s1 + $0x204] sm:$0xf]
  %v257 = vld [vmem:[%s1 + $0x208] sm:$0xf]
  %v258 = vld [vmem:[%s1 + $0x20c] sm:$0xf]
  %v259 = vld [vmem:[%s1 + $0x210] sm:$0xf]
  %v260 = vld [vmem:[%s1 + $0x214] sm:$0xf]
  %v261 = vld [vmem:[%s1 + $0x218] sm:$0xf]
  %v262 = vld [vmem:[%s1 + $0x21c] sm:$0xf]
  %v263 = vld [vmem:[%s1 + $0x220] sm:$0xf]
  %v264 = vld [vmem:[%s1 + $0x224] sm:$0xf]
  %v265 = vld [vmem:[%s1 + $0x228] sm:$0xf]
  %v266 = vld [vmem:[%s1 + $0x22c] sm:$0xf]
  %v267 = vld [vmem:[%s1 + $0x230] sm:$0xf]
  %v268 = vld [vmem:[%s1 + $0x234] sm:$0xf]
  %v269 = vld [vmem:[%s1 + $0x238] sm:$0xf]
  %v270 = vld [vmem:[%s1 + $0x23c] sm:$0xf]
  %v271 = vld [vmem:[%s1 + $0x240] sm:$0xf]
  %v272 = vld [vmem:[%s1 + $0x244] sm:$0xf]
  %v273 = vld [vmem:[%s1 + $0x248] sm:$0xf]
  %v274 = vld [vmem:[%s1 + $0x24c] sm:$0xf]
  %v275 = vld [vmem:[%s1 + $0x250] sm:$0xf]
  %v276 = vld [vmem:[%s1 + $0x254] sm:$0xf]
  %v277 = vld [vmem:[%s1 + $0x258] sm:$0xf]
  %v278 = vld [vmem:[%s1 + $0x25c] sm:$0xf]
  %v279 = vld [vmem:[%s1 + $0x260] sm:$0xf]
  %v280 = vld [vmem:[%s1 + $0x264] sm:$0xf]
  %v281 = vld [vmem:[%s1 + $0x268] sm:$0xf]
  %v282 = vld [vmem:[%s1 + $0x26c] sm:$0xf]
  %v283 = vld [vmem:[%s1 + $0x270] sm:$0xf]
  %v284 = vld [vmem:[%s1 + $0x274] sm:$0xf]
  %v285 = vld [vmem:[%s1 + $0x278] sm:$0xf]
  %v286 = vld [vmem:[%s1 + $0x27c] sm:$0xf]
  %v287 = vld [vmem:[%s1 + $0x280] sm:$0xf]
  %v288 = vld [vmem:[%s1 + $0x284] sm:$0xf]
  %v289 = vld [vmem:[%s1 + $0x288] sm:$0xf]
  %v290 = vld [vmem:[%s1 + $0x28c] sm:$0xf]
  %v291 = vld [vmem:[%s1 + $0x290] sm:$0xf]
  %v292 = vld [vmem:[%s1 + $0x294] sm:$0xf]
  %v293 = vld [vmem:[%s1 + $0x298] sm:$0xf]
  %v294 = vld [vmem:[%s1 + $0x29c] sm:$0xf]
  %v295 = vld [vmem:[%s1 + $0x2a0] sm:$0xf]
  %v296 = vld [vmem:[%s1 + $0x2a4] sm:$0xf]
  %v297 = vld [vmem:[%s1 + $0x2a8] sm:$0xf]
  %v298 = vld [vmem:[%s1 + $0x2ac] sm:$0xf]
  %v299 = vld [vmem:[%s1 + $0x2b0] sm:$0xf]
  %v300 = vld [vmem:[%s1 + $0x2b4] sm:$0xf]
  %v301 = vld [vmem:[%s1 + $0x2b8] sm:$0xf]
  %v302 = vld [vmem:[%s1 + $0x2bc] sm:$0xf]
  %v303 = vld [vmem:[%s1 + $0x2c0] sm:$0xf]
  %v304 = vld [vmem:[%s1 + $0x2c4] sm:$0xf]
  %v305 = vld [vmem:[%s1 + $0x2c8] sm:$0xf]
  %v306 = vld [vmem:[%s1 + $0x2cc] sm:$0xf]
  %v307 = vld [vmem:[%s1 + $0x2d0] sm:$0xf]
  %v308 = vld [vmem:[%s1 + $0x2d4] sm:$0xf]
  %v309 = vld [vmem:[%s1 + $0x2d8] sm:$0xf]
  %v310 = vld [vmem:[%s1 + $0x2dc] sm:$0xf]
  %v311 = vld [vmem:[%s1 + $0x2e0] sm:$0xf]
  %v312 = vld [vmem:[%s1 + $0x2e4] sm:$0xf]
  %v313 = vld [vmem:[%s1 + $0x2e8] sm:$0xf]
  %v314 = vld [vmem:[%s1 + $0x2ec] sm:$0xf]
  %v315 = vld [vmem:[%s1 + $0x2f0] sm:$0xf]
  %v316 = vld [vmem:[%s1 + $0x2f4] sm:$0xf]
  %v317 = vld [vmem:[%s1 + $0x2f8] sm:$0xf]
  %v318 = vld [vmem:[%s1 + $0x2fc] sm:$0xf]
  %v319 = vld [vmem:[%s1 + $0x300] sm:$0xf]
  %v320 = vld [vmem:[%s1 + $0x304] sm:$0xf]
  %v321 = vld [vmem:[%s1 + $0x308] sm:$0xf]
  %v322 = vld [vmem:[%s1 + $0x30c] sm:$0xf]
  %v323 = vld [vmem:[%s1 + $0x310] sm:$0xf]
  %v324 = vld [vmem:[%s1 + $0x314] sm:$0xf]
  %v325 = vld [vmem:[%s1 + $0x318] sm:$0xf]
  %v326 = vld [vmem:[%s1 + $0x31c] sm:$0xf]
  %v327 = vld [vmem:[%s1 + $0x320] sm:$0xf]
  %v328 = vld [vmem:[%s1 + $0x324] sm:$0xf]
  %v329 = vld [vmem:[%s1 + $0x328] sm:$0xf]
  %v330 = vld [vmem:[%s1 + $0x32c] sm:$0xf]
  %v331 = vld [vmem:[%s1 + $0x330] sm:$0xf]
  %v332 = vld [vmem:[%s1 + $0x334] sm:$0xf]
  %v333 = vld [vmem:[%s1 + $0x338] sm:$0xf]
  %v334 = vld [vmem:[%s1 + $0x33c] sm:$0xf]
  %v335 = vld [vmem:[%s1 + $0x340] sm:$0xf]
  %v336 = vld [vmem:[%s1 + $0x344] sm:$0xf]
  %v337 = vld [vmem:[%s1 + $0x348] sm:$0xf]
  %v338 = vld [vmem:[%s1 + $0x34c] sm:$0xf]
  %v339 = vld [vmem:[%s1 + $0x350] sm:$0xf]
  %v340 = vld [vmem:[%s1 + $0x354] sm:$0xf]
  %v341 = vld [vmem:[%s1 + $0x358] sm:$0xf]
  %v342 = vld [vmem:[%s1 + $0x35c] sm:$0xf]
  %v343 = vld [vmem:[%s1 + $0x360] sm:$0xf]
  %v344 = vld [vmem:[%s1 + $0x364] sm:$0xf]
  %v345 = vld [vmem:[%s1 + $0x368] sm:$0xf]
  %v346 = vld [vmem:[%s1 + $0x36c] sm:$0xf]
  %v347 = vld [vmem:[%s1 + $0x370] sm:$0xf]
  %v348 = vld [vmem:[%s1 + $0x374] sm:$0xf]
  %v349 = vld [vmem:[%s1 + $0x378] sm:$0xf]
  %v350 = vld [vmem:[%s1 + $0x37c] sm:$0xf]
  %v351 = vld [vmem:[%s1 + $0x380] sm:$0xf]
  %v352 = vld [vmem:[%s1 + $0x384] sm:$0xf]
  %v353 = vld [vmem:[%s1 + $0x388] sm:$0xf]
  %v354 = vld [vmem:[%s1 + $0x38c] sm:$0xf]
  %v355 = vld [vmem:[%s1 + $0x390] sm:$0xf]
  %v356 = vld [vmem:[%s1 + $0x394] sm:$0xf]
  %v357 = vld [vmem:[%s1 + $0x398] sm:$0xf]
  %v358 = vld [vmem:[%s1 + $0x39c] sm:$0xf]
  %v359 = vld [vmem:[%s1 + $0x3a0] sm:$0xf]
  %v360 = vld [vmem:[%s1 + $0x3a4] sm:$0xf]
  %v361 = vld [vmem:[%s1 + $0x3a8] sm:$0xf]
  %v362 = vld [vmem:[%s1 + $0x3ac] sm:$0xf]
  %v363 = vld [vmem:[%s1 + $0x3b0] sm:$0xf]
  %v364 = vld [vmem:[%s1 + $0x3b4] sm:$0xf]
  %v365 = vld [vmem:[%s1 + $0x3b8] sm:$0xf]
  %v366 = vld [vmem:[%s1 + $0x3bc] sm:$0xf]
  %v367 = vld [vmem:[%s1 + $0x3c0] sm:$0xf]
  %v368 = vld [vmem:[%s1 + $0x3c4] sm:$0xf]
  %v369 = vld [vmem:[%s1 + $0x3c8] sm:$0xf]
  %v370 = vld [vmem:[%s1 + $0x3cc] sm:$0xf]
  %v371 = vld [vmem:[%s1 + $0x3d0] sm:$0xf]
  %v372 = vld [vmem:[%s1 + $0x3d4] sm:$0xf]
  %v373 = vld [vmem:[%s1 + $0x3d8] sm:$0xf]
  %v374 = vld [vmem:[%s1 + $0x3dc] sm:$0xf]
  %v375 = vld [vmem:[%s1 + $0x3e0] sm:$0xf]
  %v376 = vld [vmem:[%s1 + $0x3e4] sm:$0xf]
  %v377 = vld [vmem:[%s1 + $0x3e8] sm:$0xf]
  %v378 = vld [vmem:[%s1 + $0x3ec] sm:$0xf]
  %v379 = vld [vmem:[%s1 + $0x3f0] sm:$0xf]
  %v380 = vld [vmem:[%s1 + $0x3f4] sm:$0xf]
  %v381 = vld [vmem:[%s1 + $0x3f8] sm:$0xf]
  %v382 = vld [vmem:[%s1 + $0x3fc] sm:$0xf]
  %v383 = vld [vmem:[%s1 + $0x400] sm:$0xf]
  %v384 = vld [vmem:[%s1 + $0x404] sm:$0xf]
  %v385 = vld [vmem:[%s1 + $0x408] sm:$0xf]
  %v386 = vld [vmem:[%s1 + $0x40c] sm:$0xf]
  %v387 = vld [vmem:[%s1 + $0x410] sm:$0xf]
  %v388 = vld [vmem:[%s1 + $0x414] sm:$0xf]
  %v389 = vld [vmem:[%s1 + $0x418] sm:$0xf]
  %v390 = vld [vmem:[%s1 + $0x41c] sm:$0xf]
  %v391 = vld [vmem:[%s1 + $0x420] sm:$0xf]
  %v392 = vld [vmem:[%s1 + $0x424] sm:$0xf]
  %v393 = vld [vmem:[%s1 + $0x428] sm:$0xf]
  %v394 = vld [vmem:[%s1 + $0x42c] sm:$0xf]
  %v395 = vld [vmem:[%s1 + $0x430] sm:$0xf]
  %v396 = vld [vmem:[%s1 + $0x434] sm:$0xf]
  %v397 = vld [vmem:[%s1 + $0x438] sm:$0xf]
  %v398 = vld [vmem:[%s1 + $0x43c] sm:$0xf]
  %v399 = vld [vmem:[%s1 + $0x440] sm:$0xf]
  %v400 = vld [vmem:[%s1 + $0x444] sm:$0xf]
  %v401 = vld [vmem:[%s1 + $0x448] sm:$0xf]
  %v402 = vld [vmem:[%s1 + $0x44c] sm:$0xf]
  %v403 = vld [vmem:[%s1 + $0x450] sm:$0xf]
  %v404 = vld [vmem:[%s1 + $0x454] sm:$0xf]
  %v405 = vld [vmem:[%s1 + $0x458] sm:$0xf]
  %v406 = vld [vmem:[%s1 + $0x45c] sm:$0xf]
  %v407 = vld [vmem:[%s1 + $0x460] sm:$0xf]
  %v408 = vld [vmem:[%s1 + $0x464] sm:$0xf]
  %v409 = vld [vmem:[%s1 + $0x468] sm:$0xf]
  %v410 = vld [vmem:[%s1 + $0x46c] sm:$0xf]
  %v411 = vld [vmem:[%s1 + $0x470] sm:$0xf]
  %v412 = vld [vmem:[%s1 + $0x474] sm:$0xf]
  %v413 = vld [vmem:[%s1 + $0x478] sm:$0xf]
  %v414 = vld [vmem:[%s1 + $0x47c] sm:$0xf]
  %v415 = vld [vmem:[%s1 + $0x480] sm:$0xf]
  %v416 = vld [vmem:[%s1 + $0x484] sm:$0xf]
  %v417 = vld [vmem:[%s1 + $0x488] sm:$0xf]
  %v418 = vld [vmem:[%s1 + $0x48c] sm:$0xf]
  %v419 = vld [vmem:[%s1 + $0x490] sm:$0xf]
  %v420 = vld [vmem:[%s1 + $0x494] sm:$0xf]
  %v421 = vld [vmem:[%s1 + $0x498] sm:$0xf]
  %v422 = vld [vmem:[%s1 + $0x49c] sm:$0xf]
  %v423 = vld [vmem:[%s1 + $0x4a0] sm:$0xf]
  %v424 = vld [vmem:[%s1 + $0x4a4] sm:$0xf]
  %v425 = vld [vmem:[%s1 + $0x4a8] sm:$0xf]
  %v426 = vld [vmem:[%s1 + $0x4ac] sm:$0xf]
  %v427 = vld [vmem:[%s1 + $0x4b0] sm:$0xf]
  %v428 = vld [vmem:[%s1 + $0x4b4] sm:$0xf]
  %v429 = vld [vmem:[%s1 + $0x4b8] sm:$0xf]
  %v430 = vld [vmem:[%s1 + $0x4bc] sm:$0xf]
  %v431 = vld [vmem:[%s1 + $0x4c0] sm:$0xf]
  %v432 = vld [vmem:[%s1 + $0x4c4] sm:$0xf]
  %v433 = vld [vmem:[%s1 + $0x4c8] sm:$0xf]
  %v434 = vld [vmem:[%s1 + $0x4cc] sm:$0xf]
  %v435 = vld [vmem:[%s1 + $0x4d0] sm:$0xf]
  %v436 = vld [vmem:[%s1 + $0x4d4] sm:$0xf]
  %v437 = vld [vmem:[%s1 + $0x4d8] sm:$0xf]
  %v438 = vld [vmem:[%s1 + $0x4dc] sm:$0xf]
  %v439 = vld [vmem:[%s1 + $0x4e0] sm:$0xf]
  %v440 = vld [vmem:[%s1 + $0x4e4] sm:$0xf]
  %v441 = vld [vmem:[%s1 + $0x4e8] sm:$0xf]
  %v442 = vld [vmem:[%s1 + $0x4ec] sm:$0xf]
  %v443 = vld [vmem:[%s1 + $0x4f0] sm:$0xf]
  %v444 = vld [vmem:[%s1 + $0x4f4] sm:$0xf]
  %v445 = vld [vmem:[%s1 + $0x4f8] sm:$0xf]
  %v446 = vld [vmem:[%s1 + $0x4fc] sm:$0xf]
  %v447 = vld [vmem:[%s1 + $0x500] sm:$0xf]
  %v448 = vld [vmem:[%s1 + $0x504] sm:$0xf]
  %v449 = vld [vmem:[%s1 + $0x508] sm:$0xf]
  %v450 = vld [vmem:[%s1 + $0x50c] sm:$0xf]
  %v451 = vld [vmem:[%s1 + $0x510] sm:$0xf]
  %v452 = vld [vmem:[%s1 + $0x514] sm:$0xf]
  %v453 = vld [vmem:[%s1 + $0x518] sm:$0xf]
  %v454 = vld [vmem:[%s1 + $0x51c] sm:$0xf]
  %v455 = vld [vmem:[%s1 + $0x520] sm:$0xf]
  %v456 = vld [vmem:[%s1 + $0x524] sm:$0xf]
  %v457 = vld [vmem:[%s1 + $0x528] sm:$0xf]
  %v458 = vld [vmem:[%s1 + $0x52c] sm:$0xf]
  %v459 = vld [vmem:[%s1 + $0x530] sm:$0xf]
  %v460 = vld [vmem:[%s1 + $0x534] sm:$0xf]
  %v461 = vld [vmem:[%s1 + $0x538] sm:$0xf]
  %v462 = vld [vmem:[%s1 + $0x53c] sm:$0xf]
  %v463 = vld [vmem:[%s1 + $0x540] sm:$0xf]
  %v464 = vld [vmem:[%s1 + $0x544] sm:$0xf]
  %v465 = vld [vmem:[%s1 + $0x548] sm:$0xf]
  %v466 = vld [vmem:[%s1 + $0x54c] sm:$0xf]
  %v467 = vld [vmem:[%s1 + $0x550] sm:$0xf]
  %v468 = vld [vmem:[%s1 + $0x554] sm:$0xf]
  %v469 = vld [vmem:[%s1 + $0x558] sm:$0xf]
  %v470 = vld [vmem:[%s1 + $0x55c] sm:$0xf]
  %v471 = vld [vmem:[%s1 + $0x560] sm:$0xf]
  %v472 = vld [vmem:[%s1 + $0x564] sm:$0xf]
  %v473 = vld [vmem:[%s1 + $0x568] sm:$0xf]
  %v474 = vld [vmem:[%s1 + $0x56c] sm:$0xf]
  %v475 = vld [vmem:[%s1 + $0x570] sm:$0xf]
  %v476 = vld [vmem:[%s1 + $0x574] sm:$0xf]
  %v477 = vld [vmem:[%s1 + $0x578] sm:$0xf]
  %v478 = vld [vmem:[%s1 + $0x57c] sm:$0xf]
  %v479 = vld [vmem:[%s1 + $0x580] sm:$0xf]
  %v480 = vld [vmem:[%s1 + $0x584] sm:$0xf]
  %v481 = vld [vmem:[%s1 + $0x588] sm:$0xf]
  %v482 = vld [vmem:[%s1 + $0x58c] sm:$0xf]
  %v483 = vld [vmem:[%s1 + $0x590] sm:$0xf]
  %v484 = vld [vmem:[%s1 + $0x594] sm:$0xf]
  %v485 = vld [vmem:[%s1 + $0x598] sm:$0xf]
  %v486 = vld [vmem:[%s1 + $0x59c] sm:$0xf]
  %v487 = vld [vmem:[%s1 + $0x5a0] sm:$0xf]
  %v488 = vld [vmem:[%s1 + $0x5a4] sm:$0xf]
  %v489 = vld [vmem:[%s1 + $0x5a8] sm:$0xf]
  %v490 = vld [vmem:[%s1 + $0x5ac] sm:$0xf]
  %v491 = vld [vmem:[%s1 + $0x5b0] sm:$0xf]
  %v492 = vld [vmem:[%s1 + $0x5b4] sm:$0xf]
  %v493 = vld [vmem:[%s1 + $0x5b8] sm:$0xf]
  %v494 = vld [vmem:[%s1 + $0x5bc] sm:$0xf]
  %v495 = vld [vmem:[%s1 + $0x5c0] sm:$0xf]
  %v496 = vld [vmem:[%s1 + $0x5c4] sm:$0xf]
  %v497 = vld [vmem:[%s1 + $0x5c8] sm:$0xf]
  %v498 = vld [vmem:[%s1 + $0x5cc] sm:$0xf]
  %v499 = vld [vmem:[%s1 + $0x5d0] sm:$0xf]
  %v500 = vld [vmem:[%s1 + $0x5d4] sm:$0xf]
  %v501 = vld [vmem:[%s1 + $0x5d8] sm:$0xf]
  %v502 = vld [vmem:[%s1 + $0x5dc] sm:$0xf]
  %v503 = vld [vmem:[%s1 + $0x5e0] sm:$0xf]
  %v504 = vld [vmem:[%s1 + $0x5e4] sm:$0xf]
  %v505 = vld [vmem:[%s1 + $0x5e8] sm:$0xf]
  %v506 = vld [vmem:[%s1 + $0x5ec] sm:$0xf]
  %v507 = vld [vmem:[%s1 + $0x5f0] sm:$0xf]
  %v508 = vld [vmem:[%s1 + $0x5f4] sm:$0xf]
  %v509 = vld [vmem:[%s1 + $0x5f8] sm:$0xf]
  %v510 = vld [vmem:[%s1 + $0x5fc] sm:$0xf]
  %v511 = vld [vmem:[%s1 + $0x600] sm:$0xf]
  %v512 = vld [vmem:[%s1 + $0x604] sm:$0xf]
  %v513 = vld [vmem:[%s1 + $0x608] sm:$0xf]
  %v514 = vld [vmem:[%s1 + $0x60c] sm:$0xf]
  %v515 = vld [vmem:[%s1 + $0x610] sm:$0xf]
  %v516 = vld [vmem:[%s1 + $0x614] sm:$0xf]
  %v517 = vld [vmem:[%s1 + $0x618] sm:$0xf]
  %v518 = vld [vmem:[%s1 + $0x61c] sm:$0xf]
  %v519 = vld [vmem:[%s1 + $0x620] sm:$0xf]
  %v520 = vld [vmem:[%s1 + $0x624] sm:$0xf]
  %v521 = vld [vmem:[%s1 + $0x628] sm:$0xf]
  %v522 = vld [vmem:[%s1 + $0x62c] sm:$0xf]
  %v523 = vld [vmem:[%s1 + $0x630] sm:$0xf]
  %v524 = vld [vmem:[%s1 + $0x634] sm:$0xf]
  %v525 = vld [vmem:[%s1 + $0x638] sm:$0xf]
  %v526 = vld [vmem:[%s1 + $0x63c] sm:$0xf]
  %v527 = vld [vmem:[%s1 + $0x640] sm:$0xf]
  %v528 = vld [vmem:[%s1 + $0x644] sm:$0xf]
  %v529 = vld [vmem:[%s1 + $0x648] sm:$0xf]
  %v530 = vld [vmem:[%s1 + $0x64c] sm:$0xf]
  %v531 = vld [vmem:[%s1 + $0x650] sm:$0xf]
  %v532 = vld [vmem:[%s1 + $0x654] sm:$0xf]
  %v533 = vld [vmem:[%s1 + $0x658] sm:$0xf]
  %v534 = vld [vmem:[%s1 + $0x65c] sm:$0xf]
  %v535 = vld [vmem:[%s1 + $0x660] sm:$0xf]
  %v536 = vld [vmem:[%s1 + $0x664] sm:$0xf]
  %v537 = vld [vmem:[%s1 + $0x668] sm:$0xf]
  %v538 = vld [vmem:[%s1 + $0x66c] sm:$0xf]
  %v539 = vld [vmem:[%s1 + $0x670] sm:$0xf]
  %v540 = vld [vmem:[%s1 + $0x674] sm:$0xf]
  %v541 = vld [vmem:[%s1 + $0x678] sm:$0xf]
  %v542 = vld [vmem:[%s1 + $0x67c] sm:$0xf]
  %v543 = vld [vmem:[%s1 + $0x680] sm:$0xf]
  %v544 = vld [vmem:[%s1 + $0x684] sm:$0xf]
  %v545 = vld [vmem:[%s1 + $0x688] sm:$0xf]
  %v546 = vld [vmem:[%s1 + $0x68c] sm:$0xf]
  %v547 = vld [vmem:[%s1 + $0x690] sm:$0xf]
  %v548 = vld [vmem:[%s1 + $0x694] sm:$0xf]
  %v549 = vld [vmem:[%s1 + $0x698] sm:$0xf]
  %v550 = vld [vmem:[%s1 + $0x69c] sm:$0xf]
  %v551 = vld [vmem:[%s1 + $0x6a0] sm:$0xf]
  %v552 = vld [vmem:[%s1 + $0x6a4] sm:$0xf]
  %v553 = vld [vmem:[%s1 + $0x6a8] sm:$0xf]
  %v554 = vld [vmem:[%s1 + $0x6ac] sm:$0xf]
  %v555 = vld [vmem:[%s1 + $0x6b0] sm:$0xf]
  %v556 = vld [vmem:[%s1 + $0x6b4] sm:$0xf]
  %v557 = vld [vmem:[%s1 + $0x6b8] sm:$0xf]
  %v558 = vld [vmem:[%s1 + $0x6bc] sm:$0xf]
  %v559 = vld [vmem:[%s2] sm:$0xff]
  %v560 = vld [vmem:[%s2 + $0x8] sm:$0xff]
  %v561 = vld [vmem:[%s2 + $0x10] sm:$0xff]
  %v562 = vld [vmem:[%s2 + $0x18] sm:$0xff]
  %v563 = vld [vmem:[%s2 + $0x20] sm:$0xff]
  %v564 = vld [vmem:[%s2 + $0x28] sm:$0xff]
  %v565 = vld [vmem:[%s2 + $0x30] sm:$0xff]
  %v566 = vld [vmem:[%s2 + $0x38] sm:$0xff]
  %568 = vset.pattern.permute.xlu0 0
  %569 = vperm.xlu0 %568, %v559
  %v570 = vpop.permute.xlu0 %569
  %573 = vset.pattern.permute.xlu0 0
  %574 = vperm.xlu0 %573, %v560
  %v575 = vpop.permute.xlu0 %574
  %578 = vset.pattern.permute.xlu0 0
  %579 = vperm.xlu0 %578, %v561
  %v580 = vpop.permute.xlu0 %579
  %583 = vset.pattern.permute.xlu0 0
  %584 = vperm.xlu0 %583, %v562
  %v585 = vpop.permute.xlu0 %584
  %588 = vset.pattern.permute.xlu0 0
  %589 = vperm.xlu0 %588, %v563
  %v590 = vpop.permute.xlu0 %589
  %593 = vset.pattern.permute.xlu0 0
  %594 = vperm.xlu0 %593, %v564
  %v595 = vpop.permute.xlu0 %594
  %598 = vset.pattern.permute.xlu0 0
  %599 = vperm.xlu0 %598, %v565
  %v600 = vpop.permute.xlu0 %599
  %603 = vset.pattern.permute.xlu0 0
  %604 = vperm.xlu0 %603, %v566
  %v605 = vpop.permute.xlu0 %604
  %v719 = vunpack.c.l.b16 %v15
  %v720 = vunpack.c.h.b16 %v15
  %v721 = vunpack.c.l.b16 %v16
  %v722 = vunpack.c.h.b16 %v16
  %v723 = vunpack.c.l.b16 %v17
  %v724 = vunpack.c.h.b16 %v17
  %v725 = vunpack.c.l.b16 %v18
  %v726 = vunpack.c.h.b16 %v18
  %v727 = vunpack.c.l.b16 %v19
  %v728 = vunpack.c.h.b16 %v19
  %v729 = vunpack.c.l.b16 %v20
  %v730 = vunpack.c.h.b16 %v20
  %v731 = vunpack.c.l.b16 %v21
  %v732 = vunpack.c.h.b16 %v21
  %v733 = vunpack.c.l.b16 %v22
  %v734 = vunpack.c.h.b16 %v22
  %v735 = vunpack.c.l.b16 %v23
  %v736 = vunpack.c.h.b16 %v23
  %v737 = vunpack.c.l.b16 %v24
  %v738 = vunpack.c.h.b16 %v24
  %v739 = vunpack.c.l.b16 %v25
  %v740 = vunpack.c.h.b16 %v25
  %v741 = vunpack.c.l.b16 %v26
  %v742 = vunpack.c.h.b16 %v26
  %v743 = vunpack.c.l.b16 %v27
  %v744 = vunpack.c.h.b16 %v27
  %v745 = vunpack.c.l.b16 %v28
  %v746 = vunpack.c.l.b16 %v29
  %v747 = vunpack.c.h.b16 %v29
  %v748 = vunpack.c.l.b16 %v30
  %v749 = vunpack.c.h.b16 %v30
  %v750 = vunpack.c.l.b16 %v31
  %v751 = vunpack.c.h.b16 %v31
  %v752 = vunpack.c.l.b16 %v32
  %v753 = vunpack.c.h.b16 %v32
  %v754 = vunpack.c.l.b16 %v33
  %v755 = vunpack.c.h.b16 %v33
  %v756 = vunpack.c.l.b16 %v34
  %v757 = vunpack.c.h.b16 %v34
  %v758 = vunpack.c.l.b16 %v35
  %v759 = vunpack.c.h.b16 %v35
  %v760 = vunpack.c.l.b16 %v36
  %v761 = vunpack.c.h.b16 %v36
  %v762 = vunpack.c.l.b16 %v37
  %v763 = vunpack.c.h.b16 %v37
  %v764 = vunpack.c.l.b16 %v38
  %v765 = vunpack.c.h.b16 %v38
  %v766 = vunpack.c.l.b16 %v39
  %v767 = vunpack.c.h.b16 %v39
  %v768 = vunpack.c.l.b16 %v40
  %v769 = vunpack.c.h.b16 %v40
  %v770 = vunpack.c.l.b16 %v41
  %v771 = vunpack.c.h.b16 %v41
  %v772 = vunpack.c.l.b16 %v42
  %v773 = vunpack.c.l.b16 %v43
  %v774 = vunpack.c.h.b16 %v43
  %v775 = vunpack.c.l.b16 %v44
  %v776 = vunpack.c.h.b16 %v44
  %v777 = vunpack.c.l.b16 %v45
  %v778 = vunpack.c.h.b16 %v45
  %v779 = vunpack.c.l.b16 %v46
  %v780 = vunpack.c.h.b16 %v46
  %v781 = vunpack.c.l.b16 %v47
  %v782 = vunpack.c.h.b16 %v47
  %v783 = vunpack.c.l.b16 %v48
  %v784 = vunpack.c.h.b16 %v48
  %v785 = vunpack.c.l.b16 %v49
  %v786 = vunpack.c.h.b16 %v49
  %v787 = vunpack.c.l.b16 %v50
  %v788 = vunpack.c.h.b16 %v50
  %v789 = vunpack.c.l.b16 %v51
  %v790 = vunpack.c.h.b16 %v51
  %v791 = vunpack.c.l.b16 %v52
  %v792 = vunpack.c.h.b16 %v52
  %v793 = vunpack.c.l.b16 %v53
  %v794 = vunpack.c.h.b16 %v53
  %v795 = vunpack.c.l.b16 %v54
  %v796 = vunpack.c.h.b16 %v54
  %v797 = vunpack.c.l.b16 %v55
  %v798 = vunpack.c.h.b16 %v55
  %v799 = vunpack.c.l.b16 %v56
  %v800 = vunpack.c.l.b16 %v57
  %v801 = vunpack.c.h.b16 %v57
  %v802 = vunpack.c.l.b16 %v58
  %v803 = vunpack.c.h.b16 %v58
  %v804 = vunpack.c.l.b16 %v59
  %v805 = vunpack.c.h.b16 %v59
  %v806 = vunpack.c.l.b16 %v60
  %v807 = vunpack.c.h.b16 %v60
  %v808 = vunpack.c.l.b16 %v61
  %v809 = vunpack.c.h.b16 %v61
  %v810 = vunpack.c.l.b16 %v62
  %v811 = vunpack.c.h.b16 %v62
  %v812 = vunpack.c.l.b16 %v63
  %v813 = vunpack.c.h.b16 %v63
  %v814 = vunpack.c.l.b16 %v64
  %v815 = vunpack.c.h.b16 %v64
  %v816 = vunpack.c.l.b16 %v65
  %v817 = vunpack.c.h.b16 %v65
  %v818 = vunpack.c.l.b16 %v66
  %v819 = vunpack.c.h.b16 %v66
  %v820 = vunpack.c.l.b16 %v67
  %v821 = vunpack.c.h.b16 %v67
  %v822 = vunpack.c.l.b16 %v68
  %v823 = vunpack.c.h.b16 %v68
  %v824 = vunpack.c.l.b16 %v69
  %v825 = vunpack.c.h.b16 %v69
  %v826 = vunpack.c.l.b16 %v70
  %v827 = vunpack.c.l.b16 %v71
  %v828 = vunpack.c.h.b16 %v71
  %v829 = vunpack.c.l.b16 %v72
  %v830 = vunpack.c.h.b16 %v72
  %v831 = vunpack.c.l.b16 %v73
  %v832 = vunpack.c.h.b16 %v73
  %v833 = vunpack.c.l.b16 %v74
  %v834 = vunpack.c.h.b16 %v74
  %v835 = vunpack.c.l.b16 %v75
  %v836 = vunpack.c.h.b16 %v75
  %v837 = vunpack.c.l.b16 %v76
  %v838 = vunpack.c.h.b16 %v76
  %v839 = vunpack.c.l.b16 %v77
  %v840 = vunpack.c.h.b16 %v77
  %v841 = vunpack.c.l.b16 %v78
  %v842 = vunpack.c.h.b16 %v78
  %v843 = vunpack.c.l.b16 %v79
  %v844 = vunpack.c.h.b16 %v79
  %v845 = vunpack.c.l.b16 %v80
  %v846 = vunpack.c.h.b16 %v80
  %v847 = vunpack.c.l.b16 %v81
  %v848 = vunpack.c.h.b16 %v81
  %v849 = vunpack.c.l.b16 %v82
  %v850 = vunpack.c.h.b16 %v82
  %v851 = vunpack.c.l.b16 %v83
  %v852 = vunpack.c.h.b16 %v83
  %v853 = vunpack.c.l.b16 %v84
  %v854 = vunpack.c.l.b16 %v85
  %v855 = vunpack.c.h.b16 %v85
  %v856 = vunpack.c.l.b16 %v86
  %v857 = vunpack.c.h.b16 %v86
  %v858 = vunpack.c.l.b16 %v87
  %v859 = vunpack.c.h.b16 %v87
  %v860 = vunpack.c.l.b16 %v88
  %v861 = vunpack.c.h.b16 %v88
  %v862 = vunpack.c.l.b16 %v89
  %v863 = vunpack.c.h.b16 %v89
  %v864 = vunpack.c.l.b16 %v90
  %v865 = vunpack.c.h.b16 %v90
  %v866 = vunpack.c.l.b16 %v91
  %v867 = vunpack.c.h.b16 %v91
  %v868 = vunpack.c.l.b16 %v92
  %v869 = vunpack.c.h.b16 %v92
  %v870 = vunpack.c.l.b16 %v93
  %v871 = vunpack.c.h.b16 %v93
  %v872 = vunpack.c.l.b16 %v94
  %v873 = vunpack.c.h.b16 %v94
  %v874 = vunpack.c.l.b16 %v95
  %v875 = vunpack.c.h.b16 %v95
  %v876 = vunpack.c.l.b16 %v96
  %v877 = vunpack.c.h.b16 %v96
  %v878 = vunpack.c.l.b16 %v97
  %v879 = vunpack.c.h.b16 %v97
  %v880 = vunpack.c.l.b16 %v98
  %v881 = vunpack.c.l.b16 %v99
  %v882 = vunpack.c.h.b16 %v99
  %v883 = vunpack.c.l.b16 %v100
  %v884 = vunpack.c.h.b16 %v100
  %v885 = vunpack.c.l.b16 %v101
  %v886 = vunpack.c.h.b16 %v101
  %v887 = vunpack.c.l.b16 %v102
  %v888 = vunpack.c.h.b16 %v102
  %v889 = vunpack.c.l.b16 %v103
  %v890 = vunpack.c.h.b16 %v103
  %v891 = vunpack.c.l.b16 %v104
  %v892 = vunpack.c.h.b16 %v104
  %v893 = vunpack.c.l.b16 %v105
  %v894 = vunpack.c.h.b16 %v105
  %v895 = vunpack.c.l.b16 %v106
  %v896 = vunpack.c.h.b16 %v106
  %v897 = vunpack.c.l.b16 %v107
  %v898 = vunpack.c.h.b16 %v107
  %v899 = vunpack.c.l.b16 %v108
  %v900 = vunpack.c.h.b16 %v108
  %v901 = vunpack.c.l.b16 %v109
  %v902 = vunpack.c.h.b16 %v109
  %v903 = vunpack.c.l.b16 %v110
  %v904 = vunpack.c.h.b16 %v110
  %v905 = vunpack.c.l.b16 %v111
  %v906 = vunpack.c.h.b16 %v111
  %v907 = vunpack.c.l.b16 %v112
  %v908 = vunpack.c.l.b16 %v113
  %v909 = vunpack.c.h.b16 %v113
  %v910 = vunpack.c.l.b16 %v114
  %v911 = vunpack.c.h.b16 %v114
  %v912 = vunpack.c.l.b16 %v115
  %v913 = vunpack.c.h.b16 %v115
  %v914 = vunpack.c.l.b16 %v116
  %v915 = vunpack.c.h.b16 %v116
  %v916 = vunpack.c.l.b16 %v117
  %v917 = vunpack.c.h.b16 %v117
  %v918 = vunpack.c.l.b16 %v118
  %v919 = vunpack.c.h.b16 %v118
  %v920 = vunpack.c.l.b16 %v119
  %v921 = vunpack.c.h.b16 %v119
  %v922 = vunpack.c.l.b16 %v120
  %v923 = vunpack.c.h.b16 %v120
  %v924 = vunpack.c.l.b16 %v121
  %v925 = vunpack.c.h.b16 %v121
  %v926 = vunpack.c.l.b16 %v122
  %v927 = vunpack.c.h.b16 %v122
  %v928 = vunpack.c.l.b16 %v123
  %v929 = vunpack.c.h.b16 %v123
  %v930 = vunpack.c.l.b16 %v124
  %v931 = vunpack.c.h.b16 %v124
  %v932 = vunpack.c.l.b16 %v125
  %v933 = vunpack.c.h.b16 %v125
  %v934 = vunpack.c.l.b16 %v126
  %v935 = vpack.c.b16 %v746, %v719
  %v936 = vpack.c.b16 %v747, %v720
  %v937 = vpack.c.b16 %v748, %v721
  %v938 = vpack.c.b16 %v749, %v722
  %v939 = vpack.c.b16 %v750, %v723
  %v940 = vpack.c.b16 %v751, %v724
  %v941 = vpack.c.b16 %v752, %v725
  %v942 = vpack.c.b16 %v753, %v726
  %v943 = vpack.c.b16 %v754, %v727
  %v944 = vpack.c.b16 %v755, %v728
  %v945 = vpack.c.b16 %v756, %v729
  %v946 = vpack.c.b16 %v757, %v730
  %v947 = vpack.c.b16 %v758, %v731
  %v948 = vpack.c.b16 %v759, %v732
  %v949 = vpack.c.b16 %v760, %v733
  %v950 = vpack.c.b16 %v761, %v734
  %v951 = vpack.c.b16 %v762, %v735
  %v952 = vpack.c.b16 %v763, %v736
  %v953 = vpack.c.b16 %v764, %v737
  %v954 = vpack.c.b16 %v765, %v738
  %v955 = vpack.c.b16 %v766, %v739
  %v956 = vpack.c.b16 %v767, %v740
  %v957 = vpack.c.b16 %v768, %v741
  %v958 = vpack.c.b16 %v769, %v742
  %v959 = vpack.c.b16 %v770, %v743
  %v960 = vpack.c.b16 %v771, %v744
  %v961 = vpack.c.b16 %v772, %v745
  %v962 = vpack.c.b16 %v800, %v773
  %v963 = vpack.c.b16 %v801, %v774
  %v964 = vpack.c.b16 %v802, %v775
  %v965 = vpack.c.b16 %v803, %v776
  %v966 = vpack.c.b16 %v804, %v777
  %v967 = vpack.c.b16 %v805, %v778
  %v968 = vpack.c.b16 %v806, %v779
  %v969 = vpack.c.b16 %v807, %v780
  %v970 = vpack.c.b16 %v808, %v781
  %v971 = vpack.c.b16 %v809, %v782
  %v972 = vpack.c.b16 %v810, %v783
  %v973 = vpack.c.b16 %v811, %v784
  %v974 = vpack.c.b16 %v812, %v785
  %v975 = vpack.c.b16 %v813, %v786
  %v976 = vpack.c.b16 %v814, %v787
  %v977 = vpack.c.b16 %v815, %v788
  %v978 = vpack.c.b16 %v816, %v789
  %v979 = vpack.c.b16 %v817, %v790
  %v980 = vpack.c.b16 %v818, %v791
  %v981 = vpack.c.b16 %v819, %v792
  %v982 = vpack.c.b16 %v820, %v793
  %v983 = vpack.c.b16 %v821, %v794
  %v984 = vpack.c.b16 %v822, %v795
  %v985 = vpack.c.b16 %v823, %v796
  %v986 = vpack.c.b16 %v824, %v797
  %v987 = vpack.c.b16 %v825, %v798
  %v988 = vpack.c.b16 %v826, %v799
  %v989 = vpack.c.b16 %v854, %v827
  %v990 = vpack.c.b16 %v855, %v828
  %v991 = vpack.c.b16 %v856, %v829
  %v992 = vpack.c.b16 %v857, %v830
  %v993 = vpack.c.b16 %v858, %v831
  %v994 = vpack.c.b16 %v859, %v832
  %v995 = vpack.c.b16 %v860, %v833
  %v996 = vpack.c.b16 %v861, %v834
  %v997 = vpack.c.b16 %v862, %v835
  %v998 = vpack.c.b16 %v863, %v836
  %v999 = vpack.c.b16 %v864, %v837
  %v1000 = vpack.c.b16 %v865, %v838
  %v1001 = vpack.c.b16 %v866, %v839
  %v1002 = vpack.c.b16 %v867, %v840
  %v1003 = vpack.c.b16 %v868, %v841
  %v1004 = vpack.c.b16 %v869, %v842
  %v1005 = vpack.c.b16 %v870, %v843
  %v1006 = vpack.c.b16 %v871, %v844
  %v1007 = vpack.c.b16 %v872, %v845
  %v1008 = vpack.c.b16 %v873, %v846
  %v1009 = vpack.c.b16 %v874, %v847
  %v1010 = vpack.c.b16 %v875, %v848
  %v1011 = vpack.c.b16 %v876, %v849
  %v1012 = vpack.c.b16 %v877, %v850
  %v1013 = vpack.c.b16 %v878, %v851
  %v1014 = vpack.c.b16 %v879, %v852
  %v1015 = vpack.c.b16 %v880, %v853
  %v1016 = vpack.c.b16 %v908, %v881
  %v1017 = vpack.c.b16 %v909, %v882
  %v1018 = vpack.c.b16 %v910, %v883
  %v1019 = vpack.c.b16 %v911, %v884
  %v1020 = vpack.c.b16 %v912, %v885
  %v1021 = vpack.c.b16 %v913, %v886
  %v1022 = vpack.c.b16 %v914, %v887
  %v1023 = vpack.c.b16 %v915, %v888
  %v1024 = vpack.c.b16 %v916, %v889
  %v1025 = vpack.c.b16 %v917, %v890
  %v1026 = vpack.c.b16 %v918, %v891
  %v1027 = vpack.c.b16 %v919, %v892
  %v1028 = vpack.c.b16 %v920, %v893
  %v1029 = vpack.c.b16 %v921, %v894
  %v1030 = vpack.c.b16 %v922, %v895
  %v1031 = vpack.c.b16 %v923, %v896
  %v1032 = vpack.c.b16 %v924, %v897
  %v1033 = vpack.c.b16 %v925, %v898
  %v1034 = vpack.c.b16 %v926, %v899
  %v1035 = vpack.c.b16 %v927, %v900
  %v1036 = vpack.c.b16 %v928, %v901
  %v1037 = vpack.c.b16 %v929, %v902
  %v1038 = vpack.c.b16 %v930, %v903
  %v1039 = vpack.c.b16 %v931, %v904
  %v1040 = vpack.c.b16 %v932, %v905
  %v1041 = vpack.c.b16 %v933, %v906
  %v1042 = vpack.c.b16 %v934, %v907
  %v1583 = vunpack.c.l.b16 %v127
  %v1584 = vunpack.c.l.b16 %v128
  %v1585 = vunpack.c.l.b16 %v129
  %v1586 = vunpack.c.l.b16 %v130
  %v1587 = vunpack.c.l.b16 %v131
  %v1588 = vunpack.c.l.b16 %v132
  %v1589 = vunpack.c.l.b16 %v133
  %v1590 = vunpack.c.l.b16 %v134
  %v1591 = vunpack.c.l.b16 %v135
  %v1592 = vunpack.c.l.b16 %v136
  %v1593 = vunpack.c.l.b16 %v137
  %v1594 = vunpack.c.l.b16 %v138
  %v1595 = vunpack.c.l.b16 %v139
  %v1596 = vunpack.c.l.b16 %v140
  %v1597 = vunpack.c.l.b16 %v141
  %v1598 = vunpack.c.l.b16 %v142
  %v1599 = vunpack.c.l.b16 %v143
  %v1600 = vunpack.c.l.b16 %v144
  %v1601 = vunpack.c.l.b16 %v145
  %v1602 = vunpack.c.l.b16 %v146
  %v1603 = vunpack.c.l.b16 %v147
  %v1604 = vunpack.c.l.b16 %v148
  %v1605 = vunpack.c.l.b16 %v149
  %v1606 = vunpack.c.l.b16 %v150
  %v1607 = vunpack.c.l.b16 %v151
  %v1608 = vunpack.c.l.b16 %v152
  %v1609 = vunpack.c.l.b16 %v153
  %v1610 = vunpack.c.l.b16 %v154
  %v1611 = vunpack.c.l.b16 %v155
  %v1612 = vunpack.c.l.b16 %v156
  %v1613 = vunpack.c.l.b16 %v157
  %v1614 = vunpack.c.l.b16 %v158
  %v1615 = vunpack.c.l.b16 %v159
  %v1616 = vunpack.c.l.b16 %v160
  %v1617 = vunpack.c.l.b16 %v161
  %v1618 = vunpack.c.l.b16 %v162
  %v1619 = vunpack.c.l.b16 %v163
  %v1620 = vunpack.c.l.b16 %v164
  %v1621 = vunpack.c.l.b16 %v165
  %v1622 = vunpack.c.l.b16 %v166
  %v1623 = vunpack.c.l.b16 %v167
  %v1624 = vunpack.c.l.b16 %v168
  %v1625 = vunpack.c.l.b16 %v169
  %v1626 = vunpack.c.l.b16 %v170
  %v1627 = vunpack.c.l.b16 %v171
  %v1628 = vunpack.c.l.b16 %v172
  %v1629 = vunpack.c.l.b16 %v173
  %v1630 = vunpack.c.l.b16 %v174
  %v1631 = vunpack.c.l.b16 %v175
  %v1632 = vunpack.c.l.b16 %v176
  %v1633 = vunpack.c.l.b16 %v177
  %v1634 = vunpack.c.l.b16 %v178
  %v1635 = vunpack.c.l.b16 %v179
  %v1636 = vunpack.c.l.b16 %v180
  %v1637 = vunpack.c.l.b16 %v181
  %v1638 = vunpack.c.l.b16 %v182
  %v1639 = vunpack.c.l.b16 %v183
  %v1640 = vunpack.c.l.b16 %v184
  %v1641 = vunpack.c.l.b16 %v185
  %v1642 = vunpack.c.l.b16 %v186
  %v1643 = vunpack.c.l.b16 %v187
  %v1644 = vunpack.c.l.b16 %v188
  %v1645 = vunpack.c.l.b16 %v189
  %v1646 = vunpack.c.l.b16 %v190
  %v1647 = vunpack.c.l.b16 %v191
  %v1648 = vunpack.c.l.b16 %v192
  %v1649 = vunpack.c.l.b16 %v193
  %v1650 = vunpack.c.l.b16 %v194
  %v1651 = vunpack.c.l.b16 %v195
  %v1652 = vunpack.c.l.b16 %v196
  %v1653 = vunpack.c.l.b16 %v197
  %v1654 = vunpack.c.l.b16 %v198
  %v1655 = vunpack.c.l.b16 %v199
  %v1656 = vunpack.c.l.b16 %v200
  %v1657 = vunpack.c.l.b16 %v201
  %v1658 = vunpack.c.l.b16 %v202
  %v1659 = vunpack.c.l.b16 %v203
  %v1660 = vunpack.c.l.b16 %v204
  %v1661 = vunpack.c.l.b16 %v205
  %v1662 = vunpack.c.l.b16 %v206
  %v1663 = vunpack.c.l.b16 %v207
  %v1664 = vunpack.c.l.b16 %v208
  %v1665 = vunpack.c.l.b16 %v209
  %v1666 = vunpack.c.l.b16 %v210
  %v1667 = vunpack.c.l.b16 %v211
  %v1668 = vunpack.c.l.b16 %v212
  %v1669 = vunpack.c.l.b16 %v213
  %v1670 = vunpack.c.l.b16 %v214
  %v1671 = vunpack.c.l.b16 %v215
  %v1672 = vunpack.c.l.b16 %v216
  %v1673 = vunpack.c.l.b16 %v217
  %v1674 = vunpack.c.l.b16 %v218
  %v1675 = vunpack.c.l.b16 %v219
  %v1676 = vunpack.c.l.b16 %v220
  %v1677 = vunpack.c.l.b16 %v221
  %v1678 = vunpack.c.l.b16 %v222
  %v1679 = vunpack.c.l.b16 %v223
  %v1680 = vunpack.c.l.b16 %v224
  %v1681 = vunpack.c.l.b16 %v225
  %v1682 = vunpack.c.l.b16 %v226
  %v1683 = vunpack.c.l.b16 %v227
  %v1684 = vunpack.c.l.b16 %v228
  %v1685 = vunpack.c.l.b16 %v229
  %v1686 = vunpack.c.l.b16 %v230
  %v1687 = vunpack.c.l.b16 %v231
  %v1688 = vunpack.c.l.b16 %v232
  %v1689 = vunpack.c.l.b16 %v233
  %v1690 = vunpack.c.l.b16 %v234
  %v1691 = vunpack.c.l.b16 %v235
  %v1692 = vunpack.c.l.b16 %v236
  %v1693 = vunpack.c.l.b16 %v237
  %v1694 = vunpack.c.l.b16 %v238
  %v1695 = vunpack.c.l.b16 %v239
  %v1696 = vunpack.c.l.b16 %v240
  %v1697 = vunpack.c.l.b16 %v241
  %v1698 = vunpack.c.l.b16 %v242
  %v1699 = vunpack.c.l.b16 %v243
  %v1700 = vunpack.c.l.b16 %v244
  %v1701 = vunpack.c.l.b16 %v245
  %v1702 = vunpack.c.l.b16 %v246
  %v1703 = vunpack.c.l.b16 %v247
  %v1704 = vunpack.c.l.b16 %v248
  %v1705 = vunpack.c.l.b16 %v249
  %v1706 = vunpack.c.l.b16 %v250
  %v1707 = vunpack.c.l.b16 %v251
  %v1708 = vunpack.c.l.b16 %v252
  %v1709 = vunpack.c.l.b16 %v253
  %v1710 = vunpack.c.l.b16 %v254
  %v1711 = vunpack.c.l.b16 %v255
  %v1712 = vunpack.c.l.b16 %v256
  %v1713 = vunpack.c.l.b16 %v257
  %v1714 = vunpack.c.l.b16 %v258
  %v1715 = vunpack.c.l.b16 %v259
  %v1716 = vunpack.c.l.b16 %v260
  %v1717 = vunpack.c.l.b16 %v261
  %v1718 = vunpack.c.l.b16 %v262
  %v1719 = vunpack.c.l.b16 %v263
  %v1720 = vunpack.c.l.b16 %v264
  %v1721 = vunpack.c.l.b16 %v265
  %v1722 = vunpack.c.l.b16 %v266
  %v1723 = vunpack.c.l.b16 %v267
  %v1724 = vunpack.c.l.b16 %v268
  %v1725 = vunpack.c.l.b16 %v269
  %v1726 = vunpack.c.l.b16 %v270
  %v1727 = vunpack.c.l.b16 %v271
  %v1728 = vunpack.c.l.b16 %v272
  %v1729 = vunpack.c.l.b16 %v273
  %v1730 = vunpack.c.l.b16 %v274
  %v1731 = vunpack.c.l.b16 %v275
  %v1732 = vunpack.c.l.b16 %v276
  %v1733 = vunpack.c.l.b16 %v277
  %v1734 = vunpack.c.l.b16 %v278
  %v1735 = vunpack.c.l.b16 %v279
  %v1736 = vunpack.c.l.b16 %v280
  %v1737 = vunpack.c.l.b16 %v281
  %v1738 = vunpack.c.l.b16 %v282
  %v1739 = vunpack.c.l.b16 %v283
  %v1740 = vunpack.c.l.b16 %v284
  %v1741 = vunpack.c.l.b16 %v285
  %v1742 = vunpack.c.l.b16 %v286
  %v1743 = vunpack.c.l.b16 %v287
  %v1744 = vunpack.c.l.b16 %v288
  %v1745 = vunpack.c.l.b16 %v289
  %v1746 = vunpack.c.l.b16 %v290
  %v1747 = vunpack.c.l.b16 %v291
  %v1748 = vunpack.c.l.b16 %v292
  %v1749 = vunpack.c.l.b16 %v293
  %v1750 = vunpack.c.l.b16 %v294
  %v1751 = vunpack.c.l.b16 %v295
  %v1752 = vunpack.c.l.b16 %v296
  %v1753 = vunpack.c.l.b16 %v297
  %v1754 = vunpack.c.l.b16 %v298
  %v1755 = vunpack.c.l.b16 %v299
  %v1756 = vunpack.c.l.b16 %v300
  %v1757 = vunpack.c.l.b16 %v301
  %v1758 = vunpack.c.l.b16 %v302
  %v1759 = vunpack.c.l.b16 %v303
  %v1760 = vunpack.c.l.b16 %v304
  %v1761 = vunpack.c.l.b16 %v305
  %v1762 = vunpack.c.l.b16 %v306
  %v1763 = vunpack.c.l.b16 %v307
  %v1764 = vunpack.c.l.b16 %v308
  %v1765 = vunpack.c.l.b16 %v309
  %v1766 = vunpack.c.l.b16 %v310
  %v1767 = vunpack.c.l.b16 %v311
  %v1768 = vunpack.c.l.b16 %v312
  %v1769 = vunpack.c.l.b16 %v313
  %v1770 = vunpack.c.l.b16 %v314
  %v1771 = vunpack.c.l.b16 %v315
  %v1772 = vunpack.c.l.b16 %v316
  %v1773 = vunpack.c.l.b16 %v317
  %v1774 = vunpack.c.l.b16 %v318
  %v1775 = vunpack.c.l.b16 %v319
  %v1776 = vunpack.c.l.b16 %v320
  %v1777 = vunpack.c.l.b16 %v321
  %v1778 = vunpack.c.l.b16 %v322
  %v1779 = vunpack.c.l.b16 %v323
  %v1780 = vunpack.c.l.b16 %v324
  %v1781 = vunpack.c.l.b16 %v325
  %v1782 = vunpack.c.l.b16 %v326
  %v1783 = vunpack.c.l.b16 %v327
  %v1784 = vunpack.c.l.b16 %v328
  %v1785 = vunpack.c.l.b16 %v329
  %v1786 = vunpack.c.l.b16 %v330
  %v1787 = vunpack.c.l.b16 %v331
  %v1788 = vunpack.c.l.b16 %v332
  %v1789 = vunpack.c.l.b16 %v333
  %v1790 = vunpack.c.l.b16 %v334
  %v1791 = vunpack.c.l.b16 %v335
  %v1792 = vunpack.c.l.b16 %v336
  %v1793 = vunpack.c.l.b16 %v337
  %v1794 = vunpack.c.l.b16 %v338
  %v1795 = vunpack.c.l.b16 %v339
  %v1796 = vunpack.c.l.b16 %v340
  %v1797 = vunpack.c.l.b16 %v341
  %v1798 = vunpack.c.l.b16 %v342
  %v1799 = vunpack.c.l.b16 %v343
  %v1800 = vunpack.c.l.b16 %v344
  %v1801 = vunpack.c.l.b16 %v345
  %v1802 = vunpack.c.l.b16 %v346
  %v1803 = vunpack.c.l.b16 %v347
  %v1804 = vunpack.c.l.b16 %v348
  %v1805 = vunpack.c.l.b16 %v349
  %v1806 = vunpack.c.l.b16 %v350
  %v1807 = vunpack.c.l.b16 %v351
  %v1808 = vunpack.c.l.b16 %v352
  %v1809 = vunpack.c.l.b16 %v353
  %v1810 = vunpack.c.l.b16 %v354
  %v1811 = vunpack.c.l.b16 %v355
  %v1812 = vunpack.c.l.b16 %v356
  %v1813 = vunpack.c.l.b16 %v357
  %v1814 = vunpack.c.l.b16 %v358
  %v1815 = vunpack.c.l.b16 %v359
  %v1816 = vunpack.c.l.b16 %v360
  %v1817 = vunpack.c.l.b16 %v361
  %v1818 = vunpack.c.l.b16 %v362
  %v1819 = vunpack.c.l.b16 %v363
  %v1820 = vunpack.c.l.b16 %v364
  %v1821 = vunpack.c.l.b16 %v365
  %v1822 = vunpack.c.l.b16 %v366
  %v1823 = vunpack.c.l.b16 %v367
  %v1824 = vunpack.c.l.b16 %v368
  %v1825 = vunpack.c.l.b16 %v369
  %v1826 = vunpack.c.l.b16 %v370
  %v1827 = vunpack.c.l.b16 %v371
  %v1828 = vunpack.c.l.b16 %v372
  %v1829 = vunpack.c.l.b16 %v373
  %v1830 = vunpack.c.l.b16 %v374
  %v1831 = vunpack.c.l.b16 %v375
  %v1832 = vunpack.c.l.b16 %v376
  %v1833 = vunpack.c.l.b16 %v377
  %v1834 = vunpack.c.l.b16 %v378
  %v1835 = vunpack.c.l.b16 %v379
  %v1836 = vunpack.c.l.b16 %v380
  %v1837 = vunpack.c.l.b16 %v381
  %v1838 = vunpack.c.l.b16 %v382
  %v1839 = vunpack.c.l.b16 %v383
  %v1840 = vunpack.c.l.b16 %v384
  %v1841 = vunpack.c.l.b16 %v385
  %v1842 = vunpack.c.l.b16 %v386
  %v1843 = vunpack.c.l.b16 %v387
  %v1844 = vunpack.c.l.b16 %v388
  %v1845 = vunpack.c.l.b16 %v389
  %v1846 = vunpack.c.l.b16 %v390
  %v1847 = vunpack.c.l.b16 %v391
  %v1848 = vunpack.c.l.b16 %v392
  %v1849 = vunpack.c.l.b16 %v393
  %v1850 = vunpack.c.l.b16 %v394
  %v1851 = vunpack.c.l.b16 %v395
  %v1852 = vunpack.c.l.b16 %v396
  %v1853 = vunpack.c.l.b16 %v397
  %v1854 = vunpack.c.l.b16 %v398
  %v1855 = vunpack.c.l.b16 %v399
  %v1856 = vunpack.c.l.b16 %v400
  %v1857 = vunpack.c.l.b16 %v401
  %v1858 = vunpack.c.l.b16 %v402
  %v1859 = vunpack.c.l.b16 %v403
  %v1860 = vunpack.c.l.b16 %v404
  %v1861 = vunpack.c.l.b16 %v405
  %v1862 = vunpack.c.l.b16 %v406
  %v1863 = vunpack.c.l.b16 %v407
  %v1864 = vunpack.c.l.b16 %v408
  %v1865 = vunpack.c.l.b16 %v409
  %v1866 = vunpack.c.l.b16 %v410
  %v1867 = vunpack.c.l.b16 %v411
  %v1868 = vunpack.c.l.b16 %v412
  %v1869 = vunpack.c.l.b16 %v413
  %v1870 = vunpack.c.l.b16 %v414
  %v1871 = vunpack.c.l.b16 %v415
  %v1872 = vunpack.c.l.b16 %v416
  %v1873 = vunpack.c.l.b16 %v417
  %v1874 = vunpack.c.l.b16 %v418
  %v1875 = vunpack.c.l.b16 %v419
  %v1876 = vunpack.c.l.b16 %v420
  %v1877 = vunpack.c.l.b16 %v421
  %v1878 = vunpack.c.l.b16 %v422
  %v1879 = vunpack.c.l.b16 %v423
  %v1880 = vunpack.c.l.b16 %v424
  %v1881 = vunpack.c.l.b16 %v425
  %v1882 = vunpack.c.l.b16 %v426
  %v1883 = vunpack.c.l.b16 %v427
  %v1884 = vunpack.c.l.b16 %v428
  %v1885 = vunpack.c.l.b16 %v429
  %v1886 = vunpack.c.l.b16 %v430
  %v1887 = vunpack.c.l.b16 %v431
  %v1888 = vunpack.c.l.b16 %v432
  %v1889 = vunpack.c.l.b16 %v433
  %v1890 = vunpack.c.l.b16 %v434
  %v1891 = vunpack.c.l.b16 %v435
  %v1892 = vunpack.c.l.b16 %v436
  %v1893 = vunpack.c.l.b16 %v437
  %v1894 = vunpack.c.l.b16 %v438
  %v1895 = vunpack.c.l.b16 %v439
  %v1896 = vunpack.c.l.b16 %v440
  %v1897 = vunpack.c.l.b16 %v441
  %v1898 = vunpack.c.l.b16 %v442
  %v1899 = vunpack.c.l.b16 %v443
  %v1900 = vunpack.c.l.b16 %v444
  %v1901 = vunpack.c.l.b16 %v445
  %v1902 = vunpack.c.l.b16 %v446
  %v1903 = vunpack.c.l.b16 %v447
  %v1904 = vunpack.c.l.b16 %v448
  %v1905 = vunpack.c.l.b16 %v449
  %v1906 = vunpack.c.l.b16 %v450
  %v1907 = vunpack.c.l.b16 %v451
  %v1908 = vunpack.c.l.b16 %v452
  %v1909 = vunpack.c.l.b16 %v453
  %v1910 = vunpack.c.l.b16 %v454
  %v1911 = vunpack.c.l.b16 %v455
  %v1912 = vunpack.c.l.b16 %v456
  %v1913 = vunpack.c.l.b16 %v457
  %v1914 = vunpack.c.l.b16 %v458
  %v1915 = vunpack.c.l.b16 %v459
  %v1916 = vunpack.c.l.b16 %v460
  %v1917 = vunpack.c.l.b16 %v461
  %v1918 = vunpack.c.l.b16 %v462
  %v1919 = vunpack.c.l.b16 %v463
  %v1920 = vunpack.c.l.b16 %v464
  %v1921 = vunpack.c.l.b16 %v465
  %v1922 = vunpack.c.l.b16 %v466
  %v1923 = vunpack.c.l.b16 %v467
  %v1924 = vunpack.c.l.b16 %v468
  %v1925 = vunpack.c.l.b16 %v469
  %v1926 = vunpack.c.l.b16 %v470
  %v1927 = vunpack.c.l.b16 %v471
  %v1928 = vunpack.c.l.b16 %v472
  %v1929 = vunpack.c.l.b16 %v473
  %v1930 = vunpack.c.l.b16 %v474
  %v1931 = vunpack.c.l.b16 %v475
  %v1932 = vunpack.c.l.b16 %v476
  %v1933 = vunpack.c.l.b16 %v477
  %v1934 = vunpack.c.l.b16 %v478
  %v1935 = vunpack.c.l.b16 %v479
  %v1936 = vunpack.c.l.b16 %v480
  %v1937 = vunpack.c.l.b16 %v481
  %v1938 = vunpack.c.l.b16 %v482
  %v1939 = vunpack.c.l.b16 %v483
  %v1940 = vunpack.c.l.b16 %v484
  %v1941 = vunpack.c.l.b16 %v485
  %v1942 = vunpack.c.l.b16 %v486
  %v1943 = vunpack.c.l.b16 %v487
  %v1944 = vunpack.c.l.b16 %v488
  %v1945 = vunpack.c.l.b16 %v489
  %v1946 = vunpack.c.l.b16 %v490
  %v1947 = vunpack.c.l.b16 %v491
  %v1948 = vunpack.c.l.b16 %v492
  %v1949 = vunpack.c.l.b16 %v493
  %v1950 = vunpack.c.l.b16 %v494
  %v1951 = vunpack.c.l.b16 %v495
  %v1952 = vunpack.c.l.b16 %v496
  %v1953 = vunpack.c.l.b16 %v497
  %v1954 = vunpack.c.l.b16 %v498
  %v1955 = vunpack.c.l.b16 %v499
  %v1956 = vunpack.c.l.b16 %v500
  %v1957 = vunpack.c.l.b16 %v501
  %v1958 = vunpack.c.l.b16 %v502
  %v1959 = vunpack.c.l.b16 %v503
  %v1960 = vunpack.c.l.b16 %v504
  %v1961 = vunpack.c.l.b16 %v505
  %v1962 = vunpack.c.l.b16 %v506
  %v1963 = vunpack.c.l.b16 %v507
  %v1964 = vunpack.c.l.b16 %v508
  %v1965 = vunpack.c.l.b16 %v509
  %v1966 = vunpack.c.l.b16 %v510
  %v1967 = vunpack.c.l.b16 %v511
  %v1968 = vunpack.c.l.b16 %v512
  %v1969 = vunpack.c.l.b16 %v513
  %v1970 = vunpack.c.l.b16 %v514
  %v1971 = vunpack.c.l.b16 %v515
  %v1972 = vunpack.c.l.b16 %v516
  %v1973 = vunpack.c.l.b16 %v517
  %v1974 = vunpack.c.l.b16 %v518
  %v1975 = vunpack.c.l.b16 %v519
  %v1976 = vunpack.c.l.b16 %v520
  %v1977 = vunpack.c.l.b16 %v521
  %v1978 = vunpack.c.l.b16 %v522
  %v1979 = vunpack.c.l.b16 %v523
  %v1980 = vunpack.c.l.b16 %v524
  %v1981 = vunpack.c.l.b16 %v525
  %v1982 = vunpack.c.l.b16 %v526
  %v1983 = vunpack.c.l.b16 %v527
  %v1984 = vunpack.c.l.b16 %v528
  %v1985 = vunpack.c.l.b16 %v529
  %v1986 = vunpack.c.l.b16 %v530
  %v1987 = vunpack.c.l.b16 %v531
  %v1988 = vunpack.c.l.b16 %v532
  %v1989 = vunpack.c.l.b16 %v533
  %v1990 = vunpack.c.l.b16 %v534
  %v1991 = vunpack.c.l.b16 %v535
  %v1992 = vunpack.c.l.b16 %v536
  %v1993 = vunpack.c.l.b16 %v537
  %v1994 = vunpack.c.l.b16 %v538
  %v1995 = vunpack.c.l.b16 %v539
  %v1996 = vunpack.c.l.b16 %v540
  %v1997 = vunpack.c.l.b16 %v541
  %v1998 = vunpack.c.l.b16 %v542
  %v1999 = vunpack.c.l.b16 %v543
  %v2000 = vunpack.c.l.b16 %v544
  %v2001 = vunpack.c.l.b16 %v545
  %v2002 = vunpack.c.l.b16 %v546
  %v2003 = vunpack.c.l.b16 %v547
  %v2004 = vunpack.c.l.b16 %v548
  %v2005 = vunpack.c.l.b16 %v549
  %v2006 = vunpack.c.l.b16 %v550
  %v2007 = vunpack.c.l.b16 %v551
  %v2008 = vunpack.c.l.b16 %v552
  %v2009 = vunpack.c.l.b16 %v553
  %v2010 = vunpack.c.l.b16 %v554
  %v2011 = vunpack.c.l.b16 %v555
  %v2012 = vunpack.c.l.b16 %v556
  %v2013 = vunpack.c.l.b16 %v557
  %v2014 = vunpack.c.l.b16 %v558
  %v2015 = vpack.c.b16 %v1584, %v1583
  %v2016 = vpack.c.b16 %v1586, %v1585
  %v2017 = vpack.c.b16 %v1588, %v1587
  %v2018 = vpack.c.b16 %v1590, %v1589
  %v2019 = vpack.c.b16 %v1592, %v1591
  %v2020 = vpack.c.b16 %v1594, %v1593
  %v2021 = vpack.c.b16 %v1596, %v1595
  %v2022 = vpack.c.b16 %v1598, %v1597
  %v2023 = vpack.c.b16 %v1600, %v1599
  %v2024 = vpack.c.b16 %v1602, %v1601
  %v2025 = vpack.c.b16 %v1604, %v1603
  %v2026 = vpack.c.b16 %v1606, %v1605
  %v2027 = vpack.c.b16 %v1608, %v1607
  %v2028 = vpack.c.b16 %v1610, %v1609
  %v2029 = vpack.c.b16 %v1612, %v1611
  %v2030 = vpack.c.b16 %v1614, %v1613
  %v2031 = vpack.c.b16 %v1616, %v1615
  %v2032 = vpack.c.b16 %v1618, %v1617
  %v2033 = vpack.c.b16 %v1620, %v1619
  %v2034 = vpack.c.b16 %v1622, %v1621
  %v2035 = vpack.c.b16 %v1624, %v1623
  %v2036 = vpack.c.b16 %v1626, %v1625
  %v2037 = vpack.c.b16 %v1628, %v1627
  %v2038 = vpack.c.b16 %v1630, %v1629
  %v2039 = vpack.c.b16 %v1632, %v1631
  %v2040 = vpack.c.b16 %v1634, %v1633
  %v2041 = vpack.c.b16 %v1636, %v1635
  %v2042 = vpack.c.b16 %v1638, %v1637
  %v2043 = vpack.c.b16 %v1640, %v1639
  %v2044 = vpack.c.b16 %v1642, %v1641
  %v2045 = vpack.c.b16 %v1644, %v1643
  %v2046 = vpack.c.b16 %v1646, %v1645
  %v2047 = vpack.c.b16 %v1648, %v1647
  %v2048 = vpack.c.b16 %v1650, %v1649
  %v2049 = vpack.c.b16 %v1652, %v1651
  %v2050 = vpack.c.b16 %v1654, %v1653
  %v2051 = vpack.c.b16 %v1656, %v1655
  %v2052 = vpack.c.b16 %v1658, %v1657
  %v2053 = vpack.c.b16 %v1660, %v1659
  %v2054 = vpack.c.b16 %v1662, %v1661
  %v2055 = vpack.c.b16 %v1664, %v1663
  %v2056 = vpack.c.b16 %v1666, %v1665
  %v2057 = vpack.c.b16 %v1668, %v1667
  %v2058 = vpack.c.b16 %v1670, %v1669
  %v2059 = vpack.c.b16 %v1672, %v1671
  %v2060 = vpack.c.b16 %v1674, %v1673
  %v2061 = vpack.c.b16 %v1676, %v1675
  %v2062 = vpack.c.b16 %v1678, %v1677
  %v2063 = vpack.c.b16 %v1680, %v1679
  %v2064 = vpack.c.b16 %v1682, %v1681
  %v2065 = vpack.c.b16 %v1684, %v1683
  %v2066 = vpack.c.b16 %v1686, %v1685
  %v2067 = vpack.c.b16 %v1688, %v1687
  %v2068 = vpack.c.b16 %v1690, %v1689
  %v2069 = vpack.c.b16 %v1692, %v1691
  %v2070 = vpack.c.b16 %v1694, %v1693
  %v2071 = vpack.c.b16 %v1696, %v1695
  %v2072 = vpack.c.b16 %v1698, %v1697
  %v2073 = vpack.c.b16 %v1700, %v1699
  %v2074 = vpack.c.b16 %v1702, %v1701
  %v2075 = vpack.c.b16 %v1704, %v1703
  %v2076 = vpack.c.b16 %v1706, %v1705
  %v2077 = vpack.c.b16 %v1708, %v1707
  %v2078 = vpack.c.b16 %v1710, %v1709
  %v2079 = vpack.c.b16 %v1712, %v1711
  %v2080 = vpack.c.b16 %v1714, %v1713
  %v2081 = vpack.c.b16 %v1716, %v1715
  %v2082 = vpack.c.b16 %v1718, %v1717
  %v2083 = vpack.c.b16 %v1720, %v1719
  %v2084 = vpack.c.b16 %v1722, %v1721
  %v2085 = vpack.c.b16 %v1724, %v1723
  %v2086 = vpack.c.b16 %v1726, %v1725
  %v2087 = vpack.c.b16 %v1728, %v1727
  %v2088 = vpack.c.b16 %v1730, %v1729
  %v2089 = vpack.c.b16 %v1732, %v1731
  %v2090 = vpack.c.b16 %v1734, %v1733
  %v2091 = vpack.c.b16 %v1736, %v1735
  %v2092 = vpack.c.b16 %v1738, %v1737
  %v2093 = vpack.c.b16 %v1740, %v1739
  %v2094 = vpack.c.b16 %v1742, %v1741
  %v2095 = vpack.c.b16 %v1744, %v1743
  %v2096 = vpack.c.b16 %v1746, %v1745
  %v2097 = vpack.c.b16 %v1748, %v1747
  %v2098 = vpack.c.b16 %v1750, %v1749
  %v2099 = vpack.c.b16 %v1752, %v1751
  %v2100 = vpack.c.b16 %v1754, %v1753
  %v2101 = vpack.c.b16 %v1756, %v1755
  %v2102 = vpack.c.b16 %v1758, %v1757
  %v2103 = vpack.c.b16 %v1760, %v1759
  %v2104 = vpack.c.b16 %v1762, %v1761
  %v2105 = vpack.c.b16 %v1764, %v1763
  %v2106 = vpack.c.b16 %v1766, %v1765
  %v2107 = vpack.c.b16 %v1768, %v1767
  %v2108 = vpack.c.b16 %v1770, %v1769
  %v2109 = vpack.c.b16 %v1772, %v1771
  %v2110 = vpack.c.b16 %v1774, %v1773
  %v2111 = vpack.c.b16 %v1776, %v1775
  %v2112 = vpack.c.b16 %v1778, %v1777
  %v2113 = vpack.c.b16 %v1780, %v1779
  %v2114 = vpack.c.b16 %v1782, %v1781
  %v2115 = vpack.c.b16 %v1784, %v1783
  %v2116 = vpack.c.b16 %v1786, %v1785
  %v2117 = vpack.c.b16 %v1788, %v1787
  %v2118 = vpack.c.b16 %v1790, %v1789
  %v2119 = vpack.c.b16 %v1792, %v1791
  %v2120 = vpack.c.b16 %v1794, %v1793
  %v2121 = vpack.c.b16 %v1796, %v1795
  %v2122 = vpack.c.b16 %v1798, %v1797
  %v2123 = vpack.c.b16 %v1800, %v1799
  %v2124 = vpack.c.b16 %v1802, %v1801
  %v2125 = vpack.c.b16 %v1804, %v1803
  %v2126 = vpack.c.b16 %v1806, %v1805
  %v2127 = vpack.c.b16 %v1808, %v1807
  %v2128 = vpack.c.b16 %v1810, %v1809
  %v2129 = vpack.c.b16 %v1812, %v1811
  %v2130 = vpack.c.b16 %v1814, %v1813
  %v2131 = vpack.c.b16 %v1816, %v1815
  %v2132 = vpack.c.b16 %v1818, %v1817
  %v2133 = vpack.c.b16 %v1820, %v1819
  %v2134 = vpack.c.b16 %v1822, %v1821
  %v2135 = vpack.c.b16 %v1824, %v1823
  %v2136 = vpack.c.b16 %v1826, %v1825
  %v2137 = vpack.c.b16 %v1828, %v1827
  %v2138 = vpack.c.b16 %v1830, %v1829
  %v2139 = vpack.c.b16 %v1832, %v1831
  %v2140 = vpack.c.b16 %v1834, %v1833
  %v2141 = vpack.c.b16 %v1836, %v1835
  %v2142 = vpack.c.b16 %v1838, %v1837
  %v2143 = vpack.c.b16 %v1840, %v1839
  %v2144 = vpack.c.b16 %v1842, %v1841
  %v2145 = vpack.c.b16 %v1844, %v1843
  %v2146 = vpack.c.b16 %v1846, %v1845
  %v2147 = vpack.c.b16 %v1848, %v1847
  %v2148 = vpack.c.b16 %v1850, %v1849
  %v2149 = vpack.c.b16 %v1852, %v1851
  %v2150 = vpack.c.b16 %v1854, %v1853
  %v2151 = vpack.c.b16 %v1856, %v1855
  %v2152 = vpack.c.b16 %v1858, %v1857
  %v2153 = vpack.c.b16 %v1860, %v1859
  %v2154 = vpack.c.b16 %v1862, %v1861
  %v2155 = vpack.c.b16 %v1864, %v1863
  %v2156 = vpack.c.b16 %v1866, %v1865
  %v2157 = vpack.c.b16 %v1868, %v1867
  %v2158 = vpack.c.b16 %v1870, %v1869
  %v2159 = vpack.c.b16 %v1872, %v1871
  %v2160 = vpack.c.b16 %v1874, %v1873
  %v2161 = vpack.c.b16 %v1876, %v1875
  %v2162 = vpack.c.b16 %v1878, %v1877
  %v2163 = vpack.c.b16 %v1880, %v1879
  %v2164 = vpack.c.b16 %v1882, %v1881
  %v2165 = vpack.c.b16 %v1884, %v1883
  %v2166 = vpack.c.b16 %v1886, %v1885
  %v2167 = vpack.c.b16 %v1888, %v1887
  %v2168 = vpack.c.b16 %v1890, %v1889
  %v2169 = vpack.c.b16 %v1892, %v1891
  %v2170 = vpack.c.b16 %v1894, %v1893
  %v2171 = vpack.c.b16 %v1896, %v1895
  %v2172 = vpack.c.b16 %v1898, %v1897
  %v2173 = vpack.c.b16 %v1900, %v1899
  %v2174 = vpack.c.b16 %v1902, %v1901
  %v2175 = vpack.c.b16 %v1904, %v1903
  %v2176 = vpack.c.b16 %v1906, %v1905
  %v2177 = vpack.c.b16 %v1908, %v1907
  %v2178 = vpack.c.b16 %v1910, %v1909
  %v2179 = vpack.c.b16 %v1912, %v1911
  %v2180 = vpack.c.b16 %v1914, %v1913
  %v2181 = vpack.c.b16 %v1916, %v1915
  %v2182 = vpack.c.b16 %v1918, %v1917
  %v2183 = vpack.c.b16 %v1920, %v1919
  %v2184 = vpack.c.b16 %v1922, %v1921
  %v2185 = vpack.c.b16 %v1924, %v1923
  %v2186 = vpack.c.b16 %v1926, %v1925
  %v2187 = vpack.c.b16 %v1928, %v1927
  %v2188 = vpack.c.b16 %v1930, %v1929
  %v2189 = vpack.c.b16 %v1932, %v1931
  %v2190 = vpack.c.b16 %v1934, %v1933
  %v2191 = vpack.c.b16 %v1936, %v1935
  %v2192 = vpack.c.b16 %v1938, %v1937
  %v2193 = vpack.c.b16 %v1940, %v1939
  %v2194 = vpack.c.b16 %v1942, %v1941
  %v2195 = vpack.c.b16 %v1944, %v1943
  %v2196 = vpack.c.b16 %v1946, %v1945
  %v2197 = vpack.c.b16 %v1948, %v1947
  %v2198 = vpack.c.b16 %v1950, %v1949
  %v2199 = vpack.c.b16 %v1952, %v1951
  %v2200 = vpack.c.b16 %v1954, %v1953
  %v2201 = vpack.c.b16 %v1956, %v1955
  %v2202 = vpack.c.b16 %v1958, %v1957
  %v2203 = vpack.c.b16 %v1960, %v1959
  %v2204 = vpack.c.b16 %v1962, %v1961
  %v2205 = vpack.c.b16 %v1964, %v1963
  %v2206 = vpack.c.b16 %v1966, %v1965
  %v2207 = vpack.c.b16 %v1968, %v1967
  %v2208 = vpack.c.b16 %v1970, %v1969
  %v2209 = vpack.c.b16 %v1972, %v1971
  %v2210 = vpack.c.b16 %v1974, %v1973
  %v2211 = vpack.c.b16 %v1976, %v1975
  %v2212 = vpack.c.b16 %v1978, %v1977
  %v2213 = vpack.c.b16 %v1980, %v1979
  %v2214 = vpack.c.b16 %v1982, %v1981
  %v2215 = vpack.c.b16 %v1984, %v1983
  %v2216 = vpack.c.b16 %v1986, %v1985
  %v2217 = vpack.c.b16 %v1988, %v1987
  %v2218 = vpack.c.b16 %v1990, %v1989
  %v2219 = vpack.c.b16 %v1992, %v1991
  %v2220 = vpack.c.b16 %v1994, %v1993
  %v2221 = vpack.c.b16 %v1996, %v1995
  %v2222 = vpack.c.b16 %v1998, %v1997
  %v2223 = vpack.c.b16 %v2000, %v1999
  %v2224 = vpack.c.b16 %v2002, %v2001
  %v2225 = vpack.c.b16 %v2004, %v2003
  %v2226 = vpack.c.b16 %v2006, %v2005
  %v2227 = vpack.c.b16 %v2008, %v2007
  %v2228 = vpack.c.b16 %v2010, %v2009
  %v2229 = vpack.c.b16 %v2012, %v2011
  %v2230 = vpack.c.b16 %v2014, %v2013
  %2447 = vmatprep.subr.bf16.mxu0 0
  %2448 = vmatpush1.bf16.msra.mxu0 %v2022
  %2449 = vmatprep.subr.bf16.mxu0 0
  %2450 = vmatpush1.bf16.msra.mxu0 %v2021
  %2451 = vmatprep.subr.bf16.mxu0 0
  %2452 = vmatpush1.bf16.msra.mxu0 %v2020
  %2453 = vmatprep.subr.bf16.mxu0 0
  %2454 = vmatpush1.bf16.msra.mxu0 %v2019
  %2455 = vmatprep.subr.bf16.mxu0 0
  %2456 = vmatpush1.bf16.msra.mxu0 %v2018
  %2457 = vmatprep.subr.bf16.mxu0 0
  %2458 = vmatpush1.bf16.msra.mxu0 %v2017
  %2459 = vmatprep.subr.bf16.mxu0 0
  %2460 = vmatpush1.bf16.msra.mxu0 %v2016
  %2461 = vmatprep.subr.bf16.mxu0 0
  %2462 = vmatpush1.bf16.msra.mxu0 %v2015
  %2463 = vmatprep.subr.bf16.mxu0 0
  %2464 = vmatpush2.bf16.msra.mxu0 %v2030
  %2465 = vmatprep.subr.bf16.mxu0 0
  %2466 = vmatpush2.bf16.msra.mxu0 %v2029
  %2467 = vmatprep.subr.bf16.mxu0 0
  %2468 = vmatpush2.bf16.msra.mxu0 %v2028
  %2469 = vmatprep.subr.bf16.mxu0 0
  %2470 = vmatpush2.bf16.msra.mxu0 %v2027
  %2471 = vmatprep.subr.bf16.mxu0 0
  %2472 = vmatpush2.bf16.msra.mxu0 %v2026
  %2473 = vmatprep.subr.bf16.mxu0 0
  %2474 = vmatpush2.bf16.msra.mxu0 %v2025
  %2475 = vmatprep.subr.bf16.mxu0 0
  %2476 = vmatpush2.bf16.msra.mxu0 %v2024
  %2477 = vmatprep.subr.bf16.mxu0 0
  %2478 = vmatpush2.bf16.msra.mxu0 %v2023
  %2479 = vmatprep.mubr.bf16.mxu0 %v936
  %2480 = vmatmul.mubr.bf16.gmra.mxu0 %v935
  %v2481 = vpop.f32.mrf.mxu0
  %v2482 = vadd.f32 %v570, %v2481
  %v2483 = vpop.f32.mrf.mxu0
  %v2484 = vpop.f32.mrf.mxu0
  %v2485 = vadd.f32 %v575, %v2484
  %v2486 = vpop.f32.mrf.mxu0
  %2487 = vmatprep.mubr.bf16.mxu0 %v963
  %2488 = vmatmul.mubr.bf16.gmra.mxu0 %v962
  %v2489 = vpop.f32.mrf.mxu0
  %v2490 = vadd.f32 %v580, %v2489
  %v2491 = vpop.f32.mrf.mxu0
  %v2492 = vpop.f32.mrf.mxu0
  %v2493 = vadd.f32 %v585, %v2492
  %v2494 = vpop.f32.mrf.mxu0
  %2495 = vmatprep.mubr.bf16.mxu0 %v990
  %2496 = vmatmul.mubr.bf16.gmra.mxu0 %v989
  %v2497 = vpop.f32.mrf.mxu0
  %v2498 = vadd.f32 %v590, %v2497
  %v2499 = vpop.f32.mrf.mxu0
  %v2500 = vpop.f32.mrf.mxu0
  %v2501 = vadd.f32 %v595, %v2500
  %v2502 = vpop.f32.mrf.mxu0
  %2503 = vmatprep.mubr.bf16.mxu0 %v1017
  %2504 = vmatmul.mubr.bf16.gmra.mxu0 %v1016
  %v2505 = vpop.f32.mrf.mxu0
  %v2506 = vadd.f32 %v600, %v2505
  %v2507 = vpop.f32.mrf.mxu0
  %v2508 = vpop.f32.mrf.mxu0
  %v2509 = vadd.f32 %v605, %v2508
  %v2510 = vpop.f32.mrf.mxu0
  %2511 = vdwg.mxu0
  %2512 = vmatprep.subr.bf16.mxu0 0
  %2513 = vmatpush1.bf16.msra.mxu0 %v2038
  %2514 = vmatprep.subr.bf16.mxu0 0
  %2515 = vmatpush1.bf16.msra.mxu0 %v2037
  %2516 = vmatprep.subr.bf16.mxu0 0
  %2517 = vmatpush1.bf16.msra.mxu0 %v2036
  %2518 = vmatprep.subr.bf16.mxu0 0
  %2519 = vmatpush1.bf16.msra.mxu0 %v2035
  %2520 = vmatprep.subr.bf16.mxu0 0
  %2521 = vmatpush1.bf16.msra.mxu0 %v2034
  %2522 = vmatprep.subr.bf16.mxu0 0
  %2523 = vmatpush1.bf16.msra.mxu0 %v2033
  %2524 = vmatprep.subr.bf16.mxu0 0
  %2525 = vmatpush1.bf16.msra.mxu0 %v2032
  %2526 = vmatprep.subr.bf16.mxu0 0
  %2527 = vmatpush1.bf16.msra.mxu0 %v2031
  %2528 = vmatprep.subr.bf16.mxu0 0
  %2529 = vmatpush2.bf16.msra.mxu0 %v2046
  %2530 = vmatprep.subr.bf16.mxu0 0
  %2531 = vmatpush2.bf16.msra.mxu0 %v2045
  %2532 = vmatprep.subr.bf16.mxu0 0
  %2533 = vmatpush2.bf16.msra.mxu0 %v2044
  %2534 = vmatprep.subr.bf16.mxu0 0
  %2535 = vmatpush2.bf16.msra.mxu0 %v2043
  %2536 = vmatprep.subr.bf16.mxu0 0
  %2537 = vmatpush2.bf16.msra.mxu0 %v2042
  %2538 = vmatprep.subr.bf16.mxu0 0
  %2539 = vmatpush2.bf16.msra.mxu0 %v2041
  %2540 = vmatprep.subr.bf16.mxu0 0
  %2541 = vmatpush2.bf16.msra.mxu0 %v2040
  %2542 = vmatprep.subr.bf16.mxu0 0
  %2543 = vmatpush2.bf16.msra.mxu0 %v2039
  %2544 = vmatprep.mubr.bf16.mxu0 %v938
  %2545 = vmatmul.mubr.bf16.gmra.mxu0 %v937
  %v2546 = vpop.f32.mrf.mxu0
  %v2547 = vadd.f32 %v2482, %v2546
  %v2548 = vpop.f32.mrf.mxu0
  %v2549 = vpop.f32.mrf.mxu0
  %v2550 = vadd.f32 %v2485, %v2549
  %v2551 = vpop.f32.mrf.mxu0
  %2552 = vmatprep.mubr.bf16.mxu0 %v965
  %2553 = vmatmul.mubr.bf16.gmra.mxu0 %v964
  %v2554 = vpop.f32.mrf.mxu0
  %v2555 = vadd.f32 %v2490, %v2554
  %v2556 = vpop.f32.mrf.mxu0
  %v2557 = vpop.f32.mrf.mxu0
  %v2558 = vadd.f32 %v2493, %v2557
  %v2559 = vpop.f32.mrf.mxu0
  %2560 = vmatprep.mubr.bf16.mxu0 %v992
  %2561 = vmatmul.mubr.bf16.gmra.mxu0 %v991
  %v2562 = vpop.f32.mrf.mxu0
  %v2563 = vadd.f32 %v2498, %v2562
  %v2564 = vpop.f32.mrf.mxu0
  %v2565 = vpop.f32.mrf.mxu0
  %v2566 = vadd.f32 %v2501, %v2565
  %v2567 = vpop.f32.mrf.mxu0
  %2568 = vmatprep.mubr.bf16.mxu0 %v1019
  %2569 = vmatmul.mubr.bf16.gmra.mxu0 %v1018
  %v2570 = vpop.f32.mrf.mxu0
  %v2571 = vadd.f32 %v2506, %v2570
  %v2572 = vpop.f32.mrf.mxu0
  %v2573 = vpop.f32.mrf.mxu0
  %v2574 = vadd.f32 %v2509, %v2573
  %v2575 = vpop.f32.mrf.mxu0
  %2576 = vdwg.mxu0
  %2577 = vmatprep.subr.bf16.mxu0 0
  %2578 = vmatpush1.bf16.msra.mxu0 %v2054
  %2579 = vmatprep.subr.bf16.mxu0 0
  %2580 = vmatpush1.bf16.msra.mxu0 %v2053
  %2581 = vmatprep.subr.bf16.mxu0 0
  %2582 = vmatpush1.bf16.msra.mxu0 %v2052
  %2583 = vmatprep.subr.bf16.mxu0 0
  %2584 = vmatpush1.bf16.msra.mxu0 %v2051
  %2585 = vmatprep.subr.bf16.mxu0 0
  %2586 = vmatpush1.bf16.msra.mxu0 %v2050
  %2587 = vmatprep.subr.bf16.mxu0 0
  %2588 = vmatpush1.bf16.msra.mxu0 %v2049
  %2589 = vmatprep.subr.bf16.mxu0 0
  %2590 = vmatpush1.bf16.msra.mxu0 %v2048
  %2591 = vmatprep.subr.bf16.mxu0 0
  %2592 = vmatpush1.bf16.msra.mxu0 %v2047
  %2593 = vmatprep.subr.bf16.mxu0 0
  %2594 = vmatpush2.bf16.msra.mxu0 %v2062
  %2595 = vmatprep.subr.bf16.mxu0 0
  %2596 = vmatpush2.bf16.msra.mxu0 %v2061
  %2597 = vmatprep.subr.bf16.mxu0 0
  %2598 = vmatpush2.bf16.msra.mxu0 %v2060
  %2599 = vmatprep.subr.bf16.mxu0 0
  %2600 = vmatpush2.bf16.msra.mxu0 %v2059
  %2601 = vmatprep.subr.bf16.mxu0 0
  %2602 = vmatpush2.bf16.msra.mxu0 %v2058
  %2603 = vmatprep.subr.bf16.mxu0 0
  %2604 = vmatpush2.bf16.msra.mxu0 %v2057
  %2605 = vmatprep.subr.bf16.mxu0 0
  %2606 = vmatpush2.bf16.msra.mxu0 %v2056
  %2607 = vmatprep.subr.bf16.mxu0 0
  %2608 = vmatpush2.bf16.msra.mxu0 %v2055
  %2609 = vmatprep.mubr.bf16.mxu0 %v940
  %2610 = vmatmul.mubr.bf16.gmra.mxu0 %v939
  %v2611 = vpop.f32.mrf.mxu0
  %v2612 = vadd.f32 %v2547, %v2611
  %v2613 = vpop.f32.mrf.mxu0
  %v2614 = vpop.f32.mrf.mxu0
  %v2615 = vadd.f32 %v2550, %v2614
  %v2616 = vpop.f32.mrf.mxu0
  %2617 = vmatprep.mubr.bf16.mxu0 %v967
  %2618 = vmatmul.mubr.bf16.gmra.mxu0 %v966
  %v2619 = vpop.f32.mrf.mxu0
  %v2620 = vadd.f32 %v2555, %v2619
  %v2621 = vpop.f32.mrf.mxu0
  %v2622 = vpop.f32.mrf.mxu0
  %v2623 = vadd.f32 %v2558, %v2622
  %v2624 = vpop.f32.mrf.mxu0
  %2625 = vmatprep.mubr.bf16.mxu0 %v994
  %2626 = vmatmul.mubr.bf16.gmra.mxu0 %v993
  %v2627 = vpop.f32.mrf.mxu0
  %v2628 = vadd.f32 %v2563, %v2627
  %v2629 = vpop.f32.mrf.mxu0
  %v2630 = vpop.f32.mrf.mxu0
  %v2631 = vadd.f32 %v2566, %v2630
  %v2632 = vpop.f32.mrf.mxu0
  %2633 = vmatprep.mubr.bf16.mxu0 %v1021
  %2634 = vmatmul.mubr.bf16.gmra.mxu0 %v1020
  %v2635 = vpop.f32.mrf.mxu0
  %v2636 = vadd.f32 %v2571, %v2635
  %v2637 = vpop.f32.mrf.mxu0
  %v2638 = vpop.f32.mrf.mxu0
  %v2639 = vadd.f32 %v2574, %v2638
  %v2640 = vpop.f32.mrf.mxu0
  %2641 = vdwg.mxu0
  %2642 = vmatprep.subr.bf16.mxu0 0
  %2643 = vmatpush1.bf16.msra.mxu0 %v2070
  %2644 = vmatprep.subr.bf16.mxu0 0
  %2645 = vmatpush1.bf16.msra.mxu0 %v2069
  %2646 = vmatprep.subr.bf16.mxu0 0
  %2647 = vmatpush1.bf16.msra.mxu0 %v2068
  %2648 = vmatprep.subr.bf16.mxu0 0
  %2649 = vmatpush1.bf16.msra.mxu0 %v2067
  %2650 = vmatprep.subr.bf16.mxu0 0
  %2651 = vmatpush1.bf16.msra.mxu0 %v2066
  %2652 = vmatprep.subr.bf16.mxu0 0
  %2653 = vmatpush1.bf16.msra.mxu0 %v2065
  %2654 = vmatprep.subr.bf16.mxu0 0
  %2655 = vmatpush1.bf16.msra.mxu0 %v2064
  %2656 = vmatprep.subr.bf16.mxu0 0
  %2657 = vmatpush1.bf16.msra.mxu0 %v2063
  %2658 = vmatprep.subr.bf16.mxu0 0
  %2659 = vmatpush2.bf16.msra.mxu0 %v2078
  %2660 = vmatprep.subr.bf16.mxu0 0
  %2661 = vmatpush2.bf16.msra.mxu0 %v2077
  %2662 = vmatprep.subr.bf16.mxu0 0
  %2663 = vmatpush2.bf16.msra.mxu0 %v2076
  %2664 = vmatprep.subr.bf16.mxu0 0
  %2665 = vmatpush2.bf16.msra.mxu0 %v2075
  %2666 = vmatprep.subr.bf16.mxu0 0
  %2667 = vmatpush2.bf16.msra.mxu0 %v2074
  %2668 = vmatprep.subr.bf16.mxu0 0
  %2669 = vmatpush2.bf16.msra.mxu0 %v2073
  %2670 = vmatprep.subr.bf16.mxu0 0
  %2671 = vmatpush2.bf16.msra.mxu0 %v2072
  %2672 = vmatprep.subr.bf16.mxu0 0
  %2673 = vmatpush2.bf16.msra.mxu0 %v2071
  %2674 = vmatprep.mubr.bf16.mxu0 %v942
  %2675 = vmatmul.mubr.bf16.gmra.mxu0 %v941
  %v2676 = vpop.f32.mrf.mxu0
  %v2677 = vadd.f32 %v2612, %v2676
  %v2678 = vpop.f32.mrf.mxu0
  %v2679 = vpop.f32.mrf.mxu0
  %v2680 = vadd.f32 %v2615, %v2679
  %v2681 = vpop.f32.mrf.mxu0
  %2682 = vmatprep.mubr.bf16.mxu0 %v969
  %2683 = vmatmul.mubr.bf16.gmra.mxu0 %v968
  %v2684 = vpop.f32.mrf.mxu0
  %v2685 = vadd.f32 %v2620, %v2684
  %v2686 = vpop.f32.mrf.mxu0
  %v2687 = vpop.f32.mrf.mxu0
  %v2688 = vadd.f32 %v2623, %v2687
  %v2689 = vpop.f32.mrf.mxu0
  %2690 = vmatprep.mubr.bf16.mxu0 %v996
  %2691 = vmatmul.mubr.bf16.gmra.mxu0 %v995
  %v2692 = vpop.f32.mrf.mxu0
  %v2693 = vadd.f32 %v2628, %v2692
  %v2694 = vpop.f32.mrf.mxu0
  %v2695 = vpop.f32.mrf.mxu0
  %v2696 = vadd.f32 %v2631, %v2695
  %v2697 = vpop.f32.mrf.mxu0
  %2698 = vmatprep.mubr.bf16.mxu0 %v1023
  %2699 = vmatmul.mubr.bf16.gmra.mxu0 %v1022
  %v2700 = vpop.f32.mrf.mxu0
  %v2701 = vadd.f32 %v2636, %v2700
  %v2702 = vpop.f32.mrf.mxu0
  %v2703 = vpop.f32.mrf.mxu0
  %v2704 = vadd.f32 %v2639, %v2703
  %v2705 = vpop.f32.mrf.mxu0
  %2706 = vdwg.mxu0
  %2707 = vmatprep.subr.bf16.mxu0 0
  %2708 = vmatpush1.bf16.msra.mxu0 %v2086
  %2709 = vmatprep.subr.bf16.mxu0 0
  %2710 = vmatpush1.bf16.msra.mxu0 %v2085
  %2711 = vmatprep.subr.bf16.mxu0 0
  %2712 = vmatpush1.bf16.msra.mxu0 %v2084
  %2713 = vmatprep.subr.bf16.mxu0 0
  %2714 = vmatpush1.bf16.msra.mxu0 %v2083
  %2715 = vmatprep.subr.bf16.mxu0 0
  %2716 = vmatpush1.bf16.msra.mxu0 %v2082
  %2717 = vmatprep.subr.bf16.mxu0 0
  %2718 = vmatpush1.bf16.msra.mxu0 %v2081
  %2719 = vmatprep.subr.bf16.mxu0 0
  %2720 = vmatpush1.bf16.msra.mxu0 %v2080
  %2721 = vmatprep.subr.bf16.mxu0 0
  %2722 = vmatpush1.bf16.msra.mxu0 %v2079
  %2723 = vmatprep.subr.bf16.mxu0 0
  %2724 = vmatpush2.bf16.msra.mxu0 %v2094
  %2725 = vmatprep.subr.bf16.mxu0 0
  %2726 = vmatpush2.bf16.msra.mxu0 %v2093
  %2727 = vmatprep.subr.bf16.mxu0 0
  %2728 = vmatpush2.bf16.msra.mxu0 %v2092
  %2729 = vmatprep.subr.bf16.mxu0 0
  %2730 = vmatpush2.bf16.msra.mxu0 %v2091
  %2731 = vmatprep.subr.bf16.mxu0 0
  %2732 = vmatpush2.bf16.msra.mxu0 %v2090
  %2733 = vmatprep.subr.bf16.mxu0 0
  %2734 = vmatpush2.bf16.msra.mxu0 %v2089
  %2735 = vmatprep.subr.bf16.mxu0 0
  %2736 = vmatpush2.bf16.msra.mxu0 %v2088
  %2737 = vmatprep.subr.bf16.mxu0 0
  %2738 = vmatpush2.bf16.msra.mxu0 %v2087
  %2739 = vmatprep.mubr.bf16.mxu0 %v944
  %2740 = vmatmul.mubr.bf16.gmra.mxu0 %v943
  %v2741 = vpop.f32.mrf.mxu0
  %v2742 = vadd.f32 %v2677, %v2741
  %v2743 = vpop.f32.mrf.mxu0
  %v2744 = vpop.f32.mrf.mxu0
  %v2745 = vadd.f32 %v2680, %v2744
  %v2746 = vpop.f32.mrf.mxu0
  %2747 = vmatprep.mubr.bf16.mxu0 %v971
  %2748 = vmatmul.mubr.bf16.gmra.mxu0 %v970
  %v2749 = vpop.f32.mrf.mxu0
  %v2750 = vadd.f32 %v2685, %v2749
  %v2751 = vpop.f32.mrf.mxu0
  %v2752 = vpop.f32.mrf.mxu0
  %v2753 = vadd.f32 %v2688, %v2752
  %v2754 = vpop.f32.mrf.mxu0
  %2755 = vmatprep.mubr.bf16.mxu0 %v998
  %2756 = vmatmul.mubr.bf16.gmra.mxu0 %v997
  %v2757 = vpop.f32.mrf.mxu0
  %v2758 = vadd.f32 %v2693, %v2757
  %v2759 = vpop.f32.mrf.mxu0
  %v2760 = vpop.f32.mrf.mxu0
  %v2761 = vadd.f32 %v2696, %v2760
  %v2762 = vpop.f32.mrf.mxu0
  %2763 = vmatprep.mubr.bf16.mxu0 %v1025
  %2764 = vmatmul.mubr.bf16.gmra.mxu0 %v1024
  %v2765 = vpop.f32.mrf.mxu0
  %v2766 = vadd.f32 %v2701, %v2765
  %v2767 = vpop.f32.mrf.mxu0
  %v2768 = vpop.f32.mrf.mxu0
  %v2769 = vadd.f32 %v2704, %v2768
  %v2770 = vpop.f32.mrf.mxu0
  %2771 = vdwg.mxu0
  %2772 = vmatprep.subr.bf16.mxu0 0
  %2773 = vmatpush1.bf16.msra.mxu0 %v2102
  %2774 = vmatprep.subr.bf16.mxu0 0
  %2775 = vmatpush1.bf16.msra.mxu0 %v2101
  %2776 = vmatprep.subr.bf16.mxu0 0
  %2777 = vmatpush1.bf16.msra.mxu0 %v2100
  %2778 = vmatprep.subr.bf16.mxu0 0
  %2779 = vmatpush1.bf16.msra.mxu0 %v2099
  %2780 = vmatprep.subr.bf16.mxu0 0
  %2781 = vmatpush1.bf16.msra.mxu0 %v2098
  %2782 = vmatprep.subr.bf16.mxu0 0
  %2783 = vmatpush1.bf16.msra.mxu0 %v2097
  %2784 = vmatprep.subr.bf16.mxu0 0
  %2785 = vmatpush1.bf16.msra.mxu0 %v2096
  %2786 = vmatprep.subr.bf16.mxu0 0
  %2787 = vmatpush1.bf16.msra.mxu0 %v2095
  %2788 = vmatprep.subr.bf16.mxu0 0
  %2789 = vmatpush2.bf16.msra.mxu0 %v2110
  %2790 = vmatprep.subr.bf16.mxu0 0
  %2791 = vmatpush2.bf16.msra.mxu0 %v2109
  %2792 = vmatprep.subr.bf16.mxu0 0
  %2793 = vmatpush2.bf16.msra.mxu0 %v2108
  %2794 = vmatprep.subr.bf16.mxu0 0
  %2795 = vmatpush2.bf16.msra.mxu0 %v2107
  %2796 = vmatprep.subr.bf16.mxu0 0
  %2797 = vmatpush2.bf16.msra.mxu0 %v2106
  %2798 = vmatprep.subr.bf16.mxu0 0
  %2799 = vmatpush2.bf16.msra.mxu0 %v2105
  %2800 = vmatprep.subr.bf16.mxu0 0
  %2801 = vmatpush2.bf16.msra.mxu0 %v2104
  %2802 = vmatprep.subr.bf16.mxu0 0
  %2803 = vmatpush2.bf16.msra.mxu0 %v2103
  %2804 = vmatprep.mubr.bf16.mxu0 %v946
  %2805 = vmatmul.mubr.bf16.gmra.mxu0 %v945
  %v2806 = vpop.f32.mrf.mxu0
  %v2807 = vadd.f32 %v2742, %v2806
  %v2808 = vpop.f32.mrf.mxu0
  %v2809 = vpop.f32.mrf.mxu0
  %v2810 = vadd.f32 %v2745, %v2809
  %v2811 = vpop.f32.mrf.mxu0
  %2812 = vmatprep.mubr.bf16.mxu0 %v973
  %2813 = vmatmul.mubr.bf16.gmra.mxu0 %v972
  %v2814 = vpop.f32.mrf.mxu0
  %v2815 = vadd.f32 %v2750, %v2814
  %v2816 = vpop.f32.mrf.mxu0
  %v2817 = vpop.f32.mrf.mxu0
  %v2818 = vadd.f32 %v2753, %v2817
  %v2819 = vpop.f32.mrf.mxu0
  %2820 = vmatprep.mubr.bf16.mxu0 %v1000
  %2821 = vmatmul.mubr.bf16.gmra.mxu0 %v999
  %v2822 = vpop.f32.mrf.mxu0
  %v2823 = vadd.f32 %v2758, %v2822
  %v2824 = vpop.f32.mrf.mxu0
  %v2825 = vpop.f32.mrf.mxu0
  %v2826 = vadd.f32 %v2761, %v2825
  %v2827 = vpop.f32.mrf.mxu0
  %2828 = vmatprep.mubr.bf16.mxu0 %v1027
  %2829 = vmatmul.mubr.bf16.gmra.mxu0 %v1026
  %v2830 = vpop.f32.mrf.mxu0
  %v2831 = vadd.f32 %v2766, %v2830
  %v2832 = vpop.f32.mrf.mxu0
  %v2833 = vpop.f32.mrf.mxu0
  %v2834 = vadd.f32 %v2769, %v2833
  %v2835 = vpop.f32.mrf.mxu0
  %2836 = vdwg.mxu0
  %2837 = vmatprep.subr.bf16.mxu0 0
  %2838 = vmatpush1.bf16.msra.mxu0 %v2118
  %2839 = vmatprep.subr.bf16.mxu0 0
  %2840 = vmatpush1.bf16.msra.mxu0 %v2117
  %2841 = vmatprep.subr.bf16.mxu0 0
  %2842 = vmatpush1.bf16.msra.mxu0 %v2116
  %2843 = vmatprep.subr.bf16.mxu0 0
  %2844 = vmatpush1.bf16.msra.mxu0 %v2115
  %2845 = vmatprep.subr.bf16.mxu0 0
  %2846 = vmatpush1.bf16.msra.mxu0 %v2114
  %2847 = vmatprep.subr.bf16.mxu0 0
  %2848 = vmatpush1.bf16.msra.mxu0 %v2113
  %2849 = vmatprep.subr.bf16.mxu0 0
  %2850 = vmatpush1.bf16.msra.mxu0 %v2112
  %2851 = vmatprep.subr.bf16.mxu0 0
  %2852 = vmatpush1.bf16.msra.mxu0 %v2111
  %2853 = vmatprep.subr.bf16.mxu0 0
  %2854 = vmatpush2.bf16.msra.mxu0 %v2126
  %2855 = vmatprep.subr.bf16.mxu0 0
  %2856 = vmatpush2.bf16.msra.mxu0 %v2125
  %2857 = vmatprep.subr.bf16.mxu0 0
  %2858 = vmatpush2.bf16.msra.mxu0 %v2124
  %2859 = vmatprep.subr.bf16.mxu0 0
  %2860 = vmatpush2.bf16.msra.mxu0 %v2123
  %2861 = vmatprep.subr.bf16.mxu0 0
  %2862 = vmatpush2.bf16.msra.mxu0 %v2122
  %2863 = vmatprep.subr.bf16.mxu0 0
  %2864 = vmatpush2.bf16.msra.mxu0 %v2121
  %2865 = vmatprep.subr.bf16.mxu0 0
  %2866 = vmatpush2.bf16.msra.mxu0 %v2120
  %2867 = vmatprep.subr.bf16.mxu0 0
  %2868 = vmatpush2.bf16.msra.mxu0 %v2119
  %2869 = vmatprep.mubr.bf16.mxu0 %v948
  %2870 = vmatmul.mubr.bf16.gmra.mxu0 %v947
  %v2871 = vpop.f32.mrf.mxu0
  %v2872 = vadd.f32 %v2807, %v2871
  %v2873 = vpop.f32.mrf.mxu0
  %v2874 = vpop.f32.mrf.mxu0
  %v2875 = vadd.f32 %v2810, %v2874
  %v2876 = vpop.f32.mrf.mxu0
  %2877 = vmatprep.mubr.bf16.mxu0 %v975
  %2878 = vmatmul.mubr.bf16.gmra.mxu0 %v974
  %v2879 = vpop.f32.mrf.mxu0
  %v2880 = vadd.f32 %v2815, %v2879
  %v2881 = vpop.f32.mrf.mxu0
  %v2882 = vpop.f32.mrf.mxu0
  %v2883 = vadd.f32 %v2818, %v2882
  %v2884 = vpop.f32.mrf.mxu0
  %2885 = vmatprep.mubr.bf16.mxu0 %v1002
  %2886 = vmatmul.mubr.bf16.gmra.mxu0 %v1001
  %v2887 = vpop.f32.mrf.mxu0
  %v2888 = vadd.f32 %v2823, %v2887
  %v2889 = vpop.f32.mrf.mxu0
  %v2890 = vpop.f32.mrf.mxu0
  %v2891 = vadd.f32 %v2826, %v2890
  %v2892 = vpop.f32.mrf.mxu0
  %2893 = vmatprep.mubr.bf16.mxu0 %v1029
  %2894 = vmatmul.mubr.bf16.gmra.mxu0 %v1028
  %v2895 = vpop.f32.mrf.mxu0
  %v2896 = vadd.f32 %v2831, %v2895
  %v2897 = vpop.f32.mrf.mxu0
  %v2898 = vpop.f32.mrf.mxu0
  %v2899 = vadd.f32 %v2834, %v2898
  %v2900 = vpop.f32.mrf.mxu0
  %2901 = vdwg.mxu0
  %2902 = vmatprep.subr.bf16.mxu0 0
  %2903 = vmatpush1.bf16.msra.mxu0 %v2134
  %2904 = vmatprep.subr.bf16.mxu0 0
  %2905 = vmatpush1.bf16.msra.mxu0 %v2133
  %2906 = vmatprep.subr.bf16.mxu0 0
  %2907 = vmatpush1.bf16.msra.mxu0 %v2132
  %2908 = vmatprep.subr.bf16.mxu0 0
  %2909 = vmatpush1.bf16.msra.mxu0 %v2131
  %2910 = vmatprep.subr.bf16.mxu0 0
  %2911 = vmatpush1.bf16.msra.mxu0 %v2130
  %2912 = vmatprep.subr.bf16.mxu0 0
  %2913 = vmatpush1.bf16.msra.mxu0 %v2129
  %2914 = vmatprep.subr.bf16.mxu0 0
  %2915 = vmatpush1.bf16.msra.mxu0 %v2128
  %2916 = vmatprep.subr.bf16.mxu0 0
  %2917 = vmatpush1.bf16.msra.mxu0 %v2127
  %2918 = vmatprep.subr.bf16.mxu0 0
  %2919 = vmatpush2.bf16.msra.mxu0 %v2142
  %2920 = vmatprep.subr.bf16.mxu0 0
  %2921 = vmatpush2.bf16.msra.mxu0 %v2141
  %2922 = vmatprep.subr.bf16.mxu0 0
  %2923 = vmatpush2.bf16.msra.mxu0 %v2140
  %2924 = vmatprep.subr.bf16.mxu0 0
  %2925 = vmatpush2.bf16.msra.mxu0 %v2139
  %2926 = vmatprep.subr.bf16.mxu0 0
  %2927 = vmatpush2.bf16.msra.mxu0 %v2138
  %2928 = vmatprep.subr.bf16.mxu0 0
  %2929 = vmatpush2.bf16.msra.mxu0 %v2137
  %2930 = vmatprep.subr.bf16.mxu0 0
  %2931 = vmatpush2.bf16.msra.mxu0 %v2136
  %2932 = vmatprep.subr.bf16.mxu0 0
  %2933 = vmatpush2.bf16.msra.mxu0 %v2135
  %2934 = vmatprep.mubr.bf16.mxu0 %v950
  %2935 = vmatmul.mubr.bf16.gmra.mxu0 %v949
  %v2936 = vpop.f32.mrf.mxu0
  %v2937 = vadd.f32 %v2872, %v2936
  %v2938 = vpop.f32.mrf.mxu0
  %v2939 = vpop.f32.mrf.mxu0
  %v2940 = vadd.f32 %v2875, %v2939
  %v2941 = vpop.f32.mrf.mxu0
  %2942 = vmatprep.mubr.bf16.mxu0 %v977
  %2943 = vmatmul.mubr.bf16.gmra.mxu0 %v976
  %v2944 = vpop.f32.mrf.mxu0
  %v2945 = vadd.f32 %v2880, %v2944
  %v2946 = vpop.f32.mrf.mxu0
  %v2947 = vpop.f32.mrf.mxu0
  %v2948 = vadd.f32 %v2883, %v2947
  %v2949 = vpop.f32.mrf.mxu0
  %2950 = vmatprep.mubr.bf16.mxu0 %v1004
  %2951 = vmatmul.mubr.bf16.gmra.mxu0 %v1003
  %v2952 = vpop.f32.mrf.mxu0
  %v2953 = vadd.f32 %v2888, %v2952
  %v2954 = vpop.f32.mrf.mxu0
  %v2955 = vpop.f32.mrf.mxu0
  %v2956 = vadd.f32 %v2891, %v2955
  %v2957 = vpop.f32.mrf.mxu0
  %2958 = vmatprep.mubr.bf16.mxu0 %v1031
  %2959 = vmatmul.mubr.bf16.gmra.mxu0 %v1030
  %v2960 = vpop.f32.mrf.mxu0
  %v2961 = vadd.f32 %v2896, %v2960
  %v2962 = vpop.f32.mrf.mxu0
  %v2963 = vpop.f32.mrf.mxu0
  %v2964 = vadd.f32 %v2899, %v2963
  %v2965 = vpop.f32.mrf.mxu0
  %2966 = vdwg.mxu0
  %2967 = vmatprep.subr.bf16.mxu0 0
  %2968 = vmatpush1.bf16.msra.mxu0 %v2150
  %2969 = vmatprep.subr.bf16.mxu0 0
  %2970 = vmatpush1.bf16.msra.mxu0 %v2149
  %2971 = vmatprep.subr.bf16.mxu0 0
  %2972 = vmatpush1.bf16.msra.mxu0 %v2148
  %2973 = vmatprep.subr.bf16.mxu0 0
  %2974 = vmatpush1.bf16.msra.mxu0 %v2147
  %2975 = vmatprep.subr.bf16.mxu0 0
  %2976 = vmatpush1.bf16.msra.mxu0 %v2146
  %2977 = vmatprep.subr.bf16.mxu0 0
  %2978 = vmatpush1.bf16.msra.mxu0 %v2145
  %2979 = vmatprep.subr.bf16.mxu0 0
  %2980 = vmatpush1.bf16.msra.mxu0 %v2144
  %2981 = vmatprep.subr.bf16.mxu0 0
  %2982 = vmatpush1.bf16.msra.mxu0 %v2143
  %2983 = vmatprep.subr.bf16.mxu0 0
  %2984 = vmatpush2.bf16.msra.mxu0 %v2158
  %2985 = vmatprep.subr.bf16.mxu0 0
  %2986 = vmatpush2.bf16.msra.mxu0 %v2157
  %2987 = vmatprep.subr.bf16.mxu0 0
  %2988 = vmatpush2.bf16.msra.mxu0 %v2156
  %2989 = vmatprep.subr.bf16.mxu0 0
  %2990 = vmatpush2.bf16.msra.mxu0 %v2155
  %2991 = vmatprep.subr.bf16.mxu0 0
  %2992 = vmatpush2.bf16.msra.mxu0 %v2154
  %2993 = vmatprep.subr.bf16.mxu0 0
  %2994 = vmatpush2.bf16.msra.mxu0 %v2153
  %2995 = vmatprep.subr.bf16.mxu0 0
  %2996 = vmatpush2.bf16.msra.mxu0 %v2152
  %2997 = vmatprep.subr.bf16.mxu0 0
  %2998 = vmatpush2.bf16.msra.mxu0 %v2151
  %2999 = vmatprep.mubr.bf16.mxu0 %v952
  %3000 = vmatmul.mubr.bf16.gmra.mxu0 %v951
  %v3001 = vpop.f32.mrf.mxu0
  %v3002 = vadd.f32 %v2937, %v3001
  %v3003 = vpop.f32.mrf.mxu0
  %v3004 = vpop.f32.mrf.mxu0
  %v3005 = vadd.f32 %v2940, %v3004
  %v3006 = vpop.f32.mrf.mxu0
  %3007 = vmatprep.mubr.bf16.mxu0 %v979
  %3008 = vmatmul.mubr.bf16.gmra.mxu0 %v978
  %v3009 = vpop.f32.mrf.mxu0
  %v3010 = vadd.f32 %v2945, %v3009
  %v3011 = vpop.f32.mrf.mxu0
  %v3012 = vpop.f32.mrf.mxu0
  %v3013 = vadd.f32 %v2948, %v3012
  %v3014 = vpop.f32.mrf.mxu0
  %3015 = vmatprep.mubr.bf16.mxu0 %v1006
  %3016 = vmatmul.mubr.bf16.gmra.mxu0 %v1005
  %v3017 = vpop.f32.mrf.mxu0
  %v3018 = vadd.f32 %v2953, %v3017
  %v3019 = vpop.f32.mrf.mxu0
  %v3020 = vpop.f32.mrf.mxu0
  %v3021 = vadd.f32 %v2956, %v3020
  %v3022 = vpop.f32.mrf.mxu0
  %3023 = vmatprep.mubr.bf16.mxu0 %v1033
  %3024 = vmatmul.mubr.bf16.gmra.mxu0 %v1032
  %v3025 = vpop.f32.mrf.mxu0
  %v3026 = vadd.f32 %v2961, %v3025
  %v3027 = vpop.f32.mrf.mxu0
  %v3028 = vpop.f32.mrf.mxu0
  %v3029 = vadd.f32 %v2964, %v3028
  %v3030 = vpop.f32.mrf.mxu0
  %3031 = vdwg.mxu0
  %3032 = vmatprep.subr.bf16.mxu0 0
  %3033 = vmatpush1.bf16.msra.mxu0 %v2166
  %3034 = vmatprep.subr.bf16.mxu0 0
  %3035 = vmatpush1.bf16.msra.mxu0 %v2165
  %3036 = vmatprep.subr.bf16.mxu0 0
  %3037 = vmatpush1.bf16.msra.mxu0 %v2164
  %3038 = vmatprep.subr.bf16.mxu0 0
  %3039 = vmatpush1.bf16.msra.mxu0 %v2163
  %3040 = vmatprep.subr.bf16.mxu0 0
  %3041 = vmatpush1.bf16.msra.mxu0 %v2162
  %3042 = vmatprep.subr.bf16.mxu0 0
  %3043 = vmatpush1.bf16.msra.mxu0 %v2161
  %3044 = vmatprep.subr.bf16.mxu0 0
  %3045 = vmatpush1.bf16.msra.mxu0 %v2160
  %3046 = vmatprep.subr.bf16.mxu0 0
  %3047 = vmatpush1.bf16.msra.mxu0 %v2159
  %3048 = vmatprep.subr.bf16.mxu0 0
  %3049 = vmatpush2.bf16.msra.mxu0 %v2174
  %3050 = vmatprep.subr.bf16.mxu0 0
  %3051 = vmatpush2.bf16.msra.mxu0 %v2173
  %3052 = vmatprep.subr.bf16.mxu0 0
  %3053 = vmatpush2.bf16.msra.mxu0 %v2172
  %3054 = vmatprep.subr.bf16.mxu0 0
  %3055 = vmatpush2.bf16.msra.mxu0 %v2171
  %3056 = vmatprep.subr.bf16.mxu0 0
  %3057 = vmatpush2.bf16.msra.mxu0 %v2170
  %3058 = vmatprep.subr.bf16.mxu0 0
  %3059 = vmatpush2.bf16.msra.mxu0 %v2169
  %3060 = vmatprep.subr.bf16.mxu0 0
  %3061 = vmatpush2.bf16.msra.mxu0 %v2168
  %3062 = vmatprep.subr.bf16.mxu0 0
  %3063 = vmatpush2.bf16.msra.mxu0 %v2167
  %3064 = vmatprep.mubr.bf16.mxu0 %v954
  %3065 = vmatmul.mubr.bf16.gmra.mxu0 %v953
  %v3066 = vpop.f32.mrf.mxu0
  %v3067 = vadd.f32 %v3002, %v3066
  %v3068 = vpop.f32.mrf.mxu0
  %v3069 = vpop.f32.mrf.mxu0
  %v3070 = vadd.f32 %v3005, %v3069
  %v3071 = vpop.f32.mrf.mxu0
  %3072 = vmatprep.mubr.bf16.mxu0 %v981
  %3073 = vmatmul.mubr.bf16.gmra.mxu0 %v980
  %v3074 = vpop.f32.mrf.mxu0
  %v3075 = vadd.f32 %v3010, %v3074
  %v3076 = vpop.f32.mrf.mxu0
  %v3077 = vpop.f32.mrf.mxu0
  %v3078 = vadd.f32 %v3013, %v3077
  %v3079 = vpop.f32.mrf.mxu0
  %3080 = vmatprep.mubr.bf16.mxu0 %v1008
  %3081 = vmatmul.mubr.bf16.gmra.mxu0 %v1007
  %v3082 = vpop.f32.mrf.mxu0
  %v3083 = vadd.f32 %v3018, %v3082
  %v3084 = vpop.f32.mrf.mxu0
  %v3085 = vpop.f32.mrf.mxu0
  %v3086 = vadd.f32 %v3021, %v3085
  %v3087 = vpop.f32.mrf.mxu0
  %3088 = vmatprep.mubr.bf16.mxu0 %v1035
  %3089 = vmatmul.mubr.bf16.gmra.mxu0 %v1034
  %v3090 = vpop.f32.mrf.mxu0
  %v3091 = vadd.f32 %v3026, %v3090
  %v3092 = vpop.f32.mrf.mxu0
  %v3093 = vpop.f32.mrf.mxu0
  %v3094 = vadd.f32 %v3029, %v3093
  %v3095 = vpop.f32.mrf.mxu0
  %3096 = vdwg.mxu0
  %3097 = vmatprep.subr.bf16.mxu0 0
  %3098 = vmatpush1.bf16.msra.mxu0 %v2182
  %3099 = vmatprep.subr.bf16.mxu0 0
  %3100 = vmatpush1.bf16.msra.mxu0 %v2181
  %3101 = vmatprep.subr.bf16.mxu0 0
  %3102 = vmatpush1.bf16.msra.mxu0 %v2180
  %3103 = vmatprep.subr.bf16.mxu0 0
  %3104 = vmatpush1.bf16.msra.mxu0 %v2179
  %3105 = vmatprep.subr.bf16.mxu0 0
  %3106 = vmatpush1.bf16.msra.mxu0 %v2178
  %3107 = vmatprep.subr.bf16.mxu0 0
  %3108 = vmatpush1.bf16.msra.mxu0 %v2177
  %3109 = vmatprep.subr.bf16.mxu0 0
  %3110 = vmatpush1.bf16.msra.mxu0 %v2176
  %3111 = vmatprep.subr.bf16.mxu0 0
  %3112 = vmatpush1.bf16.msra.mxu0 %v2175
  %3113 = vmatprep.subr.bf16.mxu0 0
  %3114 = vmatpush2.bf16.msra.mxu0 %v2190
  %3115 = vmatprep.subr.bf16.mxu0 0
  %3116 = vmatpush2.bf16.msra.mxu0 %v2189
  %3117 = vmatprep.subr.bf16.mxu0 0
  %3118 = vmatpush2.bf16.msra.mxu0 %v2188
  %3119 = vmatprep.subr.bf16.mxu0 0
  %3120 = vmatpush2.bf16.msra.mxu0 %v2187
  %3121 = vmatprep.subr.bf16.mxu0 0
  %3122 = vmatpush2.bf16.msra.mxu0 %v2186
  %3123 = vmatprep.subr.bf16.mxu0 0
  %3124 = vmatpush2.bf16.msra.mxu0 %v2185
  %3125 = vmatprep.subr.bf16.mxu0 0
  %3126 = vmatpush2.bf16.msra.mxu0 %v2184
  %3127 = vmatprep.subr.bf16.mxu0 0
  %3128 = vmatpush2.bf16.msra.mxu0 %v2183
  %3129 = vmatprep.mubr.bf16.mxu0 %v956
  %3130 = vmatmul.mubr.bf16.gmra.mxu0 %v955
  %v3131 = vpop.f32.mrf.mxu0
  %v3132 = vadd.f32 %v3067, %v3131
  %v3133 = vpop.f32.mrf.mxu0
  %v3134 = vpop.f32.mrf.mxu0
  %v3135 = vadd.f32 %v3070, %v3134
  %v3136 = vpop.f32.mrf.mxu0
  %3137 = vmatprep.mubr.bf16.mxu0 %v983
  %3138 = vmatmul.mubr.bf16.gmra.mxu0 %v982
  %v3139 = vpop.f32.mrf.mxu0
  %v3140 = vadd.f32 %v3075, %v3139
  %v3141 = vpop.f32.mrf.mxu0
  %v3142 = vpop.f32.mrf.mxu0
  %v3143 = vadd.f32 %v3078, %v3142
  %v3144 = vpop.f32.mrf.mxu0
  %3145 = vmatprep.mubr.bf16.mxu0 %v1010
  %3146 = vmatmul.mubr.bf16.gmra.mxu0 %v1009
  %v3147 = vpop.f32.mrf.mxu0
  %v3148 = vadd.f32 %v3083, %v3147
  %v3149 = vpop.f32.mrf.mxu0
  %v3150 = vpop.f32.mrf.mxu0
  %v3151 = vadd.f32 %v3086, %v3150
  %v3152 = vpop.f32.mrf.mxu0
  %3153 = vmatprep.mubr.bf16.mxu0 %v1037
  %3154 = vmatmul.mubr.bf16.gmra.mxu0 %v1036
  %v3155 = vpop.f32.mrf.mxu0
  %v3156 = vadd.f32 %v3091, %v3155
  %v3157 = vpop.f32.mrf.mxu0
  %v3158 = vpop.f32.mrf.mxu0
  %v3159 = vadd.f32 %v3094, %v3158
  %v3160 = vpop.f32.mrf.mxu0
  %3161 = vdwg.mxu0
  %3162 = vmatprep.subr.bf16.mxu0 0
  %3163 = vmatpush1.bf16.msra.mxu0 %v2198
  %3164 = vmatprep.subr.bf16.mxu0 0
  %3165 = vmatpush1.bf16.msra.mxu0 %v2197
  %3166 = vmatprep.subr.bf16.mxu0 0
  %3167 = vmatpush1.bf16.msra.mxu0 %v2196
  %3168 = vmatprep.subr.bf16.mxu0 0
  %3169 = vmatpush1.bf16.msra.mxu0 %v2195
  %3170 = vmatprep.subr.bf16.mxu0 0
  %3171 = vmatpush1.bf16.msra.mxu0 %v2194
  %3172 = vmatprep.subr.bf16.mxu0 0
  %3173 = vmatpush1.bf16.msra.mxu0 %v2193
  %3174 = vmatprep.subr.bf16.mxu0 0
  %3175 = vmatpush1.bf16.msra.mxu0 %v2192
  %3176 = vmatprep.subr.bf16.mxu0 0
  %3177 = vmatpush1.bf16.msra.mxu0 %v2191
  %3178 = vmatprep.subr.bf16.mxu0 0
  %3179 = vmatpush2.bf16.msra.mxu0 %v2206
  %3180 = vmatprep.subr.bf16.mxu0 0
  %3181 = vmatpush2.bf16.msra.mxu0 %v2205
  %3182 = vmatprep.subr.bf16.mxu0 0
  %3183 = vmatpush2.bf16.msra.mxu0 %v2204
  %3184 = vmatprep.subr.bf16.mxu0 0
  %3185 = vmatpush2.bf16.msra.mxu0 %v2203
  %3186 = vmatprep.subr.bf16.mxu0 0
  %3187 = vmatpush2.bf16.msra.mxu0 %v2202
  %3188 = vmatprep.subr.bf16.mxu0 0
  %3189 = vmatpush2.bf16.msra.mxu0 %v2201
  %3190 = vmatprep.subr.bf16.mxu0 0
  %3191 = vmatpush2.bf16.msra.mxu0 %v2200
  %3192 = vmatprep.subr.bf16.mxu0 0
  %3193 = vmatpush2.bf16.msra.mxu0 %v2199
  %3194 = vmatprep.mubr.bf16.mxu0 %v958
  %3195 = vmatmul.mubr.bf16.gmra.mxu0 %v957
  %v3196 = vpop.f32.mrf.mxu0
  %v3197 = vadd.f32 %v3132, %v3196
  %v3198 = vpop.f32.mrf.mxu0
  %v3199 = vpop.f32.mrf.mxu0
  %v3200 = vadd.f32 %v3135, %v3199
  %v3201 = vpop.f32.mrf.mxu0
  %3202 = vmatprep.mubr.bf16.mxu0 %v985
  %3203 = vmatmul.mubr.bf16.gmra.mxu0 %v984
  %v3204 = vpop.f32.mrf.mxu0
  %v3205 = vadd.f32 %v3140, %v3204
  %v3206 = vpop.f32.mrf.mxu0
  %v3207 = vpop.f32.mrf.mxu0
  %v3208 = vadd.f32 %v3143, %v3207
  %v3209 = vpop.f32.mrf.mxu0
  %3210 = vmatprep.mubr.bf16.mxu0 %v1012
  %3211 = vmatmul.mubr.bf16.gmra.mxu0 %v1011
  %v3212 = vpop.f32.mrf.mxu0
  %v3213 = vadd.f32 %v3148, %v3212
  %v3214 = vpop.f32.mrf.mxu0
  %v3215 = vpop.f32.mrf.mxu0
  %v3216 = vadd.f32 %v3151, %v3215
  %v3217 = vpop.f32.mrf.mxu0
  %3218 = vmatprep.mubr.bf16.mxu0 %v1039
  %3219 = vmatmul.mubr.bf16.gmra.mxu0 %v1038
  %v3220 = vpop.f32.mrf.mxu0
  %v3221 = vadd.f32 %v3156, %v3220
  %v3222 = vpop.f32.mrf.mxu0
  %v3223 = vpop.f32.mrf.mxu0
  %v3224 = vadd.f32 %v3159, %v3223
  %v3225 = vpop.f32.mrf.mxu0
  %3226 = vdwg.mxu0
  %3227 = vmatprep.subr.bf16.mxu0 0
  %3228 = vmatpush1.bf16.msra.mxu0 %v2214
  %3229 = vmatprep.subr.bf16.mxu0 0
  %3230 = vmatpush1.bf16.msra.mxu0 %v2213
  %3231 = vmatprep.subr.bf16.mxu0 0
  %3232 = vmatpush1.bf16.msra.mxu0 %v2212
  %3233 = vmatprep.subr.bf16.mxu0 0
  %3234 = vmatpush1.bf16.msra.mxu0 %v2211
  %3235 = vmatprep.subr.bf16.mxu0 0
  %3236 = vmatpush1.bf16.msra.mxu0 %v2210
  %3237 = vmatprep.subr.bf16.mxu0 0
  %3238 = vmatpush1.bf16.msra.mxu0 %v2209
  %3239 = vmatprep.subr.bf16.mxu0 0
  %3240 = vmatpush1.bf16.msra.mxu0 %v2208
  %3241 = vmatprep.subr.bf16.mxu0 0
  %3242 = vmatpush1.bf16.msra.mxu0 %v2207
  %3243 = vmatprep.subr.bf16.mxu0 0
  %3244 = vmatpush2.bf16.msra.mxu0 %v2222
  %3245 = vmatprep.subr.bf16.mxu0 0
  %3246 = vmatpush2.bf16.msra.mxu0 %v2221
  %3247 = vmatprep.subr.bf16.mxu0 0
  %3248 = vmatpush2.bf16.msra.mxu0 %v2220
  %3249 = vmatprep.subr.bf16.mxu0 0
  %3250 = vmatpush2.bf16.msra.mxu0 %v2219
  %3251 = vmatprep.subr.bf16.mxu0 0
  %3252 = vmatpush2.bf16.msra.mxu0 %v2218
  %3253 = vmatprep.subr.bf16.mxu0 0
  %3254 = vmatpush2.bf16.msra.mxu0 %v2217
  %3255 = vmatprep.subr.bf16.mxu0 0
  %3256 = vmatpush2.bf16.msra.mxu0 %v2216
  %3257 = vmatprep.subr.bf16.mxu0 0
  %3258 = vmatpush2.bf16.msra.mxu0 %v2215
  %3259 = vmatprep.mubr.bf16.mxu0 %v960
  %3260 = vmatmul.mubr.bf16.gmra.mxu0 %v959
  %v3261 = vpop.f32.mrf.mxu0
  %v3262 = vadd.f32 %v3197, %v3261
  %v3263 = vpop.f32.mrf.mxu0
  %v3264 = vpop.f32.mrf.mxu0
  %v3265 = vadd.f32 %v3200, %v3264
  %v3266 = vpop.f32.mrf.mxu0
  %3267 = vmatprep.mubr.bf16.mxu0 %v987
  %3268 = vmatmul.mubr.bf16.gmra.mxu0 %v986
  %v3269 = vpop.f32.mrf.mxu0
  %v3270 = vadd.f32 %v3205, %v3269
  %v3271 = vpop.f32.mrf.mxu0
  %v3272 = vpop.f32.mrf.mxu0
  %v3273 = vadd.f32 %v3208, %v3272
  %v3274 = vpop.f32.mrf.mxu0
  %3275 = vmatprep.mubr.bf16.mxu0 %v1014
  %3276 = vmatmul.mubr.bf16.gmra.mxu0 %v1013
  %v3277 = vpop.f32.mrf.mxu0
  %v3278 = vadd.f32 %v3213, %v3277
  %v3279 = vpop.f32.mrf.mxu0
  %v3280 = vpop.f32.mrf.mxu0
  %v3281 = vadd.f32 %v3216, %v3280
  %v3282 = vpop.f32.mrf.mxu0
  %3283 = vmatprep.mubr.bf16.mxu0 %v1041
  %3284 = vmatmul.mubr.bf16.gmra.mxu0 %v1040
  %v3285 = vpop.f32.mrf.mxu0
  %v3286 = vadd.f32 %v3221, %v3285
  %v3287 = vpop.f32.mrf.mxu0
  %v3288 = vpop.f32.mrf.mxu0
  %v3289 = vadd.f32 %v3224, %v3288
  %v3290 = vpop.f32.mrf.mxu0
  %3291 = vdwg.mxu0
  %3292 = vmatprep.subr.bf16.mxu0 0
  %3293 = vmatpush1.bf16.msra.mxu0 %v2230
  %3294 = vmatprep.subr.bf16.mxu0 0
  %3295 = vmatpush1.bf16.msra.mxu0 %v2229
  %3296 = vmatprep.subr.bf16.mxu0 0
  %3297 = vmatpush1.bf16.msra.mxu0 %v2228
  %3298 = vmatprep.subr.bf16.mxu0 0
  %3299 = vmatpush1.bf16.msra.mxu0 %v2227
  %3300 = vmatprep.subr.bf16.mxu0 0
  %3301 = vmatpush1.bf16.msra.mxu0 %v2226
  %3302 = vmatprep.subr.bf16.mxu0 0
  %3303 = vmatpush1.bf16.msra.mxu0 %v2225
  %3304 = vmatprep.subr.bf16.mxu0 0
  %3305 = vmatpush1.bf16.msra.mxu0 %v2224
  %3306 = vmatprep.subr.bf16.mxu0 0
  %3307 = vmatpush1.bf16.msra.mxu0 %v2223
  %3308 = vmatprep.subr.bf16.mxu0 0
  %3309 = vmatpush2.bf16.msra.mxu0 0
  %3310 = vmatprep.subr.bf16.mxu0 0
  %3311 = vmatpush2.bf16.msra.mxu0 0
  %3312 = vmatprep.subr.bf16.mxu0 0
  %3313 = vmatpush2.bf16.msra.mxu0 0
  %3314 = vmatprep.subr.bf16.mxu0 0
  %3315 = vmatpush2.bf16.msra.mxu0 0
  %3316 = vmatprep.subr.bf16.mxu0 0
  %3317 = vmatpush2.bf16.msra.mxu0 0
  %3318 = vmatprep.subr.bf16.mxu0 0
  %3319 = vmatpush2.bf16.msra.mxu0 0
  %3320 = vmatprep.subr.bf16.mxu0 0
  %3321 = vmatpush2.bf16.msra.mxu0 0
  %3322 = vmatprep.subr.bf16.mxu0 0
  %3323 = vmatpush2.bf16.msra.mxu0 0
  %3324 = vmatprep.mubr.bf16.mxu0 0
  %3325 = vmatmul.mubr.bf16.gmra.mxu0 %v961
  %v3326 = vpop.f32.mrf.mxu0
  %v3327 = vadd.f32 %v3262, %v3326
  %v3328 = vpop.f32.mrf.mxu0
  %v3329 = vpop.f32.mrf.mxu0
  %v3330 = vadd.f32 %v3265, %v3329
  %v3331 = vpop.f32.mrf.mxu0
  %3332 = vmatprep.mubr.bf16.mxu0 0
  %3333 = vmatmul.mubr.bf16.gmra.mxu0 %v988
  %v3334 = vpop.f32.mrf.mxu0
  %v3335 = vadd.f32 %v3270, %v3334
  %v3336 = vpop.f32.mrf.mxu0
  %v3337 = vpop.f32.mrf.mxu0
  %v3338 = vadd.f32 %v3273, %v3337
  %v3339 = vpop.f32.mrf.mxu0
  %3340 = vmatprep.mubr.bf16.mxu0 0
  %3341 = vmatmul.mubr.bf16.gmra.mxu0 %v1015
  %v3342 = vpop.f32.mrf.mxu0
  %v3343 = vadd.f32 %v3278, %v3342
  %v3344 = vpop.f32.mrf.mxu0
  %v3345 = vpop.f32.mrf.mxu0
  %v3346 = vadd.f32 %v3281, %v3345
  %v3347 = vpop.f32.mrf.mxu0
  %3348 = vmatprep.mubr.bf16.mxu0 0
  %3349 = vmatmul.mubr.bf16.gmra.mxu0 %v1042
  %v3350 = vpop.f32.mrf.mxu0
  %v3351 = vadd.f32 %v3286, %v3350
  %v3352 = vpop.f32.mrf.mxu0
  %v3353 = vpop.f32.mrf.mxu0
  %v3354 = vadd.f32 %v3289, %v3353
  %v3355 = vpop.f32.mrf.mxu0
  %3356 = vdwg.mxu0
  %v3357 = vmax.f32 %v3327, 0.0
  %v3358 = vmax.f32 %v3330, 0.0
  %v3359 = vmax.f32 %v3335, 0.0
  %v3360 = vmax.f32 %v3338, 0.0
  %v3361 = vmax.f32 %v3343, 0.0
  %v3362 = vmax.f32 %v3346, 0.0
  %v3363 = vmax.f32 %v3351, 0.0
  %v3364 = vmax.f32 %v3354, 0.0
  %v3365 = vpack.c.bf16 %v3358, %v3357
  %v3366 = vpack.c.bf16 %v3360, %v3359
  %v3367 = vpack.c.bf16 %v3362, %v3361
  %v3368 = vpack.c.bf16 %v3364, %v3363
  %v3373 = vunpack.c.l.b16 %v3365
  %v3374 = vunpack.c.h.b16 %v3365
  %v3375 = vunpack.c.l.b16 %v3366
  %v3376 = vunpack.c.h.b16 %v3366
  %v3377 = vunpack.c.l.b16 %v3367
  %v3378 = vunpack.c.h.b16 %v3367
  %v3379 = vunpack.c.l.b16 %v3368
  %v3380 = vunpack.c.h.b16 %v3368
  %v3381 = vpack.c.b16 %v3373, %v3373
  %v3382 = vpack.c.b16 %v3374, %v3374
  %v3383 = vpack.c.b16 %v3375, %v3375
  %v3384 = vpack.c.b16 %v3376, %v3376
  %v3385 = vpack.c.b16 %v3377, %v3377
  %v3386 = vpack.c.b16 %v3378, %v3378
  %v3387 = vpack.c.b16 %v3379, %v3379
  %v3388 = vpack.c.b16 %v3380, %v3380
  %3397 = vst [vmem:[%s3] sm:$0xf] %v3381
  %3398 = vst [vmem:[%s3 + $0x4] sm:$0xf] %v3382
  %3399 = vst [vmem:[%s3 + $0x8] sm:$0xf] %v3383
  %3400 = vst [vmem:[%s3 + $0xc] sm:$0xf] %v3384
  %3401 = vst [vmem:[%s3 + $0x10] sm:$0xf] %v3385
  %3402 = vst [vmem:[%s3 + $0x14] sm:$0xf] %v3386
  %3403 = vst [vmem:[%s3 + $0x18] sm:$0xf] %v3387
  %3404 = vst [vmem:[%s3 + $0x1c] sm:$0xf] %v3388
  // Predicated region
  $region14: #{vnet_forward.11} parent=0 // pred_check
    _
  $region15: #{vnet_forward.11} parent=0 // pred_check_branch
    %3406 = sbr.rel (0) target = $region17
  $region16: #{vnet_forward.11} parent=0 // pred_region
    _
  $region17: #{vnet_forward.11} parent=0 // pred_fallthru
    _
  // Predicated region
  $region18: #{vnet_forward.11} parent=0 // pred_check
    _
  $region19: #{vnet_forward.11} parent=0 // pred_check_branch
    %3408 = sbr.rel (0) target = $region21
  $region20: #{vnet_forward.11} parent=0 // pred_region
    _
  $region21: #{vnet_forward.11} parent=0 // pred_fallthru
    _

// kernel: vnet_forward.12
$region0: #{vnet_forward.12}
  #allocation0 [shape = 'u32[]', space=smem, size = 0x4, offset = 0x4, fixed_abs, tag = 'smem constant byte address 0x4 - core index']
  #allocation1 [shape = 'u32[144,128]{1,0:T(1,128)}', space=vmem, size = 0x12000, scoped, tag = 'internal scratch']
  %s0 = inlined_call_operand.vmem [shape: bf16[8,32,512], index: 0, kind: input, shape index: {}]
  %s1 = inlined_call_operand.vmem [shape: bf16[8,512,128], index: 1, kind: input, shape index: {}]
  %s2 = inlined_call_operand.vmem [shape: f32[32,1], index: 2, kind: input, shape index: {}]
  %s3 = inlined_call_operand.vmem [shape: bf16[8,32,128], index: 3, kind: output, shape index: {}]
  %s4 = sld [smem:[#allocation0]]
  $region45: #{vnet_forward.12} parent=0
    _
  %s6 = ssub.s32 1, %s4
  %s7 = scalar_select 0, %s6, %s4
  loop: start=0, step=1, limit=10
  $region2: #{vnet_forward.12} parent=0 // loop_pre_header
    _
  $region3: #{vnet_forward.12} parent=0 // loop_header
    %s9 = sphi 0, %s13
    %p10 = scmp.ge.s32.totalorder %s9, 10
    %s19 = sphi 0, %s21
    %s22 = sphi 0, %s19
    %s23 = sphi 0, %s22
    %s39 = sphi 0, %s23
    %s45 = sphi 0, %s47
    %s48 = sphi 0, %s45
    %s49 = sphi 0, %s48
    %s65 = sphi 0, %s49
    %s69 = sphi 0, %s69
    %s71 = sphi 0, %s69
    %s72 = sphi 0, %s71
    %s86 = sphi 0, %s72
    %s92 = sphi 0, %s94
    %s95 = sphi 0, %s92
    %s96 = sphi 0, %s95
    %s112 = sphi 0, %s96
  $region4: #{vnet_forward.12} parent=0 // loop_header_branch
    %12 = sbr.rel (%p10) target = $region8
  $region5: #{vnet_forward.12} parent=0 // loop_body
    %s14 = ssub.s32 %s9, 1
    %s15 = ssub.s32 %s9, 2
    %s16 = sadd.s32 %s9, 1
    %s17 = ssub.s32 %s9, %s16
    %p18 = scmp.eq.s32.totalorder %s17, 0
    %s20 = sadd.s32 %s19, 1
    %s21 = scalar_select %p18, %s19, %s20
    %p24 = pneg %p18
    %p25 = scmp.eq.s32.totalorder %s9, 7
    %p26 = por %p24, %p25
    %p27 = scmp.ne.s32.totalorder %s19, %s22
    %p28 = scmp.eq.s32.totalorder %s9, 0
    %p29 = por %p27, %p28
    %p30 = scmp.ne.s32.totalorder %s19, %s22
    %p31 = scmp.eq.s32.totalorder %s14, 7
    %p32 = por %p30, %p31
    %p33 = scmp.ne.s32.totalorder %s22, %s23
    %p34 = scmp.eq.s32.totalorder %s14, 0
    %p35 = por %p33, %p34
    %p36 = scmp.ne.s32.totalorder %s22, %s23
    %p37 = scmp.eq.s32.totalorder %s15, 7
    %p38 = por %p36, %p37
    %p40 = scmp.ne.s32.totalorder %s23, %s39
    %p41 = scmp.eq.s32.totalorder %s15, 0
    %p42 = por %p40, %p41
    %s43 = ssub.s32 %s9, %s16
    %p44 = scmp.eq.s32.totalorder %s43, 0
    %s46 = sadd.s32 %s45, 1
    %s47 = scalar_select %p44, %s45, %s46
    %p50 = pneg %p44
    %p51 = scmp.eq.s32.totalorder %s9, 7
    %p52 = por %p50, %p51
    %p53 = scmp.ne.s32.totalorder %s45, %s48
    %p54 = scmp.eq.s32.totalorder %s9, 0
    %p55 = por %p53, %p54
    %p56 = scmp.ne.s32.totalorder %s45, %s48
    %p57 = scmp.eq.s32.totalorder %s14, 7
    %p58 = por %p56, %p57
    %p59 = scmp.ne.s32.totalorder %s48, %s49
    %p60 = scmp.eq.s32.totalorder %s14, 0
    %p61 = por %p59, %p60
    %p62 = scmp.ne.s32.totalorder %s48, %s49
    %p63 = scmp.eq.s32.totalorder %s15, 7
    %p64 = por %p62, %p63
    %p66 = scmp.ne.s32.totalorder %s49, %s65
    %p67 = scmp.eq.s32.totalorder %s15, 0
    %p68 = por %p66, %p67
    %s70 = sadd.s32 %s69, 1
    %p73 = scmp.eq.s32.totalorder %s9, 7
    %p74 = scmp.ne.s32.totalorder %s69, %s71
    %p75 = scmp.eq.s32.totalorder %s9, 0
    %p76 = por %p74, %p75
    %p77 = scmp.ne.s32.totalorder %s69, %s71
    %p78 = scmp.eq.s32.totalorder %s14, 7
    %p79 = por %p77, %p78
    %p80 = scmp.ne.s32.totalorder %s71, %s72
    %p81 = scmp.eq.s32.totalorder %s14, 0
    %p82 = por %p80, %p81
    %p83 = scmp.ne.s32.totalorder %s71, %s72
    %p84 = scmp.eq.s32.totalorder %s15, 7
    %p85 = por %p83, %p84
    %p87 = scmp.ne.s32.totalorder %s72, %s86
    %p88 = scmp.eq.s32.totalorder %s15, 0
    %p89 = por %p87, %p88
    %s90 = ssub.s32 %s9, %s16
    %p91 = scmp.eq.s32.totalorder %s90, 0
    %s93 = sadd.s32 %s92, 1
    %s94 = scalar_select %p91, %s92, %s93
    %p97 = pneg %p91
    %p98 = scmp.eq.s32.totalorder %s9, 7
    %p99 = por %p97, %p98
    %p100 = scmp.ne.s32.totalorder %s92, %s95
    %p101 = scmp.eq.s32.totalorder %s9, 0
    %p102 = por %p100, %p101
    %p103 = scmp.ne.s32.totalorder %s92, %s95
    %p104 = scmp.eq.s32.totalorder %s14, 7
    %p105 = por %p103, %p104
    %p106 = scmp.ne.s32.totalorder %s95, %s96
    %p107 = scmp.eq.s32.totalorder %s14, 0
    %p108 = por %p106, %p107
    %p109 = scmp.ne.s32.totalorder %s95, %s96
    %p110 = scmp.eq.s32.totalorder %s15, 7
    %p111 = por %p109, %p110
    %p113 = scmp.ne.s32.totalorder %s96, %s112
    %p114 = scmp.eq.s32.totalorder %s15, 0
    %p115 = por %p113, %p114
    %p116 = scmp.le.s32.totalorder 1, %s9
    %p117 = scmp.lt.s32.totalorder %s9, 9
    %p118 = pnand %p116, %p117
    %p119 = pneg %p118
    // Predicated region
    $region9: #{vnet_forward.12} parent=5 // pred_check
      _
    $region10: #{vnet_forward.12} parent=5 // pred_check_branch
      %121 = sbr.rel (%p118) target = $region12
    $region11: #{vnet_forward.12} parent=5 // pred_region
      %s122 = ssub.s32 %s9, 1
      // Predicated region
      $region13: #{vnet_forward.12} parent=11 // pred_check
        %p123 = pneg %p82
      $region14: #{vnet_forward.12} parent=11 // pred_check_branch
        %125 = sbr.rel (%p123) target = $region16
      $region15: #{vnet_forward.12} parent=11 // pred_region
        _
      $region16: #{vnet_forward.12} parent=11 // pred_fallthru
        _
    $region12: #{vnet_forward.12} parent=5 // pred_fallthru
      _
    %p126 = scmp.lt.s32.totalorder %s9, 8
    // Predicated region
    $region17: #{vnet_forward.12} parent=5 // pred_check
      %p127 = pneg %p126
    $region18: #{vnet_forward.12} parent=5 // pred_check_branch
      %129 = sbr.rel (%p127) target = $region20
    $region19: #{vnet_forward.12} parent=5 // pred_region
      // Predicated region
      $region21: #{vnet_forward.12} parent=19 // pred_check
        %p130 = pneg %p29
      $region22: #{vnet_forward.12} parent=19 // pred_check_branch
        %132 = sbr.rel (%p130) target = $region24
      $region23: #{vnet_forward.12} parent=19 // pred_region
        %p133 = scmp.lt.s32.totalorder %s9, 7
        %s134 = scalar_select %p133, %s9, 7
        %s135 = smul.addr %s134, 16
        %s136 = smul.addr %s135, 4
        %s137 = scalar_lea.vmem %s0, %s136
      $region24: #{vnet_forward.12} parent=19 // pred_fallthru
        _
      // Predicated region
      $region25: #{vnet_forward.12} parent=19 // pred_check
        %p138 = pneg %p55
      $region26: #{vnet_forward.12} parent=19 // pred_check_branch
        %140 = sbr.rel (%p138) target = $region28
      $region27: #{vnet_forward.12} parent=19 // pred_region
        %p141 = scmp.lt.s32.totalorder %s9, 7
        %s142 = scalar_select %p141, %s9, 7
        %s143 = smul.addr %s142, 64
        %s144 = smul.addr %s143, 4
        %s145 = scalar_lea.vmem %s1, %s144
      $region28: #{vnet_forward.12} parent=19 // pred_fallthru
        _
    $region20: #{vnet_forward.12} parent=5 // pred_fallthru
      _
    %p146 = scmp.le.s32.totalorder 1, %s9
    %p147 = scmp.lt.s32.totalorder %s9, 9
    %p148 = pnand %p146, %p147
    %p149 = pneg %p148
    // Predicated region
    $region29: #{vnet_forward.12} parent=5 // pred_check
      _
    $region30: #{vnet_forward.12} parent=5 // pred_check_branch
      %151 = sbr.rel (%p148) target = $region32
    $region31: #{vnet_forward.12} parent=5 // pred_region
      %s152 = ssub.s32 %s9, 1
      %p153 = scmp.lt.s32.totalorder %s14, 7
      %s154 = scalar_select %p153, %s14, 7
      %s155 = smul.addr %s154, 16
      %s156 = smul.addr %s155, 4
      %s157 = scalar_lea.vmem %s0, %s156
      %p158 = pneg %p35
      %p159 = pneg %p32
      %p160 = scmp.lt.s32.totalorder %s14, 7
      %s161 = scalar_select %p160, %s14, 7
      %s162 = smul.addr %s161, 64
      %s163 = smul.addr %s162, 4
      %s164 = scalar_lea.vmem %s1, %s163
      %p165 = pneg %p61
      %p166 = pneg %p58
      %p167 = pneg %p82
      %p168 = pneg %p79
      %p169 = pneg %p108
      %p170 = pneg %p105
      %p171 = scmp.lt.s32.totalorder %s14, 7
      %s172 = scalar_select %p171, %s14, 7
      %s173 = smul.addr %s172, 4
      %s174 = smul.addr %s173, 4
      %s175 = scalar_lea.vmem %s3, %s174
      %p176 = scmp.lt.s32.totalorder %s14, 7
      %s177 = scalar_select %p176, %s14, 7
      %s178 = smul.addr %s177, 16
      %s179 = smul.addr %s178, 4
      %s180 = scalar_lea.vmem %s0, %s179
      %p181 = scmp.lt.s32.totalorder %s14, 7
      %s182 = scalar_select %p181, %s14, 7
      %s183 = smul.addr %s182, 64
      %s184 = smul.addr %s183, 4
      %s185 = scalar_lea.vmem %s1, %s184
      %p186 = scmp.lt.s32.totalorder %s14, 7
      %s187 = scalar_select %p186, %s14, 7
      %s188 = smul.addr %s187, 4
      %s189 = smul.addr %s188, 4
      %s190 = scalar_lea.vmem %s3, %s189
      %v192 = vld [vmem:[%s180] sm:$0xff]
      %v193 = vld [vmem:[%s180 + $0x8] sm:$0xff]
      %v194 = vld [vmem:[%s180 + $0x10] sm:$0xff]
      %v195 = vld [vmem:[%s180 + $0x18] sm:$0xff]
      %v196 = vld [vmem:[%s180 + $0x20] sm:$0xff]
      %v197 = vld [vmem:[%s180 + $0x28] sm:$0xff]
      %v198 = vld [vmem:[%s180 + $0x30] sm:$0xff]
      %v199 = vld [vmem:[%s180 + $0x38] sm:$0xff]
      %v200 = vld [vmem:[%s185] sm:$0xf]
      %v201 = vld [vmem:[%s185 + $0x4] sm:$0xf]
      %v202 = vld [vmem:[%s185 + $0x8] sm:$0xf]
      %v203 = vld [vmem:[%s185 + $0xc] sm:$0xf]
      %v204 = vld [vmem:[%s185 + $0x10] sm:$0xf]
      %v205 = vld [vmem:[%s185 + $0x14] sm:$0xf]
      %v206 = vld [vmem:[%s185 + $0x18] sm:$0xf]
      %v207 = vld [vmem:[%s185 + $0x1c] sm:$0xf]
      %v208 = vld [vmem:[%s185 + $0x20] sm:$0xf]
      %v209 = vld [vmem:[%s185 + $0x24] sm:$0xf]
      %v210 = vld [vmem:[%s185 + $0x28] sm:$0xf]
      %v211 = vld [vmem:[%s185 + $0x2c] sm:$0xf]
      %v212 = vld [vmem:[%s185 + $0x30] sm:$0xf]
      %v213 = vld [vmem:[%s185 + $0x34] sm:$0xf]
      %v214 = vld [vmem:[%s185 + $0x38] sm:$0xf]
      %v215 = vld [vmem:[%s185 + $0x3c] sm:$0xf]
      %v216 = vld [vmem:[%s185 + $0x40] sm:$0xf]
      %v217 = vld [vmem:[%s185 + $0x44] sm:$0xf]
      %v218 = vld [vmem:[%s185 + $0x48] sm:$0xf]
      %v219 = vld [vmem:[%s185 + $0x4c] sm:$0xf]
      %v220 = vld [vmem:[%s185 + $0x50] sm:$0xf]
      %v221 = vld [vmem:[%s185 + $0x54] sm:$0xf]
      %v222 = vld [vmem:[%s185 + $0x58] sm:$0xf]
      %v223 = vld [vmem:[%s185 + $0x5c] sm:$0xf]
      %v224 = vld [vmem:[%s185 + $0x60] sm:$0xf]
      %v225 = vld [vmem:[%s185 + $0x64] sm:$0xf]
      %v226 = vld [vmem:[%s185 + $0x68] sm:$0xf]
      %v227 = vld [vmem:[%s185 + $0x6c] sm:$0xf]
      %v228 = vld [vmem:[%s185 + $0x70] sm:$0xf]
      %v229 = vld [vmem:[%s185 + $0x74] sm:$0xf]
      %v230 = vld [vmem:[%s185 + $0x78] sm:$0xf]
      %v231 = vld [vmem:[%s185 + $0x7c] sm:$0xf]
      %v232 = vld [vmem:[%s185 + $0x80] sm:$0xf]
      %v233 = vld [vmem:[%s185 + $0x84] sm:$0xf]
      %v234 = vld [vmem:[%s185 + $0x88] sm:$0xf]
      %v235 = vld [vmem:[%s185 + $0x8c] sm:$0xf]
      %v236 = vld [vmem:[%s185 + $0x90] sm:$0xf]
      %v237 = vld [vmem:[%s185 + $0x94] sm:$0xf]
      %v238 = vld [vmem:[%s185 + $0x98] sm:$0xf]
      %v239 = vld [vmem:[%s185 + $0x9c] sm:$0xf]
      %v240 = vld [vmem:[%s185 + $0xa0] sm:$0xf]
      %v241 = vld [vmem:[%s185 + $0xa4] sm:$0xf]
      %v242 = vld [vmem:[%s185 + $0xa8] sm:$0xf]
      %v243 = vld [vmem:[%s185 + $0xac] sm:$0xf]
      %v244 = vld [vmem:[%s185 + $0xb0] sm:$0xf]
      %v245 = vld [vmem:[%s185 + $0xb4] sm:$0xf]
      %v246 = vld [vmem:[%s185 + $0xb8] sm:$0xf]
      %v247 = vld [vmem:[%s185 + $0xbc] sm:$0xf]
      %v248 = vld [vmem:[%s185 + $0xc0] sm:$0xf]
      %v249 = vld [vmem:[%s185 + $0xc4] sm:$0xf]
      %v250 = vld [vmem:[%s185 + $0xc8] sm:$0xf]
      %v251 = vld [vmem:[%s185 + $0xcc] sm:$0xf]
      %v252 = vld [vmem:[%s185 + $0xd0] sm:$0xf]
      %v253 = vld [vmem:[%s185 + $0xd4] sm:$0xf]
      %v254 = vld [vmem:[%s185 + $0xd8] sm:$0xf]
      %v255 = vld [vmem:[%s185 + $0xdc] sm:$0xf]
      %v256 = vld [vmem:[%s185 + $0xe0] sm:$0xf]
      %v257 = vld [vmem:[%s185 + $0xe4] sm:$0xf]
      %v258 = vld [vmem:[%s185 + $0xe8] sm:$0xf]
      %v259 = vld [vmem:[%s185 + $0xec] sm:$0xf]
      %v260 = vld [vmem:[%s185 + $0xf0] sm:$0xf]
      %v261 = vld [vmem:[%s185 + $0xf4] sm:$0xf]
      %v262 = vld [vmem:[%s185 + $0xf8] sm:$0xf]
      %v263 = vld [vmem:[%s185 + $0xfc] sm:$0xf]
      %v264 = vld [vmem:[%s2] sm:$0xff]
      %v265 = vld [vmem:[%s2 + $0x8] sm:$0xff]
      %v266 = vld [vmem:[%s2 + $0x10] sm:$0xff]
      %v267 = vld [vmem:[%s2 + $0x18] sm:$0xff]
      %269 = vset.pattern.permute.xlu0 0
      %270 = vperm.xlu0 %269, %v264
      %v271 = vpop.permute.xlu0 %270
      %274 = vset.pattern.permute.xlu0 0
      %275 = vperm.xlu0 %274, %v265
      %v276 = vpop.permute.xlu0 %275
      %279 = vset.pattern.permute.xlu0 0
      %280 = vperm.xlu0 %279, %v266
      %v281 = vpop.permute.xlu0 %280
      %284 = vset.pattern.permute.xlu0 0
      %285 = vperm.xlu0 %284, %v267
      %v286 = vpop.permute.xlu0 %285
      %v296 = vunpack.c.l.b16 %v192
      %v297 = vunpack.c.h.b16 %v192
      %v298 = vunpack.c.l.b16 %v193
      %v299 = vunpack.c.h.b16 %v193
      %v300 = vunpack.c.l.b16 %v194
      %v301 = vunpack.c.h.b16 %v194
      %v302 = vunpack.c.l.b16 %v195
      %v303 = vunpack.c.h.b16 %v195
      %v304 = vunpack.c.l.b16 %v196
      %v305 = vunpack.c.h.b16 %v196
      %v306 = vunpack.c.l.b16 %v197
      %v307 = vunpack.c.h.b16 %v197
      %v308 = vunpack.c.l.b16 %v198
      %v309 = vunpack.c.h.b16 %v198
      %v310 = vunpack.c.l.b16 %v199
      %v311 = vunpack.c.h.b16 %v199
      %v312 = vpack.c.b16 %v300, %v296
      %v313 = vpack.c.b16 %v301, %v297
      %v314 = vpack.c.b16 %v302, %v298
      %v315 = vpack.c.b16 %v303, %v299
      %v316 = vpack.c.b16 %v308, %v304
      %v317 = vpack.c.b16 %v309, %v305
      %v318 = vpack.c.b16 %v310, %v306
      %v319 = vpack.c.b16 %v311, %v307
      %v392 = vunpack.c.l.b16 %v200
      %v393 = vunpack.c.l.b16 %v201
      %v394 = vunpack.c.l.b16 %v202
      %v395 = vunpack.c.l.b16 %v203
      %v396 = vunpack.c.l.b16 %v204
      %v397 = vunpack.c.l.b16 %v205
      %v398 = vunpack.c.l.b16 %v206
      %v399 = vunpack.c.l.b16 %v207
      %v400 = vunpack.c.l.b16 %v208
      %v401 = vunpack.c.l.b16 %v209
      %v402 = vunpack.c.l.b16 %v210
      %v403 = vunpack.c.l.b16 %v211
      %v404 = vunpack.c.l.b16 %v212
      %v405 = vunpack.c.l.b16 %v213
      %v406 = vunpack.c.l.b16 %v214
      %v407 = vunpack.c.l.b16 %v215
      %v408 = vunpack.c.l.b16 %v216
      %v409 = vunpack.c.l.b16 %v217
      %v410 = vunpack.c.l.b16 %v218
      %v411 = vunpack.c.l.b16 %v219
      %v412 = vunpack.c.l.b16 %v220
      %v413 = vunpack.c.l.b16 %v221
      %v414 = vunpack.c.l.b16 %v222
      %v415 = vunpack.c.l.b16 %v223
      %v416 = vunpack.c.l.b16 %v224
      %v417 = vunpack.c.l.b16 %v225
      %v418 = vunpack.c.l.b16 %v226
      %v419 = vunpack.c.l.b16 %v227
      %v420 = vunpack.c.l.b16 %v228
      %v421 = vunpack.c.l.b16 %v229
      %v422 = vunpack.c.l.b16 %v230
      %v423 = vunpack.c.l.b16 %v231
      %v424 = vunpack.c.l.b16 %v232
      %v425 = vunpack.c.l.b16 %v233
      %v426 = vunpack.c.l.b16 %v234
      %v427 = vunpack.c.l.b16 %v235
      %v428 = vunpack.c.l.b16 %v236
      %v429 = vunpack.c.l.b16 %v237
      %v430 = vunpack.c.l.b16 %v238
      %v431 = vunpack.c.l.b16 %v239
      %v432 = vunpack.c.l.b16 %v240
      %v433 = vunpack.c.l.b16 %v241
      %v434 = vunpack.c.l.b16 %v242
      %v435 = vunpack.c.l.b16 %v243
      %v436 = vunpack.c.l.b16 %v244
      %v437 = vunpack.c.l.b16 %v245
      %v438 = vunpack.c.l.b16 %v246
      %v439 = vunpack.c.l.b16 %v247
      %v440 = vunpack.c.l.b16 %v248
      %v441 = vunpack.c.l.b16 %v249
      %v442 = vunpack.c.l.b16 %v250
      %v443 = vunpack.c.l.b16 %v251
      %v444 = vunpack.c.l.b16 %v252
      %v445 = vunpack.c.l.b16 %v253
      %v446 = vunpack.c.l.b16 %v254
      %v447 = vunpack.c.l.b16 %v255
      %v448 = vunpack.c.l.b16 %v256
      %v449 = vunpack.c.l.b16 %v257
      %v450 = vunpack.c.l.b16 %v258
      %v451 = vunpack.c.l.b16 %v259
      %v452 = vunpack.c.l.b16 %v260
      %v453 = vunpack.c.l.b16 %v261
      %v454 = vunpack.c.l.b16 %v262
      %v455 = vunpack.c.l.b16 %v263
      %v456 = vpack.c.b16 %v393, %v392
      %v457 = vpack.c.b16 %v395, %v394
      %v458 = vpack.c.b16 %v397, %v396
      %v459 = vpack.c.b16 %v399, %v398
      %v460 = vpack.c.b16 %v401, %v400
      %v461 = vpack.c.b16 %v403, %v402
      %v462 = vpack.c.b16 %v405, %v404
      %v463 = vpack.c.b16 %v407, %v406
      %v464 = vpack.c.b16 %v409, %v408
      %v465 = vpack.c.b16 %v411, %v410
      %v466 = vpack.c.b16 %v413, %v412
      %v467 = vpack.c.b16 %v415, %v414
      %v468 = vpack.c.b16 %v417, %v416
      %v469 = vpack.c.b16 %v419, %v418
      %v470 = vpack.c.b16 %v421, %v420
      %v471 = vpack.c.b16 %v423, %v422
      %v472 = vpack.c.b16 %v425, %v424
      %v473 = vpack.c.b16 %v427, %v426
      %v474 = vpack.c.b16 %v429, %v428
      %v475 = vpack.c.b16 %v431, %v430
      %v476 = vpack.c.b16 %v433, %v432
      %v477 = vpack.c.b16 %v435, %v434
      %v478 = vpack.c.b16 %v437, %v436
      %v479 = vpack.c.b16 %v439, %v438
      %v480 = vpack.c.b16 %v441, %v440
      %v481 = vpack.c.b16 %v443, %v442
      %v482 = vpack.c.b16 %v445, %v444
      %v483 = vpack.c.b16 %v447, %v446
      %v484 = vpack.c.b16 %v449, %v448
      %v485 = vpack.c.b16 %v451, %v450
      %v486 = vpack.c.b16 %v453, %v452
      %v487 = vpack.c.b16 %v455, %v454
      %520 = vmatprep.subr.bf16.mxu0 0
      %521 = vmatpush1.bf16.msra.mxu0 %v463
      %522 = vmatprep.subr.bf16.mxu0 0
      %523 = vmatpush1.bf16.msra.mxu0 %v462
      %524 = vmatprep.subr.bf16.mxu0 0
      %525 = vmatpush1.bf16.msra.mxu0 %v461
      %526 = vmatprep.subr.bf16.mxu0 0
      %527 = vmatpush1.bf16.msra.mxu0 %v460
      %528 = vmatprep.subr.bf16.mxu0 0
      %529 = vmatpush1.bf16.msra.mxu0 %v459
      %530 = vmatprep.subr.bf16.mxu0 0
      %531 = vmatpush1.bf16.msra.mxu0 %v458
      %532 = vmatprep.subr.bf16.mxu0 0
      %533 = vmatpush1.bf16.msra.mxu0 %v457
      %534 = vmatprep.subr.bf16.mxu0 0
      %535 = vmatpush1.bf16.msra.mxu0 %v456
      %536 = vmatprep.subr.bf16.mxu0 0
      %537 = vmatpush2.bf16.msra.mxu0 %v471
      %538 = vmatprep.subr.bf16.mxu0 0
      %539 = vmatpush2.bf16.msra.mxu0 %v470
      %540 = vmatprep.subr.bf16.mxu0 0
      %541 = vmatpush2.bf16.msra.mxu0 %v469
      %542 = vmatprep.subr.bf16.mxu0 0
      %543 = vmatpush2.bf16.msra.mxu0 %v468
      %544 = vmatprep.subr.bf16.mxu0 0
      %545 = vmatpush2.bf16.msra.mxu0 %v467
      %546 = vmatprep.subr.bf16.mxu0 0
      %547 = vmatpush2.bf16.msra.mxu0 %v466
      %548 = vmatprep.subr.bf16.mxu0 0
      %549 = vmatpush2.bf16.msra.mxu0 %v465
      %550 = vmatprep.subr.bf16.mxu0 0
      %551 = vmatpush2.bf16.msra.mxu0 %v464
      %552 = vmatprep.mubr.bf16.mxu0 %v313
      %553 = vmatmul.mubr.bf16.gmra.mxu0 %v312
      %v554 = vpop.f32.mrf.mxu0
      %v555 = vadd.f32 %v271, %v554
      %v556 = vpop.f32.mrf.mxu0
      %v557 = vpop.f32.mrf.mxu0
      %v558 = vadd.f32 %v276, %v557
      %v559 = vpop.f32.mrf.mxu0
      %560 = vmatprep.mubr.bf16.mxu0 %v317
      %561 = vmatmul.mubr.bf16.gmra.mxu0 %v316
      %v562 = vpop.f32.mrf.mxu0
      %v563 = vadd.f32 %v281, %v562
      %v564 = vpop.f32.mrf.mxu0
      %v565 = vpop.f32.mrf.mxu0
      %v566 = vadd.f32 %v286, %v565
      %v567 = vpop.f32.mrf.mxu0
      %568 = vdwg.mxu0
      %569 = vmatprep.subr.bf16.mxu0 0
      %570 = vmatpush1.bf16.msra.mxu0 %v479
      %571 = vmatprep.subr.bf16.mxu0 0
      %572 = vmatpush1.bf16.msra.mxu0 %v478
      %573 = vmatprep.subr.bf16.mxu0 0
      %574 = vmatpush1.bf16.msra.mxu0 %v477
      %575 = vmatprep.subr.bf16.mxu0 0
      %576 = vmatpush1.bf16.msra.mxu0 %v476
      %577 = vmatprep.subr.bf16.mxu0 0
      %578 = vmatpush1.bf16.msra.mxu0 %v475
      %579 = vmatprep.subr.bf16.mxu0 0
      %580 = vmatpush1.bf16.msra.mxu0 %v474
      %581 = vmatprep.subr.bf16.mxu0 0
      %582 = vmatpush1.bf16.msra.mxu0 %v473
      %583 = vmatprep.subr.bf16.mxu0 0
      %584 = vmatpush1.bf16.msra.mxu0 %v472
      %585 = vmatprep.subr.bf16.mxu0 0
      %586 = vmatpush2.bf16.msra.mxu0 %v487
      %587 = vmatprep.subr.bf16.mxu0 0
      %588 = vmatpush2.bf16.msra.mxu0 %v486
      %589 = vmatprep.subr.bf16.mxu0 0
      %590 = vmatpush2.bf16.msra.mxu0 %v485
      %591 = vmatprep.subr.bf16.mxu0 0
      %592 = vmatpush2.bf16.msra.mxu0 %v484
      %593 = vmatprep.subr.bf16.mxu0 0
      %594 = vmatpush2.bf16.msra.mxu0 %v483
      %595 = vmatprep.subr.bf16.mxu0 0
      %596 = vmatpush2.bf16.msra.mxu0 %v482
      %597 = vmatprep.subr.bf16.mxu0 0
      %598 = vmatpush2.bf16.msra.mxu0 %v481
      %599 = vmatprep.subr.bf16.mxu0 0
      %600 = vmatpush2.bf16.msra.mxu0 %v480
      %601 = vmatprep.mubr.bf16.mxu0 %v315
      %602 = vmatmul.mubr.bf16.gmra.mxu0 %v314
      %v603 = vpop.f32.mrf.mxu0
      %v604 = vadd.f32 %v555, %v603
      %v605 = vpop.f32.mrf.mxu0
      %v606 = vpop.f32.mrf.mxu0
      %v607 = vadd.f32 %v558, %v606
      %v608 = vpop.f32.mrf.mxu0
      %609 = vmatprep.mubr.bf16.mxu0 %v319
      %610 = vmatmul.mubr.bf16.gmra.mxu0 %v318
      %v611 = vpop.f32.mrf.mxu0
      %v612 = vadd.f32 %v563, %v611
      %v613 = vpop.f32.mrf.mxu0
      %v614 = vpop.f32.mrf.mxu0
      %v615 = vadd.f32 %v566, %v614
      %v616 = vpop.f32.mrf.mxu0
      %617 = vdwg.mxu0
      %v618 = vmax.f32 %v604, 0.0
      %v619 = vmax.f32 %v607, 0.0
      %v620 = vmax.f32 %v612, 0.0
      %v621 = vmax.f32 %v615, 0.0
      %v622 = vpack.c.bf16 %v619, %v618
      %v623 = vpack.c.bf16 %v621, %v620
      %v626 = vunpack.c.l.b16 %v622
      %v627 = vunpack.c.h.b16 %v622
      %v628 = vunpack.c.l.b16 %v623
      %v629 = vunpack.c.h.b16 %v623
      %v630 = vpack.c.b16 %v626, %v626
      %v631 = vpack.c.b16 %v627, %v627
      %v632 = vpack.c.b16 %v628, %v628
      %v633 = vpack.c.b16 %v629, %v629
      %638 = vst [vmem:[%s190] sm:$0xf] %v630
      %639 = vst [vmem:[%s190 + $0x4] sm:$0xf] %v631
      %640 = vst [vmem:[%s190 + $0x8] sm:$0xf] %v632
      %641 = vst [vmem:[%s190 + $0xc] sm:$0xf] %v633
      %p642 = scmp.lt.s32.totalorder %s14, 7
      %s643 = scalar_select %p642, %s14, 7
      %s644 = smul.addr %s643, 4
      %s645 = smul.addr %s644, 4
      %s646 = scalar_lea.vmem %s3, %s645
      // Predicated region
      $region33: #{vnet_forward.12} parent=31 // pred_check
        %p647 = pneg %p105
      $region34: #{vnet_forward.12} parent=31 // pred_check_branch
        %649 = sbr.rel (%p647) target = $region36
      $region35: #{vnet_forward.12} parent=31 // pred_region
        _
      $region36: #{vnet_forward.12} parent=31 // pred_fallthru
        _
    $region32: #{vnet_forward.12} parent=5 // pred_fallthru
      _
    %p650 = scmp.le.s32.totalorder 2, %s9
    // Predicated region
    $region37: #{vnet_forward.12} parent=5 // pred_check
      %p651 = pneg %p650
    $region38: #{vnet_forward.12} parent=5 // pred_check_branch
      %653 = sbr.rel (%p651) target = $region40
    $region39: #{vnet_forward.12} parent=5 // pred_region
      %s654 = ssub.s32 %s9, 2
      // Predicated region
      $region41: #{vnet_forward.12} parent=39 // pred_check
        %p655 = pneg %p111
      $region42: #{vnet_forward.12} parent=39 // pred_check_branch
        %657 = sbr.rel (%p655) target = $region44
      $region43: #{vnet_forward.12} parent=39 // pred_region
        %p658 = scmp.lt.s32.totalorder %s15, 7
        %s659 = scalar_select %p658, %s15, 7
        %s660 = smul.addr %s659, 4
        %s661 = smul.addr %s660, 4
        %s662 = scalar_lea.vmem %s3, %s661
      $region44: #{vnet_forward.12} parent=39 // pred_fallthru
        _
    $region40: #{vnet_forward.12} parent=5 // pred_fallthru
      _
  $region6: #{vnet_forward.12} parent=0 // loop_footer
    %s13 = sadd.s32 1, %s9
  $region7: #{vnet_forward.12} parent=0 // loop_footer_branch
    %8 = sbr.rel target = $region3
  $region8: #{vnet_forward.12} parent=0 // loop_exit
    _

// kernel: vnet_forward.13
$region0: #{vnet_forward.13}
  #allocation0 [shape = 'u32[]', space=smem, size = 0x4, offset = 0x4, fixed_abs, tag = 'smem constant byte address 0x4 - core index']
  #allocation1 [shape = 'u32[144,128]{1,0:T(1,128)}', space=vmem, size = 0x12000, scoped, tag = 'internal scratch']
  %s0 = inlined_call_operand.vmem [shape: bf16[8,16,256], index: 0, kind: input, shape index: {}]
  %s1 = inlined_call_operand.vmem [shape: bf16[8,256,1024], index: 1, kind: input, shape index: {}]
  %s2 = inlined_call_operand.vmem [shape: f32[16,1], index: 2, kind: input, shape index: {}]
  %s3 = inlined_call_operand.vmem [shape: f32[8,16,1024], index: 3, kind: output, shape index: {}]
  %s4 = sld [smem:[#allocation0]]
  $region45: #{vnet_forward.13} parent=0
    _
  %s6 = ssub.s32 1, %s4
  %s7 = scalar_select 0, %s6, %s4
  loop: start=0, step=1, limit=10
  $region2: #{vnet_forward.13} parent=0 // loop_pre_header
    _
  $region3: #{vnet_forward.13} parent=0 // loop_header
    %s9 = sphi 0, %s13
    %p10 = scmp.ge.s32.totalorder %s9, 10
    %s19 = sphi 0, %s21
    %s22 = sphi 0, %s19
    %s23 = sphi 0, %s22
    %s39 = sphi 0, %s23
    %s45 = sphi 0, %s47
    %s48 = sphi 0, %s45
    %s49 = sphi 0, %s48
    %s65 = sphi 0, %s49
    %s69 = sphi 0, %s69
    %s71 = sphi 0, %s69
    %s72 = sphi 0, %s71
    %s86 = sphi 0, %s72
    %s92 = sphi 0, %s94
    %s95 = sphi 0, %s92
    %s96 = sphi 0, %s95
    %s112 = sphi 0, %s96
  $region4: #{vnet_forward.13} parent=0 // loop_header_branch
    %12 = sbr.rel (%p10) target = $region8
  $region5: #{vnet_forward.13} parent=0 // loop_body
    %s14 = ssub.s32 %s9, 1
    %s15 = ssub.s32 %s9, 2
    %s16 = sadd.s32 %s9, 1
    %s17 = ssub.s32 %s9, %s16
    %p18 = scmp.eq.s32.totalorder %s17, 0
    %s20 = sadd.s32 %s19, 1
    %s21 = scalar_select %p18, %s19, %s20
    %p24 = pneg %p18
    %p25 = scmp.eq.s32.totalorder %s9, 7
    %p26 = por %p24, %p25
    %p27 = scmp.ne.s32.totalorder %s19, %s22
    %p28 = scmp.eq.s32.totalorder %s9, 0
    %p29 = por %p27, %p28
    %p30 = scmp.ne.s32.totalorder %s19, %s22
    %p31 = scmp.eq.s32.totalorder %s14, 7
    %p32 = por %p30, %p31
    %p33 = scmp.ne.s32.totalorder %s22, %s23
    %p34 = scmp.eq.s32.totalorder %s14, 0
    %p35 = por %p33, %p34
    %p36 = scmp.ne.s32.totalorder %s22, %s23
    %p37 = scmp.eq.s32.totalorder %s15, 7
    %p38 = por %p36, %p37
    %p40 = scmp.ne.s32.totalorder %s23, %s39
    %p41 = scmp.eq.s32.totalorder %s15, 0
    %p42 = por %p40, %p41
    %s43 = ssub.s32 %s9, %s16
    %p44 = scmp.eq.s32.totalorder %s43, 0
    %s46 = sadd.s32 %s45, 1
    %s47 = scalar_select %p44, %s45, %s46
    %p50 = pneg %p44
    %p51 = scmp.eq.s32.totalorder %s9, 7
    %p52 = por %p50, %p51
    %p53 = scmp.ne.s32.totalorder %s45, %s48
    %p54 = scmp.eq.s32.totalorder %s9, 0
    %p55 = por %p53, %p54
    %p56 = scmp.ne.s32.totalorder %s45, %s48
    %p57 = scmp.eq.s32.totalorder %s14, 7
    %p58 = por %p56, %p57
    %p59 = scmp.ne.s32.totalorder %s48, %s49
    %p60 = scmp.eq.s32.totalorder %s14, 0
    %p61 = por %p59, %p60
    %p62 = scmp.ne.s32.totalorder %s48, %s49
    %p63 = scmp.eq.s32.totalorder %s15, 7
    %p64 = por %p62, %p63
    %p66 = scmp.ne.s32.totalorder %s49, %s65
    %p67 = scmp.eq.s32.totalorder %s15, 0
    %p68 = por %p66, %p67
    %s70 = sadd.s32 %s69, 1
    %p73 = scmp.eq.s32.totalorder %s9, 7
    %p74 = scmp.ne.s32.totalorder %s69, %s71
    %p75 = scmp.eq.s32.totalorder %s9, 0
    %p76 = por %p74, %p75
    %p77 = scmp.ne.s32.totalorder %s69, %s71
    %p78 = scmp.eq.s32.totalorder %s14, 7
    %p79 = por %p77, %p78
    %p80 = scmp.ne.s32.totalorder %s71, %s72
    %p81 = scmp.eq.s32.totalorder %s14, 0
    %p82 = por %p80, %p81
    %p83 = scmp.ne.s32.totalorder %s71, %s72
    %p84 = scmp.eq.s32.totalorder %s15, 7
    %p85 = por %p83, %p84
    %p87 = scmp.ne.s32.totalorder %s72, %s86
    %p88 = scmp.eq.s32.totalorder %s15, 0
    %p89 = por %p87, %p88
    %s90 = ssub.s32 %s9, %s16
    %p91 = scmp.eq.s32.totalorder %s90, 0
    %s93 = sadd.s32 %s92, 1
    %s94 = scalar_select %p91, %s92, %s93
    %p97 = pneg %p91
    %p98 = scmp.eq.s32.totalorder %s9, 7
    %p99 = por %p97, %p98
    %p100 = scmp.ne.s32.totalorder %s92, %s95
    %p101 = scmp.eq.s32.totalorder %s9, 0
    %p102 = por %p100, %p101
    %p103 = scmp.ne.s32.totalorder %s92, %s95
    %p104 = scmp.eq.s32.totalorder %s14, 7
    %p105 = por %p103, %p104
    %p106 = scmp.ne.s32.totalorder %s95, %s96
    %p107 = scmp.eq.s32.totalorder %s14, 0
    %p108 = por %p106, %p107
    %p109 = scmp.ne.s32.totalorder %s95, %s96
    %p110 = scmp.eq.s32.totalorder %s15, 7
    %p111 = por %p109, %p110
    %p113 = scmp.ne.s32.totalorder %s96, %s112
    %p114 = scmp.eq.s32.totalorder %s15, 0
    %p115 = por %p113, %p114
    %p116 = scmp.le.s32.totalorder 1, %s9
    %p117 = scmp.lt.s32.totalorder %s9, 9
    %p118 = pnand %p116, %p117
    %p119 = pneg %p118
    // Predicated region
    $region9: #{vnet_forward.13} parent=5 // pred_check
      _
    $region10: #{vnet_forward.13} parent=5 // pred_check_branch
      %121 = sbr.rel (%p118) target = $region12
    $region11: #{vnet_forward.13} parent=5 // pred_region
      %s122 = ssub.s32 %s9, 1
      // Predicated region
      $region13: #{vnet_forward.13} parent=11 // pred_check
        %p123 = pneg %p82
      $region14: #{vnet_forward.13} parent=11 // pred_check_branch
        %125 = sbr.rel (%p123) target = $region16
      $region15: #{vnet_forward.13} parent=11 // pred_region
        _
      $region16: #{vnet_forward.13} parent=11 // pred_fallthru
        _
    $region12: #{vnet_forward.13} parent=5 // pred_fallthru
      _
    %p126 = scmp.lt.s32.totalorder %s9, 8
    // Predicated region
    $region17: #{vnet_forward.13} parent=5 // pred_check
      %p127 = pneg %p126
    $region18: #{vnet_forward.13} parent=5 // pred_check_branch
      %129 = sbr.rel (%p127) target = $region20
    $region19: #{vnet_forward.13} parent=5 // pred_region
      // Predicated region
      $region21: #{vnet_forward.13} parent=19 // pred_check
        %p130 = pneg %p29
      $region22: #{vnet_forward.13} parent=19 // pred_check_branch
        %132 = sbr.rel (%p130) target = $region24
      $region23: #{vnet_forward.13} parent=19 // pred_region
        %p133 = scmp.lt.s32.totalorder %s9, 7
        %s134 = scalar_select %p133, %s9, 7
        %s135 = smul.addr %s134, 4
        %s136 = smul.addr %s135, 4
        %s137 = scalar_lea.vmem %s0, %s136
      $region24: #{vnet_forward.13} parent=19 // pred_fallthru
        _
      // Predicated region
      $region25: #{vnet_forward.13} parent=19 // pred_check
        %p138 = pneg %p55
      $region26: #{vnet_forward.13} parent=19 // pred_check_branch
        %140 = sbr.rel (%p138) target = $region28
      $region27: #{vnet_forward.13} parent=19 // pred_region
        %p141 = scmp.lt.s32.totalorder %s9, 7
        %s142 = scalar_select %p141, %s9, 7
        %s143 = smul.addr %s142, 256
        %s144 = smul.addr %s143, 4
        %s145 = scalar_lea.vmem %s1, %s144
      $region28: #{vnet_forward.13} parent=19 // pred_fallthru
        _
    $region20: #{vnet_forward.13} parent=5 // pred_fallthru
      _
    %p146 = scmp.le.s32.totalorder 1, %s9
    %p147 = scmp.lt.s32.totalorder %s9, 9
    %p148 = pnand %p146, %p147
    %p149 = pneg %p148
    // Predicated region
    $region29: #{vnet_forward.13} parent=5 // pred_check
      _
    $region30: #{vnet_forward.13} parent=5 // pred_check_branch
      %151 = sbr.rel (%p148) target = $region32
    $region31: #{vnet_forward.13} parent=5 // pred_region
      %s152 = ssub.s32 %s9, 1
      %p153 = scmp.lt.s32.totalorder %s14, 7
      %s154 = scalar_select %p153, %s14, 7
      %s155 = smul.addr %s154, 4
      %s156 = smul.addr %s155, 4
      %s157 = scalar_lea.vmem %s0, %s156
      %p158 = pneg %p35
      %p159 = pneg %p32
      %p160 = scmp.lt.s32.totalorder %s14, 7
      %s161 = scalar_select %p160, %s14, 7
      %s162 = smul.addr %s161, 256
      %s163 = smul.addr %s162, 4
      %s164 = scalar_lea.vmem %s1, %s163
      %p165 = pneg %p61
      %p166 = pneg %p58
      %p167 = pneg %p82
      %p168 = pneg %p79
      %p169 = pneg %p108
      %p170 = pneg %p105
      %p171 = scmp.lt.s32.totalorder %s14, 7
      %s172 = scalar_select %p171, %s14, 7
      %s173 = smul.addr %s172, 16
      %s174 = smul.addr %s173, 8
      %s175 = scalar_lea.vmem %s3, %s174
      %p176 = scmp.lt.s32.totalorder %s14, 7
      %s177 = scalar_select %p176, %s14, 7
      %s178 = smul.addr %s177, 4
      %s179 = smul.addr %s178, 4
      %s180 = scalar_lea.vmem %s0, %s179
      %p181 = scmp.lt.s32.totalorder %s14, 7
      %s182 = scalar_select %p181, %s14, 7
      %s183 = smul.addr %s182, 256
      %s184 = smul.addr %s183, 4
      %s185 = scalar_lea.vmem %s1, %s184
      %p186 = scmp.lt.s32.totalorder %s14, 7
      %s187 = scalar_select %p186, %s14, 7
      %s188 = smul.addr %s187, 16
      %s189 = smul.addr %s188, 8
      %s190 = scalar_lea.vmem %s3, %s189
      %v191 = vld [vmem:[%s180] sm:$0xff]
      %v192 = vld [vmem:[%s180 + $0x8] sm:$0xff]
      %v193 = vld [vmem:[%s185] sm:$0xff]
      %v194 = vld [vmem:[%s185 + $0x8] sm:$0xff]
      %v195 = vld [vmem:[%s185 + $0x10] sm:$0xff]
      %v196 = vld [vmem:[%s185 + $0x18] sm:$0xff]
      %v197 = vld [vmem:[%s185 + $0x20] sm:$0xff]
      %v198 = vld [vmem:[%s185 + $0x28] sm:$0xff]
      %v199 = vld [vmem:[%s185 + $0x30] sm:$0xff]
      %v200 = vld [vmem:[%s185 + $0x38] sm:$0xff]
      %v201 = vld [vmem:[%s185 + $0x40] sm:$0xff]
      %v202 = vld [vmem:[%s185 + $0x48] sm:$0xff]
      %v203 = vld [vmem:[%s185 + $0x50] sm:$0xff]
      %v204 = vld [vmem:[%s185 + $0x58] sm:$0xff]
      %v205 = vld [vmem:[%s185 + $0x60] sm:$0xff]
      %v206 = vld [vmem:[%s185 + $0x68] sm:$0xff]
      %v207 = vld [vmem:[%s185 + $0x70] sm:$0xff]
      %v208 = vld [vmem:[%s185 + $0x78] sm:$0xff]
      %v209 = vld [vmem:[%s185 + $0x80] sm:$0xff]
      %v210 = vld [vmem:[%s185 + $0x88] sm:$0xff]
      %v211 = vld [vmem:[%s185 + $0x90] sm:$0xff]
      %v212 = vld [vmem:[%s185 + $0x98] sm:$0xff]
      %v213 = vld [vmem:[%s185 + $0xa0] sm:$0xff]
      %v214 = vld [vmem:[%s185 + $0xa8] sm:$0xff]
      %v215 = vld [vmem:[%s185 + $0xb0] sm:$0xff]
      %v216 = vld [vmem:[%s185 + $0xb8] sm:$0xff]
      %v217 = vld [vmem:[%s185 + $0xc0] sm:$0xff]
      %v218 = vld [vmem:[%s185 + $0xc8] sm:$0xff]
      %v219 = vld [vmem:[%s185 + $0xd0] sm:$0xff]
      %v220 = vld [vmem:[%s185 + $0xd8] sm:$0xff]
      %v221 = vld [vmem:[%s185 + $0xe0] sm:$0xff]
      %v222 = vld [vmem:[%s185 + $0xe8] sm:$0xff]
      %v223 = vld [vmem:[%s185 + $0xf0] sm:$0xff]
      %v224 = vld [vmem:[%s185 + $0xf8] sm:$0xff]
      %v225 = vld [vmem:[%s185 + $0x100] sm:$0xff]
      %v226 = vld [vmem:[%s185 + $0x108] sm:$0xff]
      %v227 = vld [vmem:[%s185 + $0x110] sm:$0xff]
      %v228 = vld [vmem:[%s185 + $0x118] sm:$0xff]
      %v229 = vld [vmem:[%s185 + $0x120] sm:$0xff]
      %v230 = vld [vmem:[%s185 + $0x128] sm:$0xff]
      %v231 = vld [vmem:[%s185 + $0x130] sm:$0xff]
      %v232 = vld [vmem:[%s185 + $0x138] sm:$0xff]
      %v233 = vld [vmem:[%s185 + $0x140] sm:$0xff]
      %v234 = vld [vmem:[%s185 + $0x148] sm:$0xff]
      %v235 = vld [vmem:[%s185 + $0x150] sm:$0xff]
      %v236 = vld [vmem:[%s185 + $0x158] sm:$0xff]
      %v237 = vld [vmem:[%s185 + $0x160] sm:$0xff]
      %v238 = vld [vmem:[%s185 + $0x168] sm:$0xff]
      %v239 = vld [vmem:[%s185 + $0x170] sm:$0xff]
      %v240 = vld [vmem:[%s185 + $0x178] sm:$0xff]
      %v241 = vld [vmem:[%s185 + $0x180] sm:$0xff]
      %v242 = vld [vmem:[%s185 + $0x188] sm:$0xff]
      %v243 = vld [vmem:[%s185 + $0x190] sm:$0xff]
      %v244 = vld [vmem:[%s185 + $0x198] sm:$0xff]
      %v245 = vld [vmem:[%s185 + $0x1a0] sm:$0xff]
      %v246 = vld [vmem:[%s185 + $0x1a8] sm:$0xff]
      %v247 = vld [vmem:[%s185 + $0x1b0] sm:$0xff]
      %v248 = vld [vmem:[%s185 + $0x1b8] sm:$0xff]
      %v249 = vld [vmem:[%s185 + $0x1c0] sm:$0xff]
      %v250 = vld [vmem:[%s185 + $0x1c8] sm:$0xff]
      %v251 = vld [vmem:[%s185 + $0x1d0] sm:$0xff]
      %v252 = vld [vmem:[%s185 + $0x1d8] sm:$0xff]
      %v253 = vld [vmem:[%s185 + $0x1e0] sm:$0xff]
      %v254 = vld [vmem:[%s185 + $0x1e8] sm:$0xff]
      %v255 = vld [vmem:[%s185 + $0x1f0] sm:$0xff]
      %v256 = vld [vmem:[%s185 + $0x1f8] sm:$0xff]
      %v257 = vld [vmem:[%s185 + $0x200] sm:$0xff]
      %v258 = vld [vmem:[%s185 + $0x208] sm:$0xff]
      %v259 = vld [vmem:[%s185 + $0x210] sm:$0xff]
      %v260 = vld [vmem:[%s185 + $0x218] sm:$0xff]
      %v261 = vld [vmem:[%s185 + $0x220] sm:$0xff]
      %v262 = vld [vmem:[%s185 + $0x228] sm:$0xff]
      %v263 = vld [vmem:[%s185 + $0x230] sm:$0xff]
      %v264 = vld [vmem:[%s185 + $0x238] sm:$0xff]
      %v265 = vld [vmem:[%s185 + $0x240] sm:$0xff]
      %v266 = vld [vmem:[%s185 + $0x248] sm:$0xff]
      %v267 = vld [vmem:[%s185 + $0x250] sm:$0xff]
      %v268 = vld [vmem:[%s185 + $0x258] sm:$0xff]
      %v269 = vld [vmem:[%s185 + $0x260] sm:$0xff]
      %v270 = vld [vmem:[%s185 + $0x268] sm:$0xff]
      %v271 = vld [vmem:[%s185 + $0x270] sm:$0xff]
      %v272 = vld [vmem:[%s185 + $0x278] sm:$0xff]
      %v273 = vld [vmem:[%s185 + $0x280] sm:$0xff]
      %v274 = vld [vmem:[%s185 + $0x288] sm:$0xff]
      %v275 = vld [vmem:[%s185 + $0x290] sm:$0xff]
      %v276 = vld [vmem:[%s185 + $0x298] sm:$0xff]
      %v277 = vld [vmem:[%s185 + $0x2a0] sm:$0xff]
      %v278 = vld [vmem:[%s185 + $0x2a8] sm:$0xff]
      %v279 = vld [vmem:[%s185 + $0x2b0] sm:$0xff]
      %v280 = vld [vmem:[%s185 + $0x2b8] sm:$0xff]
      %v281 = vld [vmem:[%s185 + $0x2c0] sm:$0xff]
      %v282 = vld [vmem:[%s185 + $0x2c8] sm:$0xff]
      %v283 = vld [vmem:[%s185 + $0x2d0] sm:$0xff]
      %v284 = vld [vmem:[%s185 + $0x2d8] sm:$0xff]
      %v285 = vld [vmem:[%s185 + $0x2e0] sm:$0xff]
      %v286 = vld [vmem:[%s185 + $0x2e8] sm:$0xff]
      %v287 = vld [vmem:[%s185 + $0x2f0] sm:$0xff]
      %v288 = vld [vmem:[%s185 + $0x2f8] sm:$0xff]
      %v289 = vld [vmem:[%s185 + $0x300] sm:$0xff]
      %v290 = vld [vmem:[%s185 + $0x308] sm:$0xff]
      %v291 = vld [vmem:[%s185 + $0x310] sm:$0xff]
      %v292 = vld [vmem:[%s185 + $0x318] sm:$0xff]
      %v293 = vld [vmem:[%s185 + $0x320] sm:$0xff]
      %v294 = vld [vmem:[%s185 + $0x328] sm:$0xff]
      %v295 = vld [vmem:[%s185 + $0x330] sm:$0xff]
      %v296 = vld [vmem:[%s185 + $0x338] sm:$0xff]
      %v297 = vld [vmem:[%s185 + $0x340] sm:$0xff]
      %v298 = vld [vmem:[%s185 + $0x348] sm:$0xff]
      %v299 = vld [vmem:[%s185 + $0x350] sm:$0xff]
      %v300 = vld [vmem:[%s185 + $0x358] sm:$0xff]
      %v301 = vld [vmem:[%s185 + $0x360] sm:$0xff]
      %v302 = vld [vmem:[%s185 + $0x368] sm:$0xff]
      %v303 = vld [vmem:[%s185 + $0x370] sm:$0xff]
      %v304 = vld [vmem:[%s185 + $0x378] sm:$0xff]
      %v305 = vld [vmem:[%s185 + $0x380] sm:$0xff]
      %v306 = vld [vmem:[%s185 + $0x388] sm:$0xff]
      %v307 = vld [vmem:[%s185 + $0x390] sm:$0xff]
      %v308 = vld [vmem:[%s185 + $0x398] sm:$0xff]
      %v309 = vld [vmem:[%s185 + $0x3a0] sm:$0xff]
      %v310 = vld [vmem:[%s185 + $0x3a8] sm:$0xff]
      %v311 = vld [vmem:[%s185 + $0x3b0] sm:$0xff]
      %v312 = vld [vmem:[%s185 + $0x3b8] sm:$0xff]
      %v313 = vld [vmem:[%s185 + $0x3c0] sm:$0xff]
      %v314 = vld [vmem:[%s185 + $0x3c8] sm:$0xff]
      %v315 = vld [vmem:[%s185 + $0x3d0] sm:$0xff]
      %v316 = vld [vmem:[%s185 + $0x3d8] sm:$0xff]
      %v317 = vld [vmem:[%s185 + $0x3e0] sm:$0xff]
      %v318 = vld [vmem:[%s185 + $0x3e8] sm:$0xff]
      %v319 = vld [vmem:[%s185 + $0x3f0] sm:$0xff]
      %v320 = vld [vmem:[%s185 + $0x3f8] sm:$0xff]
      %v321 = vld [vmem:[%s2] sm:$0xff]
      %v322 = vld [vmem:[%s2 + $0x8] sm:$0xff]
      %324 = vset.pattern.permute.xlu0 0
      %325 = vperm.xlu0 %324, %v321
      %v326 = vpop.permute.xlu0 %325
      %329 = vset.pattern.permute.xlu0 0
      %330 = vperm.xlu0 %329, %v322
      %v331 = vpop.permute.xlu0 %330
      %v335 = vunpack.c.l.b16 %v191
      %v336 = vunpack.c.h.b16 %v191
      %v337 = vunpack.c.l.b16 %v192
      %v338 = vunpack.c.h.b16 %v192
      %v339 = vpack.c.b16 %v337, %v335
      %v340 = vpack.c.b16 %v338, %v336
      %v471 = vunpack.c.l.b16 %v193
      %v472 = vunpack.c.h.b16 %v193
      %v473 = vunpack.c.l.b16 %v194
      %v474 = vunpack.c.h.b16 %v194
      %v475 = vunpack.c.l.b16 %v195
      %v476 = vunpack.c.h.b16 %v195
      %v477 = vunpack.c.l.b16 %v196
      %v478 = vunpack.c.h.b16 %v196
      %v479 = vunpack.c.l.b16 %v197
      %v480 = vunpack.c.h.b16 %v197
      %v481 = vunpack.c.l.b16 %v198
      %v482 = vunpack.c.h.b16 %v198
      %v483 = vunpack.c.l.b16 %v199
      %v484 = vunpack.c.h.b16 %v199
      %v485 = vunpack.c.l.b16 %v200
      %v486 = vunpack.c.h.b16 %v200
      %v487 = vunpack.c.l.b16 %v201
      %v488 = vunpack.c.h.b16 %v201
      %v489 = vunpack.c.l.b16 %v202
      %v490 = vunpack.c.h.b16 %v202
      %v491 = vunpack.c.l.b16 %v203
      %v492 = vunpack.c.h.b16 %v203
      %v493 = vunpack.c.l.b16 %v204
      %v494 = vunpack.c.h.b16 %v204
      %v495 = vunpack.c.l.b16 %v205
      %v496 = vunpack.c.h.b16 %v205
      %v497 = vunpack.c.l.b16 %v206
      %v498 = vunpack.c.h.b16 %v206
      %v499 = vunpack.c.l.b16 %v207
      %v500 = vunpack.c.h.b16 %v207
      %v501 = vunpack.c.l.b16 %v208
      %v502 = vunpack.c.h.b16 %v208
      %v503 = vunpack.c.l.b16 %v209
      %v504 = vunpack.c.h.b16 %v209
      %v505 = vunpack.c.l.b16 %v210
      %v506 = vunpack.c.h.b16 %v210
      %v507 = vunpack.c.l.b16 %v211
      %v508 = vunpack.c.h.b16 %v211
      %v509 = vunpack.c.l.b16 %v212
      %v510 = vunpack.c.h.b16 %v212
      %v511 = vunpack.c.l.b16 %v213
      %v512 = vunpack.c.h.b16 %v213
      %v513 = vunpack.c.l.b16 %v214
      %v514 = vunpack.c.h.b16 %v214
      %v515 = vunpack.c.l.b16 %v215
      %v516 = vunpack.c.h.b16 %v215
      %v517 = vunpack.c.l.b16 %v216
      %v518 = vunpack.c.h.b16 %v216
      %v519 = vunpack.c.l.b16 %v217
      %v520 = vunpack.c.h.b16 %v217
      %v521 = vunpack.c.l.b16 %v218
      %v522 = vunpack.c.h.b16 %v218
      %v523 = vunpack.c.l.b16 %v219
      %v524 = vunpack.c.h.b16 %v219
      %v525 = vunpack.c.l.b16 %v220
      %v526 = vunpack.c.h.b16 %v220
      %v527 = vunpack.c.l.b16 %v221
      %v528 = vunpack.c.h.b16 %v221
      %v529 = vunpack.c.l.b16 %v222
      %v530 = vunpack.c.h.b16 %v222
      %v531 = vunpack.c.l.b16 %v223
      %v532 = vunpack.c.h.b16 %v223
      %v533 = vunpack.c.l.b16 %v224
      %v534 = vunpack.c.h.b16 %v224
      %v535 = vunpack.c.l.b16 %v225
      %v536 = vunpack.c.h.b16 %v225
      %v537 = vunpack.c.l.b16 %v226
      %v538 = vunpack.c.h.b16 %v226
      %v539 = vunpack.c.l.b16 %v227
      %v540 = vunpack.c.h.b16 %v227
      %v541 = vunpack.c.l.b16 %v228
      %v542 = vunpack.c.h.b16 %v228
      %v543 = vunpack.c.l.b16 %v229
      %v544 = vunpack.c.h.b16 %v229
      %v545 = vunpack.c.l.b16 %v230
      %v546 = vunpack.c.h.b16 %v230
      %v547 = vunpack.c.l.b16 %v231
      %v548 = vunpack.c.h.b16 %v231
      %v549 = vunpack.c.l.b16 %v232
      %v550 = vunpack.c.h.b16 %v232
      %v551 = vunpack.c.l.b16 %v233
      %v552 = vunpack.c.h.b16 %v233
      %v553 = vunpack.c.l.b16 %v234
      %v554 = vunpack.c.h.b16 %v234
      %v555 = vunpack.c.l.b16 %v235
      %v556 = vunpack.c.h.b16 %v235
      %v557 = vunpack.c.l.b16 %v236
      %v558 = vunpack.c.h.b16 %v236
      %v559 = vunpack.c.l.b16 %v237
      %v560 = vunpack.c.h.b16 %v237
      %v561 = vunpack.c.l.b16 %v238
      %v562 = vunpack.c.h.b16 %v238
      %v563 = vunpack.c.l.b16 %v239
      %v564 = vunpack.c.h.b16 %v239
      %v565 = vunpack.c.l.b16 %v240
      %v566 = vunpack.c.h.b16 %v240
      %v567 = vunpack.c.l.b16 %v241
      %v568 = vunpack.c.h.b16 %v241
      %v569 = vunpack.c.l.b16 %v242
      %v570 = vunpack.c.h.b16 %v242
      %v571 = vunpack.c.l.b16 %v243
      %v572 = vunpack.c.h.b16 %v243
      %v573 = vunpack.c.l.b16 %v244
      %v574 = vunpack.c.h.b16 %v244
      %v575 = vunpack.c.l.b16 %v245
      %v576 = vunpack.c.h.b16 %v245
      %v577 = vunpack.c.l.b16 %v246
      %v578 = vunpack.c.h.b16 %v246
      %v579 = vunpack.c.l.b16 %v247
      %v580 = vunpack.c.h.b16 %v247
      %v581 = vunpack.c.l.b16 %v248
      %v582 = vunpack.c.h.b16 %v248
      %v583 = vunpack.c.l.b16 %v249
      %v584 = vunpack.c.h.b16 %v249
      %v585 = vunpack.c.l.b16 %v250
      %v586 = vunpack.c.h.b16 %v250
      %v587 = vunpack.c.l.b16 %v251
      %v588 = vunpack.c.h.b16 %v251
      %v589 = vunpack.c.l.b16 %v252
      %v590 = vunpack.c.h.b16 %v252
      %v591 = vunpack.c.l.b16 %v253
      %v592 = vunpack.c.h.b16 %v253
      %v593 = vunpack.c.l.b16 %v254
      %v594 = vunpack.c.h.b16 %v254
      %v595 = vunpack.c.l.b16 %v255
      %v596 = vunpack.c.h.b16 %v255
      %v597 = vunpack.c.l.b16 %v256
      %v598 = vunpack.c.h.b16 %v256
      %v599 = vunpack.c.l.b16 %v257
      %v600 = vunpack.c.h.b16 %v257
      %v601 = vunpack.c.l.b16 %v258
      %v602 = vunpack.c.h.b16 %v258
      %v603 = vunpack.c.l.b16 %v259
      %v604 = vunpack.c.h.b16 %v259
      %v605 = vunpack.c.l.b16 %v260
      %v606 = vunpack.c.h.b16 %v260
      %v607 = vunpack.c.l.b16 %v261
      %v608 = vunpack.c.h.b16 %v261
      %v609 = vunpack.c.l.b16 %v262
      %v610 = vunpack.c.h.b16 %v262
      %v611 = vunpack.c.l.b16 %v263
      %v612 = vunpack.c.h.b16 %v263
      %v613 = vunpack.c.l.b16 %v264
      %v614 = vunpack.c.h.b16 %v264
      %v615 = vunpack.c.l.b16 %v265
      %v616 = vunpack.c.h.b16 %v265
      %v617 = vunpack.c.l.b16 %v266
      %v618 = vunpack.c.h.b16 %v266
      %v619 = vunpack.c.l.b16 %v267
      %v620 = vunpack.c.h.b16 %v267
      %v621 = vunpack.c.l.b16 %v268
      %v622 = vunpack.c.h.b16 %v268
      %v623 = vunpack.c.l.b16 %v269
      %v624 = vunpack.c.h.b16 %v269
      %v625 = vunpack.c.l.b16 %v270
      %v626 = vunpack.c.h.b16 %v270
      %v627 = vunpack.c.l.b16 %v271
      %v628 = vunpack.c.h.b16 %v271
      %v629 = vunpack.c.l.b16 %v272
      %v630 = vunpack.c.h.b16 %v272
      %v631 = vunpack.c.l.b16 %v273
      %v632 = vunpack.c.h.b16 %v273
      %v633 = vunpack.c.l.b16 %v274
      %v634 = vunpack.c.h.b16 %v274
      %v635 = vunpack.c.l.b16 %v275
      %v636 = vunpack.c.h.b16 %v275
      %v637 = vunpack.c.l.b16 %v276
      %v638 = vunpack.c.h.b16 %v276
      %v639 = vunpack.c.l.b16 %v277
      %v640 = vunpack.c.h.b16 %v277
      %v641 = vunpack.c.l.b16 %v278
      %v642 = vunpack.c.h.b16 %v278
      %v643 = vunpack.c.l.b16 %v279
      %v644 = vunpack.c.h.b16 %v279
      %v645 = vunpack.c.l.b16 %v280
      %v646 = vunpack.c.h.b16 %v280
      %v647 = vunpack.c.l.b16 %v281
      %v648 = vunpack.c.h.b16 %v281
      %v649 = vunpack.c.l.b16 %v282
      %v650 = vunpack.c.h.b16 %v282
      %v651 = vunpack.c.l.b16 %v283
      %v652 = vunpack.c.h.b16 %v283
      %v653 = vunpack.c.l.b16 %v284
      %v654 = vunpack.c.h.b16 %v284
      %v655 = vunpack.c.l.b16 %v285
      %v656 = vunpack.c.h.b16 %v285
      %v657 = vunpack.c.l.b16 %v286
      %v658 = vunpack.c.h.b16 %v286
      %v659 = vunpack.c.l.b16 %v287
      %v660 = vunpack.c.h.b16 %v287
      %v661 = vunpack.c.l.b16 %v288
      %v662 = vunpack.c.h.b16 %v288
      %v663 = vunpack.c.l.b16 %v289
      %v664 = vunpack.c.h.b16 %v289
      %v665 = vunpack.c.l.b16 %v290
      %v666 = vunpack.c.h.b16 %v290
      %v667 = vunpack.c.l.b16 %v291
      %v668 = vunpack.c.h.b16 %v291
      %v669 = vunpack.c.l.b16 %v292
      %v670 = vunpack.c.h.b16 %v292
      %v671 = vunpack.c.l.b16 %v293
      %v672 = vunpack.c.h.b16 %v293
      %v673 = vunpack.c.l.b16 %v294
      %v674 = vunpack.c.h.b16 %v294
      %v675 = vunpack.c.l.b16 %v295
      %v676 = vunpack.c.h.b16 %v295
      %v677 = vunpack.c.l.b16 %v296
      %v678 = vunpack.c.h.b16 %v296
      %v679 = vunpack.c.l.b16 %v297
      %v680 = vunpack.c.h.b16 %v297
      %v681 = vunpack.c.l.b16 %v298
      %v682 = vunpack.c.h.b16 %v298
      %v683 = vunpack.c.l.b16 %v299
      %v684 = vunpack.c.h.b16 %v299
      %v685 = vunpack.c.l.b16 %v300
      %v686 = vunpack.c.h.b16 %v300
      %v687 = vunpack.c.l.b16 %v301
      %v688 = vunpack.c.h.b16 %v301
      %v689 = vunpack.c.l.b16 %v302
      %v690 = vunpack.c.h.b16 %v302
      %v691 = vunpack.c.l.b16 %v303
      %v692 = vunpack.c.h.b16 %v303
      %v693 = vunpack.c.l.b16 %v304
      %v694 = vunpack.c.h.b16 %v304
      %v695 = vunpack.c.l.b16 %v305
      %v696 = vunpack.c.h.b16 %v305
      %v697 = vunpack.c.l.b16 %v306
      %v698 = vunpack.c.h.b16 %v306
      %v699 = vunpack.c.l.b16 %v307
      %v700 = vunpack.c.h.b16 %v307
      %v701 = vunpack.c.l.b16 %v308
      %v702 = vunpack.c.h.b16 %v308
      %v703 = vunpack.c.l.b16 %v309
      %v704 = vunpack.c.h.b16 %v309
      %v705 = vunpack.c.l.b16 %v310
      %v706 = vunpack.c.h.b16 %v310
      %v707 = vunpack.c.l.b16 %v311
      %v708 = vunpack.c.h.b16 %v311
      %v709 = vunpack.c.l.b16 %v312
      %v710 = vunpack.c.h.b16 %v312
      %v711 = vunpack.c.l.b16 %v313
      %v712 = vunpack.c.h.b16 %v313
      %v713 = vunpack.c.l.b16 %v314
      %v714 = vunpack.c.h.b16 %v314
      %v715 = vunpack.c.l.b16 %v315
      %v716 = vunpack.c.h.b16 %v315
      %v717 = vunpack.c.l.b16 %v316
      %v718 = vunpack.c.h.b16 %v316
      %v719 = vunpack.c.l.b16 %v317
      %v720 = vunpack.c.h.b16 %v317
      %v721 = vunpack.c.l.b16 %v318
      %v722 = vunpack.c.h.b16 %v318
      %v723 = vunpack.c.l.b16 %v319
      %v724 = vunpack.c.h.b16 %v319
      %v725 = vunpack.c.l.b16 %v320
      %v726 = vunpack.c.h.b16 %v320
      %v727 = vpack.c.b16 %v479, %v471
      %v728 = vpack.c.b16 %v480, %v472
      %v729 = vpack.c.b16 %v481, %v473
      %v730 = vpack.c.b16 %v482, %v474
      %v731 = vpack.c.b16 %v483, %v475
      %v732 = vpack.c.b16 %v484, %v476
      %v733 = vpack.c.b16 %v485, %v477
      %v734 = vpack.c.b16 %v486, %v478
      %v735 = vpack.c.b16 %v495, %v487
      %v736 = vpack.c.b16 %v496, %v488
      %v737 = vpack.c.b16 %v497, %v489
      %v738 = vpack.c.b16 %v498, %v490
      %v739 = vpack.c.b16 %v499, %v491
      %v740 = vpack.c.b16 %v500, %v492
      %v741 = vpack.c.b16 %v501, %v493
      %v742 = vpack.c.b16 %v502, %v494
      %v743 = vpack.c.b16 %v511, %v503
      %v744 = vpack.c.b16 %v512, %v504
      %v745 = vpack.c.b16 %v513, %v505
      %v746 = vpack.c.b16 %v514, %v506
      %v747 = vpack.c.b16 %v515, %v507
      %v748 = vpack.c.b16 %v516, %v508
      %v749 = vpack.c.b16 %v517, %v509
      %v750 = vpack.c.b16 %v518, %v510
      %v751 = vpack.c.b16 %v527, %v519
      %v752 = vpack.c.b16 %v528, %v520
      %v753 = vpack.c.b16 %v529, %v521
      %v754 = vpack.c.b16 %v530, %v522
      %v755 = vpack.c.b16 %v531, %v523
      %v756 = vpack.c.b16 %v532, %v524
      %v757 = vpack.c.b16 %v533, %v525
      %v758 = vpack.c.b16 %v534, %v526
      %v759 = vpack.c.b16 %v543, %v535
      %v760 = vpack.c.b16 %v544, %v536
      %v761 = vpack.c.b16 %v545, %v537
      %v762 = vpack.c.b16 %v546, %v538
      %v763 = vpack.c.b16 %v547, %v539
      %v764 = vpack.c.b16 %v548, %v540
      %v765 = vpack.c.b16 %v549, %v541
      %v766 = vpack.c.b16 %v550, %v542
      %v767 = vpack.c.b16 %v559, %v551
      %v768 = vpack.c.b16 %v560, %v552
      %v769 = vpack.c.b16 %v561, %v553
      %v770 = vpack.c.b16 %v562, %v554
      %v771 = vpack.c.b16 %v563, %v555
      %v772 = vpack.c.b16 %v564, %v556
      %v773 = vpack.c.b16 %v565, %v557
      %v774 = vpack.c.b16 %v566, %v558
      %v775 = vpack.c.b16 %v575, %v567
      %v776 = vpack.c.b16 %v576, %v568
      %v777 = vpack.c.b16 %v577, %v569
      %v778 = vpack.c.b16 %v578, %v570
      %v779 = vpack.c.b16 %v579, %v571
      %v780 = vpack.c.b16 %v580, %v572
      %v781 = vpack.c.b16 %v581, %v573
      %v782 = vpack.c.b16 %v582, %v574
      %v783 = vpack.c.b16 %v591, %v583
      %v784 = vpack.c.b16 %v592, %v584
      %v785 = vpack.c.b16 %v593, %v585
      %v786 = vpack.c.b16 %v594, %v586
      %v787 = vpack.c.b16 %v595, %v587
      %v788 = vpack.c.b16 %v596, %v588
      %v789 = vpack.c.b16 %v597, %v589
      %v790 = vpack.c.b16 %v598, %v590
      %v791 = vpack.c.b16 %v607, %v599
      %v792 = vpack.c.b16 %v608, %v600
      %v793 = vpack.c.b16 %v609, %v601
      %v794 = vpack.c.b16 %v610, %v602
      %v795 = vpack.c.b16 %v611, %v603
      %v796 = vpack.c.b16 %v612, %v604
      %v797 = vpack.c.b16 %v613, %v605
      %v798 = vpack.c.b16 %v614, %v606
      %v799 = vpack.c.b16 %v623, %v615
      %v800 = vpack.c.b16 %v624, %v616
      %v801 = vpack.c.b16 %v625, %v617
      %v802 = vpack.c.b16 %v626, %v618
      %v803 = vpack.c.b16 %v627, %v619
      %v804 = vpack.c.b16 %v628, %v620
      %v805 = vpack.c.b16 %v629, %v621
      %v806 = vpack.c.b16 %v630, %v622
      %v807 = vpack.c.b16 %v639, %v631
      %v808 = vpack.c.b16 %v640, %v632
      %v809 = vpack.c.b16 %v641, %v633
      %v810 = vpack.c.b16 %v642, %v634
      %v811 = vpack.c.b16 %v643, %v635
      %v812 = vpack.c.b16 %v644, %v636
      %v813 = vpack.c.b16 %v645, %v637
      %v814 = vpack.c.b16 %v646, %v638
      %v815 = vpack.c.b16 %v655, %v647
      %v816 = vpack.c.b16 %v656, %v648
      %v817 = vpack.c.b16 %v657, %v649
      %v818 = vpack.c.b16 %v658, %v650
      %v819 = vpack.c.b16 %v659, %v651
      %v820 = vpack.c.b16 %v660, %v652
      %v821 = vpack.c.b16 %v661, %v653
      %v822 = vpack.c.b16 %v662, %v654
      %v823 = vpack.c.b16 %v671, %v663
      %v824 = vpack.c.b16 %v672, %v664
      %v825 = vpack.c.b16 %v673, %v665
      %v826 = vpack.c.b16 %v674, %v666
      %v827 = vpack.c.b16 %v675, %v667
      %v828 = vpack.c.b16 %v676, %v668
      %v829 = vpack.c.b16 %v677, %v669
      %v830 = vpack.c.b16 %v678, %v670
      %v831 = vpack.c.b16 %v687, %v679
      %v832 = vpack.c.b16 %v688, %v680
      %v833 = vpack.c.b16 %v689, %v681
      %v834 = vpack.c.b16 %v690, %v682
      %v835 = vpack.c.b16 %v691, %v683
      %v836 = vpack.c.b16 %v692, %v684
      %v837 = vpack.c.b16 %v693, %v685
      %v838 = vpack.c.b16 %v694, %v686
      %v839 = vpack.c.b16 %v703, %v695
      %v840 = vpack.c.b16 %v704, %v696
      %v841 = vpack.c.b16 %v705, %v697
      %v842 = vpack.c.b16 %v706, %v698
      %v843 = vpack.c.b16 %v707, %v699
      %v844 = vpack.c.b16 %v708, %v700
      %v845 = vpack.c.b16 %v709, %v701
      %v846 = vpack.c.b16 %v710, %v702
      %v847 = vpack.c.b16 %v719, %v711
      %v848 = vpack.c.b16 %v720, %v712
      %v849 = vpack.c.b16 %v721, %v713
      %v850 = vpack.c.b16 %v722, %v714
      %v851 = vpack.c.b16 %v723, %v715
      %v852 = vpack.c.b16 %v724, %v716
      %v853 = vpack.c.b16 %v725, %v717
      %v854 = vpack.c.b16 %v726, %v718
      %983 = vmatprep.subr.bf16.mxu0 %v784
      %984 = vmatpush1.bf16.msra.mxu0 %v783
      %985 = vmatprep.subr.bf16.mxu0 %v776
      %986 = vmatpush1.bf16.msra.mxu0 %v775
      %987 = vmatprep.subr.bf16.mxu0 %v768
      %988 = vmatpush1.bf16.msra.mxu0 %v767
      %989 = vmatprep.subr.bf16.mxu0 %v760
      %990 = vmatpush1.bf16.msra.mxu0 %v759
      %991 = vmatprep.subr.bf16.mxu0 %v752
      %992 = vmatpush1.bf16.msra.mxu0 %v751
      %993 = vmatprep.subr.bf16.mxu0 %v744
      %994 = vmatpush1.bf16.msra.mxu0 %v743
      %995 = vmatprep.subr.bf16.mxu0 %v736
      %996 = vmatpush1.bf16.msra.mxu0 %v735
      %997 = vmatprep.subr.bf16.mxu0 %v728
      %998 = vmatpush1.bf16.msra.mxu0 %v727
      %999 = vmatprep.subr.bf16.mxu0 %v848
      %1000 = vmatpush2.bf16.msra.mxu0 %v847
      %1001 = vmatprep.subr.bf16.mxu0 %v840
      %1002 = vmatpush2.bf16.msra.mxu0 %v839
      %1003 = vmatprep.subr.bf16.mxu0 %v832
      %1004 = vmatpush2.bf16.msra.mxu0 %v831
      %1005 = vmatprep.subr.bf16.mxu0 %v824
      %1006 = vmatpush2.bf16.msra.mxu0 %v823
      %1007 = vmatprep.subr.bf16.mxu0 %v816
      %1008 = vmatpush2.bf16.msra.mxu0 %v815
      %1009 = vmatprep.subr.bf16.mxu0 %v808
      %1010 = vmatpush2.bf16.msra.mxu0 %v807
      %1011 = vmatprep.subr.bf16.mxu0 %v800
      %1012 = vmatpush2.bf16.msra.mxu0 %v799
      %1013 = vmatprep.subr.bf16.mxu0 %v792
      %1014 = vmatpush2.bf16.msra.mxu0 %v791
      %1015 = vmatprep.mubr.bf16.mxu0 %v340
      %1016 = vmatmul.mubr.bf16.gmra.mxu0 %v339
      %v1017 = vpop.f32.mrf.mxu0
      %v1018 = vadd.f32 %v326, %v1017
      %v1019 = vpop.f32.mrf.mxu0
      %v1020 = vadd.f32 %v326, %v1019
      %v1021 = vpop.f32.mrf.mxu0
      %v1022 = vadd.f32 %v331, %v1021
      %v1023 = vpop.f32.mrf.mxu0
      %v1024 = vadd.f32 %v331, %v1023
      %1025 = vdwg.mxu0
      %1026 = vmatprep.subr.bf16.mxu0 %v786
      %1027 = vmatpush1.bf16.msra.mxu0 %v785
      %1028 = vmatprep.subr.bf16.mxu0 %v778
      %1029 = vmatpush1.bf16.msra.mxu0 %v777
      %1030 = vmatprep.subr.bf16.mxu0 %v770
      %1031 = vmatpush1.bf16.msra.mxu0 %v769
      %1032 = vmatprep.subr.bf16.mxu0 %v762
      %1033 = vmatpush1.bf16.msra.mxu0 %v761
      %1034 = vmatprep.subr.bf16.mxu0 %v754
      %1035 = vmatpush1.bf16.msra.mxu0 %v753
      %1036 = vmatprep.subr.bf16.mxu0 %v746
      %1037 = vmatpush1.bf16.msra.mxu0 %v745
      %1038 = vmatprep.subr.bf16.mxu0 %v738
      %1039 = vmatpush1.bf16.msra.mxu0 %v737
      %1040 = vmatprep.subr.bf16.mxu0 %v730
      %1041 = vmatpush1.bf16.msra.mxu0 %v729
      %1042 = vmatprep.subr.bf16.mxu0 %v850
      %1043 = vmatpush2.bf16.msra.mxu0 %v849
      %1044 = vmatprep.subr.bf16.mxu0 %v842
      %1045 = vmatpush2.bf16.msra.mxu0 %v841
      %1046 = vmatprep.subr.bf16.mxu0 %v834
      %1047 = vmatpush2.bf16.msra.mxu0 %v833
      %1048 = vmatprep.subr.bf16.mxu0 %v826
      %1049 = vmatpush2.bf16.msra.mxu0 %v825
      %1050 = vmatprep.subr.bf16.mxu0 %v818
      %1051 = vmatpush2.bf16.msra.mxu0 %v817
      %1052 = vmatprep.subr.bf16.mxu0 %v810
      %1053 = vmatpush2.bf16.msra.mxu0 %v809
      %1054 = vmatprep.subr.bf16.mxu0 %v802
      %1055 = vmatpush2.bf16.msra.mxu0 %v801
      %1056 = vmatprep.subr.bf16.mxu0 %v794
      %1057 = vmatpush2.bf16.msra.mxu0 %v793
      %1058 = vmatprep.mubr.bf16.mxu0 %v340
      %1059 = vmatmul.mubr.bf16.gmra.mxu0 %v339
      %v1060 = vpop.f32.mrf.mxu0
      %v1061 = vadd.f32 %v326, %v1060
      %v1062 = vpop.f32.mrf.mxu0
      %v1063 = vadd.f32 %v326, %v1062
      %v1064 = vpop.f32.mrf.mxu0
      %v1065 = vadd.f32 %v331, %v1064
      %v1066 = vpop.f32.mrf.mxu0
      %v1067 = vadd.f32 %v331, %v1066
      %1068 = vdwg.mxu0
      %1069 = vmatprep.subr.bf16.mxu0 %v788
      %1070 = vmatpush1.bf16.msra.mxu0 %v787
      %1071 = vmatprep.subr.bf16.mxu0 %v780
      %1072 = vmatpush1.bf16.msra.mxu0 %v779
      %1073 = vmatprep.subr.bf16.mxu0 %v772
      %1074 = vmatpush1.bf16.msra.mxu0 %v771
      %1075 = vmatprep.subr.bf16.mxu0 %v764
      %1076 = vmatpush1.bf16.msra.mxu0 %v763
      %1077 = vmatprep.subr.bf16.mxu0 %v756
      %1078 = vmatpush1.bf16.msra.mxu0 %v755
      %1079 = vmatprep.subr.bf16.mxu0 %v748
      %1080 = vmatpush1.bf16.msra.mxu0 %v747
      %1081 = vmatprep.subr.bf16.mxu0 %v740
      %1082 = vmatpush1.bf16.msra.mxu0 %v739
      %1083 = vmatprep.subr.bf16.mxu0 %v732
      %1084 = vmatpush1.bf16.msra.mxu0 %v731
      %1085 = vmatprep.subr.bf16.mxu0 %v852
      %1086 = vmatpush2.bf16.msra.mxu0 %v851
      %1087 = vmatprep.subr.bf16.mxu0 %v844
      %1088 = vmatpush2.bf16.msra.mxu0 %v843
      %1089 = vmatprep.subr.bf16.mxu0 %v836
      %1090 = vmatpush2.bf16.msra.mxu0 %v835
      %1091 = vmatprep.subr.bf16.mxu0 %v828
      %1092 = vmatpush2.bf16.msra.mxu0 %v827
      %1093 = vmatprep.subr.bf16.mxu0 %v820
      %1094 = vmatpush2.bf16.msra.mxu0 %v819
      %1095 = vmatprep.subr.bf16.mxu0 %v812
      %1096 = vmatpush2.bf16.msra.mxu0 %v811
      %1097 = vmatprep.subr.bf16.mxu0 %v804
      %1098 = vmatpush2.bf16.msra.mxu0 %v803
      %1099 = vmatprep.subr.bf16.mxu0 %v796
      %1100 = vmatpush2.bf16.msra.mxu0 %v795
      %1101 = vmatprep.mubr.bf16.mxu0 %v340
      %1102 = vmatmul.mubr.bf16.gmra.mxu0 %v339
      %v1103 = vpop.f32.mrf.mxu0
      %v1104 = vadd.f32 %v326, %v1103
      %v1105 = vpop.f32.mrf.mxu0
      %v1106 = vadd.f32 %v326, %v1105
      %v1107 = vpop.f32.mrf.mxu0
      %v1108 = vadd.f32 %v331, %v1107
      %v1109 = vpop.f32.mrf.mxu0
      %v1110 = vadd.f32 %v331, %v1109
      %1111 = vdwg.mxu0
      %1112 = vmatprep.subr.bf16.mxu0 %v790
      %1113 = vmatpush1.bf16.msra.mxu0 %v789
      %1114 = vmatprep.subr.bf16.mxu0 %v782
      %1115 = vmatpush1.bf16.msra.mxu0 %v781
      %1116 = vmatprep.subr.bf16.mxu0 %v774
      %1117 = vmatpush1.bf16.msra.mxu0 %v773
      %1118 = vmatprep.subr.bf16.mxu0 %v766
      %1119 = vmatpush1.bf16.msra.mxu0 %v765
      %1120 = vmatprep.subr.bf16.mxu0 %v758
      %1121 = vmatpush1.bf16.msra.mxu0 %v757
      %1122 = vmatprep.subr.bf16.mxu0 %v750
      %1123 = vmatpush1.bf16.msra.mxu0 %v749
      %1124 = vmatprep.subr.bf16.mxu0 %v742
      %1125 = vmatpush1.bf16.msra.mxu0 %v741
      %1126 = vmatprep.subr.bf16.mxu0 %v734
      %1127 = vmatpush1.bf16.msra.mxu0 %v733
      %1128 = vmatprep.subr.bf16.mxu0 %v854
      %1129 = vmatpush2.bf16.msra.mxu0 %v853
      %1130 = vmatprep.subr.bf16.mxu0 %v846
      %1131 = vmatpush2.bf16.msra.mxu0 %v845
      %1132 = vmatprep.subr.bf16.mxu0 %v838
      %1133 = vmatpush2.bf16.msra.mxu0 %v837
      %1134 = vmatprep.subr.bf16.mxu0 %v830
      %1135 = vmatpush2.bf16.msra.mxu0 %v829
      %1136 = vmatprep.subr.bf16.mxu0 %v822
      %1137 = vmatpush2.bf16.msra.mxu0 %v821
      %1138 = vmatprep.subr.bf16.mxu0 %v814
      %1139 = vmatpush2.bf16.msra.mxu0 %v813
      %1140 = vmatprep.subr.bf16.mxu0 %v806
      %1141 = vmatpush2.bf16.msra.mxu0 %v805
      %1142 = vmatprep.subr.bf16.mxu0 %v798
      %1143 = vmatpush2.bf16.msra.mxu0 %v797
      %1144 = vmatprep.mubr.bf16.mxu0 %v340
      %1145 = vmatmul.mubr.bf16.gmra.mxu0 %v339
      %v1146 = vpop.f32.mrf.mxu0
      %v1147 = vadd.f32 %v326, %v1146
      %v1148 = vpop.f32.mrf.mxu0
      %v1149 = vadd.f32 %v326, %v1148
      %v1150 = vpop.f32.mrf.mxu0
      %v1151 = vadd.f32 %v331, %v1150
      %v1152 = vpop.f32.mrf.mxu0
      %v1153 = vadd.f32 %v331, %v1152
      %1154 = vdwg.mxu0
      %1155 = vst [vmem:[%s190] sm:$0xff] %v1018
      %1156 = vst [vmem:[%s190 + $0x8] sm:$0xff] %v1020
      %1157 = vst [vmem:[%s190 + $0x10] sm:$0xff] %v1061
      %1158 = vst [vmem:[%s190 + $0x18] sm:$0xff] %v1063
      %1159 = vst [vmem:[%s190 + $0x20] sm:$0xff] %v1104
      %1160 = vst [vmem:[%s190 + $0x28] sm:$0xff] %v1106
      %1161 = vst [vmem:[%s190 + $0x30] sm:$0xff] %v1147
      %1162 = vst [vmem:[%s190 + $0x38] sm:$0xff] %v1149
      %1163 = vst [vmem:[%s190 + $0x40] sm:$0xff] %v1022
      %1164 = vst [vmem:[%s190 + $0x48] sm:$0xff] %v1024
      %1165 = vst [vmem:[%s190 + $0x50] sm:$0xff] %v1065
      %1166 = vst [vmem:[%s190 + $0x58] sm:$0xff] %v1067
      %1167 = vst [vmem:[%s190 + $0x60] sm:$0xff] %v1108
      %1168 = vst [vmem:[%s190 + $0x68] sm:$0xff] %v1110
      %1169 = vst [vmem:[%s190 + $0x70] sm:$0xff] %v1151
      %1170 = vst [vmem:[%s190 + $0x78] sm:$0xff] %v1153
      %p1171 = scmp.lt.s32.totalorder %s14, 7
      %s1172 = scalar_select %p1171, %s14, 7
      %s1173 = smul.addr %s1172, 16
      %s1174 = smul.addr %s1173, 8
      %s1175 = scalar_lea.vmem %s3, %s1174
      // Predicated region
      $region33: #{vnet_forward.13} parent=31 // pred_check
        %p1176 = pneg %p105
      $region34: #{vnet_forward.13} parent=31 // pred_check_branch
        %1178 = sbr.rel (%p1176) target = $region36
      $region35: #{vnet_forward.13} parent=31 // pred_region
        _
      $region36: #{vnet_forward.13} parent=31 // pred_fallthru
        _
    $region32: #{vnet_forward.13} parent=5 // pred_fallthru
      _
    %p1179 = scmp.le.s32.totalorder 2, %s9
    // Predicated region
    $region37: #{vnet_forward.13} parent=5 // pred_check
      %p1180 = pneg %p1179
    $region38: #{vnet_forward.13} parent=5 // pred_check_branch
      %1182 = sbr.rel (%p1180) target = $region40
    $region39: #{vnet_forward.13} parent=5 // pred_region
      %s1183 = ssub.s32 %s9, 2
      // Predicated region
      $region41: #{vnet_forward.13} parent=39 // pred_check
        %p1184 = pneg %p111
      $region42: #{vnet_forward.13} parent=39 // pred_check_branch
        %1186 = sbr.rel (%p1184) target = $region44
      $region43: #{vnet_forward.13} parent=39 // pred_region
        %p1187 = scmp.lt.s32.totalorder %s15, 7
        %s1188 = scalar_select %p1187, %s15, 7
        %s1189 = smul.addr %s1188, 16
        %s1190 = smul.addr %s1189, 8
        %s1191 = scalar_lea.vmem %s3, %s1190
      $region44: #{vnet_forward.13} parent=39 // pred_fallthru
        _
    $region40: #{vnet_forward.13} parent=5 // pred_fallthru
      _
  $region6: #{vnet_forward.13} parent=0 // loop_footer
    %s13 = sadd.s32 1, %s9
  $region7: #{vnet_forward.13} parent=0 // loop_footer_branch
    %8 = sbr.rel target = $region3
  $region8: #{vnet_forward.13} parent=0 // loop_exit
    _

</llo_original>
